<compile_context>
chip_gen: v7x
topology: tpu7x:2x2x1
jax: 0.10.0
libtpu: 0.0.40
codegen_flags: <defaults>
</compile_context>

<pallas_src>
import jax
import jax.numpy as jnp
from jax import lax
from jax.experimental import pallas as pl
from jax.experimental.pallas import tpu as pltpu

HIDDEN = 768
PATCH = 32          # spatial downsample of the (stand-in) backbone: H//32, W//32
LN_EPS = 1e-5

IMAGENET_MEAN = (0.485, 0.456, 0.406)
IMAGENET_STD = (0.229, 0.224, 0.225)


# ---------------------------------------------------------------------------
# Fused kernel: per-frame patch-embedding matmul + embedding add + LayerNorm.
#   x_ref    (1, HW, P)  bf16  flattened 32x32x3 patches of one (b, t) frame
#   w_ref    (P, D)      bf16  projection weight with 1/std folded in (resident)
#   b_ref    (1, D)      f32   folded Normalize bias  (-mean @ (W/std))
#   pos_ref  (HW, D)     f32   positional embedding for patch tokens (resident)
#   len_ref  (1, 1, D)   f32   length embedding for this frame's t
#   cls_ref  (1, 1, D)   f32   pre-LayerNorm'ed cls row for this t
#   g_ref/be_ref (1, D)  f32   LayerNorm gamma / beta (resident)
#   o_ref    (1, L, D)   f32   output tokens, L = 1 + HW
# ---------------------------------------------------------------------------
def _fused_patch_embed_ln_kernel(x_ref, w_ref, b_ref, pos_ref, len_ref, cls_ref,
                                 g_ref, be_ref, o_ref):
    # MXU matmul with f32 accumulation; result stays in VMEM for the epilogue.
    f = jnp.dot(x_ref[0], w_ref[...], preferred_element_type=jnp.float32)  # (HW, D)
    f = f + b_ref[...] + pos_ref[...] + len_ref[0]                          # (HW, D)

    mu = jnp.mean(f, axis=-1, keepdims=True)
    xc = f - mu
    var = jnp.mean(xc * xc, axis=-1, keepdims=True)
    y = xc * lax.rsqrt(var + LN_EPS) * g_ref[...] + be_ref[...]

    o_ref[0, 0:1, :] = cls_ref[0]                 # cls token (precomputed LN)
    o_ref[0, 1:, :] = y.astype(o_ref.dtype)       # patch tokens


def fused_patch_embed_ln(patches, weight, bias, pos_patch, len_emb, cls_ln,
                         gamma, beta, *, T):
    """patches: (B*T, HW, P) bf16 -> tokens (B*T, 1+HW, D) f32."""
    BT, HW, P = patches.shape
    _, D = weight.shape
    L = HW + 1
    B = BT // T
    return pl.pallas_call(
        _fused_patch_embed_ln_kernel,
        out_shape=jax.ShapeDtypeStruct((BT, L, D), jnp.float32),
        grid=(B, T),
        in_specs=[
            pl.BlockSpec((1, HW, P), lambda b, t: (b * T + t, 0, 0)),
            pl.BlockSpec((P, D), lambda b, t: (0, 0)),       # weight resident
            pl.BlockSpec((1, D), lambda b, t: (0, 0)),       # bias resident
            pl.BlockSpec((HW, D), lambda b, t: (0, 0)),      # pos table resident
            pl.BlockSpec((1, 1, D), lambda b, t: (t, 0, 0)),  # len emb for t
            pl.BlockSpec((1, 1, D), lambda b, t: (t, 0, 0)),  # LN'd cls row for t
            pl.BlockSpec((1, D), lambda b, t: (0, 0)),       # gamma
            pl.BlockSpec((1, D), lambda b, t: (0, 0)),       # beta
        ],
        out_specs=pl.BlockSpec((1, L, D), lambda b, t: (b * T + t, 0, 0)),
        compiler_params=pltpu.CompilerParams(
            dimension_semantics=("parallel", "parallel"),
        ),
    )(patches, weight, bias, pos_patch, len_emb, cls_ln, gamma, beta)


# ---------------------------------------------------------------------------
# Parameter init (deterministic, mirrors EncImg.__init__ shapes).
# ---------------------------------------------------------------------------
def init_params(key, c=3):
    k_cls, k_pos, k_len, k_w = jax.random.split(key, 4)
    return {
        "emb_cls": 0.02 * jax.random.normal(k_cls, (1, 1, 1, HIDDEN), jnp.float32),
        "emb_pos": 0.02 * jax.random.normal(k_pos, (1, 1, 1 + 14 ** 2, HIDDEN), jnp.float32),
        "emb_len": 0.02 * jax.random.normal(k_len, (1, 6, 1, HIDDEN), jnp.float32),
        "ln_gamma": jnp.ones((HIDDEN,), jnp.float32),
        "ln_beta": jnp.zeros((HIDDEN,), jnp.float32),
        # stand-in for the Swin backbone: linear projection of 32x32 patches
        "patch_w": 0.02 * jax.random.normal(k_w, (c * PATCH * PATCH, HIDDEN), jnp.float32),
    }


# ---------------------------------------------------------------------------
# Full forward (glue in plain JAX, hot path in the fused Pallas kernel).
# ---------------------------------------------------------------------------
@jax.jit
def enc_img_forward(params, img):
    B, T, C, H, W = img.shape
    h, w = H // PATCH, W // PATCH
    HW = h * w
    L = 1 + HW

    # --- extract non-overlapping 32x32 patches, channel-major within a patch ---
    x = img.reshape(B, T, C, h, PATCH, w, PATCH)
    x = jnp.transpose(x, (0, 1, 3, 5, 2, 4, 6))
    patches = x.reshape(B * T, HW, C * PATCH * PATCH).astype(jnp.bfloat16)

    # fold torchvision Normalize into the projection:
    #   ((x - m) / s) @ W  ==  x @ (W / s)  -  m @ (W / s)
    mean_vec = jnp.repeat(jnp.asarray(IMAGENET_MEAN, jnp.float32), PATCH * PATCH)
    inv_std_vec = jnp.repeat(1.0 / jnp.asarray(IMAGENET_STD, jnp.float32),
                             PATCH * PATCH)
    w_eff = (params["patch_w"] * inv_std_vec[:, None]).astype(jnp.bfloat16)
    bias = jnp.dot(-mean_vec[None, :], w_eff.astype(jnp.float32),
                   precision=lax.Precision.HIGHEST)              # (1, D) f32

    pos = params["emb_pos"][0, 0, :L, :]                          # (L, D)
    len_e = params["emb_len"][0, :T, 0, :]                        # (T, D)
    gamma = params["ln_gamma"][None, :]                           # (1, D)
    beta = params["ln_beta"][None, :]                             # (1, D)
    pos_patch = pos[1:, :]                                        # (HW, D)

    # Pre-LayerNorm the batch-invariant cls rows once: (T, 1, D).
    cls_rows = params["emb_cls"][0, 0, 0][None, :] + pos[0:1, :] + len_e   # (T, D)
    mu = jnp.mean(cls_rows, axis=-1, keepdims=True)
    var = jnp.mean((cls_rows - mu) ** 2, axis=-1, keepdims=True)
    cls_ln = ((cls_rows - mu) * lax.rsqrt(var + LN_EPS) * gamma + beta)[:, None, :]

    len_emb = len_e[:, None, :]                                   # (T, 1, D)

    out = fused_patch_embed_ln(patches, w_eff, bias, pos_patch, len_emb,
                               cls_ln, gamma, beta, T=T)          # (B*T, L, D)

    f_img = out.reshape(B, T * L, HIDDEN)
    m_img = jnp.ones((B, T * L), dtype=jnp.int32)                 # torch .long() mask
    return f_img, m_img


# ---------------------------------------------------------------------------
# Pure-JAX references.
#   match_kernel_precision=True  -> same bf16 weight/patch rounding as kernel
#   match_kernel_precision=False -> original unfolded f32 math
# ---------------------------------------------------------------------------
def enc_img_reference(params, img, *, match_kernel_precision=False):
    B, T, C, H, W = img.shape
    h, w = H // PATCH, W // PATCH
    HW = h * w
    L = 1 + HW
    x = img.reshape(B, T, C, h, PATCH, w, PATCH)
    x = jnp.transpose(x, (0, 1, 3, 5, 2, 4, 6))
    patches = x.reshape(B * T * HW, C * PATCH * PATCH).astype(jnp.float32)

    mean_vec = jnp.repeat(jnp.asarray(IMAGENET_MEAN, jnp.float32), PATCH * PATCH)
    inv_std_vec = jnp.repeat(1.0 / jnp.asarray(IMAGENET_STD, jnp.float32),
                             PATCH * PATCH)
    if match_kernel_precision:
        w_eff = (params["patch_w"] * inv_std_vec[:, None]).astype(jnp.bfloat16)
        w_eff = w_eff.astype(jnp.float32)
        bias = jnp.dot(-mean_vec[None, :], w_eff, precision=lax.Precision.HIGHEST)
        xm = patches.astype(jnp.bfloat16).astype(jnp.float32)
        feats = jnp.dot(xm, w_eff, precision=lax.Precision.HIGHEST) + bias
    else:
        xn = (patches - mean_vec[None, :]) * inv_std_vec[None, :]
        feats = jnp.dot(xn, params["patch_w"], precision=lax.Precision.HIGHEST)

    f = feats.reshape(B, T, HW, HIDDEN)
    cls = jnp.broadcast_to(params["emb_cls"], (B, T, 1, HIDDEN))
    f = jnp.concatenate([cls, f], axis=2)
    f = f + params["emb_pos"][:, :, :L, :] + params["emb_len"][:, :T, :, :]
    mu = jnp.mean(f, axis=-1, keepdims=True)
    var = jnp.mean((f - mu) ** 2, axis=-1, keepdims=True)
    f = (f - mu) / jnp.sqrt(var + LN_EPS) * params["ln_gamma"] + params["ln_beta"]
    return f.reshape(B, T * L, HIDDEN), jnp.ones((B, T * L), jnp.int32)


if __name__ == "__main__":
    key = jax.random.PRNGKey(0)
    k_param, k_img = jax.random.split(key)

    B, T, C, H, W = 2, 2, 3, 64, 64          # h = w = 2, L = 5
    img = jax.random.uniform(k_img, (B, T, C, H, W), jnp.float32)
    params = init_params(k_param, c=C)

    f_img, m_img = enc_img_forward(params, img)
    f_img = jax.block_until_ready(f_img)
    m_img = jax.block_until_ready(m_img)

    L = 1 + (H // PATCH) * (W // PATCH)
    assert f_img.shape == (B, T * L, HIDDEN)
    assert m_img.shape == (B, T * L)

    # tight check: reference reproducing the kernel's bf16-operand / f32-accum path
    f_tight, m_ref = enc_img_reference(params, img, match_kernel_precision=True)
    assert jnp.allclose(f_img, f_tight, atol=2e-3, rtol=2e-3), \
        float(jnp.max(jnp.abs(f_img - f_tight)))
    # loose check: original unfolded f32 semantics (difference = bf16 rounding only)
    f_full, _ = enc_img_reference(params, img, match_kernel_precision=False)
    assert jnp.allclose(f_img, f_full, atol=5e-2, rtol=5e-2), \
        float(jnp.max(jnp.abs(f_img - f_full)))
    assert jnp.array_equal(m_img, m_ref)

    print("KERNEL_OK")
</pallas_src>

<mosaic_0001>
module attributes {stable_mosaic.version = 11 : i64} {
  func.func @_fused_patch_embed_ln_kernel(%arg0: i32, %arg1: i32, %arg2: memref<1x4x3072xbf16, #tpu.memory_space<vmem>>, %arg3: memref<3072x768xbf16, #tpu.memory_space<vmem>>, %arg4: memref<1x768xf32, #tpu.memory_space<vmem>>, %arg5: memref<4x768xf32, #tpu.memory_space<vmem>>, %arg6: memref<1x1x768xf32, #tpu.memory_space<vmem>>, %arg7: memref<1x1x768xf32, #tpu.memory_space<vmem>>, %arg8: memref<1x768xf32, #tpu.memory_space<vmem>>, %arg9: memref<1x768xf32, #tpu.memory_space<vmem>>, %arg10: memref<1x5x768xf32, #tpu.memory_space<vmem>>) attributes {dimension_semantics = [#tpu.dimension_semantics<parallel>, #tpu.dimension_semantics<parallel>], iteration_bounds = array<i64: 2, 2>, scalar_prefetch = 0 : i64, scratch_operands = 0 : i64, tpu.core_type = #tpu.core_type<tc>, window_params = [{transform_indices = @transform_0, window_bounds = array<i64: 1, 4, 3072>}, {pipeline_mode = #tpu.pipeline_mode<synchronous>, transform_indices = @transform_1, window_bounds = array<i64: 3072, 768>}, {pipeline_mode = #tpu.pipeline_mode<synchronous>, transform_indices = @transform_2, window_bounds = array<i64: 1, 768>}, {pipeline_mode = #tpu.pipeline_mode<synchronous>, transform_indices = @transform_3, window_bounds = array<i64: 4, 768>}, {transform_indices = @transform_4, window_bounds = array<i64: 1, 1, 768>}, {transform_indices = @transform_5, window_bounds = array<i64: 1, 1, 768>}, {pipeline_mode = #tpu.pipeline_mode<synchronous>, transform_indices = @transform_6, window_bounds = array<i64: 1, 768>}, {pipeline_mode = #tpu.pipeline_mode<synchronous>, transform_indices = @transform_7, window_bounds = array<i64: 1, 768>}, {transform_indices = @transform_8, window_bounds = array<i64: 1, 5, 768>}]} {
    %c0 = arith.constant 0 : index
    %c0_0 = arith.constant 0 : index
    %c0_1 = arith.constant 0 : index
    %0 = vector.load %arg2[%c0, %c0_0, %c0_1] : memref<1x4x3072xbf16, #tpu.memory_space<vmem>>, vector<1x4x3072xbf16>
    %1 = vector.shape_cast %0 : vector<1x4x3072xbf16> to vector<4x3072xbf16>
    %c0_2 = arith.constant 0 : index
    %c0_3 = arith.constant 0 : index
    %2 = vector.load %arg3[%c0_2, %c0_3] : memref<3072x768xbf16, #tpu.memory_space<vmem>>, vector<3072x768xbf16>
    %cst = arith.constant dense<0.000000e+00> : vector<4x768xf32>
    %3 = tpu.matmul %1, %2, %cst {dimension_numbers = #tpu.dot_dimension_numbers<[1], [0], [0], [1], [0, 0, 1, 1], [], []>} : vector<4x3072xbf16>, vector<3072x768xbf16>, vector<4x768xf32> -> vector<4x768xf32>
    %c0_4 = arith.constant 0 : index
    %c0_5 = arith.constant 0 : index
    %4 = vector.load %arg4[%c0_4, %c0_5] : memref<1x768xf32, #tpu.memory_space<vmem>>, vector<1x768xf32>
    %5 = vector.broadcast %4 : vector<1x768xf32> to vector<4x768xf32>
    %6 = arith.addf %3, %5 : vector<4x768xf32>
    %c0_6 = arith.constant 0 : index
    %c0_7 = arith.constant 0 : index
    %7 = vector.load %arg5[%c0_6, %c0_7] : memref<4x768xf32, #tpu.memory_space<vmem>>, vector<4x768xf32>
    %8 = arith.addf %6, %7 : vector<4x768xf32>
    %c0_8 = arith.constant 0 : index
    %c0_9 = arith.constant 0 : index
    %c0_10 = arith.constant 0 : index
    %9 = vector.load %arg6[%c0_8, %c0_9, %c0_10] : memref<1x1x768xf32, #tpu.memory_space<vmem>>, vector<1x1x768xf32>
    %10 = vector.shape_cast %9 : vector<1x1x768xf32> to vector<1x768xf32>
    %11 = vector.broadcast %10 : vector<1x768xf32> to vector<4x768xf32>
    %12 = arith.addf %8, %11 : vector<4x768xf32>
    %cst_11 = arith.constant dense<0.000000e+00> : vector<4xf32>
    %13 = vector.multi_reduction <add>, %12, %cst_11 [1] : vector<4x768xf32> to vector<4xf32>
    %14 = vector.shape_cast %13 : vector<4xf32> to vector<4x1xf32>
    %cst_12 = arith.constant 7.680000e+02 : f32
    %15 = vector.broadcast %cst_12 : f32 to vector<4x1xf32>
    %16 = arith.divf %14, %15 : vector<4x1xf32>
    %17 = vector.broadcast %16 : vector<4x1xf32> to vector<4x768xf32>
    %18 = arith.subf %12, %17 : vector<4x768xf32>
    %19 = arith.mulf %18, %18 : vector<4x768xf32>
    %cst_13 = arith.constant dense<0.000000e+00> : vector<4xf32>
    %20 = vector.multi_reduction <add>, %19, %cst_13 [1] : vector<4x768xf32> to vector<4xf32>
    %21 = vector.shape_cast %20 : vector<4xf32> to vector<4x1xf32>
    %cst_14 = arith.constant 7.680000e+02 : f32
    %22 = vector.broadcast %cst_14 : f32 to vector<4x1xf32>
    %23 = arith.divf %21, %22 : vector<4x1xf32>
    %cst_15 = arith.constant 9.99999974E-6 : f32
    %24 = vector.broadcast %cst_15 : f32 to vector<4x1xf32>
    %25 = arith.addf %23, %24 : vector<4x1xf32>
    %26 = math.rsqrt %25 : vector<4x1xf32>
    %27 = vector.broadcast %26 : vector<4x1xf32> to vector<4x768xf32>
    %28 = arith.mulf %18, %27 : vector<4x768xf32>
    %c0_16 = arith.constant 0 : index
    %c0_17 = arith.constant 0 : index
    %29 = vector.load %arg8[%c0_16, %c0_17] : memref<1x768xf32, #tpu.memory_space<vmem>>, vector<1x768xf32>
    %30 = vector.broadcast %29 : vector<1x768xf32> to vector<4x768xf32>
    %31 = arith.mulf %28, %30 : vector<4x768xf32>
    %c0_18 = arith.constant 0 : index
    %c0_19 = arith.constant 0 : index
    %32 = vector.load %arg9[%c0_18, %c0_19] : memref<1x768xf32, #tpu.memory_space<vmem>>, vector<1x768xf32>
    %33 = vector.broadcast %32 : vector<1x768xf32> to vector<4x768xf32>
    %34 = arith.addf %31, %33 : vector<4x768xf32>
    %c0_20 = arith.constant 0 : index
    %c0_21 = arith.constant 0 : index
    %c0_22 = arith.constant 0 : index
    %35 = vector.load %arg7[%c0_20, %c0_21, %c0_22] : memref<1x1x768xf32, #tpu.memory_space<vmem>>, vector<1x1x768xf32>
    %36 = vector.shape_cast %35 : vector<1x1x768xf32> to vector<1x768xf32>
    %c0_23 = arith.constant 0 : index
    %c0_24 = arith.constant 0 : index
    %c0_25 = arith.constant 0 : index
    %37 = vector.load %arg10[%c0_23, %c0_24, %c0_25] : memref<1x5x768xf32, #tpu.memory_space<vmem>>, vector<1x1x768xf32>
    %38 = vector.shape_cast %37 : vector<1x1x768xf32> to vector<1x768xf32>
    %39 = vector.shape_cast %36 : vector<1x768xf32> to vector<1x1x768xf32>
    tpu.vector_store %arg10[%c0_23, %c0_24, %c0_25], %39 {strides = array<i32>} : memref<1x5x768xf32, #tpu.memory_space<vmem>>, vector<1x1x768xf32>,
    %c0_26 = arith.constant 0 : index
    %c1 = arith.constant 1 : index
    %c0_27 = arith.constant 0 : index
    %40 = vector.load %arg10[%c0_26, %c1, %c0_27] : memref<1x5x768xf32, #tpu.memory_space<vmem>>, vector<1x4x768xf32>
    %41 = vector.shape_cast %40 : vector<1x4x768xf32> to vector<4x768xf32>
    %42 = vector.shape_cast %34 : vector<4x768xf32> to vector<1x4x768xf32>
    tpu.vector_store %arg10[%c0_26, %c1, %c0_27], %42 {strides = array<i32>} : memref<1x5x768xf32, #tpu.memory_space<vmem>>, vector<1x4x768xf32>,
    return
  }
  func.func @transform_0(%arg0: i32, %arg1: i32) -> (i32, i32, i32) {
    %c2_i32 = arith.constant 2 : i32
    %0 = arith.muli %arg0, %c2_i32 : i32
    %1 = arith.addi %0, %arg1 : i32
    %c0_i32 = arith.constant 0 : i32
    %c0_i32_0 = arith.constant 0 : i32
    %c0_i32_1 = arith.constant 0 : i32
    return %1, %c0_i32, %c0_i32_0 : i32, i32, i32
  }
  func.func @transform_1(%arg0: i32, %arg1: i32) -> (i32, i32) {
    %c0_i32 = arith.constant 0 : i32
    %c0_i32_0 = arith.constant 0 : i32
    %c0_i32_1 = arith.constant 0 : i32
    return %c0_i32, %c0_i32_0 : i32, i32
  }
  func.func @transform_2(%arg0: i32, %arg1: i32) -> (i32, i32) {
    %c0_i32 = arith.constant 0 : i32
    %c0_i32_0 = arith.constant 0 : i32
    %c0_i32_1 = arith.constant 0 : i32
    return %c0_i32, %c0_i32_0 : i32, i32
  }
  func.func @transform_3(%arg0: i32, %arg1: i32) -> (i32, i32) {
    %c0_i32 = arith.constant 0 : i32
    %c0_i32_0 = arith.constant 0 : i32
    %c0_i32_1 = arith.constant 0 : i32
    return %c0_i32, %c0_i32_0 : i32, i32
  }
  func.func @transform_4(%arg0: i32, %arg1: i32) -> (i32, i32, i32) {
    %c0_i32 = arith.constant 0 : i32
    %c0_i32_0 = arith.constant 0 : i32
    %c0_i32_1 = arith.constant 0 : i32
    return %arg1, %c0_i32, %c0_i32_0 : i32, i32, i32
  }
  func.func @transform_5(%arg0: i32, %arg1: i32) -> (i32, i32, i32) {
    %c0_i32 = arith.constant 0 : i32
    %c0_i32_0 = arith.constant 0 : i32
    %c0_i32_1 = arith.constant 0 : i32
    return %arg1, %c0_i32, %c0_i32_0 : i32, i32, i32
  }
  func.func @transform_6(%arg0: i32, %arg1: i32) -> (i32, i32) {
    %c0_i32 = arith.constant 0 : i32
    %c0_i32_0 = arith.constant 0 : i32
    %c0_i32_1 = arith.constant 0 : i32
    return %c0_i32, %c0_i32_0 : i32, i32
  }
  func.func @transform_7(%arg0: i32, %arg1: i32) -> (i32, i32) {
    %c0_i32 = arith.constant 0 : i32
    %c0_i32_0 = arith.constant 0 : i32
    %c0_i32_1 = arith.constant 0 : i32
    return %c0_i32, %c0_i32_0 : i32, i32
  }
  func.func @transform_8(%arg0: i32, %arg1: i32) -> (i32, i32, i32) {
    %c2_i32 = arith.constant 2 : i32
    %0 = arith.muli %arg0, %c2_i32 : i32
    %1 = arith.addi %0, %arg1 : i32
    %c0_i32 = arith.constant 0 : i32
    %c0_i32_0 = arith.constant 0 : i32
    %c0_i32_1 = arith.constant 0 : i32
    return %1, %c0_i32, %c0_i32_0 : i32, i32, i32
  }
}

</mosaic_0001>

<llo_original>
// kernel: enc_img_forward.1
$region0: #{enc_img_forward.1}
  #allocation0 [shape = 'u32[]', space=smem, size = 0x4, offset = 0x4, fixed_abs, tag = 'smem constant byte address 0x4 - core index']
  #allocation1 [shape = 'u32[144,128]{1,0:T(1,128)}', space=vmem, size = 0x12000, scoped, tag = 'internal scratch']
  %s0 = inlined_call_operand.vmem [shape: bf16[4,4,3072], index: 0, kind: input, shape index: {}]
  %s1 = inlined_call_operand.vmem [shape: bf16[3072,768], index: 1, kind: input, shape index: {}]
  %s2 = inlined_call_operand.vmem [shape: f32[1,768], index: 2, kind: input, shape index: {}]
  %s3 = inlined_call_operand.vmem [shape: f32[4,768], index: 3, kind: input, shape index: {}]
  %s4 = inlined_call_operand.vmem [shape: f32[2,1,768], index: 4, kind: input, shape index: {}]
  %s5 = inlined_call_operand.vmem [shape: f32[2,1,768], index: 5, kind: input, shape index: {}]
  %s6 = inlined_call_operand.vmem [shape: f32[1,768], index: 6, kind: input, shape index: {}]
  %s7 = inlined_call_operand.vmem [shape: f32[1,768], index: 7, kind: input, shape index: {}]
  %s8 = inlined_call_operand.vmem [shape: f32[4,5,768], index: 8, kind: output, shape index: {}]
  %s9 = sld [smem:[#allocation0]]
  $region65: #{enc_img_forward.1} parent=0
    _
  %s11 = ssub.s32 1, %s9
  %s12 = scalar_select 0, %s11, %s9
  loop: start=0, step=1, limit=6
  $region2: #{enc_img_forward.1} parent=0 // loop_pre_header
    _
  $region3: #{enc_img_forward.1} parent=0 // loop_header
    %s14 = sphi 0, %s18
    %p15 = scmp.ge.s32.totalorder %s14, 6
    %s21 = sphi 0, %s33
    %s22 = sphi 0, %s29
    %s23 = sphi 0, %s21
    %s24 = sphi 0, %s22
    %s25 = sphi 0, %s23
    %s26 = sphi 0, %s24
    %s40 = sphi 0, %s42
    %s43 = sphi 0, %s40
    %s44 = sphi 0, %s43
    %s60 = sphi 0, %s44
    %s64 = sphi 0, %s64
    %s66 = sphi 0, %s64
    %s67 = sphi 0, %s66
    %s81 = sphi 0, %s67
    %s85 = sphi 0, %s85
    %s87 = sphi 0, %s85
    %s88 = sphi 0, %s87
    %s102 = sphi 0, %s88
    %s106 = sphi 0, %s106
    %s108 = sphi 0, %s106
    %s109 = sphi 0, %s108
    %s123 = sphi 0, %s109
    %s129 = sphi 0, %s131
    %s132 = sphi 0, %s129
    %s133 = sphi 0, %s132
    %s149 = sphi 0, %s133
    %s155 = sphi 0, %s157
    %s158 = sphi 0, %s155
    %s159 = sphi 0, %s158
    %s175 = sphi 0, %s159
    %s179 = sphi 0, %s179
    %s181 = sphi 0, %s179
    %s182 = sphi 0, %s181
    %s196 = sphi 0, %s182
    %s200 = sphi 0, %s200
    %s202 = sphi 0, %s200
    %s203 = sphi 0, %s202
    %s217 = sphi 0, %s203
    %s227 = sphi 0, %s229
    %s230 = sphi 0, %s227
    %s231 = sphi 0, %s230
    %s247 = sphi 0, %s231
  $region4: #{enc_img_forward.1} parent=0 // loop_header_branch
    %17 = sbr.rel (%p15) target = $region8
  $region5: #{enc_img_forward.1} parent=0 // loop_body
    %s19 = ssub.s32 %s14, 1
    %s20 = ssub.s32 %s14, 2
    %s27 = sadd.s32 1, %s22
    %p28 = scmp.ge.s32.totalorder %s27, 2
    %s29 = scalar_select %p28, 0, %s27
    %s30 = sadd.s32 1, %s21
    %s31 = scalar_select %p28, %s30, %s21
    %p32 = scmp.ge.s32.totalorder %s31, 2
    %s33 = scalar_select %p32, 0, %s31
    %s34 = smul.u32 %s21, 2
    %s35 = sadd.s32 %s34, %s22
    %s36 = smul.u32 %s33, 2
    %s37 = sadd.s32 %s36, %s29
    %s38 = ssub.s32 %s35, %s37
    %p39 = scmp.eq.s32.totalorder %s38, 0
    %s41 = sadd.s32 %s40, 1
    %s42 = scalar_select %p39, %s40, %s41
    %p45 = pneg %p39
    %p46 = scmp.eq.s32.totalorder %s14, 3
    %p47 = por %p45, %p46
    %p48 = scmp.ne.s32.totalorder %s40, %s43
    %p49 = scmp.eq.s32.totalorder %s14, 0
    %p50 = por %p48, %p49
    %p51 = scmp.ne.s32.totalorder %s40, %s43
    %p52 = scmp.eq.s32.totalorder %s19, 3
    %p53 = por %p51, %p52
    %p54 = scmp.ne.s32.totalorder %s43, %s44
    %p55 = scmp.eq.s32.totalorder %s19, 0
    %p56 = por %p54, %p55
    %p57 = scmp.ne.s32.totalorder %s43, %s44
    %p58 = scmp.eq.s32.totalorder %s20, 3
    %p59 = por %p57, %p58
    %p61 = scmp.ne.s32.totalorder %s44, %s60
    %p62 = scmp.eq.s32.totalorder %s20, 0
    %p63 = por %p61, %p62
    %s65 = sadd.s32 %s64, 1
    %p68 = scmp.eq.s32.totalorder %s14, 3
    %p69 = scmp.ne.s32.totalorder %s64, %s66
    %p70 = scmp.eq.s32.totalorder %s14, 0
    %p71 = por %p69, %p70
    %p72 = scmp.ne.s32.totalorder %s64, %s66
    %p73 = scmp.eq.s32.totalorder %s19, 3
    %p74 = por %p72, %p73
    %p75 = scmp.ne.s32.totalorder %s66, %s67
    %p76 = scmp.eq.s32.totalorder %s19, 0
    %p77 = por %p75, %p76
    %p78 = scmp.ne.s32.totalorder %s66, %s67
    %p79 = scmp.eq.s32.totalorder %s20, 3
    %p80 = por %p78, %p79
    %p82 = scmp.ne.s32.totalorder %s67, %s81
    %p83 = scmp.eq.s32.totalorder %s20, 0
    %p84 = por %p82, %p83
    %s86 = sadd.s32 %s85, 1
    %p89 = scmp.eq.s32.totalorder %s14, 3
    %p90 = scmp.ne.s32.totalorder %s85, %s87
    %p91 = scmp.eq.s32.totalorder %s14, 0
    %p92 = por %p90, %p91
    %p93 = scmp.ne.s32.totalorder %s85, %s87
    %p94 = scmp.eq.s32.totalorder %s19, 3
    %p95 = por %p93, %p94
    %p96 = scmp.ne.s32.totalorder %s87, %s88
    %p97 = scmp.eq.s32.totalorder %s19, 0
    %p98 = por %p96, %p97
    %p99 = scmp.ne.s32.totalorder %s87, %s88
    %p100 = scmp.eq.s32.totalorder %s20, 3
    %p101 = por %p99, %p100
    %p103 = scmp.ne.s32.totalorder %s88, %s102
    %p104 = scmp.eq.s32.totalorder %s20, 0
    %p105 = por %p103, %p104
    %s107 = sadd.s32 %s106, 1
    %p110 = scmp.eq.s32.totalorder %s14, 3
    %p111 = scmp.ne.s32.totalorder %s106, %s108
    %p112 = scmp.eq.s32.totalorder %s14, 0
    %p113 = por %p111, %p112
    %p114 = scmp.ne.s32.totalorder %s106, %s108
    %p115 = scmp.eq.s32.totalorder %s19, 3
    %p116 = por %p114, %p115
    %p117 = scmp.ne.s32.totalorder %s108, %s109
    %p118 = scmp.eq.s32.totalorder %s19, 0
    %p119 = por %p117, %p118
    %p120 = scmp.ne.s32.totalorder %s108, %s109
    %p121 = scmp.eq.s32.totalorder %s20, 3
    %p122 = por %p120, %p121
    %p124 = scmp.ne.s32.totalorder %s109, %s123
    %p125 = scmp.eq.s32.totalorder %s20, 0
    %p126 = por %p124, %p125
    %s127 = ssub.s32 %s22, %s29
    %p128 = scmp.eq.s32.totalorder %s127, 0
    %s130 = sadd.s32 %s129, 1
    %s131 = scalar_select %p128, %s129, %s130
    %p134 = pneg %p128
    %p135 = scmp.eq.s32.totalorder %s14, 3
    %p136 = por %p134, %p135
    %p137 = scmp.ne.s32.totalorder %s129, %s132
    %p138 = scmp.eq.s32.totalorder %s14, 0
    %p139 = por %p137, %p138
    %p140 = scmp.ne.s32.totalorder %s129, %s132
    %p141 = scmp.eq.s32.totalorder %s19, 3
    %p142 = por %p140, %p141
    %p143 = scmp.ne.s32.totalorder %s132, %s133
    %p144 = scmp.eq.s32.totalorder %s19, 0
    %p145 = por %p143, %p144
    %p146 = scmp.ne.s32.totalorder %s132, %s133
    %p147 = scmp.eq.s32.totalorder %s20, 3
    %p148 = por %p146, %p147
    %p150 = scmp.ne.s32.totalorder %s133, %s149
    %p151 = scmp.eq.s32.totalorder %s20, 0
    %p152 = por %p150, %p151
    %s153 = ssub.s32 %s22, %s29
    %p154 = scmp.eq.s32.totalorder %s153, 0
    %s156 = sadd.s32 %s155, 1
    %s157 = scalar_select %p154, %s155, %s156
    %p160 = pneg %p154
    %p161 = scmp.eq.s32.totalorder %s14, 3
    %p162 = por %p160, %p161
    %p163 = scmp.ne.s32.totalorder %s155, %s158
    %p164 = scmp.eq.s32.totalorder %s14, 0
    %p165 = por %p163, %p164
    %p166 = scmp.ne.s32.totalorder %s155, %s158
    %p167 = scmp.eq.s32.totalorder %s19, 3
    %p168 = por %p166, %p167
    %p169 = scmp.ne.s32.totalorder %s158, %s159
    %p170 = scmp.eq.s32.totalorder %s19, 0
    %p171 = por %p169, %p170
    %p172 = scmp.ne.s32.totalorder %s158, %s159
    %p173 = scmp.eq.s32.totalorder %s20, 3
    %p174 = por %p172, %p173
    %p176 = scmp.ne.s32.totalorder %s159, %s175
    %p177 = scmp.eq.s32.totalorder %s20, 0
    %p178 = por %p176, %p177
    %s180 = sadd.s32 %s179, 1
    %p183 = scmp.eq.s32.totalorder %s14, 3
    %p184 = scmp.ne.s32.totalorder %s179, %s181
    %p185 = scmp.eq.s32.totalorder %s14, 0
    %p186 = por %p184, %p185
    %p187 = scmp.ne.s32.totalorder %s179, %s181
    %p188 = scmp.eq.s32.totalorder %s19, 3
    %p189 = por %p187, %p188
    %p190 = scmp.ne.s32.totalorder %s181, %s182
    %p191 = scmp.eq.s32.totalorder %s19, 0
    %p192 = por %p190, %p191
    %p193 = scmp.ne.s32.totalorder %s181, %s182
    %p194 = scmp.eq.s32.totalorder %s20, 3
    %p195 = por %p193, %p194
    %p197 = scmp.ne.s32.totalorder %s182, %s196
    %p198 = scmp.eq.s32.totalorder %s20, 0
    %p199 = por %p197, %p198
    %s201 = sadd.s32 %s200, 1
    %p204 = scmp.eq.s32.totalorder %s14, 3
    %p205 = scmp.ne.s32.totalorder %s200, %s202
    %p206 = scmp.eq.s32.totalorder %s14, 0
    %p207 = por %p205, %p206
    %p208 = scmp.ne.s32.totalorder %s200, %s202
    %p209 = scmp.eq.s32.totalorder %s19, 3
    %p210 = por %p208, %p209
    %p211 = scmp.ne.s32.totalorder %s202, %s203
    %p212 = scmp.eq.s32.totalorder %s19, 0
    %p213 = por %p211, %p212
    %p214 = scmp.ne.s32.totalorder %s202, %s203
    %p215 = scmp.eq.s32.totalorder %s20, 3
    %p216 = por %p214, %p215
    %p218 = scmp.ne.s32.totalorder %s203, %s217
    %p219 = scmp.eq.s32.totalorder %s20, 0
    %p220 = por %p218, %p219
    %s221 = smul.u32 %s21, 2
    %s222 = sadd.s32 %s221, %s22
    %s223 = smul.u32 %s33, 2
    %s224 = sadd.s32 %s223, %s29
    %s225 = ssub.s32 %s222, %s224
    %p226 = scmp.eq.s32.totalorder %s225, 0
    %s228 = sadd.s32 %s227, 1
    %s229 = scalar_select %p226, %s227, %s228
    %p232 = pneg %p226
    %p233 = scmp.eq.s32.totalorder %s14, 3
    %p234 = por %p232, %p233
    %p235 = scmp.ne.s32.totalorder %s227, %s230
    %p236 = scmp.eq.s32.totalorder %s14, 0
    %p237 = por %p235, %p236
    %p238 = scmp.ne.s32.totalorder %s227, %s230
    %p239 = scmp.eq.s32.totalorder %s19, 3
    %p240 = por %p238, %p239
    %p241 = scmp.ne.s32.totalorder %s230, %s231
    %p242 = scmp.eq.s32.totalorder %s19, 0
    %p243 = por %p241, %p242
    %p244 = scmp.ne.s32.totalorder %s230, %s231
    %p245 = scmp.eq.s32.totalorder %s20, 3
    %p246 = por %p244, %p245
    %p248 = scmp.ne.s32.totalorder %s231, %s247
    %p249 = scmp.eq.s32.totalorder %s20, 0
    %p250 = por %p248, %p249
    %p251 = scmp.le.s32.totalorder 1, %s14
    %p252 = scmp.lt.s32.totalorder %s14, 5
    %p253 = pnand %p251, %p252
    %p254 = pneg %p253
    // Predicated region
    $region9: #{enc_img_forward.1} parent=5 // pred_check
      _
    $region10: #{enc_img_forward.1} parent=5 // pred_check_branch
      %256 = sbr.rel (%p253) target = $region12
    $region11: #{enc_img_forward.1} parent=5 // pred_region
      %s257 = ssub.s32 %s14, 1
      // Predicated region
      $region13: #{enc_img_forward.1} parent=11 // pred_check
        %p258 = pneg %p77
      $region14: #{enc_img_forward.1} parent=11 // pred_check_branch
        %260 = sbr.rel (%p258) target = $region16
      $region15: #{enc_img_forward.1} parent=11 // pred_region
        _
      $region16: #{enc_img_forward.1} parent=11 // pred_fallthru
        _
      // Predicated region
      $region17: #{enc_img_forward.1} parent=11 // pred_check
        %p261 = pneg %p98
      $region18: #{enc_img_forward.1} parent=11 // pred_check_branch
        %263 = sbr.rel (%p261) target = $region20
      $region19: #{enc_img_forward.1} parent=11 // pred_region
        _
      $region20: #{enc_img_forward.1} parent=11 // pred_fallthru
        _
      // Predicated region
      $region21: #{enc_img_forward.1} parent=11 // pred_check
        %p264 = pneg %p119
      $region22: #{enc_img_forward.1} parent=11 // pred_check_branch
        %266 = sbr.rel (%p264) target = $region24
      $region23: #{enc_img_forward.1} parent=11 // pred_region
        _
      $region24: #{enc_img_forward.1} parent=11 // pred_fallthru
        _
      // Predicated region
      $region25: #{enc_img_forward.1} parent=11 // pred_check
        %p267 = pneg %p192
      $region26: #{enc_img_forward.1} parent=11 // pred_check_branch
        %269 = sbr.rel (%p267) target = $region28
      $region27: #{enc_img_forward.1} parent=11 // pred_region
        _
      $region28: #{enc_img_forward.1} parent=11 // pred_fallthru
        _
      // Predicated region
      $region29: #{enc_img_forward.1} parent=11 // pred_check
        %p270 = pneg %p213
      $region30: #{enc_img_forward.1} parent=11 // pred_check_branch
        %272 = sbr.rel (%p270) target = $region32
      $region31: #{enc_img_forward.1} parent=11 // pred_region
        _
      $region32: #{enc_img_forward.1} parent=11 // pred_fallthru
        _
    $region12: #{enc_img_forward.1} parent=5 // pred_fallthru
      _
    %p273 = scmp.lt.s32.totalorder %s14, 4
    // Predicated region
    $region33: #{enc_img_forward.1} parent=5 // pred_check
      %p274 = pneg %p273
    $region34: #{enc_img_forward.1} parent=5 // pred_check_branch
      %276 = sbr.rel (%p274) target = $region36
    $region35: #{enc_img_forward.1} parent=5 // pred_region
      // Predicated region
      $region37: #{enc_img_forward.1} parent=35 // pred_check
        %p277 = pneg %p50
      $region38: #{enc_img_forward.1} parent=35 // pred_check_branch
        %279 = sbr.rel (%p277) target = $region40
      $region39: #{enc_img_forward.1} parent=35 // pred_region
        %s280 = smul.u32 %s21, 2
        %s281 = sadd.s32 %s280, %s22
        %p282 = scmp.lt.s32.totalorder %s281, 3
        %s283 = scalar_select %p282, %s281, 3
        %s284 = smul.addr %s283, 24
        %s285 = smul.addr %s284, 2
        %s286 = scalar_lea.vmem %s0, %s285
        %s287 = smul.u32 %s21, 2
        %s288 = sadd.s32 %s287, %s22
      $region40: #{enc_img_forward.1} parent=35 // pred_fallthru
        _
      // Predicated region
      $region41: #{enc_img_forward.1} parent=35 // pred_check
        %p289 = pneg %p139
      $region42: #{enc_img_forward.1} parent=35 // pred_check_branch
        %291 = sbr.rel (%p289) target = $region44
      $region43: #{enc_img_forward.1} parent=35 // pred_region
        %p292 = scmp.lt.s32.totalorder %s22, 1
        %s293 = scalar_select %p292, %s22, 1
        %s294 = smul.addr %s293, 6
        %s295 = scalar_lea.vmem %s4, %s294
      $region44: #{enc_img_forward.1} parent=35 // pred_fallthru
        _
      // Predicated region
      $region45: #{enc_img_forward.1} parent=35 // pred_check
        %p296 = pneg %p165
      $region46: #{enc_img_forward.1} parent=35 // pred_check_branch
        %298 = sbr.rel (%p296) target = $region48
      $region47: #{enc_img_forward.1} parent=35 // pred_region
        %p299 = scmp.lt.s32.totalorder %s22, 1
        %s300 = scalar_select %p299, %s22, 1
        %s301 = smul.addr %s300, 6
        %s302 = scalar_lea.vmem %s5, %s301
      $region48: #{enc_img_forward.1} parent=35 // pred_fallthru
        _
    $region36: #{enc_img_forward.1} parent=5 // pred_fallthru
      _
    %p303 = scmp.le.s32.totalorder 1, %s14
    %p304 = scmp.lt.s32.totalorder %s14, 5
    %p305 = pnand %p303, %p304
    %p306 = pneg %p305
    // Predicated region
    $region49: #{enc_img_forward.1} parent=5 // pred_check
      _
    $region50: #{enc_img_forward.1} parent=5 // pred_check_branch
      %308 = sbr.rel (%p305) target = $region52
    $region51: #{enc_img_forward.1} parent=5 // pred_region
      %s309 = ssub.s32 %s14, 1
      %s310 = smul.u32 %s23, 2
      %s311 = sadd.s32 %s310, %s24
      %p312 = scmp.lt.s32.totalorder %s311, 3
      %s313 = scalar_select %p312, %s311, 3
      %s314 = smul.addr %s313, 24
      %s315 = smul.addr %s314, 2
      %s316 = scalar_lea.vmem %s0, %s315
      %p317 = pneg %p56
      %p318 = pneg %p53
      %p319 = pneg %p77
      %p320 = pneg %p74
      %p321 = pneg %p98
      %p322 = pneg %p95
      %p323 = pneg %p119
      %p324 = pneg %p116
      %p325 = scmp.lt.s32.totalorder %s24, 1
      %s326 = scalar_select %p325, %s24, 1
      %s327 = smul.addr %s326, 6
      %s328 = scalar_lea.vmem %s4, %s327
      %p329 = pneg %p145
      %p330 = pneg %p142
      %p331 = scmp.lt.s32.totalorder %s24, 1
      %s332 = scalar_select %p331, %s24, 1
      %s333 = smul.addr %s332, 6
      %s334 = scalar_lea.vmem %s5, %s333
      %p335 = pneg %p171
      %p336 = pneg %p168
      %p337 = pneg %p192
      %p338 = pneg %p189
      %p339 = pneg %p213
      %p340 = pneg %p210
      %p341 = pneg %p243
      %p342 = pneg %p240
      %s343 = smul.u32 %s23, 2
      %s344 = sadd.s32 %s343, %s24
      %p345 = scmp.lt.s32.totalorder %s344, 3
      %s346 = scalar_select %p345, %s344, 3
      %s347 = smul.addr %s346, 6
      %s348 = smul.addr %s347, 8
      %s349 = scalar_lea.vmem %s8, %s348
      %s350 = smul.u32 %s23, 2
      %s351 = sadd.s32 %s350, %s24
      %p352 = scmp.lt.s32.totalorder %s351, 3
      %s353 = scalar_select %p352, %s351, 3
      %s354 = smul.addr %s353, 24
      %s355 = smul.addr %s354, 2
      %s356 = scalar_lea.vmem %s0, %s355
      %s357 = smul.u32 %s23, 2
      %s358 = sadd.s32 %s357, %s24
      %p359 = scmp.lt.s32.totalorder %s24, 1
      %s360 = scalar_select %p359, %s24, 1
      %s361 = smul.addr %s360, 6
      %s362 = scalar_lea.vmem %s4, %s361
      %p363 = scmp.lt.s32.totalorder %s24, 1
      %s364 = scalar_select %p363, %s24, 1
      %s365 = smul.addr %s364, 6
      %s366 = scalar_lea.vmem %s5, %s365
      %s367 = smul.u32 %s23, 2
      %s368 = sadd.s32 %s367, %s24
      %p369 = scmp.lt.s32.totalorder %s368, 3
      %s370 = scalar_select %p369, %s368, 3
      %s371 = smul.addr %s370, 6
      %s372 = smul.addr %s371, 8
      %s373 = scalar_lea.vmem %s8, %s372
      %s374 = smul.u32 %s23, 2
      %s375 = sadd.s32 %s374, %s24
      %v376 = vld [vmem:[%s356] sm:$0xff]
      %v377 = vld [vmem:[%s356 + $0x8] sm:$0xff]
      %v378 = vld [vmem:[%s356 + $0x10] sm:$0xff]
      %v379 = vld [vmem:[%s356 + $0x18] sm:$0xff]
      %v380 = vld [vmem:[%s356 + $0x20] sm:$0xff]
      %v381 = vld [vmem:[%s356 + $0x28] sm:$0xff]
      %v382 = vld [vmem:[%s1] sm:$0xff]
      %v383 = vld [vmem:[%s1 + $0x8] sm:$0xff]
      %v384 = vld [vmem:[%s1 + $0x10] sm:$0xff]
      %v385 = vld [vmem:[%s1 + $0x18] sm:$0xff]
      %v386 = vld [vmem:[%s1 + $0x20] sm:$0xff]
      %v387 = vld [vmem:[%s1 + $0x28] sm:$0xff]
      %v388 = vld [vmem:[%s1 + $0x30] sm:$0xff]
      %v389 = vld [vmem:[%s1 + $0x38] sm:$0xff]
      %v390 = vld [vmem:[%s1 + $0x40] sm:$0xff]
      %v391 = vld [vmem:[%s1 + $0x48] sm:$0xff]
      %v392 = vld [vmem:[%s1 + $0x50] sm:$0xff]
      %v393 = vld [vmem:[%s1 + $0x58] sm:$0xff]
      %v394 = vld [vmem:[%s1 + $0x60] sm:$0xff]
      %v395 = vld [vmem:[%s1 + $0x68] sm:$0xff]
      %v396 = vld [vmem:[%s1 + $0x70] sm:$0xff]
      %v397 = vld [vmem:[%s1 + $0x78] sm:$0xff]
      %v398 = vld [vmem:[%s1 + $0x80] sm:$0xff]
      %v399 = vld [vmem:[%s1 + $0x88] sm:$0xff]
      %v400 = vld [vmem:[%s1 + $0x90] sm:$0xff]
      %v401 = vld [vmem:[%s1 + $0x98] sm:$0xff]
      %v402 = vld [vmem:[%s1 + $0xa0] sm:$0xff]
      %v403 = vld [vmem:[%s1 + $0xa8] sm:$0xff]
      %v404 = vld [vmem:[%s1 + $0xb0] sm:$0xff]
      %v405 = vld [vmem:[%s1 + $0xb8] sm:$0xff]
      %v406 = vld [vmem:[%s1 + $0xc0] sm:$0xff]
      %v407 = vld [vmem:[%s1 + $0xc8] sm:$0xff]
      %v408 = vld [vmem:[%s1 + $0xd0] sm:$0xff]
      %v409 = vld [vmem:[%s1 + $0xd8] sm:$0xff]
      %v410 = vld [vmem:[%s1 + $0xe0] sm:$0xff]
      %v411 = vld [vmem:[%s1 + $0xe8] sm:$0xff]
      %v412 = vld [vmem:[%s1 + $0xf0] sm:$0xff]
      %v413 = vld [vmem:[%s1 + $0xf8] sm:$0xff]
      %v414 = vld [vmem:[%s1 + $0x100] sm:$0xff]
      %v415 = vld [vmem:[%s1 + $0x108] sm:$0xff]
      %v416 = vld [vmem:[%s1 + $0x110] sm:$0xff]
      %v417 = vld [vmem:[%s1 + $0x118] sm:$0xff]
      %v418 = vld [vmem:[%s1 + $0x120] sm:$0xff]
      %v419 = vld [vmem:[%s1 + $0x128] sm:$0xff]
      %v420 = vld [vmem:[%s1 + $0x130] sm:$0xff]
      %v421 = vld [vmem:[%s1 + $0x138] sm:$0xff]
      %v422 = vld [vmem:[%s1 + $0x140] sm:$0xff]
      %v423 = vld [vmem:[%s1 + $0x148] sm:$0xff]
      %v424 = vld [vmem:[%s1 + $0x150] sm:$0xff]
      %v425 = vld [vmem:[%s1 + $0x158] sm:$0xff]
      %v426 = vld [vmem:[%s1 + $0x160] sm:$0xff]
      %v427 = vld [vmem:[%s1 + $0x168] sm:$0xff]
      %v428 = vld [vmem:[%s1 + $0x170] sm:$0xff]
      %v429 = vld [vmem:[%s1 + $0x178] sm:$0xff]
      %v430 = vld [vmem:[%s1 + $0x180] sm:$0xff]
      %v431 = vld [vmem:[%s1 + $0x188] sm:$0xff]
      %v432 = vld [vmem:[%s1 + $0x190] sm:$0xff]
      %v433 = vld [vmem:[%s1 + $0x198] sm:$0xff]
      %v434 = vld [vmem:[%s1 + $0x1a0] sm:$0xff]
      %v435 = vld [vmem:[%s1 + $0x1a8] sm:$0xff]
      %v436 = vld [vmem:[%s1 + $0x1b0] sm:$0xff]
      %v437 = vld [vmem:[%s1 + $0x1b8] sm:$0xff]
      %v438 = vld [vmem:[%s1 + $0x1c0] sm:$0xff]
      %v439 = vld [vmem:[%s1 + $0x1c8] sm:$0xff]
      %v440 = vld [vmem:[%s1 + $0x1d0] sm:$0xff]
      %v441 = vld [vmem:[%s1 + $0x1d8] sm:$0xff]
      %v442 = vld [vmem:[%s1 + $0x1e0] sm:$0xff]
      %v443 = vld [vmem:[%s1 + $0x1e8] sm:$0xff]
      %v444 = vld [vmem:[%s1 + $0x1f0] sm:$0xff]
      %v445 = vld [vmem:[%s1 + $0x1f8] sm:$0xff]
      %v446 = vld [vmem:[%s1 + $0x200] sm:$0xff]
      %v447 = vld [vmem:[%s1 + $0x208] sm:$0xff]
      %v448 = vld [vmem:[%s1 + $0x210] sm:$0xff]
      %v449 = vld [vmem:[%s1 + $0x218] sm:$0xff]
      %v450 = vld [vmem:[%s1 + $0x220] sm:$0xff]
      %v451 = vld [vmem:[%s1 + $0x228] sm:$0xff]
      %v452 = vld [vmem:[%s1 + $0x230] sm:$0xff]
      %v453 = vld [vmem:[%s1 + $0x238] sm:$0xff]
      %v454 = vld [vmem:[%s1 + $0x240] sm:$0xff]
      %v455 = vld [vmem:[%s1 + $0x248] sm:$0xff]
      %v456 = vld [vmem:[%s1 + $0x250] sm:$0xff]
      %v457 = vld [vmem:[%s1 + $0x258] sm:$0xff]
      %v458 = vld [vmem:[%s1 + $0x260] sm:$0xff]
      %v459 = vld [vmem:[%s1 + $0x268] sm:$0xff]
      %v460 = vld [vmem:[%s1 + $0x270] sm:$0xff]
      %v461 = vld [vmem:[%s1 + $0x278] sm:$0xff]
      %v462 = vld [vmem:[%s1 + $0x280] sm:$0xff]
      %v463 = vld [vmem:[%s1 + $0x288] sm:$0xff]
      %v464 = vld [vmem:[%s1 + $0x290] sm:$0xff]
      %v465 = vld [vmem:[%s1 + $0x298] sm:$0xff]
      %v466 = vld [vmem:[%s1 + $0x2a0] sm:$0xff]
      %v467 = vld [vmem:[%s1 + $0x2a8] sm:$0xff]
      %v468 = vld [vmem:[%s1 + $0x2b0] sm:$0xff]
      %v469 = vld [vmem:[%s1 + $0x2b8] sm:$0xff]
      %v470 = vld [vmem:[%s1 + $0x2c0] sm:$0xff]
      %v471 = vld [vmem:[%s1 + $0x2c8] sm:$0xff]
      %v472 = vld [vmem:[%s1 + $0x2d0] sm:$0xff]
      %v473 = vld [vmem:[%s1 + $0x2d8] sm:$0xff]
      %v474 = vld [vmem:[%s1 + $0x2e0] sm:$0xff]
      %v475 = vld [vmem:[%s1 + $0x2e8] sm:$0xff]
      %v476 = vld [vmem:[%s1 + $0x2f0] sm:$0xff]
      %v477 = vld [vmem:[%s1 + $0x2f8] sm:$0xff]
      %v478 = vld [vmem:[%s1 + $0x300] sm:$0xff]
      %v479 = vld [vmem:[%s1 + $0x308] sm:$0xff]
      %v480 = vld [vmem:[%s1 + $0x310] sm:$0xff]
      %v481 = vld [vmem:[%s1 + $0x318] sm:$0xff]
      %v482 = vld [vmem:[%s1 + $0x320] sm:$0xff]
      %v483 = vld [vmem:[%s1 + $0x328] sm:$0xff]
      %v484 = vld [vmem:[%s1 + $0x330] sm:$0xff]
      %v485 = vld [vmem:[%s1 + $0x338] sm:$0xff]
      %v486 = vld [vmem:[%s1 + $0x340] sm:$0xff]
      %v487 = vld [vmem:[%s1 + $0x348] sm:$0xff]
      %v488 = vld [vmem:[%s1 + $0x350] sm:$0xff]
      %v489 = vld [vmem:[%s1 + $0x358] sm:$0xff]
      %v490 = vld [vmem:[%s1 + $0x360] sm:$0xff]
      %v491 = vld [vmem:[%s1 + $0x368] sm:$0xff]
      %v492 = vld [vmem:[%s1 + $0x370] sm:$0xff]
      %v493 = vld [vmem:[%s1 + $0x378] sm:$0xff]
      %v494 = vld [vmem:[%s1 + $0x380] sm:$0xff]
      %v495 = vld [vmem:[%s1 + $0x388] sm:$0xff]
      %v496 = vld [vmem:[%s1 + $0x390] sm:$0xff]
      %v497 = vld [vmem:[%s1 + $0x398] sm:$0xff]
      %v498 = vld [vmem:[%s1 + $0x3a0] sm:$0xff]
      %v499 = vld [vmem:[%s1 + $0x3a8] sm:$0xff]
      %v500 = vld [vmem:[%s1 + $0x3b0] sm:$0xff]
      %v501 = vld [vmem:[%s1 + $0x3b8] sm:$0xff]
      %v502 = vld [vmem:[%s1 + $0x3c0] sm:$0xff]
      %v503 = vld [vmem:[%s1 + $0x3c8] sm:$0xff]
      %v504 = vld [vmem:[%s1 + $0x3d0] sm:$0xff]
      %v505 = vld [vmem:[%s1 + $0x3d8] sm:$0xff]
      %v506 = vld [vmem:[%s1 + $0x3e0] sm:$0xff]
      %v507 = vld [vmem:[%s1 + $0x3e8] sm:$0xff]
      %v508 = vld [vmem:[%s1 + $0x3f0] sm:$0xff]
      %v509 = vld [vmem:[%s1 + $0x3f8] sm:$0xff]
      %v510 = vld [vmem:[%s1 + $0x400] sm:$0xff]
      %v511 = vld [vmem:[%s1 + $0x408] sm:$0xff]
      %v512 = vld [vmem:[%s1 + $0x410] sm:$0xff]
      %v513 = vld [vmem:[%s1 + $0x418] sm:$0xff]
      %v514 = vld [vmem:[%s1 + $0x420] sm:$0xff]
      %v515 = vld [vmem:[%s1 + $0x428] sm:$0xff]
      %v516 = vld [vmem:[%s1 + $0x430] sm:$0xff]
      %v517 = vld [vmem:[%s1 + $0x438] sm:$0xff]
      %v518 = vld [vmem:[%s1 + $0x440] sm:$0xff]
      %v519 = vld [vmem:[%s1 + $0x448] sm:$0xff]
      %v520 = vld [vmem:[%s1 + $0x450] sm:$0xff]
      %v521 = vld [vmem:[%s1 + $0x458] sm:$0xff]
      %v522 = vld [vmem:[%s1 + $0x460] sm:$0xff]
      %v523 = vld [vmem:[%s1 + $0x468] sm:$0xff]
      %v524 = vld [vmem:[%s1 + $0x470] sm:$0xff]
      %v525 = vld [vmem:[%s1 + $0x478] sm:$0xff]
      %v526 = vld [vmem:[%s1 + $0x480] sm:$0xff]
      %v527 = vld [vmem:[%s1 + $0x488] sm:$0xff]
      %v528 = vld [vmem:[%s1 + $0x490] sm:$0xff]
      %v529 = vld [vmem:[%s1 + $0x498] sm:$0xff]
      %v530 = vld [vmem:[%s1 + $0x4a0] sm:$0xff]
      %v531 = vld [vmem:[%s1 + $0x4a8] sm:$0xff]
      %v532 = vld [vmem:[%s1 + $0x4b0] sm:$0xff]
      %v533 = vld [vmem:[%s1 + $0x4b8] sm:$0xff]
      %v534 = vld [vmem:[%s1 + $0x4c0] sm:$0xff]
      %v535 = vld [vmem:[%s1 + $0x4c8] sm:$0xff]
      %v536 = vld [vmem:[%s1 + $0x4d0] sm:$0xff]
      %v537 = vld [vmem:[%s1 + $0x4d8] sm:$0xff]
      %v538 = vld [vmem:[%s1 + $0x4e0] sm:$0xff]
      %v539 = vld [vmem:[%s1 + $0x4e8] sm:$0xff]
      %v540 = vld [vmem:[%s1 + $0x4f0] sm:$0xff]
      %v541 = vld [vmem:[%s1 + $0x4f8] sm:$0xff]
      %v542 = vld [vmem:[%s1 + $0x500] sm:$0xff]
      %v543 = vld [vmem:[%s1 + $0x508] sm:$0xff]
      %v544 = vld [vmem:[%s1 + $0x510] sm:$0xff]
      %v545 = vld [vmem:[%s1 + $0x518] sm:$0xff]
      %v546 = vld [vmem:[%s1 + $0x520] sm:$0xff]
      %v547 = vld [vmem:[%s1 + $0x528] sm:$0xff]
      %v548 = vld [vmem:[%s1 + $0x530] sm:$0xff]
      %v549 = vld [vmem:[%s1 + $0x538] sm:$0xff]
      %v550 = vld [vmem:[%s1 + $0x540] sm:$0xff]
      %v551 = vld [vmem:[%s1 + $0x548] sm:$0xff]
      %v552 = vld [vmem:[%s1 + $0x550] sm:$0xff]
      %v553 = vld [vmem:[%s1 + $0x558] sm:$0xff]
      %v554 = vld [vmem:[%s1 + $0x560] sm:$0xff]
      %v555 = vld [vmem:[%s1 + $0x568] sm:$0xff]
      %v556 = vld [vmem:[%s1 + $0x570] sm:$0xff]
      %v557 = vld [vmem:[%s1 + $0x578] sm:$0xff]
      %v558 = vld [vmem:[%s1 + $0x580] sm:$0xff]
      %v559 = vld [vmem:[%s1 + $0x588] sm:$0xff]
      %v560 = vld [vmem:[%s1 + $0x590] sm:$0xff]
      %v561 = vld [vmem:[%s1 + $0x598] sm:$0xff]
      %v562 = vld [vmem:[%s1 + $0x5a0] sm:$0xff]
      %v563 = vld [vmem:[%s1 + $0x5a8] sm:$0xff]
      %v564 = vld [vmem:[%s1 + $0x5b0] sm:$0xff]
      %v565 = vld [vmem:[%s1 + $0x5b8] sm:$0xff]
      %v566 = vld [vmem:[%s1 + $0x5c0] sm:$0xff]
      %v567 = vld [vmem:[%s1 + $0x5c8] sm:$0xff]
      %v568 = vld [vmem:[%s1 + $0x5d0] sm:$0xff]
      %v569 = vld [vmem:[%s1 + $0x5d8] sm:$0xff]
      %v570 = vld [vmem:[%s1 + $0x5e0] sm:$0xff]
      %v571 = vld [vmem:[%s1 + $0x5e8] sm:$0xff]
      %v572 = vld [vmem:[%s1 + $0x5f0] sm:$0xff]
      %v573 = vld [vmem:[%s1 + $0x5f8] sm:$0xff]
      %v574 = vld [vmem:[%s1 + $0x600] sm:$0xff]
      %v575 = vld [vmem:[%s1 + $0x608] sm:$0xff]
      %v576 = vld [vmem:[%s1 + $0x610] sm:$0xff]
      %v577 = vld [vmem:[%s1 + $0x618] sm:$0xff]
      %v578 = vld [vmem:[%s1 + $0x620] sm:$0xff]
      %v579 = vld [vmem:[%s1 + $0x628] sm:$0xff]
      %v580 = vld [vmem:[%s1 + $0x630] sm:$0xff]
      %v581 = vld [vmem:[%s1 + $0x638] sm:$0xff]
      %v582 = vld [vmem:[%s1 + $0x640] sm:$0xff]
      %v583 = vld [vmem:[%s1 + $0x648] sm:$0xff]
      %v584 = vld [vmem:[%s1 + $0x650] sm:$0xff]
      %v585 = vld [vmem:[%s1 + $0x658] sm:$0xff]
      %v586 = vld [vmem:[%s1 + $0x660] sm:$0xff]
      %v587 = vld [vmem:[%s1 + $0x668] sm:$0xff]
      %v588 = vld [vmem:[%s1 + $0x670] sm:$0xff]
      %v589 = vld [vmem:[%s1 + $0x678] sm:$0xff]
      %v590 = vld [vmem:[%s1 + $0x680] sm:$0xff]
      %v591 = vld [vmem:[%s1 + $0x688] sm:$0xff]
      %v592 = vld [vmem:[%s1 + $0x690] sm:$0xff]
      %v593 = vld [vmem:[%s1 + $0x698] sm:$0xff]
      %v594 = vld [vmem:[%s1 + $0x6a0] sm:$0xff]
      %v595 = vld [vmem:[%s1 + $0x6a8] sm:$0xff]
      %v596 = vld [vmem:[%s1 + $0x6b0] sm:$0xff]
      %v597 = vld [vmem:[%s1 + $0x6b8] sm:$0xff]
      %v598 = vld [vmem:[%s1 + $0x6c0] sm:$0xff]
      %v599 = vld [vmem:[%s1 + $0x6c8] sm:$0xff]
      %v600 = vld [vmem:[%s1 + $0x6d0] sm:$0xff]
      %v601 = vld [vmem:[%s1 + $0x6d8] sm:$0xff]
      %v602 = vld [vmem:[%s1 + $0x6e0] sm:$0xff]
      %v603 = vld [vmem:[%s1 + $0x6e8] sm:$0xff]
      %v604 = vld [vmem:[%s1 + $0x6f0] sm:$0xff]
      %v605 = vld [vmem:[%s1 + $0x6f8] sm:$0xff]
      %v606 = vld [vmem:[%s1 + $0x700] sm:$0xff]
      %v607 = vld [vmem:[%s1 + $0x708] sm:$0xff]
      %v608 = vld [vmem:[%s1 + $0x710] sm:$0xff]
      %v609 = vld [vmem:[%s1 + $0x718] sm:$0xff]
      %v610 = vld [vmem:[%s1 + $0x720] sm:$0xff]
      %v611 = vld [vmem:[%s1 + $0x728] sm:$0xff]
      %v612 = vld [vmem:[%s1 + $0x730] sm:$0xff]
      %v613 = vld [vmem:[%s1 + $0x738] sm:$0xff]
      %v614 = vld [vmem:[%s1 + $0x740] sm:$0xff]
      %v615 = vld [vmem:[%s1 + $0x748] sm:$0xff]
      %v616 = vld [vmem:[%s1 + $0x750] sm:$0xff]
      %v617 = vld [vmem:[%s1 + $0x758] sm:$0xff]
      %v618 = vld [vmem:[%s1 + $0x760] sm:$0xff]
      %v619 = vld [vmem:[%s1 + $0x768] sm:$0xff]
      %v620 = vld [vmem:[%s1 + $0x770] sm:$0xff]
      %v621 = vld [vmem:[%s1 + $0x778] sm:$0xff]
      %v622 = vld [vmem:[%s1 + $0x780] sm:$0xff]
      %v623 = vld [vmem:[%s1 + $0x788] sm:$0xff]
      %v624 = vld [vmem:[%s1 + $0x790] sm:$0xff]
      %v625 = vld [vmem:[%s1 + $0x798] sm:$0xff]
      %v626 = vld [vmem:[%s1 + $0x7a0] sm:$0xff]
      %v627 = vld [vmem:[%s1 + $0x7a8] sm:$0xff]
      %v628 = vld [vmem:[%s1 + $0x7b0] sm:$0xff]
      %v629 = vld [vmem:[%s1 + $0x7b8] sm:$0xff]
      %v630 = vld [vmem:[%s1 + $0x7c0] sm:$0xff]
      %v631 = vld [vmem:[%s1 + $0x7c8] sm:$0xff]
      %v632 = vld [vmem:[%s1 + $0x7d0] sm:$0xff]
      %v633 = vld [vmem:[%s1 + $0x7d8] sm:$0xff]
      %v634 = vld [vmem:[%s1 + $0x7e0] sm:$0xff]
      %v635 = vld [vmem:[%s1 + $0x7e8] sm:$0xff]
      %v636 = vld [vmem:[%s1 + $0x7f0] sm:$0xff]
      %v637 = vld [vmem:[%s1 + $0x7f8] sm:$0xff]
      %v638 = vld [vmem:[%s1 + $0x800] sm:$0xff]
      %v639 = vld [vmem:[%s1 + $0x808] sm:$0xff]
      %v640 = vld [vmem:[%s1 + $0x810] sm:$0xff]
      %v641 = vld [vmem:[%s1 + $0x818] sm:$0xff]
      %v642 = vld [vmem:[%s1 + $0x820] sm:$0xff]
      %v643 = vld [vmem:[%s1 + $0x828] sm:$0xff]
      %v644 = vld [vmem:[%s1 + $0x830] sm:$0xff]
      %v645 = vld [vmem:[%s1 + $0x838] sm:$0xff]
      %v646 = vld [vmem:[%s1 + $0x840] sm:$0xff]
      %v647 = vld [vmem:[%s1 + $0x848] sm:$0xff]
      %v648 = vld [vmem:[%s1 + $0x850] sm:$0xff]
      %v649 = vld [vmem:[%s1 + $0x858] sm:$0xff]
      %v650 = vld [vmem:[%s1 + $0x860] sm:$0xff]
      %v651 = vld [vmem:[%s1 + $0x868] sm:$0xff]
      %v652 = vld [vmem:[%s1 + $0x870] sm:$0xff]
      %v653 = vld [vmem:[%s1 + $0x878] sm:$0xff]
      %v654 = vld [vmem:[%s1 + $0x880] sm:$0xff]
      %v655 = vld [vmem:[%s1 + $0x888] sm:$0xff]
      %v656 = vld [vmem:[%s1 + $0x890] sm:$0xff]
      %v657 = vld [vmem:[%s1 + $0x898] sm:$0xff]
      %v658 = vld [vmem:[%s1 + $0x8a0] sm:$0xff]
      %v659 = vld [vmem:[%s1 + $0x8a8] sm:$0xff]
      %v660 = vld [vmem:[%s1 + $0x8b0] sm:$0xff]
      %v661 = vld [vmem:[%s1 + $0x8b8] sm:$0xff]
      %v662 = vld [vmem:[%s1 + $0x8c0] sm:$0xff]
      %v663 = vld [vmem:[%s1 + $0x8c8] sm:$0xff]
      %v664 = vld [vmem:[%s1 + $0x8d0] sm:$0xff]
      %v665 = vld [vmem:[%s1 + $0x8d8] sm:$0xff]
      %v666 = vld [vmem:[%s1 + $0x8e0] sm:$0xff]
      %v667 = vld [vmem:[%s1 + $0x8e8] sm:$0xff]
      %v668 = vld [vmem:[%s1 + $0x8f0] sm:$0xff]
      %v669 = vld [vmem:[%s1 + $0x8f8] sm:$0xff]
      %v670 = vld [vmem:[%s1 + $0x900] sm:$0xff]
      %v671 = vld [vmem:[%s1 + $0x908] sm:$0xff]
      %v672 = vld [vmem:[%s1 + $0x910] sm:$0xff]
      %v673 = vld [vmem:[%s1 + $0x918] sm:$0xff]
      %v674 = vld [vmem:[%s1 + $0x920] sm:$0xff]
      %v675 = vld [vmem:[%s1 + $0x928] sm:$0xff]
      %v676 = vld [vmem:[%s1 + $0x930] sm:$0xff]
      %v677 = vld [vmem:[%s1 + $0x938] sm:$0xff]
      %v678 = vld [vmem:[%s1 + $0x940] sm:$0xff]
      %v679 = vld [vmem:[%s1 + $0x948] sm:$0xff]
      %v680 = vld [vmem:[%s1 + $0x950] sm:$0xff]
      %v681 = vld [vmem:[%s1 + $0x958] sm:$0xff]
      %v682 = vld [vmem:[%s1 + $0x960] sm:$0xff]
      %v683 = vld [vmem:[%s1 + $0x968] sm:$0xff]
      %v684 = vld [vmem:[%s1 + $0x970] sm:$0xff]
      %v685 = vld [vmem:[%s1 + $0x978] sm:$0xff]
      %v686 = vld [vmem:[%s1 + $0x980] sm:$0xff]
      %v687 = vld [vmem:[%s1 + $0x988] sm:$0xff]
      %v688 = vld [vmem:[%s1 + $0x990] sm:$0xff]
      %v689 = vld [vmem:[%s1 + $0x998] sm:$0xff]
      %v690 = vld [vmem:[%s1 + $0x9a0] sm:$0xff]
      %v691 = vld [vmem:[%s1 + $0x9a8] sm:$0xff]
      %v692 = vld [vmem:[%s1 + $0x9b0] sm:$0xff]
      %v693 = vld [vmem:[%s1 + $0x9b8] sm:$0xff]
      %v694 = vld [vmem:[%s1 + $0x9c0] sm:$0xff]
      %v695 = vld [vmem:[%s1 + $0x9c8] sm:$0xff]
      %v696 = vld [vmem:[%s1 + $0x9d0] sm:$0xff]
      %v697 = vld [vmem:[%s1 + $0x9d8] sm:$0xff]
      %v698 = vld [vmem:[%s1 + $0x9e0] sm:$0xff]
      %v699 = vld [vmem:[%s1 + $0x9e8] sm:$0xff]
      %v700 = vld [vmem:[%s1 + $0x9f0] sm:$0xff]
      %v701 = vld [vmem:[%s1 + $0x9f8] sm:$0xff]
      %v702 = vld [vmem:[%s1 + $0xa00] sm:$0xff]
      %v703 = vld [vmem:[%s1 + $0xa08] sm:$0xff]
      %v704 = vld [vmem:[%s1 + $0xa10] sm:$0xff]
      %v705 = vld [vmem:[%s1 + $0xa18] sm:$0xff]
      %v706 = vld [vmem:[%s1 + $0xa20] sm:$0xff]
      %v707 = vld [vmem:[%s1 + $0xa28] sm:$0xff]
      %v708 = vld [vmem:[%s1 + $0xa30] sm:$0xff]
      %v709 = vld [vmem:[%s1 + $0xa38] sm:$0xff]
      %v710 = vld [vmem:[%s1 + $0xa40] sm:$0xff]
      %v711 = vld [vmem:[%s1 + $0xa48] sm:$0xff]
      %v712 = vld [vmem:[%s1 + $0xa50] sm:$0xff]
      %v713 = vld [vmem:[%s1 + $0xa58] sm:$0xff]
      %v714 = vld [vmem:[%s1 + $0xa60] sm:$0xff]
      %v715 = vld [vmem:[%s1 + $0xa68] sm:$0xff]
      %v716 = vld [vmem:[%s1 + $0xa70] sm:$0xff]
      %v717 = vld [vmem:[%s1 + $0xa78] sm:$0xff]
      %v718 = vld [vmem:[%s1 + $0xa80] sm:$0xff]
      %v719 = vld [vmem:[%s1 + $0xa88] sm:$0xff]
      %v720 = vld [vmem:[%s1 + $0xa90] sm:$0xff]
      %v721 = vld [vmem:[%s1 + $0xa98] sm:$0xff]
      %v722 = vld [vmem:[%s1 + $0xaa0] sm:$0xff]
      %v723 = vld [vmem:[%s1 + $0xaa8] sm:$0xff]
      %v724 = vld [vmem:[%s1 + $0xab0] sm:$0xff]
      %v725 = vld [vmem:[%s1 + $0xab8] sm:$0xff]
      %v726 = vld [vmem:[%s1 + $0xac0] sm:$0xff]
      %v727 = vld [vmem:[%s1 + $0xac8] sm:$0xff]
      %v728 = vld [vmem:[%s1 + $0xad0] sm:$0xff]
      %v729 = vld [vmem:[%s1 + $0xad8] sm:$0xff]
      %v730 = vld [vmem:[%s1 + $0xae0] sm:$0xff]
      %v731 = vld [vmem:[%s1 + $0xae8] sm:$0xff]
      %v732 = vld [vmem:[%s1 + $0xaf0] sm:$0xff]
      %v733 = vld [vmem:[%s1 + $0xaf8] sm:$0xff]
      %v734 = vld [vmem:[%s1 + $0xb00] sm:$0xff]
      %v735 = vld [vmem:[%s1 + $0xb08] sm:$0xff]
      %v736 = vld [vmem:[%s1 + $0xb10] sm:$0xff]
      %v737 = vld [vmem:[%s1 + $0xb18] sm:$0xff]
      %v738 = vld [vmem:[%s1 + $0xb20] sm:$0xff]
      %v739 = vld [vmem:[%s1 + $0xb28] sm:$0xff]
      %v740 = vld [vmem:[%s1 + $0xb30] sm:$0xff]
      %v741 = vld [vmem:[%s1 + $0xb38] sm:$0xff]
      %v742 = vld [vmem:[%s1 + $0xb40] sm:$0xff]
      %v743 = vld [vmem:[%s1 + $0xb48] sm:$0xff]
      %v744 = vld [vmem:[%s1 + $0xb50] sm:$0xff]
      %v745 = vld [vmem:[%s1 + $0xb58] sm:$0xff]
      %v746 = vld [vmem:[%s1 + $0xb60] sm:$0xff]
      %v747 = vld [vmem:[%s1 + $0xb68] sm:$0xff]
      %v748 = vld [vmem:[%s1 + $0xb70] sm:$0xff]
      %v749 = vld [vmem:[%s1 + $0xb78] sm:$0xff]
      %v750 = vld [vmem:[%s1 + $0xb80] sm:$0xff]
      %v751 = vld [vmem:[%s1 + $0xb88] sm:$0xff]
      %v752 = vld [vmem:[%s1 + $0xb90] sm:$0xff]
      %v753 = vld [vmem:[%s1 + $0xb98] sm:$0xff]
      %v754 = vld [vmem:[%s1 + $0xba0] sm:$0xff]
      %v755 = vld [vmem:[%s1 + $0xba8] sm:$0xff]
      %v756 = vld [vmem:[%s1 + $0xbb0] sm:$0xff]
      %v757 = vld [vmem:[%s1 + $0xbb8] sm:$0xff]
      %v758 = vld [vmem:[%s1 + $0xbc0] sm:$0xff]
      %v759 = vld [vmem:[%s1 + $0xbc8] sm:$0xff]
      %v760 = vld [vmem:[%s1 + $0xbd0] sm:$0xff]
      %v761 = vld [vmem:[%s1 + $0xbd8] sm:$0xff]
      %v762 = vld [vmem:[%s1 + $0xbe0] sm:$0xff]
      %v763 = vld [vmem:[%s1 + $0xbe8] sm:$0xff]
      %v764 = vld [vmem:[%s1 + $0xbf0] sm:$0xff]
      %v765 = vld [vmem:[%s1 + $0xbf8] sm:$0xff]
      %v766 = vld [vmem:[%s1 + $0xc00] sm:$0xff]
      %v767 = vld [vmem:[%s1 + $0xc08] sm:$0xff]
      %v768 = vld [vmem:[%s1 + $0xc10] sm:$0xff]
      %v769 = vld [vmem:[%s1 + $0xc18] sm:$0xff]
      %v770 = vld [vmem:[%s1 + $0xc20] sm:$0xff]
      %v771 = vld [vmem:[%s1 + $0xc28] sm:$0xff]
      %v772 = vld [vmem:[%s1 + $0xc30] sm:$0xff]
      %v773 = vld [vmem:[%s1 + $0xc38] sm:$0xff]
      %v774 = vld [vmem:[%s1 + $0xc40] sm:$0xff]
      %v775 = vld [vmem:[%s1 + $0xc48] sm:$0xff]
      %v776 = vld [vmem:[%s1 + $0xc50] sm:$0xff]
      %v777 = vld [vmem:[%s1 + $0xc58] sm:$0xff]
      %v778 = vld [vmem:[%s1 + $0xc60] sm:$0xff]
      %v779 = vld [vmem:[%s1 + $0xc68] sm:$0xff]
      %v780 = vld [vmem:[%s1 + $0xc70] sm:$0xff]
      %v781 = vld [vmem:[%s1 + $0xc78] sm:$0xff]
      %v782 = vld [vmem:[%s1 + $0xc80] sm:$0xff]
      %v783 = vld [vmem:[%s1 + $0xc88] sm:$0xff]
      %v784 = vld [vmem:[%s1 + $0xc90] sm:$0xff]
      %v785 = vld [vmem:[%s1 + $0xc98] sm:$0xff]
      %v786 = vld [vmem:[%s1 + $0xca0] sm:$0xff]
      %v787 = vld [vmem:[%s1 + $0xca8] sm:$0xff]
      %v788 = vld [vmem:[%s1 + $0xcb0] sm:$0xff]
      %v789 = vld [vmem:[%s1 + $0xcb8] sm:$0xff]
      %v790 = vld [vmem:[%s1 + $0xcc0] sm:$0xff]
      %v791 = vld [vmem:[%s1 + $0xcc8] sm:$0xff]
      %v792 = vld [vmem:[%s1 + $0xcd0] sm:$0xff]
      %v793 = vld [vmem:[%s1 + $0xcd8] sm:$0xff]
      %v794 = vld [vmem:[%s1 + $0xce0] sm:$0xff]
      %v795 = vld [vmem:[%s1 + $0xce8] sm:$0xff]
      %v796 = vld [vmem:[%s1 + $0xcf0] sm:$0xff]
      %v797 = vld [vmem:[%s1 + $0xcf8] sm:$0xff]
      %v798 = vld [vmem:[%s1 + $0xd00] sm:$0xff]
      %v799 = vld [vmem:[%s1 + $0xd08] sm:$0xff]
      %v800 = vld [vmem:[%s1 + $0xd10] sm:$0xff]
      %v801 = vld [vmem:[%s1 + $0xd18] sm:$0xff]
      %v802 = vld [vmem:[%s1 + $0xd20] sm:$0xff]
      %v803 = vld [vmem:[%s1 + $0xd28] sm:$0xff]
      %v804 = vld [vmem:[%s1 + $0xd30] sm:$0xff]
      %v805 = vld [vmem:[%s1 + $0xd38] sm:$0xff]
      %v806 = vld [vmem:[%s1 + $0xd40] sm:$0xff]
      %v807 = vld [vmem:[%s1 + $0xd48] sm:$0xff]
      %v808 = vld [vmem:[%s1 + $0xd50] sm:$0xff]
      %v809 = vld [vmem:[%s1 + $0xd58] sm:$0xff]
      %v810 = vld [vmem:[%s1 + $0xd60] sm:$0xff]
      %v811 = vld [vmem:[%s1 + $0xd68] sm:$0xff]
      %v812 = vld [vmem:[%s1 + $0xd70] sm:$0xff]
      %v813 = vld [vmem:[%s1 + $0xd78] sm:$0xff]
      %v814 = vld [vmem:[%s1 + $0xd80] sm:$0xff]
      %v815 = vld [vmem:[%s1 + $0xd88] sm:$0xff]
      %v816 = vld [vmem:[%s1 + $0xd90] sm:$0xff]
      %v817 = vld [vmem:[%s1 + $0xd98] sm:$0xff]
      %v818 = vld [vmem:[%s1 + $0xda0] sm:$0xff]
      %v819 = vld [vmem:[%s1 + $0xda8] sm:$0xff]
      %v820 = vld [vmem:[%s1 + $0xdb0] sm:$0xff]
      %v821 = vld [vmem:[%s1 + $0xdb8] sm:$0xff]
      %v822 = vld [vmem:[%s1 + $0xdc0] sm:$0xff]
      %v823 = vld [vmem:[%s1 + $0xdc8] sm:$0xff]
      %v824 = vld [vmem:[%s1 + $0xdd0] sm:$0xff]
      %v825 = vld [vmem:[%s1 + $0xdd8] sm:$0xff]
      %v826 = vld [vmem:[%s1 + $0xde0] sm:$0xff]
      %v827 = vld [vmem:[%s1 + $0xde8] sm:$0xff]
      %v828 = vld [vmem:[%s1 + $0xdf0] sm:$0xff]
      %v829 = vld [vmem:[%s1 + $0xdf8] sm:$0xff]
      %v830 = vld [vmem:[%s1 + $0xe00] sm:$0xff]
      %v831 = vld [vmem:[%s1 + $0xe08] sm:$0xff]
      %v832 = vld [vmem:[%s1 + $0xe10] sm:$0xff]
      %v833 = vld [vmem:[%s1 + $0xe18] sm:$0xff]
      %v834 = vld [vmem:[%s1 + $0xe20] sm:$0xff]
      %v835 = vld [vmem:[%s1 + $0xe28] sm:$0xff]
      %v836 = vld [vmem:[%s1 + $0xe30] sm:$0xff]
      %v837 = vld [vmem:[%s1 + $0xe38] sm:$0xff]
      %v838 = vld [vmem:[%s1 + $0xe40] sm:$0xff]
      %v839 = vld [vmem:[%s1 + $0xe48] sm:$0xff]
      %v840 = vld [vmem:[%s1 + $0xe50] sm:$0xff]
      %v841 = vld [vmem:[%s1 + $0xe58] sm:$0xff]
      %v842 = vld [vmem:[%s1 + $0xe60] sm:$0xff]
      %v843 = vld [vmem:[%s1 + $0xe68] sm:$0xff]
      %v844 = vld [vmem:[%s1 + $0xe70] sm:$0xff]
      %v845 = vld [vmem:[%s1 + $0xe78] sm:$0xff]
      %v846 = vld [vmem:[%s1 + $0xe80] sm:$0xff]
      %v847 = vld [vmem:[%s1 + $0xe88] sm:$0xff]
      %v848 = vld [vmem:[%s1 + $0xe90] sm:$0xff]
      %v849 = vld [vmem:[%s1 + $0xe98] sm:$0xff]
      %v850 = vld [vmem:[%s1 + $0xea0] sm:$0xff]
      %v851 = vld [vmem:[%s1 + $0xea8] sm:$0xff]
      %v852 = vld [vmem:[%s1 + $0xeb0] sm:$0xff]
      %v853 = vld [vmem:[%s1 + $0xeb8] sm:$0xff]
      %v854 = vld [vmem:[%s1 + $0xec0] sm:$0xff]
      %v855 = vld [vmem:[%s1 + $0xec8] sm:$0xff]
      %v856 = vld [vmem:[%s1 + $0xed0] sm:$0xff]
      %v857 = vld [vmem:[%s1 + $0xed8] sm:$0xff]
      %v858 = vld [vmem:[%s1 + $0xee0] sm:$0xff]
      %v859 = vld [vmem:[%s1 + $0xee8] sm:$0xff]
      %v860 = vld [vmem:[%s1 + $0xef0] sm:$0xff]
      %v861 = vld [vmem:[%s1 + $0xef8] sm:$0xff]
      %v862 = vld [vmem:[%s1 + $0xf00] sm:$0xff]
      %v863 = vld [vmem:[%s1 + $0xf08] sm:$0xff]
      %v864 = vld [vmem:[%s1 + $0xf10] sm:$0xff]
      %v865 = vld [vmem:[%s1 + $0xf18] sm:$0xff]
      %v866 = vld [vmem:[%s1 + $0xf20] sm:$0xff]
      %v867 = vld [vmem:[%s1 + $0xf28] sm:$0xff]
      %v868 = vld [vmem:[%s1 + $0xf30] sm:$0xff]
      %v869 = vld [vmem:[%s1 + $0xf38] sm:$0xff]
      %v870 = vld [vmem:[%s1 + $0xf40] sm:$0xff]
      %v871 = vld [vmem:[%s1 + $0xf48] sm:$0xff]
      %v872 = vld [vmem:[%s1 + $0xf50] sm:$0xff]
      %v873 = vld [vmem:[%s1 + $0xf58] sm:$0xff]
      %v874 = vld [vmem:[%s1 + $0xf60] sm:$0xff]
      %v875 = vld [vmem:[%s1 + $0xf68] sm:$0xff]
      %v876 = vld [vmem:[%s1 + $0xf70] sm:$0xff]
      %v877 = vld [vmem:[%s1 + $0xf78] sm:$0xff]
      %v878 = vld [vmem:[%s1 + $0xf80] sm:$0xff]
      %v879 = vld [vmem:[%s1 + $0xf88] sm:$0xff]
      %v880 = vld [vmem:[%s1 + $0xf90] sm:$0xff]
      %v881 = vld [vmem:[%s1 + $0xf98] sm:$0xff]
      %v882 = vld [vmem:[%s1 + $0xfa0] sm:$0xff]
      %v883 = vld [vmem:[%s1 + $0xfa8] sm:$0xff]
      %v884 = vld [vmem:[%s1 + $0xfb0] sm:$0xff]
      %v885 = vld [vmem:[%s1 + $0xfb8] sm:$0xff]
      %v886 = vld [vmem:[%s1 + $0xfc0] sm:$0xff]
      %v887 = vld [vmem:[%s1 + $0xfc8] sm:$0xff]
      %v888 = vld [vmem:[%s1 + $0xfd0] sm:$0xff]
      %v889 = vld [vmem:[%s1 + $0xfd8] sm:$0xff]
      %v890 = vld [vmem:[%s1 + $0xfe0] sm:$0xff]
      %v891 = vld [vmem:[%s1 + $0xfe8] sm:$0xff]
      %v892 = vld [vmem:[%s1 + $0xff0] sm:$0xff]
      %v893 = vld [vmem:[%s1 + $0xff8] sm:$0xff]
      %v894 = vld [vmem:[%s1 + $0x1000] sm:$0xff]
      %v895 = vld [vmem:[%s1 + $0x1008] sm:$0xff]
      %v896 = vld [vmem:[%s1 + $0x1010] sm:$0xff]
      %v897 = vld [vmem:[%s1 + $0x1018] sm:$0xff]
      %v898 = vld [vmem:[%s1 + $0x1020] sm:$0xff]
      %v899 = vld [vmem:[%s1 + $0x1028] sm:$0xff]
      %v900 = vld [vmem:[%s1 + $0x1030] sm:$0xff]
      %v901 = vld [vmem:[%s1 + $0x1038] sm:$0xff]
      %v902 = vld [vmem:[%s1 + $0x1040] sm:$0xff]
      %v903 = vld [vmem:[%s1 + $0x1048] sm:$0xff]
      %v904 = vld [vmem:[%s1 + $0x1050] sm:$0xff]
      %v905 = vld [vmem:[%s1 + $0x1058] sm:$0xff]
      %v906 = vld [vmem:[%s1 + $0x1060] sm:$0xff]
      %v907 = vld [vmem:[%s1 + $0x1068] sm:$0xff]
      %v908 = vld [vmem:[%s1 + $0x1070] sm:$0xff]
      %v909 = vld [vmem:[%s1 + $0x1078] sm:$0xff]
      %v910 = vld [vmem:[%s1 + $0x1080] sm:$0xff]
      %v911 = vld [vmem:[%s1 + $0x1088] sm:$0xff]
      %v912 = vld [vmem:[%s1 + $0x1090] sm:$0xff]
      %v913 = vld [vmem:[%s1 + $0x1098] sm:$0xff]
      %v914 = vld [vmem:[%s1 + $0x10a0] sm:$0xff]
      %v915 = vld [vmem:[%s1 + $0x10a8] sm:$0xff]
      %v916 = vld [vmem:[%s1 + $0x10b0] sm:$0xff]
      %v917 = vld [vmem:[%s1 + $0x10b8] sm:$0xff]
      %v918 = vld [vmem:[%s1 + $0x10c0] sm:$0xff]
      %v919 = vld [vmem:[%s1 + $0x10c8] sm:$0xff]
      %v920 = vld [vmem:[%s1 + $0x10d0] sm:$0xff]
      %v921 = vld [vmem:[%s1 + $0x10d8] sm:$0xff]
      %v922 = vld [vmem:[%s1 + $0x10e0] sm:$0xff]
      %v923 = vld [vmem:[%s1 + $0x10e8] sm:$0xff]
      %v924 = vld [vmem:[%s1 + $0x10f0] sm:$0xff]
      %v925 = vld [vmem:[%s1 + $0x10f8] sm:$0xff]
      %v926 = vld [vmem:[%s1 + $0x1100] sm:$0xff]
      %v927 = vld [vmem:[%s1 + $0x1108] sm:$0xff]
      %v928 = vld [vmem:[%s1 + $0x1110] sm:$0xff]
      %v929 = vld [vmem:[%s1 + $0x1118] sm:$0xff]
      %v930 = vld [vmem:[%s1 + $0x1120] sm:$0xff]
      %v931 = vld [vmem:[%s1 + $0x1128] sm:$0xff]
      %v932 = vld [vmem:[%s1 + $0x1130] sm:$0xff]
      %v933 = vld [vmem:[%s1 + $0x1138] sm:$0xff]
      %v934 = vld [vmem:[%s1 + $0x1140] sm:$0xff]
      %v935 = vld [vmem:[%s1 + $0x1148] sm:$0xff]
      %v936 = vld [vmem:[%s1 + $0x1150] sm:$0xff]
      %v937 = vld [vmem:[%s1 + $0x1158] sm:$0xff]
      %v938 = vld [vmem:[%s1 + $0x1160] sm:$0xff]
      %v939 = vld [vmem:[%s1 + $0x1168] sm:$0xff]
      %v940 = vld [vmem:[%s1 + $0x1170] sm:$0xff]
      %v941 = vld [vmem:[%s1 + $0x1178] sm:$0xff]
      %v942 = vld [vmem:[%s1 + $0x1180] sm:$0xff]
      %v943 = vld [vmem:[%s1 + $0x1188] sm:$0xff]
      %v944 = vld [vmem:[%s1 + $0x1190] sm:$0xff]
      %v945 = vld [vmem:[%s1 + $0x1198] sm:$0xff]
      %v946 = vld [vmem:[%s1 + $0x11a0] sm:$0xff]
      %v947 = vld [vmem:[%s1 + $0x11a8] sm:$0xff]
      %v948 = vld [vmem:[%s1 + $0x11b0] sm:$0xff]
      %v949 = vld [vmem:[%s1 + $0x11b8] sm:$0xff]
      %v950 = vld [vmem:[%s1 + $0x11c0] sm:$0xff]
      %v951 = vld [vmem:[%s1 + $0x11c8] sm:$0xff]
      %v952 = vld [vmem:[%s1 + $0x11d0] sm:$0xff]
      %v953 = vld [vmem:[%s1 + $0x11d8] sm:$0xff]
      %v954 = vld [vmem:[%s1 + $0x11e0] sm:$0xff]
      %v955 = vld [vmem:[%s1 + $0x11e8] sm:$0xff]
      %v956 = vld [vmem:[%s1 + $0x11f0] sm:$0xff]
      %v957 = vld [vmem:[%s1 + $0x11f8] sm:$0xff]
      %v958 = vld [vmem:[%s1 + $0x1200] sm:$0xff]
      %v959 = vld [vmem:[%s1 + $0x1208] sm:$0xff]
      %v960 = vld [vmem:[%s1 + $0x1210] sm:$0xff]
      %v961 = vld [vmem:[%s1 + $0x1218] sm:$0xff]
      %v962 = vld [vmem:[%s1 + $0x1220] sm:$0xff]
      %v963 = vld [vmem:[%s1 + $0x1228] sm:$0xff]
      %v964 = vld [vmem:[%s1 + $0x1230] sm:$0xff]
      %v965 = vld [vmem:[%s1 + $0x1238] sm:$0xff]
      %v966 = vld [vmem:[%s1 + $0x1240] sm:$0xff]
      %v967 = vld [vmem:[%s1 + $0x1248] sm:$0xff]
      %v968 = vld [vmem:[%s1 + $0x1250] sm:$0xff]
      %v969 = vld [vmem:[%s1 + $0x1258] sm:$0xff]
      %v970 = vld [vmem:[%s1 + $0x1260] sm:$0xff]
      %v971 = vld [vmem:[%s1 + $0x1268] sm:$0xff]
      %v972 = vld [vmem:[%s1 + $0x1270] sm:$0xff]
      %v973 = vld [vmem:[%s1 + $0x1278] sm:$0xff]
      %v974 = vld [vmem:[%s1 + $0x1280] sm:$0xff]
      %v975 = vld [vmem:[%s1 + $0x1288] sm:$0xff]
      %v976 = vld [vmem:[%s1 + $0x1290] sm:$0xff]
      %v977 = vld [vmem:[%s1 + $0x1298] sm:$0xff]
      %v978 = vld [vmem:[%s1 + $0x12a0] sm:$0xff]
      %v979 = vld [vmem:[%s1 + $0x12a8] sm:$0xff]
      %v980 = vld [vmem:[%s1 + $0x12b0] sm:$0xff]
      %v981 = vld [vmem:[%s1 + $0x12b8] sm:$0xff]
      %v982 = vld [vmem:[%s1 + $0x12c0] sm:$0xff]
      %v983 = vld [vmem:[%s1 + $0x12c8] sm:$0xff]
      %v984 = vld [vmem:[%s1 + $0x12d0] sm:$0xff]
      %v985 = vld [vmem:[%s1 + $0x12d8] sm:$0xff]
      %v986 = vld [vmem:[%s1 + $0x12e0] sm:$0xff]
      %v987 = vld [vmem:[%s1 + $0x12e8] sm:$0xff]
      %v988 = vld [vmem:[%s1 + $0x12f0] sm:$0xff]
      %v989 = vld [vmem:[%s1 + $0x12f8] sm:$0xff]
      %v990 = vld [vmem:[%s1 + $0x1300] sm:$0xff]
      %v991 = vld [vmem:[%s1 + $0x1308] sm:$0xff]
      %v992 = vld [vmem:[%s1 + $0x1310] sm:$0xff]
      %v993 = vld [vmem:[%s1 + $0x1318] sm:$0xff]
      %v994 = vld [vmem:[%s1 + $0x1320] sm:$0xff]
      %v995 = vld [vmem:[%s1 + $0x1328] sm:$0xff]
      %v996 = vld [vmem:[%s1 + $0x1330] sm:$0xff]
      %v997 = vld [vmem:[%s1 + $0x1338] sm:$0xff]
      %v998 = vld [vmem:[%s1 + $0x1340] sm:$0xff]
      %v999 = vld [vmem:[%s1 + $0x1348] sm:$0xff]
      %v1000 = vld [vmem:[%s1 + $0x1350] sm:$0xff]
      %v1001 = vld [vmem:[%s1 + $0x1358] sm:$0xff]
      %v1002 = vld [vmem:[%s1 + $0x1360] sm:$0xff]
      %v1003 = vld [vmem:[%s1 + $0x1368] sm:$0xff]
      %v1004 = vld [vmem:[%s1 + $0x1370] sm:$0xff]
      %v1005 = vld [vmem:[%s1 + $0x1378] sm:$0xff]
      %v1006 = vld [vmem:[%s1 + $0x1380] sm:$0xff]
      %v1007 = vld [vmem:[%s1 + $0x1388] sm:$0xff]
      %v1008 = vld [vmem:[%s1 + $0x1390] sm:$0xff]
      %v1009 = vld [vmem:[%s1 + $0x1398] sm:$0xff]
      %v1010 = vld [vmem:[%s1 + $0x13a0] sm:$0xff]
      %v1011 = vld [vmem:[%s1 + $0x13a8] sm:$0xff]
      %v1012 = vld [vmem:[%s1 + $0x13b0] sm:$0xff]
      %v1013 = vld [vmem:[%s1 + $0x13b8] sm:$0xff]
      %v1014 = vld [vmem:[%s1 + $0x13c0] sm:$0xff]
      %v1015 = vld [vmem:[%s1 + $0x13c8] sm:$0xff]
      %v1016 = vld [vmem:[%s1 + $0x13d0] sm:$0xff]
      %v1017 = vld [vmem:[%s1 + $0x13d8] sm:$0xff]
      %v1018 = vld [vmem:[%s1 + $0x13e0] sm:$0xff]
      %v1019 = vld [vmem:[%s1 + $0x13e8] sm:$0xff]
      %v1020 = vld [vmem:[%s1 + $0x13f0] sm:$0xff]
      %v1021 = vld [vmem:[%s1 + $0x13f8] sm:$0xff]
      %v1022 = vld [vmem:[%s1 + $0x1400] sm:$0xff]
      %v1023 = vld [vmem:[%s1 + $0x1408] sm:$0xff]
      %v1024 = vld [vmem:[%s1 + $0x1410] sm:$0xff]
      %v1025 = vld [vmem:[%s1 + $0x1418] sm:$0xff]
      %v1026 = vld [vmem:[%s1 + $0x1420] sm:$0xff]
      %v1027 = vld [vmem:[%s1 + $0x1428] sm:$0xff]
      %v1028 = vld [vmem:[%s1 + $0x1430] sm:$0xff]
      %v1029 = vld [vmem:[%s1 + $0x1438] sm:$0xff]
      %v1030 = vld [vmem:[%s1 + $0x1440] sm:$0xff]
      %v1031 = vld [vmem:[%s1 + $0x1448] sm:$0xff]
      %v1032 = vld [vmem:[%s1 + $0x1450] sm:$0xff]
      %v1033 = vld [vmem:[%s1 + $0x1458] sm:$0xff]
      %v1034 = vld [vmem:[%s1 + $0x1460] sm:$0xff]
      %v1035 = vld [vmem:[%s1 + $0x1468] sm:$0xff]
      %v1036 = vld [vmem:[%s1 + $0x1470] sm:$0xff]
      %v1037 = vld [vmem:[%s1 + $0x1478] sm:$0xff]
      %v1038 = vld [vmem:[%s1 + $0x1480] sm:$0xff]
      %v1039 = vld [vmem:[%s1 + $0x1488] sm:$0xff]
      %v1040 = vld [vmem:[%s1 + $0x1490] sm:$0xff]
      %v1041 = vld [vmem:[%s1 + $0x1498] sm:$0xff]
      %v1042 = vld [vmem:[%s1 + $0x14a0] sm:$0xff]
      %v1043 = vld [vmem:[%s1 + $0x14a8] sm:$0xff]
      %v1044 = vld [vmem:[%s1 + $0x14b0] sm:$0xff]
      %v1045 = vld [vmem:[%s1 + $0x14b8] sm:$0xff]
      %v1046 = vld [vmem:[%s1 + $0x14c0] sm:$0xff]
      %v1047 = vld [vmem:[%s1 + $0x14c8] sm:$0xff]
      %v1048 = vld [vmem:[%s1 + $0x14d0] sm:$0xff]
      %v1049 = vld [vmem:[%s1 + $0x14d8] sm:$0xff]
      %v1050 = vld [vmem:[%s1 + $0x14e0] sm:$0xff]
      %v1051 = vld [vmem:[%s1 + $0x14e8] sm:$0xff]
      %v1052 = vld [vmem:[%s1 + $0x14f0] sm:$0xff]
      %v1053 = vld [vmem:[%s1 + $0x14f8] sm:$0xff]
      %v1054 = vld [vmem:[%s1 + $0x1500] sm:$0xff]
      %v1055 = vld [vmem:[%s1 + $0x1508] sm:$0xff]
      %v1056 = vld [vmem:[%s1 + $0x1510] sm:$0xff]
      %v1057 = vld [vmem:[%s1 + $0x1518] sm:$0xff]
      %v1058 = vld [vmem:[%s1 + $0x1520] sm:$0xff]
      %v1059 = vld [vmem:[%s1 + $0x1528] sm:$0xff]
      %v1060 = vld [vmem:[%s1 + $0x1530] sm:$0xff]
      %v1061 = vld [vmem:[%s1 + $0x1538] sm:$0xff]
      %v1062 = vld [vmem:[%s1 + $0x1540] sm:$0xff]
      %v1063 = vld [vmem:[%s1 + $0x1548] sm:$0xff]
      %v1064 = vld [vmem:[%s1 + $0x1550] sm:$0xff]
      %v1065 = vld [vmem:[%s1 + $0x1558] sm:$0xff]
      %v1066 = vld [vmem:[%s1 + $0x1560] sm:$0xff]
      %v1067 = vld [vmem:[%s1 + $0x1568] sm:$0xff]
      %v1068 = vld [vmem:[%s1 + $0x1570] sm:$0xff]
      %v1069 = vld [vmem:[%s1 + $0x1578] sm:$0xff]
      %v1070 = vld [vmem:[%s1 + $0x1580] sm:$0xff]
      %v1071 = vld [vmem:[%s1 + $0x1588] sm:$0xff]
      %v1072 = vld [vmem:[%s1 + $0x1590] sm:$0xff]
      %v1073 = vld [vmem:[%s1 + $0x1598] sm:$0xff]
      %v1074 = vld [vmem:[%s1 + $0x15a0] sm:$0xff]
      %v1075 = vld [vmem:[%s1 + $0x15a8] sm:$0xff]
      %v1076 = vld [vmem:[%s1 + $0x15b0] sm:$0xff]
      %v1077 = vld [vmem:[%s1 + $0x15b8] sm:$0xff]
      %v1078 = vld [vmem:[%s1 + $0x15c0] sm:$0xff]
      %v1079 = vld [vmem:[%s1 + $0x15c8] sm:$0xff]
      %v1080 = vld [vmem:[%s1 + $0x15d0] sm:$0xff]
      %v1081 = vld [vmem:[%s1 + $0x15d8] sm:$0xff]
      %v1082 = vld [vmem:[%s1 + $0x15e0] sm:$0xff]
      %v1083 = vld [vmem:[%s1 + $0x15e8] sm:$0xff]
      %v1084 = vld [vmem:[%s1 + $0x15f0] sm:$0xff]
      %v1085 = vld [vmem:[%s1 + $0x15f8] sm:$0xff]
      %v1086 = vld [vmem:[%s1 + $0x1600] sm:$0xff]
      %v1087 = vld [vmem:[%s1 + $0x1608] sm:$0xff]
      %v1088 = vld [vmem:[%s1 + $0x1610] sm:$0xff]
      %v1089 = vld [vmem:[%s1 + $0x1618] sm:$0xff]
      %v1090 = vld [vmem:[%s1 + $0x1620] sm:$0xff]
      %v1091 = vld [vmem:[%s1 + $0x1628] sm:$0xff]
      %v1092 = vld [vmem:[%s1 + $0x1630] sm:$0xff]
      %v1093 = vld [vmem:[%s1 + $0x1638] sm:$0xff]
      %v1094 = vld [vmem:[%s1 + $0x1640] sm:$0xff]
      %v1095 = vld [vmem:[%s1 + $0x1648] sm:$0xff]
      %v1096 = vld [vmem:[%s1 + $0x1650] sm:$0xff]
      %v1097 = vld [vmem:[%s1 + $0x1658] sm:$0xff]
      %v1098 = vld [vmem:[%s1 + $0x1660] sm:$0xff]
      %v1099 = vld [vmem:[%s1 + $0x1668] sm:$0xff]
      %v1100 = vld [vmem:[%s1 + $0x1670] sm:$0xff]
      %v1101 = vld [vmem:[%s1 + $0x1678] sm:$0xff]
      %v1102 = vld [vmem:[%s1 + $0x1680] sm:$0xff]
      %v1103 = vld [vmem:[%s1 + $0x1688] sm:$0xff]
      %v1104 = vld [vmem:[%s1 + $0x1690] sm:$0xff]
      %v1105 = vld [vmem:[%s1 + $0x1698] sm:$0xff]
      %v1106 = vld [vmem:[%s1 + $0x16a0] sm:$0xff]
      %v1107 = vld [vmem:[%s1 + $0x16a8] sm:$0xff]
      %v1108 = vld [vmem:[%s1 + $0x16b0] sm:$0xff]
      %v1109 = vld [vmem:[%s1 + $0x16b8] sm:$0xff]
      %v1110 = vld [vmem:[%s1 + $0x16c0] sm:$0xff]
      %v1111 = vld [vmem:[%s1 + $0x16c8] sm:$0xff]
      %v1112 = vld [vmem:[%s1 + $0x16d0] sm:$0xff]
      %v1113 = vld [vmem:[%s1 + $0x16d8] sm:$0xff]
      %v1114 = vld [vmem:[%s1 + $0x16e0] sm:$0xff]
      %v1115 = vld [vmem:[%s1 + $0x16e8] sm:$0xff]
      %v1116 = vld [vmem:[%s1 + $0x16f0] sm:$0xff]
      %v1117 = vld [vmem:[%s1 + $0x16f8] sm:$0xff]
      %v1118 = vld [vmem:[%s1 + $0x1700] sm:$0xff]
      %v1119 = vld [vmem:[%s1 + $0x1708] sm:$0xff]
      %v1120 = vld [vmem:[%s1 + $0x1710] sm:$0xff]
      %v1121 = vld [vmem:[%s1 + $0x1718] sm:$0xff]
      %v1122 = vld [vmem:[%s1 + $0x1720] sm:$0xff]
      %v1123 = vld [vmem:[%s1 + $0x1728] sm:$0xff]
      %v1124 = vld [vmem:[%s1 + $0x1730] sm:$0xff]
      %v1125 = vld [vmem:[%s1 + $0x1738] sm:$0xff]
      %v1126 = vld [vmem:[%s1 + $0x1740] sm:$0xff]
      %v1127 = vld [vmem:[%s1 + $0x1748] sm:$0xff]
      %v1128 = vld [vmem:[%s1 + $0x1750] sm:$0xff]
      %v1129 = vld [vmem:[%s1 + $0x1758] sm:$0xff]
      %v1130 = vld [vmem:[%s1 + $0x1760] sm:$0xff]
      %v1131 = vld [vmem:[%s1 + $0x1768] sm:$0xff]
      %v1132 = vld [vmem:[%s1 + $0x1770] sm:$0xff]
      %v1133 = vld [vmem:[%s1 + $0x1778] sm:$0xff]
      %v1134 = vld [vmem:[%s1 + $0x1780] sm:$0xff]
      %v1135 = vld [vmem:[%s1 + $0x1788] sm:$0xff]
      %v1136 = vld [vmem:[%s1 + $0x1790] sm:$0xff]
      %v1137 = vld [vmem:[%s1 + $0x1798] sm:$0xff]
      %v1138 = vld [vmem:[%s1 + $0x17a0] sm:$0xff]
      %v1139 = vld [vmem:[%s1 + $0x17a8] sm:$0xff]
      %v1140 = vld [vmem:[%s1 + $0x17b0] sm:$0xff]
      %v1141 = vld [vmem:[%s1 + $0x17b8] sm:$0xff]
      %v1142 = vld [vmem:[%s1 + $0x17c0] sm:$0xff]
      %v1143 = vld [vmem:[%s1 + $0x17c8] sm:$0xff]
      %v1144 = vld [vmem:[%s1 + $0x17d0] sm:$0xff]
      %v1145 = vld [vmem:[%s1 + $0x17d8] sm:$0xff]
      %v1146 = vld [vmem:[%s1 + $0x17e0] sm:$0xff]
      %v1147 = vld [vmem:[%s1 + $0x17e8] sm:$0xff]
      %v1148 = vld [vmem:[%s1 + $0x17f0] sm:$0xff]
      %v1149 = vld [vmem:[%s1 + $0x17f8] sm:$0xff]
      %v1150 = vld [vmem:[%s1 + $0x1800] sm:$0xff]
      %v1151 = vld [vmem:[%s1 + $0x1808] sm:$0xff]
      %v1152 = vld [vmem:[%s1 + $0x1810] sm:$0xff]
      %v1153 = vld [vmem:[%s1 + $0x1818] sm:$0xff]
      %v1154 = vld [vmem:[%s1 + $0x1820] sm:$0xff]
      %v1155 = vld [vmem:[%s1 + $0x1828] sm:$0xff]
      %v1156 = vld [vmem:[%s1 + $0x1830] sm:$0xff]
      %v1157 = vld [vmem:[%s1 + $0x1838] sm:$0xff]
      %v1158 = vld [vmem:[%s1 + $0x1840] sm:$0xff]
      %v1159 = vld [vmem:[%s1 + $0x1848] sm:$0xff]
      %v1160 = vld [vmem:[%s1 + $0x1850] sm:$0xff]
      %v1161 = vld [vmem:[%s1 + $0x1858] sm:$0xff]
      %v1162 = vld [vmem:[%s1 + $0x1860] sm:$0xff]
      %v1163 = vld [vmem:[%s1 + $0x1868] sm:$0xff]
      %v1164 = vld [vmem:[%s1 + $0x1870] sm:$0xff]
      %v1165 = vld [vmem:[%s1 + $0x1878] sm:$0xff]
      %v1166 = vld [vmem:[%s1 + $0x1880] sm:$0xff]
      %v1167 = vld [vmem:[%s1 + $0x1888] sm:$0xff]
      %v1168 = vld [vmem:[%s1 + $0x1890] sm:$0xff]
      %v1169 = vld [vmem:[%s1 + $0x1898] sm:$0xff]
      %v1170 = vld [vmem:[%s1 + $0x18a0] sm:$0xff]
      %v1171 = vld [vmem:[%s1 + $0x18a8] sm:$0xff]
      %v1172 = vld [vmem:[%s1 + $0x18b0] sm:$0xff]
      %v1173 = vld [vmem:[%s1 + $0x18b8] sm:$0xff]
      %v1174 = vld [vmem:[%s1 + $0x18c0] sm:$0xff]
      %v1175 = vld [vmem:[%s1 + $0x18c8] sm:$0xff]
      %v1176 = vld [vmem:[%s1 + $0x18d0] sm:$0xff]
      %v1177 = vld [vmem:[%s1 + $0x18d8] sm:$0xff]
      %v1178 = vld [vmem:[%s1 + $0x18e0] sm:$0xff]
      %v1179 = vld [vmem:[%s1 + $0x18e8] sm:$0xff]
      %v1180 = vld [vmem:[%s1 + $0x18f0] sm:$0xff]
      %v1181 = vld [vmem:[%s1 + $0x18f8] sm:$0xff]
      %v1182 = vld [vmem:[%s1 + $0x1900] sm:$0xff]
      %v1183 = vld [vmem:[%s1 + $0x1908] sm:$0xff]
      %v1184 = vld [vmem:[%s1 + $0x1910] sm:$0xff]
      %v1185 = vld [vmem:[%s1 + $0x1918] sm:$0xff]
      %v1186 = vld [vmem:[%s1 + $0x1920] sm:$0xff]
      %v1187 = vld [vmem:[%s1 + $0x1928] sm:$0xff]
      %v1188 = vld [vmem:[%s1 + $0x1930] sm:$0xff]
      %v1189 = vld [vmem:[%s1 + $0x1938] sm:$0xff]
      %v1190 = vld [vmem:[%s1 + $0x1940] sm:$0xff]
      %v1191 = vld [vmem:[%s1 + $0x1948] sm:$0xff]
      %v1192 = vld [vmem:[%s1 + $0x1950] sm:$0xff]
      %v1193 = vld [vmem:[%s1 + $0x1958] sm:$0xff]
      %v1194 = vld [vmem:[%s1 + $0x1960] sm:$0xff]
      %v1195 = vld [vmem:[%s1 + $0x1968] sm:$0xff]
      %v1196 = vld [vmem:[%s1 + $0x1970] sm:$0xff]
      %v1197 = vld [vmem:[%s1 + $0x1978] sm:$0xff]
      %v1198 = vld [vmem:[%s1 + $0x1980] sm:$0xff]
      %v1199 = vld [vmem:[%s1 + $0x1988] sm:$0xff]
      %v1200 = vld [vmem:[%s1 + $0x1990] sm:$0xff]
      %v1201 = vld [vmem:[%s1 + $0x1998] sm:$0xff]
      %v1202 = vld [vmem:[%s1 + $0x19a0] sm:$0xff]
      %v1203 = vld [vmem:[%s1 + $0x19a8] sm:$0xff]
      %v1204 = vld [vmem:[%s1 + $0x19b0] sm:$0xff]
      %v1205 = vld [vmem:[%s1 + $0x19b8] sm:$0xff]
      %v1206 = vld [vmem:[%s1 + $0x19c0] sm:$0xff]
      %v1207 = vld [vmem:[%s1 + $0x19c8] sm:$0xff]
      %v1208 = vld [vmem:[%s1 + $0x19d0] sm:$0xff]
      %v1209 = vld [vmem:[%s1 + $0x19d8] sm:$0xff]
      %v1210 = vld [vmem:[%s1 + $0x19e0] sm:$0xff]
      %v1211 = vld [vmem:[%s1 + $0x19e8] sm:$0xff]
      %v1212 = vld [vmem:[%s1 + $0x19f0] sm:$0xff]
      %v1213 = vld [vmem:[%s1 + $0x19f8] sm:$0xff]
      %v1214 = vld [vmem:[%s1 + $0x1a00] sm:$0xff]
      %v1215 = vld [vmem:[%s1 + $0x1a08] sm:$0xff]
      %v1216 = vld [vmem:[%s1 + $0x1a10] sm:$0xff]
      %v1217 = vld [vmem:[%s1 + $0x1a18] sm:$0xff]
      %v1218 = vld [vmem:[%s1 + $0x1a20] sm:$0xff]
      %v1219 = vld [vmem:[%s1 + $0x1a28] sm:$0xff]
      %v1220 = vld [vmem:[%s1 + $0x1a30] sm:$0xff]
      %v1221 = vld [vmem:[%s1 + $0x1a38] sm:$0xff]
      %v1222 = vld [vmem:[%s1 + $0x1a40] sm:$0xff]
      %v1223 = vld [vmem:[%s1 + $0x1a48] sm:$0xff]
      %v1224 = vld [vmem:[%s1 + $0x1a50] sm:$0xff]
      %v1225 = vld [vmem:[%s1 + $0x1a58] sm:$0xff]
      %v1226 = vld [vmem:[%s1 + $0x1a60] sm:$0xff]
      %v1227 = vld [vmem:[%s1 + $0x1a68] sm:$0xff]
      %v1228 = vld [vmem:[%s1 + $0x1a70] sm:$0xff]
      %v1229 = vld [vmem:[%s1 + $0x1a78] sm:$0xff]
      %v1230 = vld [vmem:[%s1 + $0x1a80] sm:$0xff]
      %v1231 = vld [vmem:[%s1 + $0x1a88] sm:$0xff]
      %v1232 = vld [vmem:[%s1 + $0x1a90] sm:$0xff]
      %v1233 = vld [vmem:[%s1 + $0x1a98] sm:$0xff]
      %v1234 = vld [vmem:[%s1 + $0x1aa0] sm:$0xff]
      %v1235 = vld [vmem:[%s1 + $0x1aa8] sm:$0xff]
      %v1236 = vld [vmem:[%s1 + $0x1ab0] sm:$0xff]
      %v1237 = vld [vmem:[%s1 + $0x1ab8] sm:$0xff]
      %v1238 = vld [vmem:[%s1 + $0x1ac0] sm:$0xff]
      %v1239 = vld [vmem:[%s1 + $0x1ac8] sm:$0xff]
      %v1240 = vld [vmem:[%s1 + $0x1ad0] sm:$0xff]
      %v1241 = vld [vmem:[%s1 + $0x1ad8] sm:$0xff]
      %v1242 = vld [vmem:[%s1 + $0x1ae0] sm:$0xff]
      %v1243 = vld [vmem:[%s1 + $0x1ae8] sm:$0xff]
      %v1244 = vld [vmem:[%s1 + $0x1af0] sm:$0xff]
      %v1245 = vld [vmem:[%s1 + $0x1af8] sm:$0xff]
      %v1246 = vld [vmem:[%s1 + $0x1b00] sm:$0xff]
      %v1247 = vld [vmem:[%s1 + $0x1b08] sm:$0xff]
      %v1248 = vld [vmem:[%s1 + $0x1b10] sm:$0xff]
      %v1249 = vld [vmem:[%s1 + $0x1b18] sm:$0xff]
      %v1250 = vld [vmem:[%s1 + $0x1b20] sm:$0xff]
      %v1251 = vld [vmem:[%s1 + $0x1b28] sm:$0xff]
      %v1252 = vld [vmem:[%s1 + $0x1b30] sm:$0xff]
      %v1253 = vld [vmem:[%s1 + $0x1b38] sm:$0xff]
      %v1254 = vld [vmem:[%s1 + $0x1b40] sm:$0xff]
      %v1255 = vld [vmem:[%s1 + $0x1b48] sm:$0xff]
      %v1256 = vld [vmem:[%s1 + $0x1b50] sm:$0xff]
      %v1257 = vld [vmem:[%s1 + $0x1b58] sm:$0xff]
      %v1258 = vld [vmem:[%s1 + $0x1b60] sm:$0xff]
      %v1259 = vld [vmem:[%s1 + $0x1b68] sm:$0xff]
      %v1260 = vld [vmem:[%s1 + $0x1b70] sm:$0xff]
      %v1261 = vld [vmem:[%s1 + $0x1b78] sm:$0xff]
      %v1262 = vld [vmem:[%s1 + $0x1b80] sm:$0xff]
      %v1263 = vld [vmem:[%s1 + $0x1b88] sm:$0xff]
      %v1264 = vld [vmem:[%s1 + $0x1b90] sm:$0xff]
      %v1265 = vld [vmem:[%s1 + $0x1b98] sm:$0xff]
      %v1266 = vld [vmem:[%s1 + $0x1ba0] sm:$0xff]
      %v1267 = vld [vmem:[%s1 + $0x1ba8] sm:$0xff]
      %v1268 = vld [vmem:[%s1 + $0x1bb0] sm:$0xff]
      %v1269 = vld [vmem:[%s1 + $0x1bb8] sm:$0xff]
      %v1270 = vld [vmem:[%s1 + $0x1bc0] sm:$0xff]
      %v1271 = vld [vmem:[%s1 + $0x1bc8] sm:$0xff]
      %v1272 = vld [vmem:[%s1 + $0x1bd0] sm:$0xff]
      %v1273 = vld [vmem:[%s1 + $0x1bd8] sm:$0xff]
      %v1274 = vld [vmem:[%s1 + $0x1be0] sm:$0xff]
      %v1275 = vld [vmem:[%s1 + $0x1be8] sm:$0xff]
      %v1276 = vld [vmem:[%s1 + $0x1bf0] sm:$0xff]
      %v1277 = vld [vmem:[%s1 + $0x1bf8] sm:$0xff]
      %v1278 = vld [vmem:[%s1 + $0x1c00] sm:$0xff]
      %v1279 = vld [vmem:[%s1 + $0x1c08] sm:$0xff]
      %v1280 = vld [vmem:[%s1 + $0x1c10] sm:$0xff]
      %v1281 = vld [vmem:[%s1 + $0x1c18] sm:$0xff]
      %v1282 = vld [vmem:[%s1 + $0x1c20] sm:$0xff]
      %v1283 = vld [vmem:[%s1 + $0x1c28] sm:$0xff]
      %v1284 = vld [vmem:[%s1 + $0x1c30] sm:$0xff]
      %v1285 = vld [vmem:[%s1 + $0x1c38] sm:$0xff]
      %v1286 = vld [vmem:[%s1 + $0x1c40] sm:$0xff]
      %v1287 = vld [vmem:[%s1 + $0x1c48] sm:$0xff]
      %v1288 = vld [vmem:[%s1 + $0x1c50] sm:$0xff]
      %v1289 = vld [vmem:[%s1 + $0x1c58] sm:$0xff]
      %v1290 = vld [vmem:[%s1 + $0x1c60] sm:$0xff]
      %v1291 = vld [vmem:[%s1 + $0x1c68] sm:$0xff]
      %v1292 = vld [vmem:[%s1 + $0x1c70] sm:$0xff]
      %v1293 = vld [vmem:[%s1 + $0x1c78] sm:$0xff]
      %v1294 = vld [vmem:[%s1 + $0x1c80] sm:$0xff]
      %v1295 = vld [vmem:[%s1 + $0x1c88] sm:$0xff]
      %v1296 = vld [vmem:[%s1 + $0x1c90] sm:$0xff]
      %v1297 = vld [vmem:[%s1 + $0x1c98] sm:$0xff]
      %v1298 = vld [vmem:[%s1 + $0x1ca0] sm:$0xff]
      %v1299 = vld [vmem:[%s1 + $0x1ca8] sm:$0xff]
      %v1300 = vld [vmem:[%s1 + $0x1cb0] sm:$0xff]
      %v1301 = vld [vmem:[%s1 + $0x1cb8] sm:$0xff]
      %v1302 = vld [vmem:[%s1 + $0x1cc0] sm:$0xff]
      %v1303 = vld [vmem:[%s1 + $0x1cc8] sm:$0xff]
      %v1304 = vld [vmem:[%s1 + $0x1cd0] sm:$0xff]
      %v1305 = vld [vmem:[%s1 + $0x1cd8] sm:$0xff]
      %v1306 = vld [vmem:[%s1 + $0x1ce0] sm:$0xff]
      %v1307 = vld [vmem:[%s1 + $0x1ce8] sm:$0xff]
      %v1308 = vld [vmem:[%s1 + $0x1cf0] sm:$0xff]
      %v1309 = vld [vmem:[%s1 + $0x1cf8] sm:$0xff]
      %v1310 = vld [vmem:[%s1 + $0x1d00] sm:$0xff]
      %v1311 = vld [vmem:[%s1 + $0x1d08] sm:$0xff]
      %v1312 = vld [vmem:[%s1 + $0x1d10] sm:$0xff]
      %v1313 = vld [vmem:[%s1 + $0x1d18] sm:$0xff]
      %v1314 = vld [vmem:[%s1 + $0x1d20] sm:$0xff]
      %v1315 = vld [vmem:[%s1 + $0x1d28] sm:$0xff]
      %v1316 = vld [vmem:[%s1 + $0x1d30] sm:$0xff]
      %v1317 = vld [vmem:[%s1 + $0x1d38] sm:$0xff]
      %v1318 = vld [vmem:[%s1 + $0x1d40] sm:$0xff]
      %v1319 = vld [vmem:[%s1 + $0x1d48] sm:$0xff]
      %v1320 = vld [vmem:[%s1 + $0x1d50] sm:$0xff]
      %v1321 = vld [vmem:[%s1 + $0x1d58] sm:$0xff]
      %v1322 = vld [vmem:[%s1 + $0x1d60] sm:$0xff]
      %v1323 = vld [vmem:[%s1 + $0x1d68] sm:$0xff]
      %v1324 = vld [vmem:[%s1 + $0x1d70] sm:$0xff]
      %v1325 = vld [vmem:[%s1 + $0x1d78] sm:$0xff]
      %v1326 = vld [vmem:[%s1 + $0x1d80] sm:$0xff]
      %v1327 = vld [vmem:[%s1 + $0x1d88] sm:$0xff]
      %v1328 = vld [vmem:[%s1 + $0x1d90] sm:$0xff]
      %v1329 = vld [vmem:[%s1 + $0x1d98] sm:$0xff]
      %v1330 = vld [vmem:[%s1 + $0x1da0] sm:$0xff]
      %v1331 = vld [vmem:[%s1 + $0x1da8] sm:$0xff]
      %v1332 = vld [vmem:[%s1 + $0x1db0] sm:$0xff]
      %v1333 = vld [vmem:[%s1 + $0x1db8] sm:$0xff]
      %v1334 = vld [vmem:[%s1 + $0x1dc0] sm:$0xff]
      %v1335 = vld [vmem:[%s1 + $0x1dc8] sm:$0xff]
      %v1336 = vld [vmem:[%s1 + $0x1dd0] sm:$0xff]
      %v1337 = vld [vmem:[%s1 + $0x1dd8] sm:$0xff]
      %v1338 = vld [vmem:[%s1 + $0x1de0] sm:$0xff]
      %v1339 = vld [vmem:[%s1 + $0x1de8] sm:$0xff]
      %v1340 = vld [vmem:[%s1 + $0x1df0] sm:$0xff]
      %v1341 = vld [vmem:[%s1 + $0x1df8] sm:$0xff]
      %v1342 = vld [vmem:[%s1 + $0x1e00] sm:$0xff]
      %v1343 = vld [vmem:[%s1 + $0x1e08] sm:$0xff]
      %v1344 = vld [vmem:[%s1 + $0x1e10] sm:$0xff]
      %v1345 = vld [vmem:[%s1 + $0x1e18] sm:$0xff]
      %v1346 = vld [vmem:[%s1 + $0x1e20] sm:$0xff]
      %v1347 = vld [vmem:[%s1 + $0x1e28] sm:$0xff]
      %v1348 = vld [vmem:[%s1 + $0x1e30] sm:$0xff]
      %v1349 = vld [vmem:[%s1 + $0x1e38] sm:$0xff]
      %v1350 = vld [vmem:[%s1 + $0x1e40] sm:$0xff]
      %v1351 = vld [vmem:[%s1 + $0x1e48] sm:$0xff]
      %v1352 = vld [vmem:[%s1 + $0x1e50] sm:$0xff]
      %v1353 = vld [vmem:[%s1 + $0x1e58] sm:$0xff]
      %v1354 = vld [vmem:[%s1 + $0x1e60] sm:$0xff]
      %v1355 = vld [vmem:[%s1 + $0x1e68] sm:$0xff]
      %v1356 = vld [vmem:[%s1 + $0x1e70] sm:$0xff]
      %v1357 = vld [vmem:[%s1 + $0x1e78] sm:$0xff]
      %v1358 = vld [vmem:[%s1 + $0x1e80] sm:$0xff]
      %v1359 = vld [vmem:[%s1 + $0x1e88] sm:$0xff]
      %v1360 = vld [vmem:[%s1 + $0x1e90] sm:$0xff]
      %v1361 = vld [vmem:[%s1 + $0x1e98] sm:$0xff]
      %v1362 = vld [vmem:[%s1 + $0x1ea0] sm:$0xff]
      %v1363 = vld [vmem:[%s1 + $0x1ea8] sm:$0xff]
      %v1364 = vld [vmem:[%s1 + $0x1eb0] sm:$0xff]
      %v1365 = vld [vmem:[%s1 + $0x1eb8] sm:$0xff]
      %v1366 = vld [vmem:[%s1 + $0x1ec0] sm:$0xff]
      %v1367 = vld [vmem:[%s1 + $0x1ec8] sm:$0xff]
      %v1368 = vld [vmem:[%s1 + $0x1ed0] sm:$0xff]
      %v1369 = vld [vmem:[%s1 + $0x1ed8] sm:$0xff]
      %v1370 = vld [vmem:[%s1 + $0x1ee0] sm:$0xff]
      %v1371 = vld [vmem:[%s1 + $0x1ee8] sm:$0xff]
      %v1372 = vld [vmem:[%s1 + $0x1ef0] sm:$0xff]
      %v1373 = vld [vmem:[%s1 + $0x1ef8] sm:$0xff]
      %v1374 = vld [vmem:[%s1 + $0x1f00] sm:$0xff]
      %v1375 = vld [vmem:[%s1 + $0x1f08] sm:$0xff]
      %v1376 = vld [vmem:[%s1 + $0x1f10] sm:$0xff]
      %v1377 = vld [vmem:[%s1 + $0x1f18] sm:$0xff]
      %v1378 = vld [vmem:[%s1 + $0x1f20] sm:$0xff]
      %v1379 = vld [vmem:[%s1 + $0x1f28] sm:$0xff]
      %v1380 = vld [vmem:[%s1 + $0x1f30] sm:$0xff]
      %v1381 = vld [vmem:[%s1 + $0x1f38] sm:$0xff]
      %v1382 = vld [vmem:[%s1 + $0x1f40] sm:$0xff]
      %v1383 = vld [vmem:[%s1 + $0x1f48] sm:$0xff]
      %v1384 = vld [vmem:[%s1 + $0x1f50] sm:$0xff]
      %v1385 = vld [vmem:[%s1 + $0x1f58] sm:$0xff]
      %v1386 = vld [vmem:[%s1 + $0x1f60] sm:$0xff]
      %v1387 = vld [vmem:[%s1 + $0x1f68] sm:$0xff]
      %v1388 = vld [vmem:[%s1 + $0x1f70] sm:$0xff]
      %v1389 = vld [vmem:[%s1 + $0x1f78] sm:$0xff]
      %v1390 = vld [vmem:[%s1 + $0x1f80] sm:$0xff]
      %v1391 = vld [vmem:[%s1 + $0x1f88] sm:$0xff]
      %v1392 = vld [vmem:[%s1 + $0x1f90] sm:$0xff]
      %v1393 = vld [vmem:[%s1 + $0x1f98] sm:$0xff]
      %v1394 = vld [vmem:[%s1 + $0x1fa0] sm:$0xff]
      %v1395 = vld [vmem:[%s1 + $0x1fa8] sm:$0xff]
      %v1396 = vld [vmem:[%s1 + $0x1fb0] sm:$0xff]
      %v1397 = vld [vmem:[%s1 + $0x1fb8] sm:$0xff]
      %v1398 = vld [vmem:[%s1 + $0x1fc0] sm:$0xff]
      %v1399 = vld [vmem:[%s1 + $0x1fc8] sm:$0xff]
      %v1400 = vld [vmem:[%s1 + $0x1fd0] sm:$0xff]
      %v1401 = vld [vmem:[%s1 + $0x1fd8] sm:$0xff]
      %v1402 = vld [vmem:[%s1 + $0x1fe0] sm:$0xff]
      %v1403 = vld [vmem:[%s1 + $0x1fe8] sm:$0xff]
      %v1404 = vld [vmem:[%s1 + $0x1ff0] sm:$0xff]
      %v1405 = vld [vmem:[%s1 + $0x1ff8] sm:$0xff]
      %v1406 = vld [vmem:[%s1 + $0x2000] sm:$0xff]
      %v1407 = vld [vmem:[%s1 + $0x2008] sm:$0xff]
      %v1408 = vld [vmem:[%s1 + $0x2010] sm:$0xff]
      %v1409 = vld [vmem:[%s1 + $0x2018] sm:$0xff]
      %v1410 = vld [vmem:[%s1 + $0x2020] sm:$0xff]
      %v1411 = vld [vmem:[%s1 + $0x2028] sm:$0xff]
      %v1412 = vld [vmem:[%s1 + $0x2030] sm:$0xff]
      %v1413 = vld [vmem:[%s1 + $0x2038] sm:$0xff]
      %v1414 = vld [vmem:[%s1 + $0x2040] sm:$0xff]
      %v1415 = vld [vmem:[%s1 + $0x2048] sm:$0xff]
      %v1416 = vld [vmem:[%s1 + $0x2050] sm:$0xff]
      %v1417 = vld [vmem:[%s1 + $0x2058] sm:$0xff]
      %v1418 = vld [vmem:[%s1 + $0x2060] sm:$0xff]
      %v1419 = vld [vmem:[%s1 + $0x2068] sm:$0xff]
      %v1420 = vld [vmem:[%s1 + $0x2070] sm:$0xff]
      %v1421 = vld [vmem:[%s1 + $0x2078] sm:$0xff]
      %v1422 = vld [vmem:[%s1 + $0x2080] sm:$0xff]
      %v1423 = vld [vmem:[%s1 + $0x2088] sm:$0xff]
      %v1424 = vld [vmem:[%s1 + $0x2090] sm:$0xff]
      %v1425 = vld [vmem:[%s1 + $0x2098] sm:$0xff]
      %v1426 = vld [vmem:[%s1 + $0x20a0] sm:$0xff]
      %v1427 = vld [vmem:[%s1 + $0x20a8] sm:$0xff]
      %v1428 = vld [vmem:[%s1 + $0x20b0] sm:$0xff]
      %v1429 = vld [vmem:[%s1 + $0x20b8] sm:$0xff]
      %v1430 = vld [vmem:[%s1 + $0x20c0] sm:$0xff]
      %v1431 = vld [vmem:[%s1 + $0x20c8] sm:$0xff]
      %v1432 = vld [vmem:[%s1 + $0x20d0] sm:$0xff]
      %v1433 = vld [vmem:[%s1 + $0x20d8] sm:$0xff]
      %v1434 = vld [vmem:[%s1 + $0x20e0] sm:$0xff]
      %v1435 = vld [vmem:[%s1 + $0x20e8] sm:$0xff]
      %v1436 = vld [vmem:[%s1 + $0x20f0] sm:$0xff]
      %v1437 = vld [vmem:[%s1 + $0x20f8] sm:$0xff]
      %v1438 = vld [vmem:[%s1 + $0x2100] sm:$0xff]
      %v1439 = vld [vmem:[%s1 + $0x2108] sm:$0xff]
      %v1440 = vld [vmem:[%s1 + $0x2110] sm:$0xff]
      %v1441 = vld [vmem:[%s1 + $0x2118] sm:$0xff]
      %v1442 = vld [vmem:[%s1 + $0x2120] sm:$0xff]
      %v1443 = vld [vmem:[%s1 + $0x2128] sm:$0xff]
      %v1444 = vld [vmem:[%s1 + $0x2130] sm:$0xff]
      %v1445 = vld [vmem:[%s1 + $0x2138] sm:$0xff]
      %v1446 = vld [vmem:[%s1 + $0x2140] sm:$0xff]
      %v1447 = vld [vmem:[%s1 + $0x2148] sm:$0xff]
      %v1448 = vld [vmem:[%s1 + $0x2150] sm:$0xff]
      %v1449 = vld [vmem:[%s1 + $0x2158] sm:$0xff]
      %v1450 = vld [vmem:[%s1 + $0x2160] sm:$0xff]
      %v1451 = vld [vmem:[%s1 + $0x2168] sm:$0xff]
      %v1452 = vld [vmem:[%s1 + $0x2170] sm:$0xff]
      %v1453 = vld [vmem:[%s1 + $0x2178] sm:$0xff]
      %v1454 = vld [vmem:[%s1 + $0x2180] sm:$0xff]
      %v1455 = vld [vmem:[%s1 + $0x2188] sm:$0xff]
      %v1456 = vld [vmem:[%s1 + $0x2190] sm:$0xff]
      %v1457 = vld [vmem:[%s1 + $0x2198] sm:$0xff]
      %v1458 = vld [vmem:[%s1 + $0x21a0] sm:$0xff]
      %v1459 = vld [vmem:[%s1 + $0x21a8] sm:$0xff]
      %v1460 = vld [vmem:[%s1 + $0x21b0] sm:$0xff]
      %v1461 = vld [vmem:[%s1 + $0x21b8] sm:$0xff]
      %v1462 = vld [vmem:[%s1 + $0x21c0] sm:$0xff]
      %v1463 = vld [vmem:[%s1 + $0x21c8] sm:$0xff]
      %v1464 = vld [vmem:[%s1 + $0x21d0] sm:$0xff]
      %v1465 = vld [vmem:[%s1 + $0x21d8] sm:$0xff]
      %v1466 = vld [vmem:[%s1 + $0x21e0] sm:$0xff]
      %v1467 = vld [vmem:[%s1 + $0x21e8] sm:$0xff]
      %v1468 = vld [vmem:[%s1 + $0x21f0] sm:$0xff]
      %v1469 = vld [vmem:[%s1 + $0x21f8] sm:$0xff]
      %v1470 = vld [vmem:[%s1 + $0x2200] sm:$0xff]
      %v1471 = vld [vmem:[%s1 + $0x2208] sm:$0xff]
      %v1472 = vld [vmem:[%s1 + $0x2210] sm:$0xff]
      %v1473 = vld [vmem:[%s1 + $0x2218] sm:$0xff]
      %v1474 = vld [vmem:[%s1 + $0x2220] sm:$0xff]
      %v1475 = vld [vmem:[%s1 + $0x2228] sm:$0xff]
      %v1476 = vld [vmem:[%s1 + $0x2230] sm:$0xff]
      %v1477 = vld [vmem:[%s1 + $0x2238] sm:$0xff]
      %v1478 = vld [vmem:[%s1 + $0x2240] sm:$0xff]
      %v1479 = vld [vmem:[%s1 + $0x2248] sm:$0xff]
      %v1480 = vld [vmem:[%s1 + $0x2250] sm:$0xff]
      %v1481 = vld [vmem:[%s1 + $0x2258] sm:$0xff]
      %v1482 = vld [vmem:[%s1 + $0x2260] sm:$0xff]
      %v1483 = vld [vmem:[%s1 + $0x2268] sm:$0xff]
      %v1484 = vld [vmem:[%s1 + $0x2270] sm:$0xff]
      %v1485 = vld [vmem:[%s1 + $0x2278] sm:$0xff]
      %v1486 = vld [vmem:[%s1 + $0x2280] sm:$0xff]
      %v1487 = vld [vmem:[%s1 + $0x2288] sm:$0xff]
      %v1488 = vld [vmem:[%s1 + $0x2290] sm:$0xff]
      %v1489 = vld [vmem:[%s1 + $0x2298] sm:$0xff]
      %v1490 = vld [vmem:[%s1 + $0x22a0] sm:$0xff]
      %v1491 = vld [vmem:[%s1 + $0x22a8] sm:$0xff]
      %v1492 = vld [vmem:[%s1 + $0x22b0] sm:$0xff]
      %v1493 = vld [vmem:[%s1 + $0x22b8] sm:$0xff]
      %v1494 = vld [vmem:[%s1 + $0x22c0] sm:$0xff]
      %v1495 = vld [vmem:[%s1 + $0x22c8] sm:$0xff]
      %v1496 = vld [vmem:[%s1 + $0x22d0] sm:$0xff]
      %v1497 = vld [vmem:[%s1 + $0x22d8] sm:$0xff]
      %v1498 = vld [vmem:[%s1 + $0x22e0] sm:$0xff]
      %v1499 = vld [vmem:[%s1 + $0x22e8] sm:$0xff]
      %v1500 = vld [vmem:[%s1 + $0x22f0] sm:$0xff]
      %v1501 = vld [vmem:[%s1 + $0x22f8] sm:$0xff]
      %v1502 = vld [vmem:[%s1 + $0x2300] sm:$0xff]
      %v1503 = vld [vmem:[%s1 + $0x2308] sm:$0xff]
      %v1504 = vld [vmem:[%s1 + $0x2310] sm:$0xff]
      %v1505 = vld [vmem:[%s1 + $0x2318] sm:$0xff]
      %v1506 = vld [vmem:[%s1 + $0x2320] sm:$0xff]
      %v1507 = vld [vmem:[%s1 + $0x2328] sm:$0xff]
      %v1508 = vld [vmem:[%s1 + $0x2330] sm:$0xff]
      %v1509 = vld [vmem:[%s1 + $0x2338] sm:$0xff]
      %v1510 = vld [vmem:[%s1 + $0x2340] sm:$0xff]
      %v1511 = vld [vmem:[%s1 + $0x2348] sm:$0xff]
      %v1512 = vld [vmem:[%s1 + $0x2350] sm:$0xff]
      %v1513 = vld [vmem:[%s1 + $0x2358] sm:$0xff]
      %v1514 = vld [vmem:[%s1 + $0x2360] sm:$0xff]
      %v1515 = vld [vmem:[%s1 + $0x2368] sm:$0xff]
      %v1516 = vld [vmem:[%s1 + $0x2370] sm:$0xff]
      %v1517 = vld [vmem:[%s1 + $0x2378] sm:$0xff]
      %v1518 = vld [vmem:[%s1 + $0x2380] sm:$0xff]
      %v1519 = vld [vmem:[%s1 + $0x2388] sm:$0xff]
      %v1520 = vld [vmem:[%s1 + $0x2390] sm:$0xff]
      %v1521 = vld [vmem:[%s1 + $0x2398] sm:$0xff]
      %v1522 = vld [vmem:[%s1 + $0x23a0] sm:$0xff]
      %v1523 = vld [vmem:[%s1 + $0x23a8] sm:$0xff]
      %v1524 = vld [vmem:[%s1 + $0x23b0] sm:$0xff]
      %v1525 = vld [vmem:[%s1 + $0x23b8] sm:$0xff]
      %v1526 = vld [vmem:[%s1 + $0x23c0] sm:$0xff]
      %v1527 = vld [vmem:[%s1 + $0x23c8] sm:$0xff]
      %v1528 = vld [vmem:[%s1 + $0x23d0] sm:$0xff]
      %v1529 = vld [vmem:[%s1 + $0x23d8] sm:$0xff]
      %v1530 = vld [vmem:[%s1 + $0x23e0] sm:$0xff]
      %v1531 = vld [vmem:[%s1 + $0x23e8] sm:$0xff]
      %v1532 = vld [vmem:[%s1 + $0x23f0] sm:$0xff]
      %v1533 = vld [vmem:[%s1 + $0x23f8] sm:$0xff]
      %v1534 = vld [vmem:[%s2] sm:$0x3f]
      %v1536 = vlaneseq
      %v1537 = vshrl.u32 %v1536, 7
      %v1538 = vsub.s32 0, %v1537
      %v1539 = vrot.slane %v1534, %v1538
      %v1540 = vlaneseq
      %v1541 = vshrl.u32 %v1540, 7
      %v1542 = vsub.s32 1, %v1541
      %v1543 = vrot.slane %v1534, %v1542
      %v1544 = vlaneseq
      %v1545 = vshrl.u32 %v1544, 7
      %v1546 = vsub.s32 2, %v1545
      %v1547 = vrot.slane %v1534, %v1546
      %v1548 = vlaneseq
      %v1549 = vshrl.u32 %v1548, 7
      %v1550 = vsub.s32 3, %v1549
      %v1551 = vrot.slane %v1534, %v1550
      %v1552 = vlaneseq
      %v1553 = vshrl.u32 %v1552, 7
      %v1554 = vsub.s32 4, %v1553
      %v1555 = vrot.slane %v1534, %v1554
      %v1556 = vlaneseq
      %v1557 = vshrl.u32 %v1556, 7
      %v1558 = vsub.s32 5, %v1557
      %v1559 = vrot.slane %v1534, %v1558
      %v1572 = vcombine.high %v376, %v376
      %v1574 = vunpack.c.l.s4 1983009808
      %v1575 = vunpack.c.0.s8 %v1574
      %v1576 = vlaneseq
      %v1577 = vshrl.u32 %v1576, 7
      %v1578 = vsub.s32 %v1575, %v1577
      %v1579 = vrot.slane %v376, %v1578
      %v1581 = vunpack.c.l.s4 1983009808
      %v1582 = vunpack.c.0.s8 %v1581
      %v1583 = vlaneseq
      %v1584 = vshrl.u32 %v1583, 7
      %v1585 = vsub.s32 %v1582, %v1584
      %v1586 = vrot.slane %v1572, %v1585
      %v1587 = vcombine.high %v1579, %v1579
      %v1588 = vcombine.high %v1586, %v1586
      %v1589 = vcombine.high %v377, %v377
      %v1591 = vunpack.c.l.s4 1983009808
      %v1592 = vunpack.c.0.s8 %v1591
      %v1593 = vlaneseq
      %v1594 = vshrl.u32 %v1593, 7
      %v1595 = vsub.s32 %v1592, %v1594
      %v1596 = vrot.slane %v377, %v1595
      %v1598 = vunpack.c.l.s4 1983009808
      %v1599 = vunpack.c.0.s8 %v1598
      %v1600 = vlaneseq
      %v1601 = vshrl.u32 %v1600, 7
      %v1602 = vsub.s32 %v1599, %v1601
      %v1603 = vrot.slane %v1589, %v1602
      %v1604 = vcombine.high %v1596, %v1596
      %v1605 = vcombine.high %v1603, %v1603
      %v1606 = vcombine.high %v378, %v378
      %v1608 = vunpack.c.l.s4 1983009808
      %v1609 = vunpack.c.0.s8 %v1608
      %v1610 = vlaneseq
      %v1611 = vshrl.u32 %v1610, 7
      %v1612 = vsub.s32 %v1609, %v1611
      %v1613 = vrot.slane %v378, %v1612
      %v1615 = vunpack.c.l.s4 1983009808
      %v1616 = vunpack.c.0.s8 %v1615
      %v1617 = vlaneseq
      %v1618 = vshrl.u32 %v1617, 7
      %v1619 = vsub.s32 %v1616, %v1618
      %v1620 = vrot.slane %v1606, %v1619
      %v1621 = vcombine.high %v1613, %v1613
      %v1622 = vcombine.high %v1620, %v1620
      %v1623 = vcombine.high %v379, %v379
      %v1625 = vunpack.c.l.s4 1983009808
      %v1626 = vunpack.c.0.s8 %v1625
      %v1627 = vlaneseq
      %v1628 = vshrl.u32 %v1627, 7
      %v1629 = vsub.s32 %v1626, %v1628
      %v1630 = vrot.slane %v379, %v1629
      %v1632 = vunpack.c.l.s4 1983009808
      %v1633 = vunpack.c.0.s8 %v1632
      %v1634 = vlaneseq
      %v1635 = vshrl.u32 %v1634, 7
      %v1636 = vsub.s32 %v1633, %v1635
      %v1637 = vrot.slane %v1623, %v1636
      %v1638 = vcombine.high %v1630, %v1630
      %v1639 = vcombine.high %v1637, %v1637
      %v1640 = vcombine.high %v380, %v380
      %v1642 = vunpack.c.l.s4 1983009808
      %v1643 = vunpack.c.0.s8 %v1642
      %v1644 = vlaneseq
      %v1645 = vshrl.u32 %v1644, 7
      %v1646 = vsub.s32 %v1643, %v1645
      %v1647 = vrot.slane %v380, %v1646
      %v1649 = vunpack.c.l.s4 1983009808
      %v1650 = vunpack.c.0.s8 %v1649
      %v1651 = vlaneseq
      %v1652 = vshrl.u32 %v1651, 7
      %v1653 = vsub.s32 %v1650, %v1652
      %v1654 = vrot.slane %v1640, %v1653
      %v1655 = vcombine.high %v1647, %v1647
      %v1656 = vcombine.high %v1654, %v1654
      %v1657 = vcombine.high %v381, %v381
      %v1659 = vunpack.c.l.s4 1983009808
      %v1660 = vunpack.c.0.s8 %v1659
      %v1661 = vlaneseq
      %v1662 = vshrl.u32 %v1661, 7
      %v1663 = vsub.s32 %v1660, %v1662
      %v1664 = vrot.slane %v381, %v1663
      %v1666 = vunpack.c.l.s4 1983009808
      %v1667 = vunpack.c.0.s8 %v1666
      %v1668 = vlaneseq
      %v1669 = vshrl.u32 %v1668, 7
      %v1670 = vsub.s32 %v1667, %v1669
      %v1671 = vrot.slane %v1657, %v1670
      %v1672 = vcombine.high %v1664, %v1664
      %v1673 = vcombine.high %v1671, %v1671
      %v2850 = vunpack.c.l.b16 %v382
      %v2851 = vunpack.c.h.b16 %v382
      %v2852 = vunpack.c.l.b16 %v383
      %v2853 = vunpack.c.h.b16 %v383
      %v2854 = vunpack.c.l.b16 %v384
      %v2855 = vunpack.c.h.b16 %v384
      %v2856 = vunpack.c.l.b16 %v385
      %v2857 = vunpack.c.h.b16 %v385
      %v2858 = vunpack.c.l.b16 %v386
      %v2859 = vunpack.c.h.b16 %v386
      %v2860 = vunpack.c.l.b16 %v387
      %v2861 = vunpack.c.h.b16 %v387
      %v2862 = vunpack.c.l.b16 %v388
      %v2863 = vunpack.c.h.b16 %v388
      %v2864 = vunpack.c.l.b16 %v389
      %v2865 = vunpack.c.h.b16 %v389
      %v2866 = vunpack.c.l.b16 %v390
      %v2867 = vunpack.c.h.b16 %v390
      %v2868 = vunpack.c.l.b16 %v391
      %v2869 = vunpack.c.h.b16 %v391
      %v2870 = vunpack.c.l.b16 %v392
      %v2871 = vunpack.c.h.b16 %v392
      %v2872 = vunpack.c.l.b16 %v393
      %v2873 = vunpack.c.h.b16 %v393
      %v2874 = vunpack.c.l.b16 %v394
      %v2875 = vunpack.c.h.b16 %v394
      %v2876 = vunpack.c.l.b16 %v395
      %v2877 = vunpack.c.h.b16 %v395
      %v2878 = vunpack.c.l.b16 %v396
      %v2879 = vunpack.c.h.b16 %v396
      %v2880 = vunpack.c.l.b16 %v397
      %v2881 = vunpack.c.h.b16 %v397
      %v2882 = vunpack.c.l.b16 %v398
      %v2883 = vunpack.c.h.b16 %v398
      %v2884 = vunpack.c.l.b16 %v399
      %v2885 = vunpack.c.h.b16 %v399
      %v2886 = vunpack.c.l.b16 %v400
      %v2887 = vunpack.c.h.b16 %v400
      %v2888 = vunpack.c.l.b16 %v401
      %v2889 = vunpack.c.h.b16 %v401
      %v2890 = vunpack.c.l.b16 %v402
      %v2891 = vunpack.c.h.b16 %v402
      %v2892 = vunpack.c.l.b16 %v403
      %v2893 = vunpack.c.h.b16 %v403
      %v2894 = vunpack.c.l.b16 %v404
      %v2895 = vunpack.c.h.b16 %v404
      %v2896 = vunpack.c.l.b16 %v405
      %v2897 = vunpack.c.h.b16 %v405
      %v2898 = vunpack.c.l.b16 %v406
      %v2899 = vunpack.c.h.b16 %v406
      %v2900 = vunpack.c.l.b16 %v407
      %v2901 = vunpack.c.h.b16 %v407
      %v2902 = vunpack.c.l.b16 %v408
      %v2903 = vunpack.c.h.b16 %v408
      %v2904 = vunpack.c.l.b16 %v409
      %v2905 = vunpack.c.h.b16 %v409
      %v2906 = vunpack.c.l.b16 %v410
      %v2907 = vunpack.c.h.b16 %v410
      %v2908 = vunpack.c.l.b16 %v411
      %v2909 = vunpack.c.h.b16 %v411
      %v2910 = vunpack.c.l.b16 %v412
      %v2911 = vunpack.c.h.b16 %v412
      %v2912 = vunpack.c.l.b16 %v413
      %v2913 = vunpack.c.h.b16 %v413
      %v2914 = vunpack.c.l.b16 %v414
      %v2915 = vunpack.c.h.b16 %v414
      %v2916 = vunpack.c.l.b16 %v415
      %v2917 = vunpack.c.h.b16 %v415
      %v2918 = vunpack.c.l.b16 %v416
      %v2919 = vunpack.c.h.b16 %v416
      %v2920 = vunpack.c.l.b16 %v417
      %v2921 = vunpack.c.h.b16 %v417
      %v2922 = vunpack.c.l.b16 %v418
      %v2923 = vunpack.c.h.b16 %v418
      %v2924 = vunpack.c.l.b16 %v419
      %v2925 = vunpack.c.h.b16 %v419
      %v2926 = vunpack.c.l.b16 %v420
      %v2927 = vunpack.c.h.b16 %v420
      %v2928 = vunpack.c.l.b16 %v421
      %v2929 = vunpack.c.h.b16 %v421
      %v2930 = vunpack.c.l.b16 %v422
      %v2931 = vunpack.c.h.b16 %v422
      %v2932 = vunpack.c.l.b16 %v423
      %v2933 = vunpack.c.h.b16 %v423
      %v2934 = vunpack.c.l.b16 %v424
      %v2935 = vunpack.c.h.b16 %v424
      %v2936 = vunpack.c.l.b16 %v425
      %v2937 = vunpack.c.h.b16 %v425
      %v2938 = vunpack.c.l.b16 %v426
      %v2939 = vunpack.c.h.b16 %v426
      %v2940 = vunpack.c.l.b16 %v427
      %v2941 = vunpack.c.h.b16 %v427
      %v2942 = vunpack.c.l.b16 %v428
      %v2943 = vunpack.c.h.b16 %v428
      %v2944 = vunpack.c.l.b16 %v429
      %v2945 = vunpack.c.h.b16 %v429
      %v2946 = vunpack.c.l.b16 %v430
      %v2947 = vunpack.c.h.b16 %v430
      %v2948 = vunpack.c.l.b16 %v431
      %v2949 = vunpack.c.h.b16 %v431
      %v2950 = vunpack.c.l.b16 %v432
      %v2951 = vunpack.c.h.b16 %v432
      %v2952 = vunpack.c.l.b16 %v433
      %v2953 = vunpack.c.h.b16 %v433
      %v2954 = vunpack.c.l.b16 %v434
      %v2955 = vunpack.c.h.b16 %v434
      %v2956 = vunpack.c.l.b16 %v435
      %v2957 = vunpack.c.h.b16 %v435
      %v2958 = vunpack.c.l.b16 %v436
      %v2959 = vunpack.c.h.b16 %v436
      %v2960 = vunpack.c.l.b16 %v437
      %v2961 = vunpack.c.h.b16 %v437
      %v2962 = vunpack.c.l.b16 %v438
      %v2963 = vunpack.c.h.b16 %v438
      %v2964 = vunpack.c.l.b16 %v439
      %v2965 = vunpack.c.h.b16 %v439
      %v2966 = vunpack.c.l.b16 %v440
      %v2967 = vunpack.c.h.b16 %v440
      %v2968 = vunpack.c.l.b16 %v441
      %v2969 = vunpack.c.h.b16 %v441
      %v2970 = vunpack.c.l.b16 %v442
      %v2971 = vunpack.c.h.b16 %v442
      %v2972 = vunpack.c.l.b16 %v443
      %v2973 = vunpack.c.h.b16 %v443
      %v2974 = vunpack.c.l.b16 %v444
      %v2975 = vunpack.c.h.b16 %v444
      %v2976 = vunpack.c.l.b16 %v445
      %v2977 = vunpack.c.h.b16 %v445
      %v2978 = vunpack.c.l.b16 %v446
      %v2979 = vunpack.c.h.b16 %v446
      %v2980 = vunpack.c.l.b16 %v447
      %v2981 = vunpack.c.h.b16 %v447
      %v2982 = vunpack.c.l.b16 %v448
      %v2983 = vunpack.c.h.b16 %v448
      %v2984 = vunpack.c.l.b16 %v449
      %v2985 = vunpack.c.h.b16 %v449
      %v2986 = vunpack.c.l.b16 %v450
      %v2987 = vunpack.c.h.b16 %v450
      %v2988 = vunpack.c.l.b16 %v451
      %v2989 = vunpack.c.h.b16 %v451
      %v2990 = vunpack.c.l.b16 %v452
      %v2991 = vunpack.c.h.b16 %v452
      %v2992 = vunpack.c.l.b16 %v453
      %v2993 = vunpack.c.h.b16 %v453
      %v2994 = vunpack.c.l.b16 %v454
      %v2995 = vunpack.c.h.b16 %v454
      %v2996 = vunpack.c.l.b16 %v455
      %v2997 = vunpack.c.h.b16 %v455
      %v2998 = vunpack.c.l.b16 %v456
      %v2999 = vunpack.c.h.b16 %v456
      %v3000 = vunpack.c.l.b16 %v457
      %v3001 = vunpack.c.h.b16 %v457
      %v3002 = vunpack.c.l.b16 %v458
      %v3003 = vunpack.c.h.b16 %v458
      %v3004 = vunpack.c.l.b16 %v459
      %v3005 = vunpack.c.h.b16 %v459
      %v3006 = vunpack.c.l.b16 %v460
      %v3007 = vunpack.c.h.b16 %v460
      %v3008 = vunpack.c.l.b16 %v461
      %v3009 = vunpack.c.h.b16 %v461
      %v3010 = vunpack.c.l.b16 %v462
      %v3011 = vunpack.c.h.b16 %v462
      %v3012 = vunpack.c.l.b16 %v463
      %v3013 = vunpack.c.h.b16 %v463
      %v3014 = vunpack.c.l.b16 %v464
      %v3015 = vunpack.c.h.b16 %v464
      %v3016 = vunpack.c.l.b16 %v465
      %v3017 = vunpack.c.h.b16 %v465
      %v3018 = vunpack.c.l.b16 %v466
      %v3019 = vunpack.c.h.b16 %v466
      %v3020 = vunpack.c.l.b16 %v467
      %v3021 = vunpack.c.h.b16 %v467
      %v3022 = vunpack.c.l.b16 %v468
      %v3023 = vunpack.c.h.b16 %v468
      %v3024 = vunpack.c.l.b16 %v469
      %v3025 = vunpack.c.h.b16 %v469
      %v3026 = vunpack.c.l.b16 %v470
      %v3027 = vunpack.c.h.b16 %v470
      %v3028 = vunpack.c.l.b16 %v471
      %v3029 = vunpack.c.h.b16 %v471
      %v3030 = vunpack.c.l.b16 %v472
      %v3031 = vunpack.c.h.b16 %v472
      %v3032 = vunpack.c.l.b16 %v473
      %v3033 = vunpack.c.h.b16 %v473
      %v3034 = vunpack.c.l.b16 %v474
      %v3035 = vunpack.c.h.b16 %v474
      %v3036 = vunpack.c.l.b16 %v475
      %v3037 = vunpack.c.h.b16 %v475
      %v3038 = vunpack.c.l.b16 %v476
      %v3039 = vunpack.c.h.b16 %v476
      %v3040 = vunpack.c.l.b16 %v477
      %v3041 = vunpack.c.h.b16 %v477
      %v3042 = vunpack.c.l.b16 %v478
      %v3043 = vunpack.c.h.b16 %v478
      %v3044 = vunpack.c.l.b16 %v479
      %v3045 = vunpack.c.h.b16 %v479
      %v3046 = vunpack.c.l.b16 %v480
      %v3047 = vunpack.c.h.b16 %v480
      %v3048 = vunpack.c.l.b16 %v481
      %v3049 = vunpack.c.h.b16 %v481
      %v3050 = vunpack.c.l.b16 %v482
      %v3051 = vunpack.c.h.b16 %v482
      %v3052 = vunpack.c.l.b16 %v483
      %v3053 = vunpack.c.h.b16 %v483
      %v3054 = vunpack.c.l.b16 %v484
      %v3055 = vunpack.c.h.b16 %v484
      %v3056 = vunpack.c.l.b16 %v485
      %v3057 = vunpack.c.h.b16 %v485
      %v3058 = vunpack.c.l.b16 %v486
      %v3059 = vunpack.c.h.b16 %v486
      %v3060 = vunpack.c.l.b16 %v487
      %v3061 = vunpack.c.h.b16 %v487
      %v3062 = vunpack.c.l.b16 %v488
      %v3063 = vunpack.c.h.b16 %v488
      %v3064 = vunpack.c.l.b16 %v489
      %v3065 = vunpack.c.h.b16 %v489
      %v3066 = vunpack.c.l.b16 %v490
      %v3067 = vunpack.c.h.b16 %v490
      %v3068 = vunpack.c.l.b16 %v491
      %v3069 = vunpack.c.h.b16 %v491
      %v3070 = vunpack.c.l.b16 %v492
      %v3071 = vunpack.c.h.b16 %v492
      %v3072 = vunpack.c.l.b16 %v493
      %v3073 = vunpack.c.h.b16 %v493
      %v3074 = vunpack.c.l.b16 %v494
      %v3075 = vunpack.c.h.b16 %v494
      %v3076 = vunpack.c.l.b16 %v495
      %v3077 = vunpack.c.h.b16 %v495
      %v3078 = vunpack.c.l.b16 %v496
      %v3079 = vunpack.c.h.b16 %v496
      %v3080 = vunpack.c.l.b16 %v497
      %v3081 = vunpack.c.h.b16 %v497
      %v3082 = vunpack.c.l.b16 %v498
      %v3083 = vunpack.c.h.b16 %v498
      %v3084 = vunpack.c.l.b16 %v499
      %v3085 = vunpack.c.h.b16 %v499
      %v3086 = vunpack.c.l.b16 %v500
      %v3087 = vunpack.c.h.b16 %v500
      %v3088 = vunpack.c.l.b16 %v501
      %v3089 = vunpack.c.h.b16 %v501
      %v3090 = vunpack.c.l.b16 %v502
      %v3091 = vunpack.c.h.b16 %v502
      %v3092 = vunpack.c.l.b16 %v503
      %v3093 = vunpack.c.h.b16 %v503
      %v3094 = vunpack.c.l.b16 %v504
      %v3095 = vunpack.c.h.b16 %v504
      %v3096 = vunpack.c.l.b16 %v505
      %v3097 = vunpack.c.h.b16 %v505
      %v3098 = vunpack.c.l.b16 %v506
      %v3099 = vunpack.c.h.b16 %v506
      %v3100 = vunpack.c.l.b16 %v507
      %v3101 = vunpack.c.h.b16 %v507
      %v3102 = vunpack.c.l.b16 %v508
      %v3103 = vunpack.c.h.b16 %v508
      %v3104 = vunpack.c.l.b16 %v509
      %v3105 = vunpack.c.h.b16 %v509
      %v3106 = vunpack.c.l.b16 %v510
      %v3107 = vunpack.c.h.b16 %v510
      %v3108 = vunpack.c.l.b16 %v511
      %v3109 = vunpack.c.h.b16 %v511
      %v3110 = vunpack.c.l.b16 %v512
      %v3111 = vunpack.c.h.b16 %v512
      %v3112 = vunpack.c.l.b16 %v513
      %v3113 = vunpack.c.h.b16 %v513
      %v3114 = vunpack.c.l.b16 %v514
      %v3115 = vunpack.c.h.b16 %v514
      %v3116 = vunpack.c.l.b16 %v515
      %v3117 = vunpack.c.h.b16 %v515
      %v3118 = vunpack.c.l.b16 %v516
      %v3119 = vunpack.c.h.b16 %v516
      %v3120 = vunpack.c.l.b16 %v517
      %v3121 = vunpack.c.h.b16 %v517
      %v3122 = vunpack.c.l.b16 %v518
      %v3123 = vunpack.c.h.b16 %v518
      %v3124 = vunpack.c.l.b16 %v519
      %v3125 = vunpack.c.h.b16 %v519
      %v3126 = vunpack.c.l.b16 %v520
      %v3127 = vunpack.c.h.b16 %v520
      %v3128 = vunpack.c.l.b16 %v521
      %v3129 = vunpack.c.h.b16 %v521
      %v3130 = vunpack.c.l.b16 %v522
      %v3131 = vunpack.c.h.b16 %v522
      %v3132 = vunpack.c.l.b16 %v523
      %v3133 = vunpack.c.h.b16 %v523
      %v3134 = vunpack.c.l.b16 %v524
      %v3135 = vunpack.c.h.b16 %v524
      %v3136 = vunpack.c.l.b16 %v525
      %v3137 = vunpack.c.h.b16 %v525
      %v3138 = vunpack.c.l.b16 %v526
      %v3139 = vunpack.c.h.b16 %v526
      %v3140 = vunpack.c.l.b16 %v527
      %v3141 = vunpack.c.h.b16 %v527
      %v3142 = vunpack.c.l.b16 %v528
      %v3143 = vunpack.c.h.b16 %v528
      %v3144 = vunpack.c.l.b16 %v529
      %v3145 = vunpack.c.h.b16 %v529
      %v3146 = vunpack.c.l.b16 %v530
      %v3147 = vunpack.c.h.b16 %v530
      %v3148 = vunpack.c.l.b16 %v531
      %v3149 = vunpack.c.h.b16 %v531
      %v3150 = vunpack.c.l.b16 %v532
      %v3151 = vunpack.c.h.b16 %v532
      %v3152 = vunpack.c.l.b16 %v533
      %v3153 = vunpack.c.h.b16 %v533
      %v3154 = vunpack.c.l.b16 %v534
      %v3155 = vunpack.c.h.b16 %v534
      %v3156 = vunpack.c.l.b16 %v535
      %v3157 = vunpack.c.h.b16 %v535
      %v3158 = vunpack.c.l.b16 %v536
      %v3159 = vunpack.c.h.b16 %v536
      %v3160 = vunpack.c.l.b16 %v537
      %v3161 = vunpack.c.h.b16 %v537
      %v3162 = vunpack.c.l.b16 %v538
      %v3163 = vunpack.c.h.b16 %v538
      %v3164 = vunpack.c.l.b16 %v539
      %v3165 = vunpack.c.h.b16 %v539
      %v3166 = vunpack.c.l.b16 %v540
      %v3167 = vunpack.c.h.b16 %v540
      %v3168 = vunpack.c.l.b16 %v541
      %v3169 = vunpack.c.h.b16 %v541
      %v3170 = vunpack.c.l.b16 %v542
      %v3171 = vunpack.c.h.b16 %v542
      %v3172 = vunpack.c.l.b16 %v543
      %v3173 = vunpack.c.h.b16 %v543
      %v3174 = vunpack.c.l.b16 %v544
      %v3175 = vunpack.c.h.b16 %v544
      %v3176 = vunpack.c.l.b16 %v545
      %v3177 = vunpack.c.h.b16 %v545
      %v3178 = vunpack.c.l.b16 %v546
      %v3179 = vunpack.c.h.b16 %v546
      %v3180 = vunpack.c.l.b16 %v547
      %v3181 = vunpack.c.h.b16 %v547
      %v3182 = vunpack.c.l.b16 %v548
      %v3183 = vunpack.c.h.b16 %v548
      %v3184 = vunpack.c.l.b16 %v549
      %v3185 = vunpack.c.h.b16 %v549
      %v3186 = vunpack.c.l.b16 %v550
      %v3187 = vunpack.c.h.b16 %v550
      %v3188 = vunpack.c.l.b16 %v551
      %v3189 = vunpack.c.h.b16 %v551
      %v3190 = vunpack.c.l.b16 %v552
      %v3191 = vunpack.c.h.b16 %v552
      %v3192 = vunpack.c.l.b16 %v553
      %v3193 = vunpack.c.h.b16 %v553
      %v3194 = vunpack.c.l.b16 %v554
      %v3195 = vunpack.c.h.b16 %v554
      %v3196 = vunpack.c.l.b16 %v555
      %v3197 = vunpack.c.h.b16 %v555
      %v3198 = vunpack.c.l.b16 %v556
      %v3199 = vunpack.c.h.b16 %v556
      %v3200 = vunpack.c.l.b16 %v557
      %v3201 = vunpack.c.h.b16 %v557
      %v3202 = vunpack.c.l.b16 %v558
      %v3203 = vunpack.c.h.b16 %v558
      %v3204 = vunpack.c.l.b16 %v559
      %v3205 = vunpack.c.h.b16 %v559
      %v3206 = vunpack.c.l.b16 %v560
      %v3207 = vunpack.c.h.b16 %v560
      %v3208 = vunpack.c.l.b16 %v561
      %v3209 = vunpack.c.h.b16 %v561
      %v3210 = vunpack.c.l.b16 %v562
      %v3211 = vunpack.c.h.b16 %v562
      %v3212 = vunpack.c.l.b16 %v563
      %v3213 = vunpack.c.h.b16 %v563
      %v3214 = vunpack.c.l.b16 %v564
      %v3215 = vunpack.c.h.b16 %v564
      %v3216 = vunpack.c.l.b16 %v565
      %v3217 = vunpack.c.h.b16 %v565
      %v3218 = vunpack.c.l.b16 %v566
      %v3219 = vunpack.c.h.b16 %v566
      %v3220 = vunpack.c.l.b16 %v567
      %v3221 = vunpack.c.h.b16 %v567
      %v3222 = vunpack.c.l.b16 %v568
      %v3223 = vunpack.c.h.b16 %v568
      %v3224 = vunpack.c.l.b16 %v569
      %v3225 = vunpack.c.h.b16 %v569
      %v3226 = vunpack.c.l.b16 %v570
      %v3227 = vunpack.c.h.b16 %v570
      %v3228 = vunpack.c.l.b16 %v571
      %v3229 = vunpack.c.h.b16 %v571
      %v3230 = vunpack.c.l.b16 %v572
      %v3231 = vunpack.c.h.b16 %v572
      %v3232 = vunpack.c.l.b16 %v573
      %v3233 = vunpack.c.h.b16 %v573
      %v3234 = vunpack.c.l.b16 %v574
      %v3235 = vunpack.c.h.b16 %v574
      %v3236 = vunpack.c.l.b16 %v575
      %v3237 = vunpack.c.h.b16 %v575
      %v3238 = vunpack.c.l.b16 %v576
      %v3239 = vunpack.c.h.b16 %v576
      %v3240 = vunpack.c.l.b16 %v577
      %v3241 = vunpack.c.h.b16 %v577
      %v3242 = vunpack.c.l.b16 %v578
      %v3243 = vunpack.c.h.b16 %v578
      %v3244 = vunpack.c.l.b16 %v579
      %v3245 = vunpack.c.h.b16 %v579
      %v3246 = vunpack.c.l.b16 %v580
      %v3247 = vunpack.c.h.b16 %v580
      %v3248 = vunpack.c.l.b16 %v581
      %v3249 = vunpack.c.h.b16 %v581
      %v3250 = vunpack.c.l.b16 %v582
      %v3251 = vunpack.c.h.b16 %v582
      %v3252 = vunpack.c.l.b16 %v583
      %v3253 = vunpack.c.h.b16 %v583
      %v3254 = vunpack.c.l.b16 %v584
      %v3255 = vunpack.c.h.b16 %v584
      %v3256 = vunpack.c.l.b16 %v585
      %v3257 = vunpack.c.h.b16 %v585
      %v3258 = vunpack.c.l.b16 %v586
      %v3259 = vunpack.c.h.b16 %v586
      %v3260 = vunpack.c.l.b16 %v587
      %v3261 = vunpack.c.h.b16 %v587
      %v3262 = vunpack.c.l.b16 %v588
      %v3263 = vunpack.c.h.b16 %v588
      %v3264 = vunpack.c.l.b16 %v589
      %v3265 = vunpack.c.h.b16 %v589
      %v3266 = vunpack.c.l.b16 %v590
      %v3267 = vunpack.c.h.b16 %v590
      %v3268 = vunpack.c.l.b16 %v591
      %v3269 = vunpack.c.h.b16 %v591
      %v3270 = vunpack.c.l.b16 %v592
      %v3271 = vunpack.c.h.b16 %v592
      %v3272 = vunpack.c.l.b16 %v593
      %v3273 = vunpack.c.h.b16 %v593
      %v3274 = vunpack.c.l.b16 %v594
      %v3275 = vunpack.c.h.b16 %v594
      %v3276 = vunpack.c.l.b16 %v595
      %v3277 = vunpack.c.h.b16 %v595
      %v3278 = vunpack.c.l.b16 %v596
      %v3279 = vunpack.c.h.b16 %v596
      %v3280 = vunpack.c.l.b16 %v597
      %v3281 = vunpack.c.h.b16 %v597
      %v3282 = vunpack.c.l.b16 %v598
      %v3283 = vunpack.c.h.b16 %v598
      %v3284 = vunpack.c.l.b16 %v599
      %v3285 = vunpack.c.h.b16 %v599
      %v3286 = vunpack.c.l.b16 %v600
      %v3287 = vunpack.c.h.b16 %v600
      %v3288 = vunpack.c.l.b16 %v601
      %v3289 = vunpack.c.h.b16 %v601
      %v3290 = vunpack.c.l.b16 %v602
      %v3291 = vunpack.c.h.b16 %v602
      %v3292 = vunpack.c.l.b16 %v603
      %v3293 = vunpack.c.h.b16 %v603
      %v3294 = vunpack.c.l.b16 %v604
      %v3295 = vunpack.c.h.b16 %v604
      %v3296 = vunpack.c.l.b16 %v605
      %v3297 = vunpack.c.h.b16 %v605
      %v3298 = vunpack.c.l.b16 %v606
      %v3299 = vunpack.c.h.b16 %v606
      %v3300 = vunpack.c.l.b16 %v607
      %v3301 = vunpack.c.h.b16 %v607
      %v3302 = vunpack.c.l.b16 %v608
      %v3303 = vunpack.c.h.b16 %v608
      %v3304 = vunpack.c.l.b16 %v609
      %v3305 = vunpack.c.h.b16 %v609
      %v3306 = vunpack.c.l.b16 %v610
      %v3307 = vunpack.c.h.b16 %v610
      %v3308 = vunpack.c.l.b16 %v611
      %v3309 = vunpack.c.h.b16 %v611
      %v3310 = vunpack.c.l.b16 %v612
      %v3311 = vunpack.c.h.b16 %v612
      %v3312 = vunpack.c.l.b16 %v613
      %v3313 = vunpack.c.h.b16 %v613
      %v3314 = vunpack.c.l.b16 %v614
      %v3315 = vunpack.c.h.b16 %v614
      %v3316 = vunpack.c.l.b16 %v615
      %v3317 = vunpack.c.h.b16 %v615
      %v3318 = vunpack.c.l.b16 %v616
      %v3319 = vunpack.c.h.b16 %v616
      %v3320 = vunpack.c.l.b16 %v617
      %v3321 = vunpack.c.h.b16 %v617
      %v3322 = vunpack.c.l.b16 %v618
      %v3323 = vunpack.c.h.b16 %v618
      %v3324 = vunpack.c.l.b16 %v619
      %v3325 = vunpack.c.h.b16 %v619
      %v3326 = vunpack.c.l.b16 %v620
      %v3327 = vunpack.c.h.b16 %v620
      %v3328 = vunpack.c.l.b16 %v621
      %v3329 = vunpack.c.h.b16 %v621
      %v3330 = vunpack.c.l.b16 %v622
      %v3331 = vunpack.c.h.b16 %v622
      %v3332 = vunpack.c.l.b16 %v623
      %v3333 = vunpack.c.h.b16 %v623
      %v3334 = vunpack.c.l.b16 %v624
      %v3335 = vunpack.c.h.b16 %v624
      %v3336 = vunpack.c.l.b16 %v625
      %v3337 = vunpack.c.h.b16 %v625
      %v3338 = vunpack.c.l.b16 %v626
      %v3339 = vunpack.c.h.b16 %v626
      %v3340 = vunpack.c.l.b16 %v627
      %v3341 = vunpack.c.h.b16 %v627
      %v3342 = vunpack.c.l.b16 %v628
      %v3343 = vunpack.c.h.b16 %v628
      %v3344 = vunpack.c.l.b16 %v629
      %v3345 = vunpack.c.h.b16 %v629
      %v3346 = vunpack.c.l.b16 %v630
      %v3347 = vunpack.c.h.b16 %v630
      %v3348 = vunpack.c.l.b16 %v631
      %v3349 = vunpack.c.h.b16 %v631
      %v3350 = vunpack.c.l.b16 %v632
      %v3351 = vunpack.c.h.b16 %v632
      %v3352 = vunpack.c.l.b16 %v633
      %v3353 = vunpack.c.h.b16 %v633
      %v3354 = vunpack.c.l.b16 %v634
      %v3355 = vunpack.c.h.b16 %v634
      %v3356 = vunpack.c.l.b16 %v635
      %v3357 = vunpack.c.h.b16 %v635
      %v3358 = vunpack.c.l.b16 %v636
      %v3359 = vunpack.c.h.b16 %v636
      %v3360 = vunpack.c.l.b16 %v637
      %v3361 = vunpack.c.h.b16 %v637
      %v3362 = vunpack.c.l.b16 %v638
      %v3363 = vunpack.c.h.b16 %v638
      %v3364 = vunpack.c.l.b16 %v639
      %v3365 = vunpack.c.h.b16 %v639
      %v3366 = vunpack.c.l.b16 %v640
      %v3367 = vunpack.c.h.b16 %v640
      %v3368 = vunpack.c.l.b16 %v641
      %v3369 = vunpack.c.h.b16 %v641
      %v3370 = vunpack.c.l.b16 %v642
      %v3371 = vunpack.c.h.b16 %v642
      %v3372 = vunpack.c.l.b16 %v643
      %v3373 = vunpack.c.h.b16 %v643
      %v3374 = vunpack.c.l.b16 %v644
      %v3375 = vunpack.c.h.b16 %v644
      %v3376 = vunpack.c.l.b16 %v645
      %v3377 = vunpack.c.h.b16 %v645
      %v3378 = vunpack.c.l.b16 %v646
      %v3379 = vunpack.c.h.b16 %v646
      %v3380 = vunpack.c.l.b16 %v647
      %v3381 = vunpack.c.h.b16 %v647
      %v3382 = vunpack.c.l.b16 %v648
      %v3383 = vunpack.c.h.b16 %v648
      %v3384 = vunpack.c.l.b16 %v649
      %v3385 = vunpack.c.h.b16 %v649
      %v3386 = vunpack.c.l.b16 %v650
      %v3387 = vunpack.c.h.b16 %v650
      %v3388 = vunpack.c.l.b16 %v651
      %v3389 = vunpack.c.h.b16 %v651
      %v3390 = vunpack.c.l.b16 %v652
      %v3391 = vunpack.c.h.b16 %v652
      %v3392 = vunpack.c.l.b16 %v653
      %v3393 = vunpack.c.h.b16 %v653
      %v3394 = vunpack.c.l.b16 %v654
      %v3395 = vunpack.c.h.b16 %v654
      %v3396 = vunpack.c.l.b16 %v655
      %v3397 = vunpack.c.h.b16 %v655
      %v3398 = vunpack.c.l.b16 %v656
      %v3399 = vunpack.c.h.b16 %v656
      %v3400 = vunpack.c.l.b16 %v657
      %v3401 = vunpack.c.h.b16 %v657
      %v3402 = vunpack.c.l.b16 %v658
      %v3403 = vunpack.c.h.b16 %v658
      %v3404 = vunpack.c.l.b16 %v659
      %v3405 = vunpack.c.h.b16 %v659
      %v3406 = vunpack.c.l.b16 %v660
      %v3407 = vunpack.c.h.b16 %v660
      %v3408 = vunpack.c.l.b16 %v661
      %v3409 = vunpack.c.h.b16 %v661
      %v3410 = vunpack.c.l.b16 %v662
      %v3411 = vunpack.c.h.b16 %v662
      %v3412 = vunpack.c.l.b16 %v663
      %v3413 = vunpack.c.h.b16 %v663
      %v3414 = vunpack.c.l.b16 %v664
      %v3415 = vunpack.c.h.b16 %v664
      %v3416 = vunpack.c.l.b16 %v665
      %v3417 = vunpack.c.h.b16 %v665
      %v3418 = vunpack.c.l.b16 %v666
      %v3419 = vunpack.c.h.b16 %v666
      %v3420 = vunpack.c.l.b16 %v667
      %v3421 = vunpack.c.h.b16 %v667
      %v3422 = vunpack.c.l.b16 %v668
      %v3423 = vunpack.c.h.b16 %v668
      %v3424 = vunpack.c.l.b16 %v669
      %v3425 = vunpack.c.h.b16 %v669
      %v3426 = vunpack.c.l.b16 %v670
      %v3427 = vunpack.c.h.b16 %v670
      %v3428 = vunpack.c.l.b16 %v671
      %v3429 = vunpack.c.h.b16 %v671
      %v3430 = vunpack.c.l.b16 %v672
      %v3431 = vunpack.c.h.b16 %v672
      %v3432 = vunpack.c.l.b16 %v673
      %v3433 = vunpack.c.h.b16 %v673
      %v3434 = vunpack.c.l.b16 %v674
      %v3435 = vunpack.c.h.b16 %v674
      %v3436 = vunpack.c.l.b16 %v675
      %v3437 = vunpack.c.h.b16 %v675
      %v3438 = vunpack.c.l.b16 %v676
      %v3439 = vunpack.c.h.b16 %v676
      %v3440 = vunpack.c.l.b16 %v677
      %v3441 = vunpack.c.h.b16 %v677
      %v3442 = vunpack.c.l.b16 %v678
      %v3443 = vunpack.c.h.b16 %v678
      %v3444 = vunpack.c.l.b16 %v679
      %v3445 = vunpack.c.h.b16 %v679
      %v3446 = vunpack.c.l.b16 %v680
      %v3447 = vunpack.c.h.b16 %v680
      %v3448 = vunpack.c.l.b16 %v681
      %v3449 = vunpack.c.h.b16 %v681
      %v3450 = vunpack.c.l.b16 %v682
      %v3451 = vunpack.c.h.b16 %v682
      %v3452 = vunpack.c.l.b16 %v683
      %v3453 = vunpack.c.h.b16 %v683
      %v3454 = vunpack.c.l.b16 %v684
      %v3455 = vunpack.c.h.b16 %v684
      %v3456 = vunpack.c.l.b16 %v685
      %v3457 = vunpack.c.h.b16 %v685
      %v3458 = vunpack.c.l.b16 %v686
      %v3459 = vunpack.c.h.b16 %v686
      %v3460 = vunpack.c.l.b16 %v687
      %v3461 = vunpack.c.h.b16 %v687
      %v3462 = vunpack.c.l.b16 %v688
      %v3463 = vunpack.c.h.b16 %v688
      %v3464 = vunpack.c.l.b16 %v689
      %v3465 = vunpack.c.h.b16 %v689
      %v3466 = vunpack.c.l.b16 %v690
      %v3467 = vunpack.c.h.b16 %v690
      %v3468 = vunpack.c.l.b16 %v691
      %v3469 = vunpack.c.h.b16 %v691
      %v3470 = vunpack.c.l.b16 %v692
      %v3471 = vunpack.c.h.b16 %v692
      %v3472 = vunpack.c.l.b16 %v693
      %v3473 = vunpack.c.h.b16 %v693
      %v3474 = vunpack.c.l.b16 %v694
      %v3475 = vunpack.c.h.b16 %v694
      %v3476 = vunpack.c.l.b16 %v695
      %v3477 = vunpack.c.h.b16 %v695
      %v3478 = vunpack.c.l.b16 %v696
      %v3479 = vunpack.c.h.b16 %v696
      %v3480 = vunpack.c.l.b16 %v697
      %v3481 = vunpack.c.h.b16 %v697
      %v3482 = vunpack.c.l.b16 %v698
      %v3483 = vunpack.c.h.b16 %v698
      %v3484 = vunpack.c.l.b16 %v699
      %v3485 = vunpack.c.h.b16 %v699
      %v3486 = vunpack.c.l.b16 %v700
      %v3487 = vunpack.c.h.b16 %v700
      %v3488 = vunpack.c.l.b16 %v701
      %v3489 = vunpack.c.h.b16 %v701
      %v3490 = vunpack.c.l.b16 %v702
      %v3491 = vunpack.c.h.b16 %v702
      %v3492 = vunpack.c.l.b16 %v703
      %v3493 = vunpack.c.h.b16 %v703
      %v3494 = vunpack.c.l.b16 %v704
      %v3495 = vunpack.c.h.b16 %v704
      %v3496 = vunpack.c.l.b16 %v705
      %v3497 = vunpack.c.h.b16 %v705
      %v3498 = vunpack.c.l.b16 %v706
      %v3499 = vunpack.c.h.b16 %v706
      %v3500 = vunpack.c.l.b16 %v707
      %v3501 = vunpack.c.h.b16 %v707
      %v3502 = vunpack.c.l.b16 %v708
      %v3503 = vunpack.c.h.b16 %v708
      %v3504 = vunpack.c.l.b16 %v709
      %v3505 = vunpack.c.h.b16 %v709
      %v3506 = vunpack.c.l.b16 %v710
      %v3507 = vunpack.c.h.b16 %v710
      %v3508 = vunpack.c.l.b16 %v711
      %v3509 = vunpack.c.h.b16 %v711
      %v3510 = vunpack.c.l.b16 %v712
      %v3511 = vunpack.c.h.b16 %v712
      %v3512 = vunpack.c.l.b16 %v713
      %v3513 = vunpack.c.h.b16 %v713
      %v3514 = vunpack.c.l.b16 %v714
      %v3515 = vunpack.c.h.b16 %v714
      %v3516 = vunpack.c.l.b16 %v715
      %v3517 = vunpack.c.h.b16 %v715
      %v3518 = vunpack.c.l.b16 %v716
      %v3519 = vunpack.c.h.b16 %v716
      %v3520 = vunpack.c.l.b16 %v717
      %v3521 = vunpack.c.h.b16 %v717
      %v3522 = vunpack.c.l.b16 %v718
      %v3523 = vunpack.c.h.b16 %v718
      %v3524 = vunpack.c.l.b16 %v719
      %v3525 = vunpack.c.h.b16 %v719
      %v3526 = vunpack.c.l.b16 %v720
      %v3527 = vunpack.c.h.b16 %v720
      %v3528 = vunpack.c.l.b16 %v721
      %v3529 = vunpack.c.h.b16 %v721
      %v3530 = vunpack.c.l.b16 %v722
      %v3531 = vunpack.c.h.b16 %v722
      %v3532 = vunpack.c.l.b16 %v723
      %v3533 = vunpack.c.h.b16 %v723
      %v3534 = vunpack.c.l.b16 %v724
      %v3535 = vunpack.c.h.b16 %v724
      %v3536 = vunpack.c.l.b16 %v725
      %v3537 = vunpack.c.h.b16 %v725
      %v3538 = vunpack.c.l.b16 %v726
      %v3539 = vunpack.c.h.b16 %v726
      %v3540 = vunpack.c.l.b16 %v727
      %v3541 = vunpack.c.h.b16 %v727
      %v3542 = vunpack.c.l.b16 %v728
      %v3543 = vunpack.c.h.b16 %v728
      %v3544 = vunpack.c.l.b16 %v729
      %v3545 = vunpack.c.h.b16 %v729
      %v3546 = vunpack.c.l.b16 %v730
      %v3547 = vunpack.c.h.b16 %v730
      %v3548 = vunpack.c.l.b16 %v731
      %v3549 = vunpack.c.h.b16 %v731
      %v3550 = vunpack.c.l.b16 %v732
      %v3551 = vunpack.c.h.b16 %v732
      %v3552 = vunpack.c.l.b16 %v733
      %v3553 = vunpack.c.h.b16 %v733
      %v3554 = vunpack.c.l.b16 %v734
      %v3555 = vunpack.c.h.b16 %v734
      %v3556 = vunpack.c.l.b16 %v735
      %v3557 = vunpack.c.h.b16 %v735
      %v3558 = vunpack.c.l.b16 %v736
      %v3559 = vunpack.c.h.b16 %v736
      %v3560 = vunpack.c.l.b16 %v737
      %v3561 = vunpack.c.h.b16 %v737
      %v3562 = vunpack.c.l.b16 %v738
      %v3563 = vunpack.c.h.b16 %v738
      %v3564 = vunpack.c.l.b16 %v739
      %v3565 = vunpack.c.h.b16 %v739
      %v3566 = vunpack.c.l.b16 %v740
      %v3567 = vunpack.c.h.b16 %v740
      %v3568 = vunpack.c.l.b16 %v741
      %v3569 = vunpack.c.h.b16 %v741
      %v3570 = vunpack.c.l.b16 %v742
      %v3571 = vunpack.c.h.b16 %v742
      %v3572 = vunpack.c.l.b16 %v743
      %v3573 = vunpack.c.h.b16 %v743
      %v3574 = vunpack.c.l.b16 %v744
      %v3575 = vunpack.c.h.b16 %v744
      %v3576 = vunpack.c.l.b16 %v745
      %v3577 = vunpack.c.h.b16 %v745
      %v3578 = vunpack.c.l.b16 %v746
      %v3579 = vunpack.c.h.b16 %v746
      %v3580 = vunpack.c.l.b16 %v747
      %v3581 = vunpack.c.h.b16 %v747
      %v3582 = vunpack.c.l.b16 %v748
      %v3583 = vunpack.c.h.b16 %v748
      %v3584 = vunpack.c.l.b16 %v749
      %v3585 = vunpack.c.h.b16 %v749
      %v3586 = vunpack.c.l.b16 %v750
      %v3587 = vunpack.c.h.b16 %v750
      %v3588 = vunpack.c.l.b16 %v751
      %v3589 = vunpack.c.h.b16 %v751
      %v3590 = vunpack.c.l.b16 %v752
      %v3591 = vunpack.c.h.b16 %v752
      %v3592 = vunpack.c.l.b16 %v753
      %v3593 = vunpack.c.h.b16 %v753
      %v3594 = vunpack.c.l.b16 %v754
      %v3595 = vunpack.c.h.b16 %v754
      %v3596 = vunpack.c.l.b16 %v755
      %v3597 = vunpack.c.h.b16 %v755
      %v3598 = vunpack.c.l.b16 %v756
      %v3599 = vunpack.c.h.b16 %v756
      %v3600 = vunpack.c.l.b16 %v757
      %v3601 = vunpack.c.h.b16 %v757
      %v3602 = vunpack.c.l.b16 %v758
      %v3603 = vunpack.c.h.b16 %v758
      %v3604 = vunpack.c.l.b16 %v759
      %v3605 = vunpack.c.h.b16 %v759
      %v3606 = vunpack.c.l.b16 %v760
      %v3607 = vunpack.c.h.b16 %v760
      %v3608 = vunpack.c.l.b16 %v761
      %v3609 = vunpack.c.h.b16 %v761
      %v3610 = vunpack.c.l.b16 %v762
      %v3611 = vunpack.c.h.b16 %v762
      %v3612 = vunpack.c.l.b16 %v763
      %v3613 = vunpack.c.h.b16 %v763
      %v3614 = vunpack.c.l.b16 %v764
      %v3615 = vunpack.c.h.b16 %v764
      %v3616 = vunpack.c.l.b16 %v765
      %v3617 = vunpack.c.h.b16 %v765
      %v3618 = vunpack.c.l.b16 %v766
      %v3619 = vunpack.c.h.b16 %v766
      %v3620 = vunpack.c.l.b16 %v767
      %v3621 = vunpack.c.h.b16 %v767
      %v3622 = vunpack.c.l.b16 %v768
      %v3623 = vunpack.c.h.b16 %v768
      %v3624 = vunpack.c.l.b16 %v769
      %v3625 = vunpack.c.h.b16 %v769
      %v3626 = vunpack.c.l.b16 %v770
      %v3627 = vunpack.c.h.b16 %v770
      %v3628 = vunpack.c.l.b16 %v771
      %v3629 = vunpack.c.h.b16 %v771
      %v3630 = vunpack.c.l.b16 %v772
      %v3631 = vunpack.c.h.b16 %v772
      %v3632 = vunpack.c.l.b16 %v773
      %v3633 = vunpack.c.h.b16 %v773
      %v3634 = vunpack.c.l.b16 %v774
      %v3635 = vunpack.c.h.b16 %v774
      %v3636 = vunpack.c.l.b16 %v775
      %v3637 = vunpack.c.h.b16 %v775
      %v3638 = vunpack.c.l.b16 %v776
      %v3639 = vunpack.c.h.b16 %v776
      %v3640 = vunpack.c.l.b16 %v777
      %v3641 = vunpack.c.h.b16 %v777
      %v3642 = vunpack.c.l.b16 %v778
      %v3643 = vunpack.c.h.b16 %v778
      %v3644 = vunpack.c.l.b16 %v779
      %v3645 = vunpack.c.h.b16 %v779
      %v3646 = vunpack.c.l.b16 %v780
      %v3647 = vunpack.c.h.b16 %v780
      %v3648 = vunpack.c.l.b16 %v781
      %v3649 = vunpack.c.h.b16 %v781
      %v3650 = vunpack.c.l.b16 %v782
      %v3651 = vunpack.c.h.b16 %v782
      %v3652 = vunpack.c.l.b16 %v783
      %v3653 = vunpack.c.h.b16 %v783
      %v3654 = vunpack.c.l.b16 %v784
      %v3655 = vunpack.c.h.b16 %v784
      %v3656 = vunpack.c.l.b16 %v785
      %v3657 = vunpack.c.h.b16 %v785
      %v3658 = vunpack.c.l.b16 %v786
      %v3659 = vunpack.c.h.b16 %v786
      %v3660 = vunpack.c.l.b16 %v787
      %v3661 = vunpack.c.h.b16 %v787
      %v3662 = vunpack.c.l.b16 %v788
      %v3663 = vunpack.c.h.b16 %v788
      %v3664 = vunpack.c.l.b16 %v789
      %v3665 = vunpack.c.h.b16 %v789
      %v3666 = vunpack.c.l.b16 %v790
      %v3667 = vunpack.c.h.b16 %v790
      %v3668 = vunpack.c.l.b16 %v791
      %v3669 = vunpack.c.h.b16 %v791
      %v3670 = vunpack.c.l.b16 %v792
      %v3671 = vunpack.c.h.b16 %v792
      %v3672 = vunpack.c.l.b16 %v793
      %v3673 = vunpack.c.h.b16 %v793
      %v3674 = vunpack.c.l.b16 %v794
      %v3675 = vunpack.c.h.b16 %v794
      %v3676 = vunpack.c.l.b16 %v795
      %v3677 = vunpack.c.h.b16 %v795
      %v3678 = vunpack.c.l.b16 %v796
      %v3679 = vunpack.c.h.b16 %v796
      %v3680 = vunpack.c.l.b16 %v797
      %v3681 = vunpack.c.h.b16 %v797
      %v3682 = vunpack.c.l.b16 %v798
      %v3683 = vunpack.c.h.b16 %v798
      %v3684 = vunpack.c.l.b16 %v799
      %v3685 = vunpack.c.h.b16 %v799
      %v3686 = vunpack.c.l.b16 %v800
      %v3687 = vunpack.c.h.b16 %v800
      %v3688 = vunpack.c.l.b16 %v801
      %v3689 = vunpack.c.h.b16 %v801
      %v3690 = vunpack.c.l.b16 %v802
      %v3691 = vunpack.c.h.b16 %v802
      %v3692 = vunpack.c.l.b16 %v803
      %v3693 = vunpack.c.h.b16 %v803
      %v3694 = vunpack.c.l.b16 %v804
      %v3695 = vunpack.c.h.b16 %v804
      %v3696 = vunpack.c.l.b16 %v805
      %v3697 = vunpack.c.h.b16 %v805
      %v3698 = vunpack.c.l.b16 %v806
      %v3699 = vunpack.c.h.b16 %v806
      %v3700 = vunpack.c.l.b16 %v807
      %v3701 = vunpack.c.h.b16 %v807
      %v3702 = vunpack.c.l.b16 %v808
      %v3703 = vunpack.c.h.b16 %v808
      %v3704 = vunpack.c.l.b16 %v809
      %v3705 = vunpack.c.h.b16 %v809
      %v3706 = vunpack.c.l.b16 %v810
      %v3707 = vunpack.c.h.b16 %v810
      %v3708 = vunpack.c.l.b16 %v811
      %v3709 = vunpack.c.h.b16 %v811
      %v3710 = vunpack.c.l.b16 %v812
      %v3711 = vunpack.c.h.b16 %v812
      %v3712 = vunpack.c.l.b16 %v813
      %v3713 = vunpack.c.h.b16 %v813
      %v3714 = vunpack.c.l.b16 %v814
      %v3715 = vunpack.c.h.b16 %v814
      %v3716 = vunpack.c.l.b16 %v815
      %v3717 = vunpack.c.h.b16 %v815
      %v3718 = vunpack.c.l.b16 %v816
      %v3719 = vunpack.c.h.b16 %v816
      %v3720 = vunpack.c.l.b16 %v817
      %v3721 = vunpack.c.h.b16 %v817
      %v3722 = vunpack.c.l.b16 %v818
      %v3723 = vunpack.c.h.b16 %v818
      %v3724 = vunpack.c.l.b16 %v819
      %v3725 = vunpack.c.h.b16 %v819
      %v3726 = vunpack.c.l.b16 %v820
      %v3727 = vunpack.c.h.b16 %v820
      %v3728 = vunpack.c.l.b16 %v821
      %v3729 = vunpack.c.h.b16 %v821
      %v3730 = vunpack.c.l.b16 %v822
      %v3731 = vunpack.c.h.b16 %v822
      %v3732 = vunpack.c.l.b16 %v823
      %v3733 = vunpack.c.h.b16 %v823
      %v3734 = vunpack.c.l.b16 %v824
      %v3735 = vunpack.c.h.b16 %v824
      %v3736 = vunpack.c.l.b16 %v825
      %v3737 = vunpack.c.h.b16 %v825
      %v3738 = vunpack.c.l.b16 %v826
      %v3739 = vunpack.c.h.b16 %v826
      %v3740 = vunpack.c.l.b16 %v827
      %v3741 = vunpack.c.h.b16 %v827
      %v3742 = vunpack.c.l.b16 %v828
      %v3743 = vunpack.c.h.b16 %v828
      %v3744 = vunpack.c.l.b16 %v829
      %v3745 = vunpack.c.h.b16 %v829
      %v3746 = vunpack.c.l.b16 %v830
      %v3747 = vunpack.c.h.b16 %v830
      %v3748 = vunpack.c.l.b16 %v831
      %v3749 = vunpack.c.h.b16 %v831
      %v3750 = vunpack.c.l.b16 %v832
      %v3751 = vunpack.c.h.b16 %v832
      %v3752 = vunpack.c.l.b16 %v833
      %v3753 = vunpack.c.h.b16 %v833
      %v3754 = vunpack.c.l.b16 %v834
      %v3755 = vunpack.c.h.b16 %v834
      %v3756 = vunpack.c.l.b16 %v835
      %v3757 = vunpack.c.h.b16 %v835
      %v3758 = vunpack.c.l.b16 %v836
      %v3759 = vunpack.c.h.b16 %v836
      %v3760 = vunpack.c.l.b16 %v837
      %v3761 = vunpack.c.h.b16 %v837
      %v3762 = vunpack.c.l.b16 %v838
      %v3763 = vunpack.c.h.b16 %v838
      %v3764 = vunpack.c.l.b16 %v839
      %v3765 = vunpack.c.h.b16 %v839
      %v3766 = vunpack.c.l.b16 %v840
      %v3767 = vunpack.c.h.b16 %v840
      %v3768 = vunpack.c.l.b16 %v841
      %v3769 = vunpack.c.h.b16 %v841
      %v3770 = vunpack.c.l.b16 %v842
      %v3771 = vunpack.c.h.b16 %v842
      %v3772 = vunpack.c.l.b16 %v843
      %v3773 = vunpack.c.h.b16 %v843
      %v3774 = vunpack.c.l.b16 %v844
      %v3775 = vunpack.c.h.b16 %v844
      %v3776 = vunpack.c.l.b16 %v845
      %v3777 = vunpack.c.h.b16 %v845
      %v3778 = vunpack.c.l.b16 %v846
      %v3779 = vunpack.c.h.b16 %v846
      %v3780 = vunpack.c.l.b16 %v847
      %v3781 = vunpack.c.h.b16 %v847
      %v3782 = vunpack.c.l.b16 %v848
      %v3783 = vunpack.c.h.b16 %v848
      %v3784 = vunpack.c.l.b16 %v849
      %v3785 = vunpack.c.h.b16 %v849
      %v3786 = vunpack.c.l.b16 %v850
      %v3787 = vunpack.c.h.b16 %v850
      %v3788 = vunpack.c.l.b16 %v851
      %v3789 = vunpack.c.h.b16 %v851
      %v3790 = vunpack.c.l.b16 %v852
      %v3791 = vunpack.c.h.b16 %v852
      %v3792 = vunpack.c.l.b16 %v853
      %v3793 = vunpack.c.h.b16 %v853
      %v3794 = vunpack.c.l.b16 %v854
      %v3795 = vunpack.c.h.b16 %v854
      %v3796 = vunpack.c.l.b16 %v855
      %v3797 = vunpack.c.h.b16 %v855
      %v3798 = vunpack.c.l.b16 %v856
      %v3799 = vunpack.c.h.b16 %v856
      %v3800 = vunpack.c.l.b16 %v857
      %v3801 = vunpack.c.h.b16 %v857
      %v3802 = vunpack.c.l.b16 %v858
      %v3803 = vunpack.c.h.b16 %v858
      %v3804 = vunpack.c.l.b16 %v859
      %v3805 = vunpack.c.h.b16 %v859
      %v3806 = vunpack.c.l.b16 %v860
      %v3807 = vunpack.c.h.b16 %v860
      %v3808 = vunpack.c.l.b16 %v861
      %v3809 = vunpack.c.h.b16 %v861
      %v3810 = vunpack.c.l.b16 %v862
      %v3811 = vunpack.c.h.b16 %v862
      %v3812 = vunpack.c.l.b16 %v863
      %v3813 = vunpack.c.h.b16 %v863
      %v3814 = vunpack.c.l.b16 %v864
      %v3815 = vunpack.c.h.b16 %v864
      %v3816 = vunpack.c.l.b16 %v865
      %v3817 = vunpack.c.h.b16 %v865
      %v3818 = vunpack.c.l.b16 %v866
      %v3819 = vunpack.c.h.b16 %v866
      %v3820 = vunpack.c.l.b16 %v867
      %v3821 = vunpack.c.h.b16 %v867
      %v3822 = vunpack.c.l.b16 %v868
      %v3823 = vunpack.c.h.b16 %v868
      %v3824 = vunpack.c.l.b16 %v869
      %v3825 = vunpack.c.h.b16 %v869
      %v3826 = vunpack.c.l.b16 %v870
      %v3827 = vunpack.c.h.b16 %v870
      %v3828 = vunpack.c.l.b16 %v871
      %v3829 = vunpack.c.h.b16 %v871
      %v3830 = vunpack.c.l.b16 %v872
      %v3831 = vunpack.c.h.b16 %v872
      %v3832 = vunpack.c.l.b16 %v873
      %v3833 = vunpack.c.h.b16 %v873
      %v3834 = vunpack.c.l.b16 %v874
      %v3835 = vunpack.c.h.b16 %v874
      %v3836 = vunpack.c.l.b16 %v875
      %v3837 = vunpack.c.h.b16 %v875
      %v3838 = vunpack.c.l.b16 %v876
      %v3839 = vunpack.c.h.b16 %v876
      %v3840 = vunpack.c.l.b16 %v877
      %v3841 = vunpack.c.h.b16 %v877
      %v3842 = vunpack.c.l.b16 %v878
      %v3843 = vunpack.c.h.b16 %v878
      %v3844 = vunpack.c.l.b16 %v879
      %v3845 = vunpack.c.h.b16 %v879
      %v3846 = vunpack.c.l.b16 %v880
      %v3847 = vunpack.c.h.b16 %v880
      %v3848 = vunpack.c.l.b16 %v881
      %v3849 = vunpack.c.h.b16 %v881
      %v3850 = vunpack.c.l.b16 %v882
      %v3851 = vunpack.c.h.b16 %v882
      %v3852 = vunpack.c.l.b16 %v883
      %v3853 = vunpack.c.h.b16 %v883
      %v3854 = vunpack.c.l.b16 %v884
      %v3855 = vunpack.c.h.b16 %v884
      %v3856 = vunpack.c.l.b16 %v885
      %v3857 = vunpack.c.h.b16 %v885
      %v3858 = vunpack.c.l.b16 %v886
      %v3859 = vunpack.c.h.b16 %v886
      %v3860 = vunpack.c.l.b16 %v887
      %v3861 = vunpack.c.h.b16 %v887
      %v3862 = vunpack.c.l.b16 %v888
      %v3863 = vunpack.c.h.b16 %v888
      %v3864 = vunpack.c.l.b16 %v889
      %v3865 = vunpack.c.h.b16 %v889
      %v3866 = vunpack.c.l.b16 %v890
      %v3867 = vunpack.c.h.b16 %v890
      %v3868 = vunpack.c.l.b16 %v891
      %v3869 = vunpack.c.h.b16 %v891
      %v3870 = vunpack.c.l.b16 %v892
      %v3871 = vunpack.c.h.b16 %v892
      %v3872 = vunpack.c.l.b16 %v893
      %v3873 = vunpack.c.h.b16 %v893
      %v3874 = vunpack.c.l.b16 %v894
      %v3875 = vunpack.c.h.b16 %v894
      %v3876 = vunpack.c.l.b16 %v895
      %v3877 = vunpack.c.h.b16 %v895
      %v3878 = vunpack.c.l.b16 %v896
      %v3879 = vunpack.c.h.b16 %v896
      %v3880 = vunpack.c.l.b16 %v897
      %v3881 = vunpack.c.h.b16 %v897
      %v3882 = vunpack.c.l.b16 %v898
      %v3883 = vunpack.c.h.b16 %v898
      %v3884 = vunpack.c.l.b16 %v899
      %v3885 = vunpack.c.h.b16 %v899
      %v3886 = vunpack.c.l.b16 %v900
      %v3887 = vunpack.c.h.b16 %v900
      %v3888 = vunpack.c.l.b16 %v901
      %v3889 = vunpack.c.h.b16 %v901
      %v3890 = vunpack.c.l.b16 %v902
      %v3891 = vunpack.c.h.b16 %v902
      %v3892 = vunpack.c.l.b16 %v903
      %v3893 = vunpack.c.h.b16 %v903
      %v3894 = vunpack.c.l.b16 %v904
      %v3895 = vunpack.c.h.b16 %v904
      %v3896 = vunpack.c.l.b16 %v905
      %v3897 = vunpack.c.h.b16 %v905
      %v3898 = vunpack.c.l.b16 %v906
      %v3899 = vunpack.c.h.b16 %v906
      %v3900 = vunpack.c.l.b16 %v907
      %v3901 = vunpack.c.h.b16 %v907
      %v3902 = vunpack.c.l.b16 %v908
      %v3903 = vunpack.c.h.b16 %v908
      %v3904 = vunpack.c.l.b16 %v909
      %v3905 = vunpack.c.h.b16 %v909
      %v3906 = vunpack.c.l.b16 %v910
      %v3907 = vunpack.c.h.b16 %v910
      %v3908 = vunpack.c.l.b16 %v911
      %v3909 = vunpack.c.h.b16 %v911
      %v3910 = vunpack.c.l.b16 %v912
      %v3911 = vunpack.c.h.b16 %v912
      %v3912 = vunpack.c.l.b16 %v913
      %v3913 = vunpack.c.h.b16 %v913
      %v3914 = vunpack.c.l.b16 %v914
      %v3915 = vunpack.c.h.b16 %v914
      %v3916 = vunpack.c.l.b16 %v915
      %v3917 = vunpack.c.h.b16 %v915
      %v3918 = vunpack.c.l.b16 %v916
      %v3919 = vunpack.c.h.b16 %v916
      %v3920 = vunpack.c.l.b16 %v917
      %v3921 = vunpack.c.h.b16 %v917
      %v3922 = vunpack.c.l.b16 %v918
      %v3923 = vunpack.c.h.b16 %v918
      %v3924 = vunpack.c.l.b16 %v919
      %v3925 = vunpack.c.h.b16 %v919
      %v3926 = vunpack.c.l.b16 %v920
      %v3927 = vunpack.c.h.b16 %v920
      %v3928 = vunpack.c.l.b16 %v921
      %v3929 = vunpack.c.h.b16 %v921
      %v3930 = vunpack.c.l.b16 %v922
      %v3931 = vunpack.c.h.b16 %v922
      %v3932 = vunpack.c.l.b16 %v923
      %v3933 = vunpack.c.h.b16 %v923
      %v3934 = vunpack.c.l.b16 %v924
      %v3935 = vunpack.c.h.b16 %v924
      %v3936 = vunpack.c.l.b16 %v925
      %v3937 = vunpack.c.h.b16 %v925
      %v3938 = vunpack.c.l.b16 %v926
      %v3939 = vunpack.c.h.b16 %v926
      %v3940 = vunpack.c.l.b16 %v927
      %v3941 = vunpack.c.h.b16 %v927
      %v3942 = vunpack.c.l.b16 %v928
      %v3943 = vunpack.c.h.b16 %v928
      %v3944 = vunpack.c.l.b16 %v929
      %v3945 = vunpack.c.h.b16 %v929
      %v3946 = vunpack.c.l.b16 %v930
      %v3947 = vunpack.c.h.b16 %v930
      %v3948 = vunpack.c.l.b16 %v931
      %v3949 = vunpack.c.h.b16 %v931
      %v3950 = vunpack.c.l.b16 %v932
      %v3951 = vunpack.c.h.b16 %v932
      %v3952 = vunpack.c.l.b16 %v933
      %v3953 = vunpack.c.h.b16 %v933
      %v3954 = vunpack.c.l.b16 %v934
      %v3955 = vunpack.c.h.b16 %v934
      %v3956 = vunpack.c.l.b16 %v935
      %v3957 = vunpack.c.h.b16 %v935
      %v3958 = vunpack.c.l.b16 %v936
      %v3959 = vunpack.c.h.b16 %v936
      %v3960 = vunpack.c.l.b16 %v937
      %v3961 = vunpack.c.h.b16 %v937
      %v3962 = vunpack.c.l.b16 %v938
      %v3963 = vunpack.c.h.b16 %v938
      %v3964 = vunpack.c.l.b16 %v939
      %v3965 = vunpack.c.h.b16 %v939
      %v3966 = vunpack.c.l.b16 %v940
      %v3967 = vunpack.c.h.b16 %v940
      %v3968 = vunpack.c.l.b16 %v941
      %v3969 = vunpack.c.h.b16 %v941
      %v3970 = vunpack.c.l.b16 %v942
      %v3971 = vunpack.c.h.b16 %v942
      %v3972 = vunpack.c.l.b16 %v943
      %v3973 = vunpack.c.h.b16 %v943
      %v3974 = vunpack.c.l.b16 %v944
      %v3975 = vunpack.c.h.b16 %v944
      %v3976 = vunpack.c.l.b16 %v945
      %v3977 = vunpack.c.h.b16 %v945
      %v3978 = vunpack.c.l.b16 %v946
      %v3979 = vunpack.c.h.b16 %v946
      %v3980 = vunpack.c.l.b16 %v947
      %v3981 = vunpack.c.h.b16 %v947
      %v3982 = vunpack.c.l.b16 %v948
      %v3983 = vunpack.c.h.b16 %v948
      %v3984 = vunpack.c.l.b16 %v949
      %v3985 = vunpack.c.h.b16 %v949
      %v3986 = vunpack.c.l.b16 %v950
      %v3987 = vunpack.c.h.b16 %v950
      %v3988 = vunpack.c.l.b16 %v951
      %v3989 = vunpack.c.h.b16 %v951
      %v3990 = vunpack.c.l.b16 %v952
      %v3991 = vunpack.c.h.b16 %v952
      %v3992 = vunpack.c.l.b16 %v953
      %v3993 = vunpack.c.h.b16 %v953
      %v3994 = vunpack.c.l.b16 %v954
      %v3995 = vunpack.c.h.b16 %v954
      %v3996 = vunpack.c.l.b16 %v955
      %v3997 = vunpack.c.h.b16 %v955
      %v3998 = vunpack.c.l.b16 %v956
      %v3999 = vunpack.c.h.b16 %v956
      %v4000 = vunpack.c.l.b16 %v957
      %v4001 = vunpack.c.h.b16 %v957
      %v4002 = vunpack.c.l.b16 %v958
      %v4003 = vunpack.c.h.b16 %v958
      %v4004 = vunpack.c.l.b16 %v959
      %v4005 = vunpack.c.h.b16 %v959
      %v4006 = vunpack.c.l.b16 %v960
      %v4007 = vunpack.c.h.b16 %v960
      %v4008 = vunpack.c.l.b16 %v961
      %v4009 = vunpack.c.h.b16 %v961
      %v4010 = vunpack.c.l.b16 %v962
      %v4011 = vunpack.c.h.b16 %v962
      %v4012 = vunpack.c.l.b16 %v963
      %v4013 = vunpack.c.h.b16 %v963
      %v4014 = vunpack.c.l.b16 %v964
      %v4015 = vunpack.c.h.b16 %v964
      %v4016 = vunpack.c.l.b16 %v965
      %v4017 = vunpack.c.h.b16 %v965
      %v4018 = vunpack.c.l.b16 %v966
      %v4019 = vunpack.c.h.b16 %v966
      %v4020 = vunpack.c.l.b16 %v967
      %v4021 = vunpack.c.h.b16 %v967
      %v4022 = vunpack.c.l.b16 %v968
      %v4023 = vunpack.c.h.b16 %v968
      %v4024 = vunpack.c.l.b16 %v969
      %v4025 = vunpack.c.h.b16 %v969
      %v4026 = vunpack.c.l.b16 %v970
      %v4027 = vunpack.c.h.b16 %v970
      %v4028 = vunpack.c.l.b16 %v971
      %v4029 = vunpack.c.h.b16 %v971
      %v4030 = vunpack.c.l.b16 %v972
      %v4031 = vunpack.c.h.b16 %v972
      %v4032 = vunpack.c.l.b16 %v973
      %v4033 = vunpack.c.h.b16 %v973
      %v4034 = vunpack.c.l.b16 %v974
      %v4035 = vunpack.c.h.b16 %v974
      %v4036 = vunpack.c.l.b16 %v975
      %v4037 = vunpack.c.h.b16 %v975
      %v4038 = vunpack.c.l.b16 %v976
      %v4039 = vunpack.c.h.b16 %v976
      %v4040 = vunpack.c.l.b16 %v977
      %v4041 = vunpack.c.h.b16 %v977
      %v4042 = vunpack.c.l.b16 %v978
      %v4043 = vunpack.c.h.b16 %v978
      %v4044 = vunpack.c.l.b16 %v979
      %v4045 = vunpack.c.h.b16 %v979
      %v4046 = vunpack.c.l.b16 %v980
      %v4047 = vunpack.c.h.b16 %v980
      %v4048 = vunpack.c.l.b16 %v981
      %v4049 = vunpack.c.h.b16 %v981
      %v4050 = vunpack.c.l.b16 %v982
      %v4051 = vunpack.c.h.b16 %v982
      %v4052 = vunpack.c.l.b16 %v983
      %v4053 = vunpack.c.h.b16 %v983
      %v4054 = vunpack.c.l.b16 %v984
      %v4055 = vunpack.c.h.b16 %v984
      %v4056 = vunpack.c.l.b16 %v985
      %v4057 = vunpack.c.h.b16 %v985
      %v4058 = vunpack.c.l.b16 %v986
      %v4059 = vunpack.c.h.b16 %v986
      %v4060 = vunpack.c.l.b16 %v987
      %v4061 = vunpack.c.h.b16 %v987
      %v4062 = vunpack.c.l.b16 %v988
      %v4063 = vunpack.c.h.b16 %v988
      %v4064 = vunpack.c.l.b16 %v989
      %v4065 = vunpack.c.h.b16 %v989
      %v4066 = vunpack.c.l.b16 %v990
      %v4067 = vunpack.c.h.b16 %v990
      %v4068 = vunpack.c.l.b16 %v991
      %v4069 = vunpack.c.h.b16 %v991
      %v4070 = vunpack.c.l.b16 %v992
      %v4071 = vunpack.c.h.b16 %v992
      %v4072 = vunpack.c.l.b16 %v993
      %v4073 = vunpack.c.h.b16 %v993
      %v4074 = vunpack.c.l.b16 %v994
      %v4075 = vunpack.c.h.b16 %v994
      %v4076 = vunpack.c.l.b16 %v995
      %v4077 = vunpack.c.h.b16 %v995
      %v4078 = vunpack.c.l.b16 %v996
      %v4079 = vunpack.c.h.b16 %v996
      %v4080 = vunpack.c.l.b16 %v997
      %v4081 = vunpack.c.h.b16 %v997
      %v4082 = vunpack.c.l.b16 %v998
      %v4083 = vunpack.c.h.b16 %v998
      %v4084 = vunpack.c.l.b16 %v999
      %v4085 = vunpack.c.h.b16 %v999
      %v4086 = vunpack.c.l.b16 %v1000
      %v4087 = vunpack.c.h.b16 %v1000
      %v4088 = vunpack.c.l.b16 %v1001
      %v4089 = vunpack.c.h.b16 %v1001
      %v4090 = vunpack.c.l.b16 %v1002
      %v4091 = vunpack.c.h.b16 %v1002
      %v4092 = vunpack.c.l.b16 %v1003
      %v4093 = vunpack.c.h.b16 %v1003
      %v4094 = vunpack.c.l.b16 %v1004
      %v4095 = vunpack.c.h.b16 %v1004
      %v4096 = vunpack.c.l.b16 %v1005
      %v4097 = vunpack.c.h.b16 %v1005
      %v4098 = vunpack.c.l.b16 %v1006
      %v4099 = vunpack.c.h.b16 %v1006
      %v4100 = vunpack.c.l.b16 %v1007
      %v4101 = vunpack.c.h.b16 %v1007
      %v4102 = vunpack.c.l.b16 %v1008
      %v4103 = vunpack.c.h.b16 %v1008
      %v4104 = vunpack.c.l.b16 %v1009
      %v4105 = vunpack.c.h.b16 %v1009
      %v4106 = vunpack.c.l.b16 %v1010
      %v4107 = vunpack.c.h.b16 %v1010
      %v4108 = vunpack.c.l.b16 %v1011
      %v4109 = vunpack.c.h.b16 %v1011
      %v4110 = vunpack.c.l.b16 %v1012
      %v4111 = vunpack.c.h.b16 %v1012
      %v4112 = vunpack.c.l.b16 %v1013
      %v4113 = vunpack.c.h.b16 %v1013
      %v4114 = vunpack.c.l.b16 %v1014
      %v4115 = vunpack.c.h.b16 %v1014
      %v4116 = vunpack.c.l.b16 %v1015
      %v4117 = vunpack.c.h.b16 %v1015
      %v4118 = vunpack.c.l.b16 %v1016
      %v4119 = vunpack.c.h.b16 %v1016
      %v4120 = vunpack.c.l.b16 %v1017
      %v4121 = vunpack.c.h.b16 %v1017
      %v4122 = vunpack.c.l.b16 %v1018
      %v4123 = vunpack.c.h.b16 %v1018
      %v4124 = vunpack.c.l.b16 %v1019
      %v4125 = vunpack.c.h.b16 %v1019
      %v4126 = vunpack.c.l.b16 %v1020
      %v4127 = vunpack.c.h.b16 %v1020
      %v4128 = vunpack.c.l.b16 %v1021
      %v4129 = vunpack.c.h.b16 %v1021
      %v4130 = vunpack.c.l.b16 %v1022
      %v4131 = vunpack.c.h.b16 %v1022
      %v4132 = vunpack.c.l.b16 %v1023
      %v4133 = vunpack.c.h.b16 %v1023
      %v4134 = vunpack.c.l.b16 %v1024
      %v4135 = vunpack.c.h.b16 %v1024
      %v4136 = vunpack.c.l.b16 %v1025
      %v4137 = vunpack.c.h.b16 %v1025
      %v4138 = vunpack.c.l.b16 %v1026
      %v4139 = vunpack.c.h.b16 %v1026
      %v4140 = vunpack.c.l.b16 %v1027
      %v4141 = vunpack.c.h.b16 %v1027
      %v4142 = vunpack.c.l.b16 %v1028
      %v4143 = vunpack.c.h.b16 %v1028
      %v4144 = vunpack.c.l.b16 %v1029
      %v4145 = vunpack.c.h.b16 %v1029
      %v4146 = vunpack.c.l.b16 %v1030
      %v4147 = vunpack.c.h.b16 %v1030
      %v4148 = vunpack.c.l.b16 %v1031
      %v4149 = vunpack.c.h.b16 %v1031
      %v4150 = vunpack.c.l.b16 %v1032
      %v4151 = vunpack.c.h.b16 %v1032
      %v4152 = vunpack.c.l.b16 %v1033
      %v4153 = vunpack.c.h.b16 %v1033
      %v4154 = vunpack.c.l.b16 %v1034
      %v4155 = vunpack.c.h.b16 %v1034
      %v4156 = vunpack.c.l.b16 %v1035
      %v4157 = vunpack.c.h.b16 %v1035
      %v4158 = vunpack.c.l.b16 %v1036
      %v4159 = vunpack.c.h.b16 %v1036
      %v4160 = vunpack.c.l.b16 %v1037
      %v4161 = vunpack.c.h.b16 %v1037
      %v4162 = vunpack.c.l.b16 %v1038
      %v4163 = vunpack.c.h.b16 %v1038
      %v4164 = vunpack.c.l.b16 %v1039
      %v4165 = vunpack.c.h.b16 %v1039
      %v4166 = vunpack.c.l.b16 %v1040
      %v4167 = vunpack.c.h.b16 %v1040
      %v4168 = vunpack.c.l.b16 %v1041
      %v4169 = vunpack.c.h.b16 %v1041
      %v4170 = vunpack.c.l.b16 %v1042
      %v4171 = vunpack.c.h.b16 %v1042
      %v4172 = vunpack.c.l.b16 %v1043
      %v4173 = vunpack.c.h.b16 %v1043
      %v4174 = vunpack.c.l.b16 %v1044
      %v4175 = vunpack.c.h.b16 %v1044
      %v4176 = vunpack.c.l.b16 %v1045
      %v4177 = vunpack.c.h.b16 %v1045
      %v4178 = vunpack.c.l.b16 %v1046
      %v4179 = vunpack.c.h.b16 %v1046
      %v4180 = vunpack.c.l.b16 %v1047
      %v4181 = vunpack.c.h.b16 %v1047
      %v4182 = vunpack.c.l.b16 %v1048
      %v4183 = vunpack.c.h.b16 %v1048
      %v4184 = vunpack.c.l.b16 %v1049
      %v4185 = vunpack.c.h.b16 %v1049
      %v4186 = vunpack.c.l.b16 %v1050
      %v4187 = vunpack.c.h.b16 %v1050
      %v4188 = vunpack.c.l.b16 %v1051
      %v4189 = vunpack.c.h.b16 %v1051
      %v4190 = vunpack.c.l.b16 %v1052
      %v4191 = vunpack.c.h.b16 %v1052
      %v4192 = vunpack.c.l.b16 %v1053
      %v4193 = vunpack.c.h.b16 %v1053
      %v4194 = vunpack.c.l.b16 %v1054
      %v4195 = vunpack.c.h.b16 %v1054
      %v4196 = vunpack.c.l.b16 %v1055
      %v4197 = vunpack.c.h.b16 %v1055
      %v4198 = vunpack.c.l.b16 %v1056
      %v4199 = vunpack.c.h.b16 %v1056
      %v4200 = vunpack.c.l.b16 %v1057
      %v4201 = vunpack.c.h.b16 %v1057
      %v4202 = vunpack.c.l.b16 %v1058
      %v4203 = vunpack.c.h.b16 %v1058
      %v4204 = vunpack.c.l.b16 %v1059
      %v4205 = vunpack.c.h.b16 %v1059
      %v4206 = vunpack.c.l.b16 %v1060
      %v4207 = vunpack.c.h.b16 %v1060
      %v4208 = vunpack.c.l.b16 %v1061
      %v4209 = vunpack.c.h.b16 %v1061
      %v4210 = vunpack.c.l.b16 %v1062
      %v4211 = vunpack.c.h.b16 %v1062
      %v4212 = vunpack.c.l.b16 %v1063
      %v4213 = vunpack.c.h.b16 %v1063
      %v4214 = vunpack.c.l.b16 %v1064
      %v4215 = vunpack.c.h.b16 %v1064
      %v4216 = vunpack.c.l.b16 %v1065
      %v4217 = vunpack.c.h.b16 %v1065
      %v4218 = vunpack.c.l.b16 %v1066
      %v4219 = vunpack.c.h.b16 %v1066
      %v4220 = vunpack.c.l.b16 %v1067
      %v4221 = vunpack.c.h.b16 %v1067
      %v4222 = vunpack.c.l.b16 %v1068
      %v4223 = vunpack.c.h.b16 %v1068
      %v4224 = vunpack.c.l.b16 %v1069
      %v4225 = vunpack.c.h.b16 %v1069
      %v4226 = vunpack.c.l.b16 %v1070
      %v4227 = vunpack.c.h.b16 %v1070
      %v4228 = vunpack.c.l.b16 %v1071
      %v4229 = vunpack.c.h.b16 %v1071
      %v4230 = vunpack.c.l.b16 %v1072
      %v4231 = vunpack.c.h.b16 %v1072
      %v4232 = vunpack.c.l.b16 %v1073
      %v4233 = vunpack.c.h.b16 %v1073
      %v4234 = vunpack.c.l.b16 %v1074
      %v4235 = vunpack.c.h.b16 %v1074
      %v4236 = vunpack.c.l.b16 %v1075
      %v4237 = vunpack.c.h.b16 %v1075
      %v4238 = vunpack.c.l.b16 %v1076
      %v4239 = vunpack.c.h.b16 %v1076
      %v4240 = vunpack.c.l.b16 %v1077
      %v4241 = vunpack.c.h.b16 %v1077
      %v4242 = vunpack.c.l.b16 %v1078
      %v4243 = vunpack.c.h.b16 %v1078
      %v4244 = vunpack.c.l.b16 %v1079
      %v4245 = vunpack.c.h.b16 %v1079
      %v4246 = vunpack.c.l.b16 %v1080
      %v4247 = vunpack.c.h.b16 %v1080
      %v4248 = vunpack.c.l.b16 %v1081
      %v4249 = vunpack.c.h.b16 %v1081
      %v4250 = vunpack.c.l.b16 %v1082
      %v4251 = vunpack.c.h.b16 %v1082
      %v4252 = vunpack.c.l.b16 %v1083
      %v4253 = vunpack.c.h.b16 %v1083
      %v4254 = vunpack.c.l.b16 %v1084
      %v4255 = vunpack.c.h.b16 %v1084
      %v4256 = vunpack.c.l.b16 %v1085
      %v4257 = vunpack.c.h.b16 %v1085
      %v4258 = vunpack.c.l.b16 %v1086
      %v4259 = vunpack.c.h.b16 %v1086
      %v4260 = vunpack.c.l.b16 %v1087
      %v4261 = vunpack.c.h.b16 %v1087
      %v4262 = vunpack.c.l.b16 %v1088
      %v4263 = vunpack.c.h.b16 %v1088
      %v4264 = vunpack.c.l.b16 %v1089
      %v4265 = vunpack.c.h.b16 %v1089
      %v4266 = vunpack.c.l.b16 %v1090
      %v4267 = vunpack.c.h.b16 %v1090
      %v4268 = vunpack.c.l.b16 %v1091
      %v4269 = vunpack.c.h.b16 %v1091
      %v4270 = vunpack.c.l.b16 %v1092
      %v4271 = vunpack.c.h.b16 %v1092
      %v4272 = vunpack.c.l.b16 %v1093
      %v4273 = vunpack.c.h.b16 %v1093
      %v4274 = vunpack.c.l.b16 %v1094
      %v4275 = vunpack.c.h.b16 %v1094
      %v4276 = vunpack.c.l.b16 %v1095
      %v4277 = vunpack.c.h.b16 %v1095
      %v4278 = vunpack.c.l.b16 %v1096
      %v4279 = vunpack.c.h.b16 %v1096
      %v4280 = vunpack.c.l.b16 %v1097
      %v4281 = vunpack.c.h.b16 %v1097
      %v4282 = vunpack.c.l.b16 %v1098
      %v4283 = vunpack.c.h.b16 %v1098
      %v4284 = vunpack.c.l.b16 %v1099
      %v4285 = vunpack.c.h.b16 %v1099
      %v4286 = vunpack.c.l.b16 %v1100
      %v4287 = vunpack.c.h.b16 %v1100
      %v4288 = vunpack.c.l.b16 %v1101
      %v4289 = vunpack.c.h.b16 %v1101
      %v4290 = vunpack.c.l.b16 %v1102
      %v4291 = vunpack.c.h.b16 %v1102
      %v4292 = vunpack.c.l.b16 %v1103
      %v4293 = vunpack.c.h.b16 %v1103
      %v4294 = vunpack.c.l.b16 %v1104
      %v4295 = vunpack.c.h.b16 %v1104
      %v4296 = vunpack.c.l.b16 %v1105
      %v4297 = vunpack.c.h.b16 %v1105
      %v4298 = vunpack.c.l.b16 %v1106
      %v4299 = vunpack.c.h.b16 %v1106
      %v4300 = vunpack.c.l.b16 %v1107
      %v4301 = vunpack.c.h.b16 %v1107
      %v4302 = vunpack.c.l.b16 %v1108
      %v4303 = vunpack.c.h.b16 %v1108
      %v4304 = vunpack.c.l.b16 %v1109
      %v4305 = vunpack.c.h.b16 %v1109
      %v4306 = vunpack.c.l.b16 %v1110
      %v4307 = vunpack.c.h.b16 %v1110
      %v4308 = vunpack.c.l.b16 %v1111
      %v4309 = vunpack.c.h.b16 %v1111
      %v4310 = vunpack.c.l.b16 %v1112
      %v4311 = vunpack.c.h.b16 %v1112
      %v4312 = vunpack.c.l.b16 %v1113
      %v4313 = vunpack.c.h.b16 %v1113
      %v4314 = vunpack.c.l.b16 %v1114
      %v4315 = vunpack.c.h.b16 %v1114
      %v4316 = vunpack.c.l.b16 %v1115
      %v4317 = vunpack.c.h.b16 %v1115
      %v4318 = vunpack.c.l.b16 %v1116
      %v4319 = vunpack.c.h.b16 %v1116
      %v4320 = vunpack.c.l.b16 %v1117
      %v4321 = vunpack.c.h.b16 %v1117
      %v4322 = vunpack.c.l.b16 %v1118
      %v4323 = vunpack.c.h.b16 %v1118
      %v4324 = vunpack.c.l.b16 %v1119
      %v4325 = vunpack.c.h.b16 %v1119
      %v4326 = vunpack.c.l.b16 %v1120
      %v4327 = vunpack.c.h.b16 %v1120
      %v4328 = vunpack.c.l.b16 %v1121
      %v4329 = vunpack.c.h.b16 %v1121
      %v4330 = vunpack.c.l.b16 %v1122
      %v4331 = vunpack.c.h.b16 %v1122
      %v4332 = vunpack.c.l.b16 %v1123
      %v4333 = vunpack.c.h.b16 %v1123
      %v4334 = vunpack.c.l.b16 %v1124
      %v4335 = vunpack.c.h.b16 %v1124
      %v4336 = vunpack.c.l.b16 %v1125
      %v4337 = vunpack.c.h.b16 %v1125
      %v4338 = vunpack.c.l.b16 %v1126
      %v4339 = vunpack.c.h.b16 %v1126
      %v4340 = vunpack.c.l.b16 %v1127
      %v4341 = vunpack.c.h.b16 %v1127
      %v4342 = vunpack.c.l.b16 %v1128
      %v4343 = vunpack.c.h.b16 %v1128
      %v4344 = vunpack.c.l.b16 %v1129
      %v4345 = vunpack.c.h.b16 %v1129
      %v4346 = vunpack.c.l.b16 %v1130
      %v4347 = vunpack.c.h.b16 %v1130
      %v4348 = vunpack.c.l.b16 %v1131
      %v4349 = vunpack.c.h.b16 %v1131
      %v4350 = vunpack.c.l.b16 %v1132
      %v4351 = vunpack.c.h.b16 %v1132
      %v4352 = vunpack.c.l.b16 %v1133
      %v4353 = vunpack.c.h.b16 %v1133
      %v4354 = vunpack.c.l.b16 %v1134
      %v4355 = vunpack.c.h.b16 %v1134
      %v4356 = vunpack.c.l.b16 %v1135
      %v4357 = vunpack.c.h.b16 %v1135
      %v4358 = vunpack.c.l.b16 %v1136
      %v4359 = vunpack.c.h.b16 %v1136
      %v4360 = vunpack.c.l.b16 %v1137
      %v4361 = vunpack.c.h.b16 %v1137
      %v4362 = vunpack.c.l.b16 %v1138
      %v4363 = vunpack.c.h.b16 %v1138
      %v4364 = vunpack.c.l.b16 %v1139
      %v4365 = vunpack.c.h.b16 %v1139
      %v4366 = vunpack.c.l.b16 %v1140
      %v4367 = vunpack.c.h.b16 %v1140
      %v4368 = vunpack.c.l.b16 %v1141
      %v4369 = vunpack.c.h.b16 %v1141
      %v4370 = vunpack.c.l.b16 %v1142
      %v4371 = vunpack.c.h.b16 %v1142
      %v4372 = vunpack.c.l.b16 %v1143
      %v4373 = vunpack.c.h.b16 %v1143
      %v4374 = vunpack.c.l.b16 %v1144
      %v4375 = vunpack.c.h.b16 %v1144
      %v4376 = vunpack.c.l.b16 %v1145
      %v4377 = vunpack.c.h.b16 %v1145
      %v4378 = vunpack.c.l.b16 %v1146
      %v4379 = vunpack.c.h.b16 %v1146
      %v4380 = vunpack.c.l.b16 %v1147
      %v4381 = vunpack.c.h.b16 %v1147
      %v4382 = vunpack.c.l.b16 %v1148
      %v4383 = vunpack.c.h.b16 %v1148
      %v4384 = vunpack.c.l.b16 %v1149
      %v4385 = vunpack.c.h.b16 %v1149
      %v4386 = vunpack.c.l.b16 %v1150
      %v4387 = vunpack.c.h.b16 %v1150
      %v4388 = vunpack.c.l.b16 %v1151
      %v4389 = vunpack.c.h.b16 %v1151
      %v4390 = vunpack.c.l.b16 %v1152
      %v4391 = vunpack.c.h.b16 %v1152
      %v4392 = vunpack.c.l.b16 %v1153
      %v4393 = vunpack.c.h.b16 %v1153
      %v4394 = vunpack.c.l.b16 %v1154
      %v4395 = vunpack.c.h.b16 %v1154
      %v4396 = vunpack.c.l.b16 %v1155
      %v4397 = vunpack.c.h.b16 %v1155
      %v4398 = vunpack.c.l.b16 %v1156
      %v4399 = vunpack.c.h.b16 %v1156
      %v4400 = vunpack.c.l.b16 %v1157
      %v4401 = vunpack.c.h.b16 %v1157
      %v4402 = vunpack.c.l.b16 %v1158
      %v4403 = vunpack.c.h.b16 %v1158
      %v4404 = vunpack.c.l.b16 %v1159
      %v4405 = vunpack.c.h.b16 %v1159
      %v4406 = vunpack.c.l.b16 %v1160
      %v4407 = vunpack.c.h.b16 %v1160
      %v4408 = vunpack.c.l.b16 %v1161
      %v4409 = vunpack.c.h.b16 %v1161
      %v4410 = vunpack.c.l.b16 %v1162
      %v4411 = vunpack.c.h.b16 %v1162
      %v4412 = vunpack.c.l.b16 %v1163
      %v4413 = vunpack.c.h.b16 %v1163
      %v4414 = vunpack.c.l.b16 %v1164
      %v4415 = vunpack.c.h.b16 %v1164
      %v4416 = vunpack.c.l.b16 %v1165
      %v4417 = vunpack.c.h.b16 %v1165
      %v4418 = vunpack.c.l.b16 %v1166
      %v4419 = vunpack.c.h.b16 %v1166
      %v4420 = vunpack.c.l.b16 %v1167
      %v4421 = vunpack.c.h.b16 %v1167
      %v4422 = vunpack.c.l.b16 %v1168
      %v4423 = vunpack.c.h.b16 %v1168
      %v4424 = vunpack.c.l.b16 %v1169
      %v4425 = vunpack.c.h.b16 %v1169
      %v4426 = vunpack.c.l.b16 %v1170
      %v4427 = vunpack.c.h.b16 %v1170
      %v4428 = vunpack.c.l.b16 %v1171
      %v4429 = vunpack.c.h.b16 %v1171
      %v4430 = vunpack.c.l.b16 %v1172
      %v4431 = vunpack.c.h.b16 %v1172
      %v4432 = vunpack.c.l.b16 %v1173
      %v4433 = vunpack.c.h.b16 %v1173
      %v4434 = vunpack.c.l.b16 %v1174
      %v4435 = vunpack.c.h.b16 %v1174
      %v4436 = vunpack.c.l.b16 %v1175
      %v4437 = vunpack.c.h.b16 %v1175
      %v4438 = vunpack.c.l.b16 %v1176
      %v4439 = vunpack.c.h.b16 %v1176
      %v4440 = vunpack.c.l.b16 %v1177
      %v4441 = vunpack.c.h.b16 %v1177
      %v4442 = vunpack.c.l.b16 %v1178
      %v4443 = vunpack.c.h.b16 %v1178
      %v4444 = vunpack.c.l.b16 %v1179
      %v4445 = vunpack.c.h.b16 %v1179
      %v4446 = vunpack.c.l.b16 %v1180
      %v4447 = vunpack.c.h.b16 %v1180
      %v4448 = vunpack.c.l.b16 %v1181
      %v4449 = vunpack.c.h.b16 %v1181
      %v4450 = vunpack.c.l.b16 %v1182
      %v4451 = vunpack.c.h.b16 %v1182
      %v4452 = vunpack.c.l.b16 %v1183
      %v4453 = vunpack.c.h.b16 %v1183
      %v4454 = vunpack.c.l.b16 %v1184
      %v4455 = vunpack.c.h.b16 %v1184
      %v4456 = vunpack.c.l.b16 %v1185
      %v4457 = vunpack.c.h.b16 %v1185
      %v4458 = vunpack.c.l.b16 %v1186
      %v4459 = vunpack.c.h.b16 %v1186
      %v4460 = vunpack.c.l.b16 %v1187
      %v4461 = vunpack.c.h.b16 %v1187
      %v4462 = vunpack.c.l.b16 %v1188
      %v4463 = vunpack.c.h.b16 %v1188
      %v4464 = vunpack.c.l.b16 %v1189
      %v4465 = vunpack.c.h.b16 %v1189
      %v4466 = vunpack.c.l.b16 %v1190
      %v4467 = vunpack.c.h.b16 %v1190
      %v4468 = vunpack.c.l.b16 %v1191
      %v4469 = vunpack.c.h.b16 %v1191
      %v4470 = vunpack.c.l.b16 %v1192
      %v4471 = vunpack.c.h.b16 %v1192
      %v4472 = vunpack.c.l.b16 %v1193
      %v4473 = vunpack.c.h.b16 %v1193
      %v4474 = vunpack.c.l.b16 %v1194
      %v4475 = vunpack.c.h.b16 %v1194
      %v4476 = vunpack.c.l.b16 %v1195
      %v4477 = vunpack.c.h.b16 %v1195
      %v4478 = vunpack.c.l.b16 %v1196
      %v4479 = vunpack.c.h.b16 %v1196
      %v4480 = vunpack.c.l.b16 %v1197
      %v4481 = vunpack.c.h.b16 %v1197
      %v4482 = vunpack.c.l.b16 %v1198
      %v4483 = vunpack.c.h.b16 %v1198
      %v4484 = vunpack.c.l.b16 %v1199
      %v4485 = vunpack.c.h.b16 %v1199
      %v4486 = vunpack.c.l.b16 %v1200
      %v4487 = vunpack.c.h.b16 %v1200
      %v4488 = vunpack.c.l.b16 %v1201
      %v4489 = vunpack.c.h.b16 %v1201
      %v4490 = vunpack.c.l.b16 %v1202
      %v4491 = vunpack.c.h.b16 %v1202
      %v4492 = vunpack.c.l.b16 %v1203
      %v4493 = vunpack.c.h.b16 %v1203
      %v4494 = vunpack.c.l.b16 %v1204
      %v4495 = vunpack.c.h.b16 %v1204
      %v4496 = vunpack.c.l.b16 %v1205
      %v4497 = vunpack.c.h.b16 %v1205
      %v4498 = vunpack.c.l.b16 %v1206
      %v4499 = vunpack.c.h.b16 %v1206
      %v4500 = vunpack.c.l.b16 %v1207
      %v4501 = vunpack.c.h.b16 %v1207
      %v4502 = vunpack.c.l.b16 %v1208
      %v4503 = vunpack.c.h.b16 %v1208
      %v4504 = vunpack.c.l.b16 %v1209
      %v4505 = vunpack.c.h.b16 %v1209
      %v4506 = vunpack.c.l.b16 %v1210
      %v4507 = vunpack.c.h.b16 %v1210
      %v4508 = vunpack.c.l.b16 %v1211
      %v4509 = vunpack.c.h.b16 %v1211
      %v4510 = vunpack.c.l.b16 %v1212
      %v4511 = vunpack.c.h.b16 %v1212
      %v4512 = vunpack.c.l.b16 %v1213
      %v4513 = vunpack.c.h.b16 %v1213
      %v4514 = vunpack.c.l.b16 %v1214
      %v4515 = vunpack.c.h.b16 %v1214
      %v4516 = vunpack.c.l.b16 %v1215
      %v4517 = vunpack.c.h.b16 %v1215
      %v4518 = vunpack.c.l.b16 %v1216
      %v4519 = vunpack.c.h.b16 %v1216
      %v4520 = vunpack.c.l.b16 %v1217
      %v4521 = vunpack.c.h.b16 %v1217
      %v4522 = vunpack.c.l.b16 %v1218
      %v4523 = vunpack.c.h.b16 %v1218
      %v4524 = vunpack.c.l.b16 %v1219
      %v4525 = vunpack.c.h.b16 %v1219
      %v4526 = vunpack.c.l.b16 %v1220
      %v4527 = vunpack.c.h.b16 %v1220
      %v4528 = vunpack.c.l.b16 %v1221
      %v4529 = vunpack.c.h.b16 %v1221
      %v4530 = vunpack.c.l.b16 %v1222
      %v4531 = vunpack.c.h.b16 %v1222
      %v4532 = vunpack.c.l.b16 %v1223
      %v4533 = vunpack.c.h.b16 %v1223
      %v4534 = vunpack.c.l.b16 %v1224
      %v4535 = vunpack.c.h.b16 %v1224
      %v4536 = vunpack.c.l.b16 %v1225
      %v4537 = vunpack.c.h.b16 %v1225
      %v4538 = vunpack.c.l.b16 %v1226
      %v4539 = vunpack.c.h.b16 %v1226
      %v4540 = vunpack.c.l.b16 %v1227
      %v4541 = vunpack.c.h.b16 %v1227
      %v4542 = vunpack.c.l.b16 %v1228
      %v4543 = vunpack.c.h.b16 %v1228
      %v4544 = vunpack.c.l.b16 %v1229
      %v4545 = vunpack.c.h.b16 %v1229
      %v4546 = vunpack.c.l.b16 %v1230
      %v4547 = vunpack.c.h.b16 %v1230
      %v4548 = vunpack.c.l.b16 %v1231
      %v4549 = vunpack.c.h.b16 %v1231
      %v4550 = vunpack.c.l.b16 %v1232
      %v4551 = vunpack.c.h.b16 %v1232
      %v4552 = vunpack.c.l.b16 %v1233
      %v4553 = vunpack.c.h.b16 %v1233
      %v4554 = vunpack.c.l.b16 %v1234
      %v4555 = vunpack.c.h.b16 %v1234
      %v4556 = vunpack.c.l.b16 %v1235
      %v4557 = vunpack.c.h.b16 %v1235
      %v4558 = vunpack.c.l.b16 %v1236
      %v4559 = vunpack.c.h.b16 %v1236
      %v4560 = vunpack.c.l.b16 %v1237
      %v4561 = vunpack.c.h.b16 %v1237
      %v4562 = vunpack.c.l.b16 %v1238
      %v4563 = vunpack.c.h.b16 %v1238
      %v4564 = vunpack.c.l.b16 %v1239
      %v4565 = vunpack.c.h.b16 %v1239
      %v4566 = vunpack.c.l.b16 %v1240
      %v4567 = vunpack.c.h.b16 %v1240
      %v4568 = vunpack.c.l.b16 %v1241
      %v4569 = vunpack.c.h.b16 %v1241
      %v4570 = vunpack.c.l.b16 %v1242
      %v4571 = vunpack.c.h.b16 %v1242
      %v4572 = vunpack.c.l.b16 %v1243
      %v4573 = vunpack.c.h.b16 %v1243
      %v4574 = vunpack.c.l.b16 %v1244
      %v4575 = vunpack.c.h.b16 %v1244
      %v4576 = vunpack.c.l.b16 %v1245
      %v4577 = vunpack.c.h.b16 %v1245
      %v4578 = vunpack.c.l.b16 %v1246
      %v4579 = vunpack.c.h.b16 %v1246
      %v4580 = vunpack.c.l.b16 %v1247
      %v4581 = vunpack.c.h.b16 %v1247
      %v4582 = vunpack.c.l.b16 %v1248
      %v4583 = vunpack.c.h.b16 %v1248
      %v4584 = vunpack.c.l.b16 %v1249
      %v4585 = vunpack.c.h.b16 %v1249
      %v4586 = vunpack.c.l.b16 %v1250
      %v4587 = vunpack.c.h.b16 %v1250
      %v4588 = vunpack.c.l.b16 %v1251
      %v4589 = vunpack.c.h.b16 %v1251
      %v4590 = vunpack.c.l.b16 %v1252
      %v4591 = vunpack.c.h.b16 %v1252
      %v4592 = vunpack.c.l.b16 %v1253
      %v4593 = vunpack.c.h.b16 %v1253
      %v4594 = vunpack.c.l.b16 %v1254
      %v4595 = vunpack.c.h.b16 %v1254
      %v4596 = vunpack.c.l.b16 %v1255
      %v4597 = vunpack.c.h.b16 %v1255
      %v4598 = vunpack.c.l.b16 %v1256
      %v4599 = vunpack.c.h.b16 %v1256
      %v4600 = vunpack.c.l.b16 %v1257
      %v4601 = vunpack.c.h.b16 %v1257
      %v4602 = vunpack.c.l.b16 %v1258
      %v4603 = vunpack.c.h.b16 %v1258
      %v4604 = vunpack.c.l.b16 %v1259
      %v4605 = vunpack.c.h.b16 %v1259
      %v4606 = vunpack.c.l.b16 %v1260
      %v4607 = vunpack.c.h.b16 %v1260
      %v4608 = vunpack.c.l.b16 %v1261
      %v4609 = vunpack.c.h.b16 %v1261
      %v4610 = vunpack.c.l.b16 %v1262
      %v4611 = vunpack.c.h.b16 %v1262
      %v4612 = vunpack.c.l.b16 %v1263
      %v4613 = vunpack.c.h.b16 %v1263
      %v4614 = vunpack.c.l.b16 %v1264
      %v4615 = vunpack.c.h.b16 %v1264
      %v4616 = vunpack.c.l.b16 %v1265
      %v4617 = vunpack.c.h.b16 %v1265
      %v4618 = vunpack.c.l.b16 %v1266
      %v4619 = vunpack.c.h.b16 %v1266
      %v4620 = vunpack.c.l.b16 %v1267
      %v4621 = vunpack.c.h.b16 %v1267
      %v4622 = vunpack.c.l.b16 %v1268
      %v4623 = vunpack.c.h.b16 %v1268
      %v4624 = vunpack.c.l.b16 %v1269
      %v4625 = vunpack.c.h.b16 %v1269
      %v4626 = vunpack.c.l.b16 %v1270
      %v4627 = vunpack.c.h.b16 %v1270
      %v4628 = vunpack.c.l.b16 %v1271
      %v4629 = vunpack.c.h.b16 %v1271
      %v4630 = vunpack.c.l.b16 %v1272
      %v4631 = vunpack.c.h.b16 %v1272
      %v4632 = vunpack.c.l.b16 %v1273
      %v4633 = vunpack.c.h.b16 %v1273
      %v4634 = vunpack.c.l.b16 %v1274
      %v4635 = vunpack.c.h.b16 %v1274
      %v4636 = vunpack.c.l.b16 %v1275
      %v4637 = vunpack.c.h.b16 %v1275
      %v4638 = vunpack.c.l.b16 %v1276
      %v4639 = vunpack.c.h.b16 %v1276
      %v4640 = vunpack.c.l.b16 %v1277
      %v4641 = vunpack.c.h.b16 %v1277
      %v4642 = vunpack.c.l.b16 %v1278
      %v4643 = vunpack.c.h.b16 %v1278
      %v4644 = vunpack.c.l.b16 %v1279
      %v4645 = vunpack.c.h.b16 %v1279
      %v4646 = vunpack.c.l.b16 %v1280
      %v4647 = vunpack.c.h.b16 %v1280
      %v4648 = vunpack.c.l.b16 %v1281
      %v4649 = vunpack.c.h.b16 %v1281
      %v4650 = vunpack.c.l.b16 %v1282
      %v4651 = vunpack.c.h.b16 %v1282
      %v4652 = vunpack.c.l.b16 %v1283
      %v4653 = vunpack.c.h.b16 %v1283
      %v4654 = vunpack.c.l.b16 %v1284
      %v4655 = vunpack.c.h.b16 %v1284
      %v4656 = vunpack.c.l.b16 %v1285
      %v4657 = vunpack.c.h.b16 %v1285
      %v4658 = vunpack.c.l.b16 %v1286
      %v4659 = vunpack.c.h.b16 %v1286
      %v4660 = vunpack.c.l.b16 %v1287
      %v4661 = vunpack.c.h.b16 %v1287
      %v4662 = vunpack.c.l.b16 %v1288
      %v4663 = vunpack.c.h.b16 %v1288
      %v4664 = vunpack.c.l.b16 %v1289
      %v4665 = vunpack.c.h.b16 %v1289
      %v4666 = vunpack.c.l.b16 %v1290
      %v4667 = vunpack.c.h.b16 %v1290
      %v4668 = vunpack.c.l.b16 %v1291
      %v4669 = vunpack.c.h.b16 %v1291
      %v4670 = vunpack.c.l.b16 %v1292
      %v4671 = vunpack.c.h.b16 %v1292
      %v4672 = vunpack.c.l.b16 %v1293
      %v4673 = vunpack.c.h.b16 %v1293
      %v4674 = vunpack.c.l.b16 %v1294
      %v4675 = vunpack.c.h.b16 %v1294
      %v4676 = vunpack.c.l.b16 %v1295
      %v4677 = vunpack.c.h.b16 %v1295
      %v4678 = vunpack.c.l.b16 %v1296
      %v4679 = vunpack.c.h.b16 %v1296
      %v4680 = vunpack.c.l.b16 %v1297
      %v4681 = vunpack.c.h.b16 %v1297
      %v4682 = vunpack.c.l.b16 %v1298
      %v4683 = vunpack.c.h.b16 %v1298
      %v4684 = vunpack.c.l.b16 %v1299
      %v4685 = vunpack.c.h.b16 %v1299
      %v4686 = vunpack.c.l.b16 %v1300
      %v4687 = vunpack.c.h.b16 %v1300
      %v4688 = vunpack.c.l.b16 %v1301
      %v4689 = vunpack.c.h.b16 %v1301
      %v4690 = vunpack.c.l.b16 %v1302
      %v4691 = vunpack.c.h.b16 %v1302
      %v4692 = vunpack.c.l.b16 %v1303
      %v4693 = vunpack.c.h.b16 %v1303
      %v4694 = vunpack.c.l.b16 %v1304
      %v4695 = vunpack.c.h.b16 %v1304
      %v4696 = vunpack.c.l.b16 %v1305
      %v4697 = vunpack.c.h.b16 %v1305
      %v4698 = vunpack.c.l.b16 %v1306
      %v4699 = vunpack.c.h.b16 %v1306
      %v4700 = vunpack.c.l.b16 %v1307
      %v4701 = vunpack.c.h.b16 %v1307
      %v4702 = vunpack.c.l.b16 %v1308
      %v4703 = vunpack.c.h.b16 %v1308
      %v4704 = vunpack.c.l.b16 %v1309
      %v4705 = vunpack.c.h.b16 %v1309
      %v4706 = vunpack.c.l.b16 %v1310
      %v4707 = vunpack.c.h.b16 %v1310
      %v4708 = vunpack.c.l.b16 %v1311
      %v4709 = vunpack.c.h.b16 %v1311
      %v4710 = vunpack.c.l.b16 %v1312
      %v4711 = vunpack.c.h.b16 %v1312
      %v4712 = vunpack.c.l.b16 %v1313
      %v4713 = vunpack.c.h.b16 %v1313
      %v4714 = vunpack.c.l.b16 %v1314
      %v4715 = vunpack.c.h.b16 %v1314
      %v4716 = vunpack.c.l.b16 %v1315
      %v4717 = vunpack.c.h.b16 %v1315
      %v4718 = vunpack.c.l.b16 %v1316
      %v4719 = vunpack.c.h.b16 %v1316
      %v4720 = vunpack.c.l.b16 %v1317
      %v4721 = vunpack.c.h.b16 %v1317
      %v4722 = vunpack.c.l.b16 %v1318
      %v4723 = vunpack.c.h.b16 %v1318
      %v4724 = vunpack.c.l.b16 %v1319
      %v4725 = vunpack.c.h.b16 %v1319
      %v4726 = vunpack.c.l.b16 %v1320
      %v4727 = vunpack.c.h.b16 %v1320
      %v4728 = vunpack.c.l.b16 %v1321
      %v4729 = vunpack.c.h.b16 %v1321
      %v4730 = vunpack.c.l.b16 %v1322
      %v4731 = vunpack.c.h.b16 %v1322
      %v4732 = vunpack.c.l.b16 %v1323
      %v4733 = vunpack.c.h.b16 %v1323
      %v4734 = vunpack.c.l.b16 %v1324
      %v4735 = vunpack.c.h.b16 %v1324
      %v4736 = vunpack.c.l.b16 %v1325
      %v4737 = vunpack.c.h.b16 %v1325
      %v4738 = vunpack.c.l.b16 %v1326
      %v4739 = vunpack.c.h.b16 %v1326
      %v4740 = vunpack.c.l.b16 %v1327
      %v4741 = vunpack.c.h.b16 %v1327
      %v4742 = vunpack.c.l.b16 %v1328
      %v4743 = vunpack.c.h.b16 %v1328
      %v4744 = vunpack.c.l.b16 %v1329
      %v4745 = vunpack.c.h.b16 %v1329
      %v4746 = vunpack.c.l.b16 %v1330
      %v4747 = vunpack.c.h.b16 %v1330
      %v4748 = vunpack.c.l.b16 %v1331
      %v4749 = vunpack.c.h.b16 %v1331
      %v4750 = vunpack.c.l.b16 %v1332
      %v4751 = vunpack.c.h.b16 %v1332
      %v4752 = vunpack.c.l.b16 %v1333
      %v4753 = vunpack.c.h.b16 %v1333
      %v4754 = vunpack.c.l.b16 %v1334
      %v4755 = vunpack.c.h.b16 %v1334
      %v4756 = vunpack.c.l.b16 %v1335
      %v4757 = vunpack.c.h.b16 %v1335
      %v4758 = vunpack.c.l.b16 %v1336
      %v4759 = vunpack.c.h.b16 %v1336
      %v4760 = vunpack.c.l.b16 %v1337
      %v4761 = vunpack.c.h.b16 %v1337
      %v4762 = vunpack.c.l.b16 %v1338
      %v4763 = vunpack.c.h.b16 %v1338
      %v4764 = vunpack.c.l.b16 %v1339
      %v4765 = vunpack.c.h.b16 %v1339
      %v4766 = vunpack.c.l.b16 %v1340
      %v4767 = vunpack.c.h.b16 %v1340
      %v4768 = vunpack.c.l.b16 %v1341
      %v4769 = vunpack.c.h.b16 %v1341
      %v4770 = vunpack.c.l.b16 %v1342
      %v4771 = vunpack.c.h.b16 %v1342
      %v4772 = vunpack.c.l.b16 %v1343
      %v4773 = vunpack.c.h.b16 %v1343
      %v4774 = vunpack.c.l.b16 %v1344
      %v4775 = vunpack.c.h.b16 %v1344
      %v4776 = vunpack.c.l.b16 %v1345
      %v4777 = vunpack.c.h.b16 %v1345
      %v4778 = vunpack.c.l.b16 %v1346
      %v4779 = vunpack.c.h.b16 %v1346
      %v4780 = vunpack.c.l.b16 %v1347
      %v4781 = vunpack.c.h.b16 %v1347
      %v4782 = vunpack.c.l.b16 %v1348
      %v4783 = vunpack.c.h.b16 %v1348
      %v4784 = vunpack.c.l.b16 %v1349
      %v4785 = vunpack.c.h.b16 %v1349
      %v4786 = vunpack.c.l.b16 %v1350
      %v4787 = vunpack.c.h.b16 %v1350
      %v4788 = vunpack.c.l.b16 %v1351
      %v4789 = vunpack.c.h.b16 %v1351
      %v4790 = vunpack.c.l.b16 %v1352
      %v4791 = vunpack.c.h.b16 %v1352
      %v4792 = vunpack.c.l.b16 %v1353
      %v4793 = vunpack.c.h.b16 %v1353
      %v4794 = vunpack.c.l.b16 %v1354
      %v4795 = vunpack.c.h.b16 %v1354
      %v4796 = vunpack.c.l.b16 %v1355
      %v4797 = vunpack.c.h.b16 %v1355
      %v4798 = vunpack.c.l.b16 %v1356
      %v4799 = vunpack.c.h.b16 %v1356
      %v4800 = vunpack.c.l.b16 %v1357
      %v4801 = vunpack.c.h.b16 %v1357
      %v4802 = vunpack.c.l.b16 %v1358
      %v4803 = vunpack.c.h.b16 %v1358
      %v4804 = vunpack.c.l.b16 %v1359
      %v4805 = vunpack.c.h.b16 %v1359
      %v4806 = vunpack.c.l.b16 %v1360
      %v4807 = vunpack.c.h.b16 %v1360
      %v4808 = vunpack.c.l.b16 %v1361
      %v4809 = vunpack.c.h.b16 %v1361
      %v4810 = vunpack.c.l.b16 %v1362
      %v4811 = vunpack.c.h.b16 %v1362
      %v4812 = vunpack.c.l.b16 %v1363
      %v4813 = vunpack.c.h.b16 %v1363
      %v4814 = vunpack.c.l.b16 %v1364
      %v4815 = vunpack.c.h.b16 %v1364
      %v4816 = vunpack.c.l.b16 %v1365
      %v4817 = vunpack.c.h.b16 %v1365
      %v4818 = vunpack.c.l.b16 %v1366
      %v4819 = vunpack.c.h.b16 %v1366
      %v4820 = vunpack.c.l.b16 %v1367
      %v4821 = vunpack.c.h.b16 %v1367
      %v4822 = vunpack.c.l.b16 %v1368
      %v4823 = vunpack.c.h.b16 %v1368
      %v4824 = vunpack.c.l.b16 %v1369
      %v4825 = vunpack.c.h.b16 %v1369
      %v4826 = vunpack.c.l.b16 %v1370
      %v4827 = vunpack.c.h.b16 %v1370
      %v4828 = vunpack.c.l.b16 %v1371
      %v4829 = vunpack.c.h.b16 %v1371
      %v4830 = vunpack.c.l.b16 %v1372
      %v4831 = vunpack.c.h.b16 %v1372
      %v4832 = vunpack.c.l.b16 %v1373
      %v4833 = vunpack.c.h.b16 %v1373
      %v4834 = vunpack.c.l.b16 %v1374
      %v4835 = vunpack.c.h.b16 %v1374
      %v4836 = vunpack.c.l.b16 %v1375
      %v4837 = vunpack.c.h.b16 %v1375
      %v4838 = vunpack.c.l.b16 %v1376
      %v4839 = vunpack.c.h.b16 %v1376
      %v4840 = vunpack.c.l.b16 %v1377
      %v4841 = vunpack.c.h.b16 %v1377
      %v4842 = vunpack.c.l.b16 %v1378
      %v4843 = vunpack.c.h.b16 %v1378
      %v4844 = vunpack.c.l.b16 %v1379
      %v4845 = vunpack.c.h.b16 %v1379
      %v4846 = vunpack.c.l.b16 %v1380
      %v4847 = vunpack.c.h.b16 %v1380
      %v4848 = vunpack.c.l.b16 %v1381
      %v4849 = vunpack.c.h.b16 %v1381
      %v4850 = vunpack.c.l.b16 %v1382
      %v4851 = vunpack.c.h.b16 %v1382
      %v4852 = vunpack.c.l.b16 %v1383
      %v4853 = vunpack.c.h.b16 %v1383
      %v4854 = vunpack.c.l.b16 %v1384
      %v4855 = vunpack.c.h.b16 %v1384
      %v4856 = vunpack.c.l.b16 %v1385
      %v4857 = vunpack.c.h.b16 %v1385
      %v4858 = vunpack.c.l.b16 %v1386
      %v4859 = vunpack.c.h.b16 %v1386
      %v4860 = vunpack.c.l.b16 %v1387
      %v4861 = vunpack.c.h.b16 %v1387
      %v4862 = vunpack.c.l.b16 %v1388
      %v4863 = vunpack.c.h.b16 %v1388
      %v4864 = vunpack.c.l.b16 %v1389
      %v4865 = vunpack.c.h.b16 %v1389
      %v4866 = vunpack.c.l.b16 %v1390
      %v4867 = vunpack.c.h.b16 %v1390
      %v4868 = vunpack.c.l.b16 %v1391
      %v4869 = vunpack.c.h.b16 %v1391
      %v4870 = vunpack.c.l.b16 %v1392
      %v4871 = vunpack.c.h.b16 %v1392
      %v4872 = vunpack.c.l.b16 %v1393
      %v4873 = vunpack.c.h.b16 %v1393
      %v4874 = vunpack.c.l.b16 %v1394
      %v4875 = vunpack.c.h.b16 %v1394
      %v4876 = vunpack.c.l.b16 %v1395
      %v4877 = vunpack.c.h.b16 %v1395
      %v4878 = vunpack.c.l.b16 %v1396
      %v4879 = vunpack.c.h.b16 %v1396
      %v4880 = vunpack.c.l.b16 %v1397
      %v4881 = vunpack.c.h.b16 %v1397
      %v4882 = vunpack.c.l.b16 %v1398
      %v4883 = vunpack.c.h.b16 %v1398
      %v4884 = vunpack.c.l.b16 %v1399
      %v4885 = vunpack.c.h.b16 %v1399
      %v4886 = vunpack.c.l.b16 %v1400
      %v4887 = vunpack.c.h.b16 %v1400
      %v4888 = vunpack.c.l.b16 %v1401
      %v4889 = vunpack.c.h.b16 %v1401
      %v4890 = vunpack.c.l.b16 %v1402
      %v4891 = vunpack.c.h.b16 %v1402
      %v4892 = vunpack.c.l.b16 %v1403
      %v4893 = vunpack.c.h.b16 %v1403
      %v4894 = vunpack.c.l.b16 %v1404
      %v4895 = vunpack.c.h.b16 %v1404
      %v4896 = vunpack.c.l.b16 %v1405
      %v4897 = vunpack.c.h.b16 %v1405
      %v4898 = vunpack.c.l.b16 %v1406
      %v4899 = vunpack.c.h.b16 %v1406
      %v4900 = vunpack.c.l.b16 %v1407
      %v4901 = vunpack.c.h.b16 %v1407
      %v4902 = vunpack.c.l.b16 %v1408
      %v4903 = vunpack.c.h.b16 %v1408
      %v4904 = vunpack.c.l.b16 %v1409
      %v4905 = vunpack.c.h.b16 %v1409
      %v4906 = vunpack.c.l.b16 %v1410
      %v4907 = vunpack.c.h.b16 %v1410
      %v4908 = vunpack.c.l.b16 %v1411
      %v4909 = vunpack.c.h.b16 %v1411
      %v4910 = vunpack.c.l.b16 %v1412
      %v4911 = vunpack.c.h.b16 %v1412
      %v4912 = vunpack.c.l.b16 %v1413
      %v4913 = vunpack.c.h.b16 %v1413
      %v4914 = vunpack.c.l.b16 %v1414
      %v4915 = vunpack.c.h.b16 %v1414
      %v4916 = vunpack.c.l.b16 %v1415
      %v4917 = vunpack.c.h.b16 %v1415
      %v4918 = vunpack.c.l.b16 %v1416
      %v4919 = vunpack.c.h.b16 %v1416
      %v4920 = vunpack.c.l.b16 %v1417
      %v4921 = vunpack.c.h.b16 %v1417
      %v4922 = vunpack.c.l.b16 %v1418
      %v4923 = vunpack.c.h.b16 %v1418
      %v4924 = vunpack.c.l.b16 %v1419
      %v4925 = vunpack.c.h.b16 %v1419
      %v4926 = vunpack.c.l.b16 %v1420
      %v4927 = vunpack.c.h.b16 %v1420
      %v4928 = vunpack.c.l.b16 %v1421
      %v4929 = vunpack.c.h.b16 %v1421
      %v4930 = vunpack.c.l.b16 %v1422
      %v4931 = vunpack.c.h.b16 %v1422
      %v4932 = vunpack.c.l.b16 %v1423
      %v4933 = vunpack.c.h.b16 %v1423
      %v4934 = vunpack.c.l.b16 %v1424
      %v4935 = vunpack.c.h.b16 %v1424
      %v4936 = vunpack.c.l.b16 %v1425
      %v4937 = vunpack.c.h.b16 %v1425
      %v4938 = vunpack.c.l.b16 %v1426
      %v4939 = vunpack.c.h.b16 %v1426
      %v4940 = vunpack.c.l.b16 %v1427
      %v4941 = vunpack.c.h.b16 %v1427
      %v4942 = vunpack.c.l.b16 %v1428
      %v4943 = vunpack.c.h.b16 %v1428
      %v4944 = vunpack.c.l.b16 %v1429
      %v4945 = vunpack.c.h.b16 %v1429
      %v4946 = vunpack.c.l.b16 %v1430
      %v4947 = vunpack.c.h.b16 %v1430
      %v4948 = vunpack.c.l.b16 %v1431
      %v4949 = vunpack.c.h.b16 %v1431
      %v4950 = vunpack.c.l.b16 %v1432
      %v4951 = vunpack.c.h.b16 %v1432
      %v4952 = vunpack.c.l.b16 %v1433
      %v4953 = vunpack.c.h.b16 %v1433
      %v4954 = vunpack.c.l.b16 %v1434
      %v4955 = vunpack.c.h.b16 %v1434
      %v4956 = vunpack.c.l.b16 %v1435
      %v4957 = vunpack.c.h.b16 %v1435
      %v4958 = vunpack.c.l.b16 %v1436
      %v4959 = vunpack.c.h.b16 %v1436
      %v4960 = vunpack.c.l.b16 %v1437
      %v4961 = vunpack.c.h.b16 %v1437
      %v4962 = vunpack.c.l.b16 %v1438
      %v4963 = vunpack.c.h.b16 %v1438
      %v4964 = vunpack.c.l.b16 %v1439
      %v4965 = vunpack.c.h.b16 %v1439
      %v4966 = vunpack.c.l.b16 %v1440
      %v4967 = vunpack.c.h.b16 %v1440
      %v4968 = vunpack.c.l.b16 %v1441
      %v4969 = vunpack.c.h.b16 %v1441
      %v4970 = vunpack.c.l.b16 %v1442
      %v4971 = vunpack.c.h.b16 %v1442
      %v4972 = vunpack.c.l.b16 %v1443
      %v4973 = vunpack.c.h.b16 %v1443
      %v4974 = vunpack.c.l.b16 %v1444
      %v4975 = vunpack.c.h.b16 %v1444
      %v4976 = vunpack.c.l.b16 %v1445
      %v4977 = vunpack.c.h.b16 %v1445
      %v4978 = vunpack.c.l.b16 %v1446
      %v4979 = vunpack.c.h.b16 %v1446
      %v4980 = vunpack.c.l.b16 %v1447
      %v4981 = vunpack.c.h.b16 %v1447
      %v4982 = vunpack.c.l.b16 %v1448
      %v4983 = vunpack.c.h.b16 %v1448
      %v4984 = vunpack.c.l.b16 %v1449
      %v4985 = vunpack.c.h.b16 %v1449
      %v4986 = vunpack.c.l.b16 %v1450
      %v4987 = vunpack.c.h.b16 %v1450
      %v4988 = vunpack.c.l.b16 %v1451
      %v4989 = vunpack.c.h.b16 %v1451
      %v4990 = vunpack.c.l.b16 %v1452
      %v4991 = vunpack.c.h.b16 %v1452
      %v4992 = vunpack.c.l.b16 %v1453
      %v4993 = vunpack.c.h.b16 %v1453
      %v4994 = vunpack.c.l.b16 %v1454
      %v4995 = vunpack.c.h.b16 %v1454
      %v4996 = vunpack.c.l.b16 %v1455
      %v4997 = vunpack.c.h.b16 %v1455
      %v4998 = vunpack.c.l.b16 %v1456
      %v4999 = vunpack.c.h.b16 %v1456
      %v5000 = vunpack.c.l.b16 %v1457
      %v5001 = vunpack.c.h.b16 %v1457
      %v5002 = vunpack.c.l.b16 %v1458
      %v5003 = vunpack.c.h.b16 %v1458
      %v5004 = vunpack.c.l.b16 %v1459
      %v5005 = vunpack.c.h.b16 %v1459
      %v5006 = vunpack.c.l.b16 %v1460
      %v5007 = vunpack.c.h.b16 %v1460
      %v5008 = vunpack.c.l.b16 %v1461
      %v5009 = vunpack.c.h.b16 %v1461
      %v5010 = vunpack.c.l.b16 %v1462
      %v5011 = vunpack.c.h.b16 %v1462
      %v5012 = vunpack.c.l.b16 %v1463
      %v5013 = vunpack.c.h.b16 %v1463
      %v5014 = vunpack.c.l.b16 %v1464
      %v5015 = vunpack.c.h.b16 %v1464
      %v5016 = vunpack.c.l.b16 %v1465
      %v5017 = vunpack.c.h.b16 %v1465
      %v5018 = vunpack.c.l.b16 %v1466
      %v5019 = vunpack.c.h.b16 %v1466
      %v5020 = vunpack.c.l.b16 %v1467
      %v5021 = vunpack.c.h.b16 %v1467
      %v5022 = vunpack.c.l.b16 %v1468
      %v5023 = vunpack.c.h.b16 %v1468
      %v5024 = vunpack.c.l.b16 %v1469
      %v5025 = vunpack.c.h.b16 %v1469
      %v5026 = vunpack.c.l.b16 %v1470
      %v5027 = vunpack.c.h.b16 %v1470
      %v5028 = vunpack.c.l.b16 %v1471
      %v5029 = vunpack.c.h.b16 %v1471
      %v5030 = vunpack.c.l.b16 %v1472
      %v5031 = vunpack.c.h.b16 %v1472
      %v5032 = vunpack.c.l.b16 %v1473
      %v5033 = vunpack.c.h.b16 %v1473
      %v5034 = vunpack.c.l.b16 %v1474
      %v5035 = vunpack.c.h.b16 %v1474
      %v5036 = vunpack.c.l.b16 %v1475
      %v5037 = vunpack.c.h.b16 %v1475
      %v5038 = vunpack.c.l.b16 %v1476
      %v5039 = vunpack.c.h.b16 %v1476
      %v5040 = vunpack.c.l.b16 %v1477
      %v5041 = vunpack.c.h.b16 %v1477
      %v5042 = vunpack.c.l.b16 %v1478
      %v5043 = vunpack.c.h.b16 %v1478
      %v5044 = vunpack.c.l.b16 %v1479
      %v5045 = vunpack.c.h.b16 %v1479
      %v5046 = vunpack.c.l.b16 %v1480
      %v5047 = vunpack.c.h.b16 %v1480
      %v5048 = vunpack.c.l.b16 %v1481
      %v5049 = vunpack.c.h.b16 %v1481
      %v5050 = vunpack.c.l.b16 %v1482
      %v5051 = vunpack.c.h.b16 %v1482
      %v5052 = vunpack.c.l.b16 %v1483
      %v5053 = vunpack.c.h.b16 %v1483
      %v5054 = vunpack.c.l.b16 %v1484
      %v5055 = vunpack.c.h.b16 %v1484
      %v5056 = vunpack.c.l.b16 %v1485
      %v5057 = vunpack.c.h.b16 %v1485
      %v5058 = vunpack.c.l.b16 %v1486
      %v5059 = vunpack.c.h.b16 %v1486
      %v5060 = vunpack.c.l.b16 %v1487
      %v5061 = vunpack.c.h.b16 %v1487
      %v5062 = vunpack.c.l.b16 %v1488
      %v5063 = vunpack.c.h.b16 %v1488
      %v5064 = vunpack.c.l.b16 %v1489
      %v5065 = vunpack.c.h.b16 %v1489
      %v5066 = vunpack.c.l.b16 %v1490
      %v5067 = vunpack.c.h.b16 %v1490
      %v5068 = vunpack.c.l.b16 %v1491
      %v5069 = vunpack.c.h.b16 %v1491
      %v5070 = vunpack.c.l.b16 %v1492
      %v5071 = vunpack.c.h.b16 %v1492
      %v5072 = vunpack.c.l.b16 %v1493
      %v5073 = vunpack.c.h.b16 %v1493
      %v5074 = vunpack.c.l.b16 %v1494
      %v5075 = vunpack.c.h.b16 %v1494
      %v5076 = vunpack.c.l.b16 %v1495
      %v5077 = vunpack.c.h.b16 %v1495
      %v5078 = vunpack.c.l.b16 %v1496
      %v5079 = vunpack.c.h.b16 %v1496
      %v5080 = vunpack.c.l.b16 %v1497
      %v5081 = vunpack.c.h.b16 %v1497
      %v5082 = vunpack.c.l.b16 %v1498
      %v5083 = vunpack.c.h.b16 %v1498
      %v5084 = vunpack.c.l.b16 %v1499
      %v5085 = vunpack.c.h.b16 %v1499
      %v5086 = vunpack.c.l.b16 %v1500
      %v5087 = vunpack.c.h.b16 %v1500
      %v5088 = vunpack.c.l.b16 %v1501
      %v5089 = vunpack.c.h.b16 %v1501
      %v5090 = vunpack.c.l.b16 %v1502
      %v5091 = vunpack.c.h.b16 %v1502
      %v5092 = vunpack.c.l.b16 %v1503
      %v5093 = vunpack.c.h.b16 %v1503
      %v5094 = vunpack.c.l.b16 %v1504
      %v5095 = vunpack.c.h.b16 %v1504
      %v5096 = vunpack.c.l.b16 %v1505
      %v5097 = vunpack.c.h.b16 %v1505
      %v5098 = vunpack.c.l.b16 %v1506
      %v5099 = vunpack.c.h.b16 %v1506
      %v5100 = vunpack.c.l.b16 %v1507
      %v5101 = vunpack.c.h.b16 %v1507
      %v5102 = vunpack.c.l.b16 %v1508
      %v5103 = vunpack.c.h.b16 %v1508
      %v5104 = vunpack.c.l.b16 %v1509
      %v5105 = vunpack.c.h.b16 %v1509
      %v5106 = vunpack.c.l.b16 %v1510
      %v5107 = vunpack.c.h.b16 %v1510
      %v5108 = vunpack.c.l.b16 %v1511
      %v5109 = vunpack.c.h.b16 %v1511
      %v5110 = vunpack.c.l.b16 %v1512
      %v5111 = vunpack.c.h.b16 %v1512
      %v5112 = vunpack.c.l.b16 %v1513
      %v5113 = vunpack.c.h.b16 %v1513
      %v5114 = vunpack.c.l.b16 %v1514
      %v5115 = vunpack.c.h.b16 %v1514
      %v5116 = vunpack.c.l.b16 %v1515
      %v5117 = vunpack.c.h.b16 %v1515
      %v5118 = vunpack.c.l.b16 %v1516
      %v5119 = vunpack.c.h.b16 %v1516
      %v5120 = vunpack.c.l.b16 %v1517
      %v5121 = vunpack.c.h.b16 %v1517
      %v5122 = vunpack.c.l.b16 %v1518
      %v5123 = vunpack.c.h.b16 %v1518
      %v5124 = vunpack.c.l.b16 %v1519
      %v5125 = vunpack.c.h.b16 %v1519
      %v5126 = vunpack.c.l.b16 %v1520
      %v5127 = vunpack.c.h.b16 %v1520
      %v5128 = vunpack.c.l.b16 %v1521
      %v5129 = vunpack.c.h.b16 %v1521
      %v5130 = vunpack.c.l.b16 %v1522
      %v5131 = vunpack.c.h.b16 %v1522
      %v5132 = vunpack.c.l.b16 %v1523
      %v5133 = vunpack.c.h.b16 %v1523
      %v5134 = vunpack.c.l.b16 %v1524
      %v5135 = vunpack.c.h.b16 %v1524
      %v5136 = vunpack.c.l.b16 %v1525
      %v5137 = vunpack.c.h.b16 %v1525
      %v5138 = vunpack.c.l.b16 %v1526
      %v5139 = vunpack.c.h.b16 %v1526
      %v5140 = vunpack.c.l.b16 %v1527
      %v5141 = vunpack.c.h.b16 %v1527
      %v5142 = vunpack.c.l.b16 %v1528
      %v5143 = vunpack.c.h.b16 %v1528
      %v5144 = vunpack.c.l.b16 %v1529
      %v5145 = vunpack.c.h.b16 %v1529
      %v5146 = vunpack.c.l.b16 %v1530
      %v5147 = vunpack.c.h.b16 %v1530
      %v5148 = vunpack.c.l.b16 %v1531
      %v5149 = vunpack.c.h.b16 %v1531
      %v5150 = vunpack.c.l.b16 %v1532
      %v5151 = vunpack.c.h.b16 %v1532
      %v5152 = vunpack.c.l.b16 %v1533
      %v5153 = vunpack.c.h.b16 %v1533
      %v5154 = vpack.c.b16 %v2856, %v2850
      %v5155 = vpack.c.b16 %v2857, %v2851
      %v5156 = vpack.c.b16 %v2858, %v2852
      %v5157 = vpack.c.b16 %v2859, %v2853
      %v5158 = vpack.c.b16 %v2860, %v2854
      %v5159 = vpack.c.b16 %v2861, %v2855
      %v5160 = vpack.c.b16 %v2868, %v2862
      %v5161 = vpack.c.b16 %v2869, %v2863
      %v5162 = vpack.c.b16 %v2870, %v2864
      %v5163 = vpack.c.b16 %v2871, %v2865
      %v5164 = vpack.c.b16 %v2872, %v2866
      %v5165 = vpack.c.b16 %v2873, %v2867
      %v5166 = vpack.c.b16 %v2880, %v2874
      %v5167 = vpack.c.b16 %v2881, %v2875
      %v5168 = vpack.c.b16 %v2882, %v2876
      %v5169 = vpack.c.b16 %v2883, %v2877
      %v5170 = vpack.c.b16 %v2884, %v2878
      %v5171 = vpack.c.b16 %v2885, %v2879
      %v5172 = vpack.c.b16 %v2892, %v2886
      %v5173 = vpack.c.b16 %v2893, %v2887
      %v5174 = vpack.c.b16 %v2894, %v2888
      %v5175 = vpack.c.b16 %v2895, %v2889
      %v5176 = vpack.c.b16 %v2896, %v2890
      %v5177 = vpack.c.b16 %v2897, %v2891
      %v5178 = vpack.c.b16 %v2904, %v2898
      %v5179 = vpack.c.b16 %v2905, %v2899
      %v5180 = vpack.c.b16 %v2906, %v2900
      %v5181 = vpack.c.b16 %v2907, %v2901
      %v5182 = vpack.c.b16 %v2908, %v2902
      %v5183 = vpack.c.b16 %v2909, %v2903
      %v5184 = vpack.c.b16 %v2916, %v2910
      %v5185 = vpack.c.b16 %v2917, %v2911
      %v5186 = vpack.c.b16 %v2918, %v2912
      %v5187 = vpack.c.b16 %v2919, %v2913
      %v5188 = vpack.c.b16 %v2920, %v2914
      %v5189 = vpack.c.b16 %v2921, %v2915
      %v5190 = vpack.c.b16 %v2928, %v2922
      %v5191 = vpack.c.b16 %v2929, %v2923
      %v5192 = vpack.c.b16 %v2930, %v2924
      %v5193 = vpack.c.b16 %v2931, %v2925
      %v5194 = vpack.c.b16 %v2932, %v2926
      %v5195 = vpack.c.b16 %v2933, %v2927
      %v5196 = vpack.c.b16 %v2940, %v2934
      %v5197 = vpack.c.b16 %v2941, %v2935
      %v5198 = vpack.c.b16 %v2942, %v2936
      %v5199 = vpack.c.b16 %v2943, %v2937
      %v5200 = vpack.c.b16 %v2944, %v2938
      %v5201 = vpack.c.b16 %v2945, %v2939
      %v5202 = vpack.c.b16 %v2952, %v2946
      %v5203 = vpack.c.b16 %v2953, %v2947
      %v5204 = vpack.c.b16 %v2954, %v2948
      %v5205 = vpack.c.b16 %v2955, %v2949
      %v5206 = vpack.c.b16 %v2956, %v2950
      %v5207 = vpack.c.b16 %v2957, %v2951
      %v5208 = vpack.c.b16 %v2964, %v2958
      %v5209 = vpack.c.b16 %v2965, %v2959
      %v5210 = vpack.c.b16 %v2966, %v2960
      %v5211 = vpack.c.b16 %v2967, %v2961
      %v5212 = vpack.c.b16 %v2968, %v2962
      %v5213 = vpack.c.b16 %v2969, %v2963
      %v5214 = vpack.c.b16 %v2976, %v2970
      %v5215 = vpack.c.b16 %v2977, %v2971
      %v5216 = vpack.c.b16 %v2978, %v2972
      %v5217 = vpack.c.b16 %v2979, %v2973
      %v5218 = vpack.c.b16 %v2980, %v2974
      %v5219 = vpack.c.b16 %v2981, %v2975
      %v5220 = vpack.c.b16 %v2988, %v2982
      %v5221 = vpack.c.b16 %v2989, %v2983
      %v5222 = vpack.c.b16 %v2990, %v2984
      %v5223 = vpack.c.b16 %v2991, %v2985
      %v5224 = vpack.c.b16 %v2992, %v2986
      %v5225 = vpack.c.b16 %v2993, %v2987
      %v5226 = vpack.c.b16 %v3000, %v2994
      %v5227 = vpack.c.b16 %v3001, %v2995
      %v5228 = vpack.c.b16 %v3002, %v2996
      %v5229 = vpack.c.b16 %v3003, %v2997
      %v5230 = vpack.c.b16 %v3004, %v2998
      %v5231 = vpack.c.b16 %v3005, %v2999
      %v5232 = vpack.c.b16 %v3012, %v3006
      %v5233 = vpack.c.b16 %v3013, %v3007
      %v5234 = vpack.c.b16 %v3014, %v3008
      %v5235 = vpack.c.b16 %v3015, %v3009
      %v5236 = vpack.c.b16 %v3016, %v3010
      %v5237 = vpack.c.b16 %v3017, %v3011
      %v5238 = vpack.c.b16 %v3024, %v3018
      %v5239 = vpack.c.b16 %v3025, %v3019
      %v5240 = vpack.c.b16 %v3026, %v3020
      %v5241 = vpack.c.b16 %v3027, %v3021
      %v5242 = vpack.c.b16 %v3028, %v3022
      %v5243 = vpack.c.b16 %v3029, %v3023
      %v5244 = vpack.c.b16 %v3036, %v3030
      %v5245 = vpack.c.b16 %v3037, %v3031
      %v5246 = vpack.c.b16 %v3038, %v3032
      %v5247 = vpack.c.b16 %v3039, %v3033
      %v5248 = vpack.c.b16 %v3040, %v3034
      %v5249 = vpack.c.b16 %v3041, %v3035
      %v5250 = vpack.c.b16 %v3048, %v3042
      %v5251 = vpack.c.b16 %v3049, %v3043
      %v5252 = vpack.c.b16 %v3050, %v3044
      %v5253 = vpack.c.b16 %v3051, %v3045
      %v5254 = vpack.c.b16 %v3052, %v3046
      %v5255 = vpack.c.b16 %v3053, %v3047
      %v5256 = vpack.c.b16 %v3060, %v3054
      %v5257 = vpack.c.b16 %v3061, %v3055
      %v5258 = vpack.c.b16 %v3062, %v3056
      %v5259 = vpack.c.b16 %v3063, %v3057
      %v5260 = vpack.c.b16 %v3064, %v3058
      %v5261 = vpack.c.b16 %v3065, %v3059
      %v5262 = vpack.c.b16 %v3072, %v3066
      %v5263 = vpack.c.b16 %v3073, %v3067
      %v5264 = vpack.c.b16 %v3074, %v3068
      %v5265 = vpack.c.b16 %v3075, %v3069
      %v5266 = vpack.c.b16 %v3076, %v3070
      %v5267 = vpack.c.b16 %v3077, %v3071
      %v5268 = vpack.c.b16 %v3084, %v3078
      %v5269 = vpack.c.b16 %v3085, %v3079
      %v5270 = vpack.c.b16 %v3086, %v3080
      %v5271 = vpack.c.b16 %v3087, %v3081
      %v5272 = vpack.c.b16 %v3088, %v3082
      %v5273 = vpack.c.b16 %v3089, %v3083
      %v5274 = vpack.c.b16 %v3096, %v3090
      %v5275 = vpack.c.b16 %v3097, %v3091
      %v5276 = vpack.c.b16 %v3098, %v3092
      %v5277 = vpack.c.b16 %v3099, %v3093
      %v5278 = vpack.c.b16 %v3100, %v3094
      %v5279 = vpack.c.b16 %v3101, %v3095
      %v5280 = vpack.c.b16 %v3108, %v3102
      %v5281 = vpack.c.b16 %v3109, %v3103
      %v5282 = vpack.c.b16 %v3110, %v3104
      %v5283 = vpack.c.b16 %v3111, %v3105
      %v5284 = vpack.c.b16 %v3112, %v3106
      %v5285 = vpack.c.b16 %v3113, %v3107
      %v5286 = vpack.c.b16 %v3120, %v3114
      %v5287 = vpack.c.b16 %v3121, %v3115
      %v5288 = vpack.c.b16 %v3122, %v3116
      %v5289 = vpack.c.b16 %v3123, %v3117
      %v5290 = vpack.c.b16 %v3124, %v3118
      %v5291 = vpack.c.b16 %v3125, %v3119
      %v5292 = vpack.c.b16 %v3132, %v3126
      %v5293 = vpack.c.b16 %v3133, %v3127
      %v5294 = vpack.c.b16 %v3134, %v3128
      %v5295 = vpack.c.b16 %v3135, %v3129
      %v5296 = vpack.c.b16 %v3136, %v3130
      %v5297 = vpack.c.b16 %v3137, %v3131
      %v5298 = vpack.c.b16 %v3144, %v3138
      %v5299 = vpack.c.b16 %v3145, %v3139
      %v5300 = vpack.c.b16 %v3146, %v3140
      %v5301 = vpack.c.b16 %v3147, %v3141
      %v5302 = vpack.c.b16 %v3148, %v3142
      %v5303 = vpack.c.b16 %v3149, %v3143
      %v5304 = vpack.c.b16 %v3156, %v3150
      %v5305 = vpack.c.b16 %v3157, %v3151
      %v5306 = vpack.c.b16 %v3158, %v3152
      %v5307 = vpack.c.b16 %v3159, %v3153
      %v5308 = vpack.c.b16 %v3160, %v3154
      %v5309 = vpack.c.b16 %v3161, %v3155
      %v5310 = vpack.c.b16 %v3168, %v3162
      %v5311 = vpack.c.b16 %v3169, %v3163
      %v5312 = vpack.c.b16 %v3170, %v3164
      %v5313 = vpack.c.b16 %v3171, %v3165
      %v5314 = vpack.c.b16 %v3172, %v3166
      %v5315 = vpack.c.b16 %v3173, %v3167
      %v5316 = vpack.c.b16 %v3180, %v3174
      %v5317 = vpack.c.b16 %v3181, %v3175
      %v5318 = vpack.c.b16 %v3182, %v3176
      %v5319 = vpack.c.b16 %v3183, %v3177
      %v5320 = vpack.c.b16 %v3184, %v3178
      %v5321 = vpack.c.b16 %v3185, %v3179
      %v5322 = vpack.c.b16 %v3192, %v3186
      %v5323 = vpack.c.b16 %v3193, %v3187
      %v5324 = vpack.c.b16 %v3194, %v3188
      %v5325 = vpack.c.b16 %v3195, %v3189
      %v5326 = vpack.c.b16 %v3196, %v3190
      %v5327 = vpack.c.b16 %v3197, %v3191
      %v5328 = vpack.c.b16 %v3204, %v3198
      %v5329 = vpack.c.b16 %v3205, %v3199
      %v5330 = vpack.c.b16 %v3206, %v3200
      %v5331 = vpack.c.b16 %v3207, %v3201
      %v5332 = vpack.c.b16 %v3208, %v3202
      %v5333 = vpack.c.b16 %v3209, %v3203
      %v5334 = vpack.c.b16 %v3216, %v3210
      %v5335 = vpack.c.b16 %v3217, %v3211
      %v5336 = vpack.c.b16 %v3218, %v3212
      %v5337 = vpack.c.b16 %v3219, %v3213
      %v5338 = vpack.c.b16 %v3220, %v3214
      %v5339 = vpack.c.b16 %v3221, %v3215
      %v5340 = vpack.c.b16 %v3228, %v3222
      %v5341 = vpack.c.b16 %v3229, %v3223
      %v5342 = vpack.c.b16 %v3230, %v3224
      %v5343 = vpack.c.b16 %v3231, %v3225
      %v5344 = vpack.c.b16 %v3232, %v3226
      %v5345 = vpack.c.b16 %v3233, %v3227
      %v5346 = vpack.c.b16 %v3240, %v3234
      %v5347 = vpack.c.b16 %v3241, %v3235
      %v5348 = vpack.c.b16 %v3242, %v3236
      %v5349 = vpack.c.b16 %v3243, %v3237
      %v5350 = vpack.c.b16 %v3244, %v3238
      %v5351 = vpack.c.b16 %v3245, %v3239
      %v5352 = vpack.c.b16 %v3252, %v3246
      %v5353 = vpack.c.b16 %v3253, %v3247
      %v5354 = vpack.c.b16 %v3254, %v3248
      %v5355 = vpack.c.b16 %v3255, %v3249
      %v5356 = vpack.c.b16 %v3256, %v3250
      %v5357 = vpack.c.b16 %v3257, %v3251
      %v5358 = vpack.c.b16 %v3264, %v3258
      %v5359 = vpack.c.b16 %v3265, %v3259
      %v5360 = vpack.c.b16 %v3266, %v3260
      %v5361 = vpack.c.b16 %v3267, %v3261
      %v5362 = vpack.c.b16 %v3268, %v3262
      %v5363 = vpack.c.b16 %v3269, %v3263
      %v5364 = vpack.c.b16 %v3276, %v3270
      %v5365 = vpack.c.b16 %v3277, %v3271
      %v5366 = vpack.c.b16 %v3278, %v3272
      %v5367 = vpack.c.b16 %v3279, %v3273
      %v5368 = vpack.c.b16 %v3280, %v3274
      %v5369 = vpack.c.b16 %v3281, %v3275
      %v5370 = vpack.c.b16 %v3288, %v3282
      %v5371 = vpack.c.b16 %v3289, %v3283
      %v5372 = vpack.c.b16 %v3290, %v3284
      %v5373 = vpack.c.b16 %v3291, %v3285
      %v5374 = vpack.c.b16 %v3292, %v3286
      %v5375 = vpack.c.b16 %v3293, %v3287
      %v5376 = vpack.c.b16 %v3300, %v3294
      %v5377 = vpack.c.b16 %v3301, %v3295
      %v5378 = vpack.c.b16 %v3302, %v3296
      %v5379 = vpack.c.b16 %v3303, %v3297
      %v5380 = vpack.c.b16 %v3304, %v3298
      %v5381 = vpack.c.b16 %v3305, %v3299
      %v5382 = vpack.c.b16 %v3312, %v3306
      %v5383 = vpack.c.b16 %v3313, %v3307
      %v5384 = vpack.c.b16 %v3314, %v3308
      %v5385 = vpack.c.b16 %v3315, %v3309
      %v5386 = vpack.c.b16 %v3316, %v3310
      %v5387 = vpack.c.b16 %v3317, %v3311
      %v5388 = vpack.c.b16 %v3324, %v3318
      %v5389 = vpack.c.b16 %v3325, %v3319
      %v5390 = vpack.c.b16 %v3326, %v3320
      %v5391 = vpack.c.b16 %v3327, %v3321
      %v5392 = vpack.c.b16 %v3328, %v3322
      %v5393 = vpack.c.b16 %v3329, %v3323
      %v5394 = vpack.c.b16 %v3336, %v3330
      %v5395 = vpack.c.b16 %v3337, %v3331
      %v5396 = vpack.c.b16 %v3338, %v3332
      %v5397 = vpack.c.b16 %v3339, %v3333
      %v5398 = vpack.c.b16 %v3340, %v3334
      %v5399 = vpack.c.b16 %v3341, %v3335
      %v5400 = vpack.c.b16 %v3348, %v3342
      %v5401 = vpack.c.b16 %v3349, %v3343
      %v5402 = vpack.c.b16 %v3350, %v3344
      %v5403 = vpack.c.b16 %v3351, %v3345
      %v5404 = vpack.c.b16 %v3352, %v3346
      %v5405 = vpack.c.b16 %v3353, %v3347
      %v5406 = vpack.c.b16 %v3360, %v3354
      %v5407 = vpack.c.b16 %v3361, %v3355
      %v5408 = vpack.c.b16 %v3362, %v3356
      %v5409 = vpack.c.b16 %v3363, %v3357
      %v5410 = vpack.c.b16 %v3364, %v3358
      %v5411 = vpack.c.b16 %v3365, %v3359
      %v5412 = vpack.c.b16 %v3372, %v3366
      %v5413 = vpack.c.b16 %v3373, %v3367
      %v5414 = vpack.c.b16 %v3374, %v3368
      %v5415 = vpack.c.b16 %v3375, %v3369
      %v5416 = vpack.c.b16 %v3376, %v3370
      %v5417 = vpack.c.b16 %v3377, %v3371
      %v5418 = vpack.c.b16 %v3384, %v3378
      %v5419 = vpack.c.b16 %v3385, %v3379
      %v5420 = vpack.c.b16 %v3386, %v3380
      %v5421 = vpack.c.b16 %v3387, %v3381
      %v5422 = vpack.c.b16 %v3388, %v3382
      %v5423 = vpack.c.b16 %v3389, %v3383
      %v5424 = vpack.c.b16 %v3396, %v3390
      %v5425 = vpack.c.b16 %v3397, %v3391
      %v5426 = vpack.c.b16 %v3398, %v3392
      %v5427 = vpack.c.b16 %v3399, %v3393
      %v5428 = vpack.c.b16 %v3400, %v3394
      %v5429 = vpack.c.b16 %v3401, %v3395
      %v5430 = vpack.c.b16 %v3408, %v3402
      %v5431 = vpack.c.b16 %v3409, %v3403
      %v5432 = vpack.c.b16 %v3410, %v3404
      %v5433 = vpack.c.b16 %v3411, %v3405
      %v5434 = vpack.c.b16 %v3412, %v3406
      %v5435 = vpack.c.b16 %v3413, %v3407
      %v5436 = vpack.c.b16 %v3420, %v3414
      %v5437 = vpack.c.b16 %v3421, %v3415
      %v5438 = vpack.c.b16 %v3422, %v3416
      %v5439 = vpack.c.b16 %v3423, %v3417
      %v5440 = vpack.c.b16 %v3424, %v3418
      %v5441 = vpack.c.b16 %v3425, %v3419
      %v5442 = vpack.c.b16 %v3432, %v3426
      %v5443 = vpack.c.b16 %v3433, %v3427
      %v5444 = vpack.c.b16 %v3434, %v3428
      %v5445 = vpack.c.b16 %v3435, %v3429
      %v5446 = vpack.c.b16 %v3436, %v3430
      %v5447 = vpack.c.b16 %v3437, %v3431
      %v5448 = vpack.c.b16 %v3444, %v3438
      %v5449 = vpack.c.b16 %v3445, %v3439
      %v5450 = vpack.c.b16 %v3446, %v3440
      %v5451 = vpack.c.b16 %v3447, %v3441
      %v5452 = vpack.c.b16 %v3448, %v3442
      %v5453 = vpack.c.b16 %v3449, %v3443
      %v5454 = vpack.c.b16 %v3456, %v3450
      %v5455 = vpack.c.b16 %v3457, %v3451
      %v5456 = vpack.c.b16 %v3458, %v3452
      %v5457 = vpack.c.b16 %v3459, %v3453
      %v5458 = vpack.c.b16 %v3460, %v3454
      %v5459 = vpack.c.b16 %v3461, %v3455
      %v5460 = vpack.c.b16 %v3468, %v3462
      %v5461 = vpack.c.b16 %v3469, %v3463
      %v5462 = vpack.c.b16 %v3470, %v3464
      %v5463 = vpack.c.b16 %v3471, %v3465
      %v5464 = vpack.c.b16 %v3472, %v3466
      %v5465 = vpack.c.b16 %v3473, %v3467
      %v5466 = vpack.c.b16 %v3480, %v3474
      %v5467 = vpack.c.b16 %v3481, %v3475
      %v5468 = vpack.c.b16 %v3482, %v3476
      %v5469 = vpack.c.b16 %v3483, %v3477
      %v5470 = vpack.c.b16 %v3484, %v3478
      %v5471 = vpack.c.b16 %v3485, %v3479
      %v5472 = vpack.c.b16 %v3492, %v3486
      %v5473 = vpack.c.b16 %v3493, %v3487
      %v5474 = vpack.c.b16 %v3494, %v3488
      %v5475 = vpack.c.b16 %v3495, %v3489
      %v5476 = vpack.c.b16 %v3496, %v3490
      %v5477 = vpack.c.b16 %v3497, %v3491
      %v5478 = vpack.c.b16 %v3504, %v3498
      %v5479 = vpack.c.b16 %v3505, %v3499
      %v5480 = vpack.c.b16 %v3506, %v3500
      %v5481 = vpack.c.b16 %v3507, %v3501
      %v5482 = vpack.c.b16 %v3508, %v3502
      %v5483 = vpack.c.b16 %v3509, %v3503
      %v5484 = vpack.c.b16 %v3516, %v3510
      %v5485 = vpack.c.b16 %v3517, %v3511
      %v5486 = vpack.c.b16 %v3518, %v3512
      %v5487 = vpack.c.b16 %v3519, %v3513
      %v5488 = vpack.c.b16 %v3520, %v3514
      %v5489 = vpack.c.b16 %v3521, %v3515
      %v5490 = vpack.c.b16 %v3528, %v3522
      %v5491 = vpack.c.b16 %v3529, %v3523
      %v5492 = vpack.c.b16 %v3530, %v3524
      %v5493 = vpack.c.b16 %v3531, %v3525
      %v5494 = vpack.c.b16 %v3532, %v3526
      %v5495 = vpack.c.b16 %v3533, %v3527
      %v5496 = vpack.c.b16 %v3540, %v3534
      %v5497 = vpack.c.b16 %v3541, %v3535
      %v5498 = vpack.c.b16 %v3542, %v3536
      %v5499 = vpack.c.b16 %v3543, %v3537
      %v5500 = vpack.c.b16 %v3544, %v3538
      %v5501 = vpack.c.b16 %v3545, %v3539
      %v5502 = vpack.c.b16 %v3552, %v3546
      %v5503 = vpack.c.b16 %v3553, %v3547
      %v5504 = vpack.c.b16 %v3554, %v3548
      %v5505 = vpack.c.b16 %v3555, %v3549
      %v5506 = vpack.c.b16 %v3556, %v3550
      %v5507 = vpack.c.b16 %v3557, %v3551
      %v5508 = vpack.c.b16 %v3564, %v3558
      %v5509 = vpack.c.b16 %v3565, %v3559
      %v5510 = vpack.c.b16 %v3566, %v3560
      %v5511 = vpack.c.b16 %v3567, %v3561
      %v5512 = vpack.c.b16 %v3568, %v3562
      %v5513 = vpack.c.b16 %v3569, %v3563
      %v5514 = vpack.c.b16 %v3576, %v3570
      %v5515 = vpack.c.b16 %v3577, %v3571
      %v5516 = vpack.c.b16 %v3578, %v3572
      %v5517 = vpack.c.b16 %v3579, %v3573
      %v5518 = vpack.c.b16 %v3580, %v3574
      %v5519 = vpack.c.b16 %v3581, %v3575
      %v5520 = vpack.c.b16 %v3588, %v3582
      %v5521 = vpack.c.b16 %v3589, %v3583
      %v5522 = vpack.c.b16 %v3590, %v3584
      %v5523 = vpack.c.b16 %v3591, %v3585
      %v5524 = vpack.c.b16 %v3592, %v3586
      %v5525 = vpack.c.b16 %v3593, %v3587
      %v5526 = vpack.c.b16 %v3600, %v3594
      %v5527 = vpack.c.b16 %v3601, %v3595
      %v5528 = vpack.c.b16 %v3602, %v3596
      %v5529 = vpack.c.b16 %v3603, %v3597
      %v5530 = vpack.c.b16 %v3604, %v3598
      %v5531 = vpack.c.b16 %v3605, %v3599
      %v5532 = vpack.c.b16 %v3612, %v3606
      %v5533 = vpack.c.b16 %v3613, %v3607
      %v5534 = vpack.c.b16 %v3614, %v3608
      %v5535 = vpack.c.b16 %v3615, %v3609
      %v5536 = vpack.c.b16 %v3616, %v3610
      %v5537 = vpack.c.b16 %v3617, %v3611
      %v5538 = vpack.c.b16 %v3624, %v3618
      %v5539 = vpack.c.b16 %v3625, %v3619
      %v5540 = vpack.c.b16 %v3626, %v3620
      %v5541 = vpack.c.b16 %v3627, %v3621
      %v5542 = vpack.c.b16 %v3628, %v3622
      %v5543 = vpack.c.b16 %v3629, %v3623
      %v5544 = vpack.c.b16 %v3636, %v3630
      %v5545 = vpack.c.b16 %v3637, %v3631
      %v5546 = vpack.c.b16 %v3638, %v3632
      %v5547 = vpack.c.b16 %v3639, %v3633
      %v5548 = vpack.c.b16 %v3640, %v3634
      %v5549 = vpack.c.b16 %v3641, %v3635
      %v5550 = vpack.c.b16 %v3648, %v3642
      %v5551 = vpack.c.b16 %v3649, %v3643
      %v5552 = vpack.c.b16 %v3650, %v3644
      %v5553 = vpack.c.b16 %v3651, %v3645
      %v5554 = vpack.c.b16 %v3652, %v3646
      %v5555 = vpack.c.b16 %v3653, %v3647
      %v5556 = vpack.c.b16 %v3660, %v3654
      %v5557 = vpack.c.b16 %v3661, %v3655
      %v5558 = vpack.c.b16 %v3662, %v3656
      %v5559 = vpack.c.b16 %v3663, %v3657
      %v5560 = vpack.c.b16 %v3664, %v3658
      %v5561 = vpack.c.b16 %v3665, %v3659
      %v5562 = vpack.c.b16 %v3672, %v3666
      %v5563 = vpack.c.b16 %v3673, %v3667
      %v5564 = vpack.c.b16 %v3674, %v3668
      %v5565 = vpack.c.b16 %v3675, %v3669
      %v5566 = vpack.c.b16 %v3676, %v3670
      %v5567 = vpack.c.b16 %v3677, %v3671
      %v5568 = vpack.c.b16 %v3684, %v3678
      %v5569 = vpack.c.b16 %v3685, %v3679
      %v5570 = vpack.c.b16 %v3686, %v3680
      %v5571 = vpack.c.b16 %v3687, %v3681
      %v5572 = vpack.c.b16 %v3688, %v3682
      %v5573 = vpack.c.b16 %v3689, %v3683
      %v5574 = vpack.c.b16 %v3696, %v3690
      %v5575 = vpack.c.b16 %v3697, %v3691
      %v5576 = vpack.c.b16 %v3698, %v3692
      %v5577 = vpack.c.b16 %v3699, %v3693
      %v5578 = vpack.c.b16 %v3700, %v3694
      %v5579 = vpack.c.b16 %v3701, %v3695
      %v5580 = vpack.c.b16 %v3708, %v3702
      %v5581 = vpack.c.b16 %v3709, %v3703
      %v5582 = vpack.c.b16 %v3710, %v3704
      %v5583 = vpack.c.b16 %v3711, %v3705
      %v5584 = vpack.c.b16 %v3712, %v3706
      %v5585 = vpack.c.b16 %v3713, %v3707
      %v5586 = vpack.c.b16 %v3720, %v3714
      %v5587 = vpack.c.b16 %v3721, %v3715
      %v5588 = vpack.c.b16 %v3722, %v3716
      %v5589 = vpack.c.b16 %v3723, %v3717
      %v5590 = vpack.c.b16 %v3724, %v3718
      %v5591 = vpack.c.b16 %v3725, %v3719
      %v5592 = vpack.c.b16 %v3732, %v3726
      %v5593 = vpack.c.b16 %v3733, %v3727
      %v5594 = vpack.c.b16 %v3734, %v3728
      %v5595 = vpack.c.b16 %v3735, %v3729
      %v5596 = vpack.c.b16 %v3736, %v3730
      %v5597 = vpack.c.b16 %v3737, %v3731
      %v5598 = vpack.c.b16 %v3744, %v3738
      %v5599 = vpack.c.b16 %v3745, %v3739
      %v5600 = vpack.c.b16 %v3746, %v3740
      %v5601 = vpack.c.b16 %v3747, %v3741
      %v5602 = vpack.c.b16 %v3748, %v3742
      %v5603 = vpack.c.b16 %v3749, %v3743
      %v5604 = vpack.c.b16 %v3756, %v3750
      %v5605 = vpack.c.b16 %v3757, %v3751
      %v5606 = vpack.c.b16 %v3758, %v3752
      %v5607 = vpack.c.b16 %v3759, %v3753
      %v5608 = vpack.c.b16 %v3760, %v3754
      %v5609 = vpack.c.b16 %v3761, %v3755
      %v5610 = vpack.c.b16 %v3768, %v3762
      %v5611 = vpack.c.b16 %v3769, %v3763
      %v5612 = vpack.c.b16 %v3770, %v3764
      %v5613 = vpack.c.b16 %v3771, %v3765
      %v5614 = vpack.c.b16 %v3772, %v3766
      %v5615 = vpack.c.b16 %v3773, %v3767
      %v5616 = vpack.c.b16 %v3780, %v3774
      %v5617 = vpack.c.b16 %v3781, %v3775
      %v5618 = vpack.c.b16 %v3782, %v3776
      %v5619 = vpack.c.b16 %v3783, %v3777
      %v5620 = vpack.c.b16 %v3784, %v3778
      %v5621 = vpack.c.b16 %v3785, %v3779
      %v5622 = vpack.c.b16 %v3792, %v3786
      %v5623 = vpack.c.b16 %v3793, %v3787
      %v5624 = vpack.c.b16 %v3794, %v3788
      %v5625 = vpack.c.b16 %v3795, %v3789
      %v5626 = vpack.c.b16 %v3796, %v3790
      %v5627 = vpack.c.b16 %v3797, %v3791
      %v5628 = vpack.c.b16 %v3804, %v3798
      %v5629 = vpack.c.b16 %v3805, %v3799
      %v5630 = vpack.c.b16 %v3806, %v3800
      %v5631 = vpack.c.b16 %v3807, %v3801
      %v5632 = vpack.c.b16 %v3808, %v3802
      %v5633 = vpack.c.b16 %v3809, %v3803
      %v5634 = vpack.c.b16 %v3816, %v3810
      %v5635 = vpack.c.b16 %v3817, %v3811
      %v5636 = vpack.c.b16 %v3818, %v3812
      %v5637 = vpack.c.b16 %v3819, %v3813
      %v5638 = vpack.c.b16 %v3820, %v3814
      %v5639 = vpack.c.b16 %v3821, %v3815
      %v5640 = vpack.c.b16 %v3828, %v3822
      %v5641 = vpack.c.b16 %v3829, %v3823
      %v5642 = vpack.c.b16 %v3830, %v3824
      %v5643 = vpack.c.b16 %v3831, %v3825
      %v5644 = vpack.c.b16 %v3832, %v3826
      %v5645 = vpack.c.b16 %v3833, %v3827
      %v5646 = vpack.c.b16 %v3840, %v3834
      %v5647 = vpack.c.b16 %v3841, %v3835
      %v5648 = vpack.c.b16 %v3842, %v3836
      %v5649 = vpack.c.b16 %v3843, %v3837
      %v5650 = vpack.c.b16 %v3844, %v3838
      %v5651 = vpack.c.b16 %v3845, %v3839
      %v5652 = vpack.c.b16 %v3852, %v3846
      %v5653 = vpack.c.b16 %v3853, %v3847
      %v5654 = vpack.c.b16 %v3854, %v3848
      %v5655 = vpack.c.b16 %v3855, %v3849
      %v5656 = vpack.c.b16 %v3856, %v3850
      %v5657 = vpack.c.b16 %v3857, %v3851
      %v5658 = vpack.c.b16 %v3864, %v3858
      %v5659 = vpack.c.b16 %v3865, %v3859
      %v5660 = vpack.c.b16 %v3866, %v3860
      %v5661 = vpack.c.b16 %v3867, %v3861
      %v5662 = vpack.c.b16 %v3868, %v3862
      %v5663 = vpack.c.b16 %v3869, %v3863
      %v5664 = vpack.c.b16 %v3876, %v3870
      %v5665 = vpack.c.b16 %v3877, %v3871
      %v5666 = vpack.c.b16 %v3878, %v3872
      %v5667 = vpack.c.b16 %v3879, %v3873
      %v5668 = vpack.c.b16 %v3880, %v3874
      %v5669 = vpack.c.b16 %v3881, %v3875
      %v5670 = vpack.c.b16 %v3888, %v3882
      %v5671 = vpack.c.b16 %v3889, %v3883
      %v5672 = vpack.c.b16 %v3890, %v3884
      %v5673 = vpack.c.b16 %v3891, %v3885
      %v5674 = vpack.c.b16 %v3892, %v3886
      %v5675 = vpack.c.b16 %v3893, %v3887
      %v5676 = vpack.c.b16 %v3900, %v3894
      %v5677 = vpack.c.b16 %v3901, %v3895
      %v5678 = vpack.c.b16 %v3902, %v3896
      %v5679 = vpack.c.b16 %v3903, %v3897
      %v5680 = vpack.c.b16 %v3904, %v3898
      %v5681 = vpack.c.b16 %v3905, %v3899
      %v5682 = vpack.c.b16 %v3912, %v3906
      %v5683 = vpack.c.b16 %v3913, %v3907
      %v5684 = vpack.c.b16 %v3914, %v3908
      %v5685 = vpack.c.b16 %v3915, %v3909
      %v5686 = vpack.c.b16 %v3916, %v3910
      %v5687 = vpack.c.b16 %v3917, %v3911
      %v5688 = vpack.c.b16 %v3924, %v3918
      %v5689 = vpack.c.b16 %v3925, %v3919
      %v5690 = vpack.c.b16 %v3926, %v3920
      %v5691 = vpack.c.b16 %v3927, %v3921
      %v5692 = vpack.c.b16 %v3928, %v3922
      %v5693 = vpack.c.b16 %v3929, %v3923
      %v5694 = vpack.c.b16 %v3936, %v3930
      %v5695 = vpack.c.b16 %v3937, %v3931
      %v5696 = vpack.c.b16 %v3938, %v3932
      %v5697 = vpack.c.b16 %v3939, %v3933
      %v5698 = vpack.c.b16 %v3940, %v3934
      %v5699 = vpack.c.b16 %v3941, %v3935
      %v5700 = vpack.c.b16 %v3948, %v3942
      %v5701 = vpack.c.b16 %v3949, %v3943
      %v5702 = vpack.c.b16 %v3950, %v3944
      %v5703 = vpack.c.b16 %v3951, %v3945
      %v5704 = vpack.c.b16 %v3952, %v3946
      %v5705 = vpack.c.b16 %v3953, %v3947
      %v5706 = vpack.c.b16 %v3960, %v3954
      %v5707 = vpack.c.b16 %v3961, %v3955
      %v5708 = vpack.c.b16 %v3962, %v3956
      %v5709 = vpack.c.b16 %v3963, %v3957
      %v5710 = vpack.c.b16 %v3964, %v3958
      %v5711 = vpack.c.b16 %v3965, %v3959
      %v5712 = vpack.c.b16 %v3972, %v3966
      %v5713 = vpack.c.b16 %v3973, %v3967
      %v5714 = vpack.c.b16 %v3974, %v3968
      %v5715 = vpack.c.b16 %v3975, %v3969
      %v5716 = vpack.c.b16 %v3976, %v3970
      %v5717 = vpack.c.b16 %v3977, %v3971
      %v5718 = vpack.c.b16 %v3984, %v3978
      %v5719 = vpack.c.b16 %v3985, %v3979
      %v5720 = vpack.c.b16 %v3986, %v3980
      %v5721 = vpack.c.b16 %v3987, %v3981
      %v5722 = vpack.c.b16 %v3988, %v3982
      %v5723 = vpack.c.b16 %v3989, %v3983
      %v5724 = vpack.c.b16 %v3996, %v3990
      %v5725 = vpack.c.b16 %v3997, %v3991
      %v5726 = vpack.c.b16 %v3998, %v3992
      %v5727 = vpack.c.b16 %v3999, %v3993
      %v5728 = vpack.c.b16 %v4000, %v3994
      %v5729 = vpack.c.b16 %v4001, %v3995
      %v5730 = vpack.c.b16 %v4008, %v4002
      %v5731 = vpack.c.b16 %v4009, %v4003
      %v5732 = vpack.c.b16 %v4010, %v4004
      %v5733 = vpack.c.b16 %v4011, %v4005
      %v5734 = vpack.c.b16 %v4012, %v4006
      %v5735 = vpack.c.b16 %v4013, %v4007
      %v5736 = vpack.c.b16 %v4020, %v4014
      %v5737 = vpack.c.b16 %v4021, %v4015
      %v5738 = vpack.c.b16 %v4022, %v4016
      %v5739 = vpack.c.b16 %v4023, %v4017
      %v5740 = vpack.c.b16 %v4024, %v4018
      %v5741 = vpack.c.b16 %v4025, %v4019
      %v5742 = vpack.c.b16 %v4032, %v4026
      %v5743 = vpack.c.b16 %v4033, %v4027
      %v5744 = vpack.c.b16 %v4034, %v4028
      %v5745 = vpack.c.b16 %v4035, %v4029
      %v5746 = vpack.c.b16 %v4036, %v4030
      %v5747 = vpack.c.b16 %v4037, %v4031
      %v5748 = vpack.c.b16 %v4044, %v4038
      %v5749 = vpack.c.b16 %v4045, %v4039
      %v5750 = vpack.c.b16 %v4046, %v4040
      %v5751 = vpack.c.b16 %v4047, %v4041
      %v5752 = vpack.c.b16 %v4048, %v4042
      %v5753 = vpack.c.b16 %v4049, %v4043
      %v5754 = vpack.c.b16 %v4056, %v4050
      %v5755 = vpack.c.b16 %v4057, %v4051
      %v5756 = vpack.c.b16 %v4058, %v4052
      %v5757 = vpack.c.b16 %v4059, %v4053
      %v5758 = vpack.c.b16 %v4060, %v4054
      %v5759 = vpack.c.b16 %v4061, %v4055
      %v5760 = vpack.c.b16 %v4068, %v4062
      %v5761 = vpack.c.b16 %v4069, %v4063
      %v5762 = vpack.c.b16 %v4070, %v4064
      %v5763 = vpack.c.b16 %v4071, %v4065
      %v5764 = vpack.c.b16 %v4072, %v4066
      %v5765 = vpack.c.b16 %v4073, %v4067
      %v5766 = vpack.c.b16 %v4080, %v4074
      %v5767 = vpack.c.b16 %v4081, %v4075
      %v5768 = vpack.c.b16 %v4082, %v4076
      %v5769 = vpack.c.b16 %v4083, %v4077
      %v5770 = vpack.c.b16 %v4084, %v4078
      %v5771 = vpack.c.b16 %v4085, %v4079
      %v5772 = vpack.c.b16 %v4092, %v4086
      %v5773 = vpack.c.b16 %v4093, %v4087
      %v5774 = vpack.c.b16 %v4094, %v4088
      %v5775 = vpack.c.b16 %v4095, %v4089
      %v5776 = vpack.c.b16 %v4096, %v4090
      %v5777 = vpack.c.b16 %v4097, %v4091
      %v5778 = vpack.c.b16 %v4104, %v4098
      %v5779 = vpack.c.b16 %v4105, %v4099
      %v5780 = vpack.c.b16 %v4106, %v4100
      %v5781 = vpack.c.b16 %v4107, %v4101
      %v5782 = vpack.c.b16 %v4108, %v4102
      %v5783 = vpack.c.b16 %v4109, %v4103
      %v5784 = vpack.c.b16 %v4116, %v4110
      %v5785 = vpack.c.b16 %v4117, %v4111
      %v5786 = vpack.c.b16 %v4118, %v4112
      %v5787 = vpack.c.b16 %v4119, %v4113
      %v5788 = vpack.c.b16 %v4120, %v4114
      %v5789 = vpack.c.b16 %v4121, %v4115
      %v5790 = vpack.c.b16 %v4128, %v4122
      %v5791 = vpack.c.b16 %v4129, %v4123
      %v5792 = vpack.c.b16 %v4130, %v4124
      %v5793 = vpack.c.b16 %v4131, %v4125
      %v5794 = vpack.c.b16 %v4132, %v4126
      %v5795 = vpack.c.b16 %v4133, %v4127
      %v5796 = vpack.c.b16 %v4140, %v4134
      %v5797 = vpack.c.b16 %v4141, %v4135
      %v5798 = vpack.c.b16 %v4142, %v4136
      %v5799 = vpack.c.b16 %v4143, %v4137
      %v5800 = vpack.c.b16 %v4144, %v4138
      %v5801 = vpack.c.b16 %v4145, %v4139
      %v5802 = vpack.c.b16 %v4152, %v4146
      %v5803 = vpack.c.b16 %v4153, %v4147
      %v5804 = vpack.c.b16 %v4154, %v4148
      %v5805 = vpack.c.b16 %v4155, %v4149
      %v5806 = vpack.c.b16 %v4156, %v4150
      %v5807 = vpack.c.b16 %v4157, %v4151
      %v5808 = vpack.c.b16 %v4164, %v4158
      %v5809 = vpack.c.b16 %v4165, %v4159
      %v5810 = vpack.c.b16 %v4166, %v4160
      %v5811 = vpack.c.b16 %v4167, %v4161
      %v5812 = vpack.c.b16 %v4168, %v4162
      %v5813 = vpack.c.b16 %v4169, %v4163
      %v5814 = vpack.c.b16 %v4176, %v4170
      %v5815 = vpack.c.b16 %v4177, %v4171
      %v5816 = vpack.c.b16 %v4178, %v4172
      %v5817 = vpack.c.b16 %v4179, %v4173
      %v5818 = vpack.c.b16 %v4180, %v4174
      %v5819 = vpack.c.b16 %v4181, %v4175
      %v5820 = vpack.c.b16 %v4188, %v4182
      %v5821 = vpack.c.b16 %v4189, %v4183
      %v5822 = vpack.c.b16 %v4190, %v4184
      %v5823 = vpack.c.b16 %v4191, %v4185
      %v5824 = vpack.c.b16 %v4192, %v4186
      %v5825 = vpack.c.b16 %v4193, %v4187
      %v5826 = vpack.c.b16 %v4200, %v4194
      %v5827 = vpack.c.b16 %v4201, %v4195
      %v5828 = vpack.c.b16 %v4202, %v4196
      %v5829 = vpack.c.b16 %v4203, %v4197
      %v5830 = vpack.c.b16 %v4204, %v4198
      %v5831 = vpack.c.b16 %v4205, %v4199
      %v5832 = vpack.c.b16 %v4212, %v4206
      %v5833 = vpack.c.b16 %v4213, %v4207
      %v5834 = vpack.c.b16 %v4214, %v4208
      %v5835 = vpack.c.b16 %v4215, %v4209
      %v5836 = vpack.c.b16 %v4216, %v4210
      %v5837 = vpack.c.b16 %v4217, %v4211
      %v5838 = vpack.c.b16 %v4224, %v4218
      %v5839 = vpack.c.b16 %v4225, %v4219
      %v5840 = vpack.c.b16 %v4226, %v4220
      %v5841 = vpack.c.b16 %v4227, %v4221
      %v5842 = vpack.c.b16 %v4228, %v4222
      %v5843 = vpack.c.b16 %v4229, %v4223
      %v5844 = vpack.c.b16 %v4236, %v4230
      %v5845 = vpack.c.b16 %v4237, %v4231
      %v5846 = vpack.c.b16 %v4238, %v4232
      %v5847 = vpack.c.b16 %v4239, %v4233
      %v5848 = vpack.c.b16 %v4240, %v4234
      %v5849 = vpack.c.b16 %v4241, %v4235
      %v5850 = vpack.c.b16 %v4248, %v4242
      %v5851 = vpack.c.b16 %v4249, %v4243
      %v5852 = vpack.c.b16 %v4250, %v4244
      %v5853 = vpack.c.b16 %v4251, %v4245
      %v5854 = vpack.c.b16 %v4252, %v4246
      %v5855 = vpack.c.b16 %v4253, %v4247
      %v5856 = vpack.c.b16 %v4260, %v4254
      %v5857 = vpack.c.b16 %v4261, %v4255
      %v5858 = vpack.c.b16 %v4262, %v4256
      %v5859 = vpack.c.b16 %v4263, %v4257
      %v5860 = vpack.c.b16 %v4264, %v4258
      %v5861 = vpack.c.b16 %v4265, %v4259
      %v5862 = vpack.c.b16 %v4272, %v4266
      %v5863 = vpack.c.b16 %v4273, %v4267
      %v5864 = vpack.c.b16 %v4274, %v4268
      %v5865 = vpack.c.b16 %v4275, %v4269
      %v5866 = vpack.c.b16 %v4276, %v4270
      %v5867 = vpack.c.b16 %v4277, %v4271
      %v5868 = vpack.c.b16 %v4284, %v4278
      %v5869 = vpack.c.b16 %v4285, %v4279
      %v5870 = vpack.c.b16 %v4286, %v4280
      %v5871 = vpack.c.b16 %v4287, %v4281
      %v5872 = vpack.c.b16 %v4288, %v4282
      %v5873 = vpack.c.b16 %v4289, %v4283
      %v5874 = vpack.c.b16 %v4296, %v4290
      %v5875 = vpack.c.b16 %v4297, %v4291
      %v5876 = vpack.c.b16 %v4298, %v4292
      %v5877 = vpack.c.b16 %v4299, %v4293
      %v5878 = vpack.c.b16 %v4300, %v4294
      %v5879 = vpack.c.b16 %v4301, %v4295
      %v5880 = vpack.c.b16 %v4308, %v4302
      %v5881 = vpack.c.b16 %v4309, %v4303
      %v5882 = vpack.c.b16 %v4310, %v4304
      %v5883 = vpack.c.b16 %v4311, %v4305
      %v5884 = vpack.c.b16 %v4312, %v4306
      %v5885 = vpack.c.b16 %v4313, %v4307
      %v5886 = vpack.c.b16 %v4320, %v4314
      %v5887 = vpack.c.b16 %v4321, %v4315
      %v5888 = vpack.c.b16 %v4322, %v4316
      %v5889 = vpack.c.b16 %v4323, %v4317
      %v5890 = vpack.c.b16 %v4324, %v4318
      %v5891 = vpack.c.b16 %v4325, %v4319
      %v5892 = vpack.c.b16 %v4332, %v4326
      %v5893 = vpack.c.b16 %v4333, %v4327
      %v5894 = vpack.c.b16 %v4334, %v4328
      %v5895 = vpack.c.b16 %v4335, %v4329
      %v5896 = vpack.c.b16 %v4336, %v4330
      %v5897 = vpack.c.b16 %v4337, %v4331
      %v5898 = vpack.c.b16 %v4344, %v4338
      %v5899 = vpack.c.b16 %v4345, %v4339
      %v5900 = vpack.c.b16 %v4346, %v4340
      %v5901 = vpack.c.b16 %v4347, %v4341
      %v5902 = vpack.c.b16 %v4348, %v4342
      %v5903 = vpack.c.b16 %v4349, %v4343
      %v5904 = vpack.c.b16 %v4356, %v4350
      %v5905 = vpack.c.b16 %v4357, %v4351
      %v5906 = vpack.c.b16 %v4358, %v4352
      %v5907 = vpack.c.b16 %v4359, %v4353
      %v5908 = vpack.c.b16 %v4360, %v4354
      %v5909 = vpack.c.b16 %v4361, %v4355
      %v5910 = vpack.c.b16 %v4368, %v4362
      %v5911 = vpack.c.b16 %v4369, %v4363
      %v5912 = vpack.c.b16 %v4370, %v4364
      %v5913 = vpack.c.b16 %v4371, %v4365
      %v5914 = vpack.c.b16 %v4372, %v4366
      %v5915 = vpack.c.b16 %v4373, %v4367
      %v5916 = vpack.c.b16 %v4380, %v4374
      %v5917 = vpack.c.b16 %v4381, %v4375
      %v5918 = vpack.c.b16 %v4382, %v4376
      %v5919 = vpack.c.b16 %v4383, %v4377
      %v5920 = vpack.c.b16 %v4384, %v4378
      %v5921 = vpack.c.b16 %v4385, %v4379
      %v5922 = vpack.c.b16 %v4392, %v4386
      %v5923 = vpack.c.b16 %v4393, %v4387
      %v5924 = vpack.c.b16 %v4394, %v4388
      %v5925 = vpack.c.b16 %v4395, %v4389
      %v5926 = vpack.c.b16 %v4396, %v4390
      %v5927 = vpack.c.b16 %v4397, %v4391
      %v5928 = vpack.c.b16 %v4404, %v4398
      %v5929 = vpack.c.b16 %v4405, %v4399
      %v5930 = vpack.c.b16 %v4406, %v4400
      %v5931 = vpack.c.b16 %v4407, %v4401
      %v5932 = vpack.c.b16 %v4408, %v4402
      %v5933 = vpack.c.b16 %v4409, %v4403
      %v5934 = vpack.c.b16 %v4416, %v4410
      %v5935 = vpack.c.b16 %v4417, %v4411
      %v5936 = vpack.c.b16 %v4418, %v4412
      %v5937 = vpack.c.b16 %v4419, %v4413
      %v5938 = vpack.c.b16 %v4420, %v4414
      %v5939 = vpack.c.b16 %v4421, %v4415
      %v5940 = vpack.c.b16 %v4428, %v4422
      %v5941 = vpack.c.b16 %v4429, %v4423
      %v5942 = vpack.c.b16 %v4430, %v4424
      %v5943 = vpack.c.b16 %v4431, %v4425
      %v5944 = vpack.c.b16 %v4432, %v4426
      %v5945 = vpack.c.b16 %v4433, %v4427
      %v5946 = vpack.c.b16 %v4440, %v4434
      %v5947 = vpack.c.b16 %v4441, %v4435
      %v5948 = vpack.c.b16 %v4442, %v4436
      %v5949 = vpack.c.b16 %v4443, %v4437
      %v5950 = vpack.c.b16 %v4444, %v4438
      %v5951 = vpack.c.b16 %v4445, %v4439
      %v5952 = vpack.c.b16 %v4452, %v4446
      %v5953 = vpack.c.b16 %v4453, %v4447
      %v5954 = vpack.c.b16 %v4454, %v4448
      %v5955 = vpack.c.b16 %v4455, %v4449
      %v5956 = vpack.c.b16 %v4456, %v4450
      %v5957 = vpack.c.b16 %v4457, %v4451
      %v5958 = vpack.c.b16 %v4464, %v4458
      %v5959 = vpack.c.b16 %v4465, %v4459
      %v5960 = vpack.c.b16 %v4466, %v4460
      %v5961 = vpack.c.b16 %v4467, %v4461
      %v5962 = vpack.c.b16 %v4468, %v4462
      %v5963 = vpack.c.b16 %v4469, %v4463
      %v5964 = vpack.c.b16 %v4476, %v4470
      %v5965 = vpack.c.b16 %v4477, %v4471
      %v5966 = vpack.c.b16 %v4478, %v4472
      %v5967 = vpack.c.b16 %v4479, %v4473
      %v5968 = vpack.c.b16 %v4480, %v4474
      %v5969 = vpack.c.b16 %v4481, %v4475
      %v5970 = vpack.c.b16 %v4488, %v4482
      %v5971 = vpack.c.b16 %v4489, %v4483
      %v5972 = vpack.c.b16 %v4490, %v4484
      %v5973 = vpack.c.b16 %v4491, %v4485
      %v5974 = vpack.c.b16 %v4492, %v4486
      %v5975 = vpack.c.b16 %v4493, %v4487
      %v5976 = vpack.c.b16 %v4500, %v4494
      %v5977 = vpack.c.b16 %v4501, %v4495
      %v5978 = vpack.c.b16 %v4502, %v4496
      %v5979 = vpack.c.b16 %v4503, %v4497
      %v5980 = vpack.c.b16 %v4504, %v4498
      %v5981 = vpack.c.b16 %v4505, %v4499
      %v5982 = vpack.c.b16 %v4512, %v4506
      %v5983 = vpack.c.b16 %v4513, %v4507
      %v5984 = vpack.c.b16 %v4514, %v4508
      %v5985 = vpack.c.b16 %v4515, %v4509
      %v5986 = vpack.c.b16 %v4516, %v4510
      %v5987 = vpack.c.b16 %v4517, %v4511
      %v5988 = vpack.c.b16 %v4524, %v4518
      %v5989 = vpack.c.b16 %v4525, %v4519
      %v5990 = vpack.c.b16 %v4526, %v4520
      %v5991 = vpack.c.b16 %v4527, %v4521
      %v5992 = vpack.c.b16 %v4528, %v4522
      %v5993 = vpack.c.b16 %v4529, %v4523
      %v5994 = vpack.c.b16 %v4536, %v4530
      %v5995 = vpack.c.b16 %v4537, %v4531
      %v5996 = vpack.c.b16 %v4538, %v4532
      %v5997 = vpack.c.b16 %v4539, %v4533
      %v5998 = vpack.c.b16 %v4540, %v4534
      %v5999 = vpack.c.b16 %v4541, %v4535
      %v6000 = vpack.c.b16 %v4548, %v4542
      %v6001 = vpack.c.b16 %v4549, %v4543
      %v6002 = vpack.c.b16 %v4550, %v4544
      %v6003 = vpack.c.b16 %v4551, %v4545
      %v6004 = vpack.c.b16 %v4552, %v4546
      %v6005 = vpack.c.b16 %v4553, %v4547
      %v6006 = vpack.c.b16 %v4560, %v4554
      %v6007 = vpack.c.b16 %v4561, %v4555
      %v6008 = vpack.c.b16 %v4562, %v4556
      %v6009 = vpack.c.b16 %v4563, %v4557
      %v6010 = vpack.c.b16 %v4564, %v4558
      %v6011 = vpack.c.b16 %v4565, %v4559
      %v6012 = vpack.c.b16 %v4572, %v4566
      %v6013 = vpack.c.b16 %v4573, %v4567
      %v6014 = vpack.c.b16 %v4574, %v4568
      %v6015 = vpack.c.b16 %v4575, %v4569
      %v6016 = vpack.c.b16 %v4576, %v4570
      %v6017 = vpack.c.b16 %v4577, %v4571
      %v6018 = vpack.c.b16 %v4584, %v4578
      %v6019 = vpack.c.b16 %v4585, %v4579
      %v6020 = vpack.c.b16 %v4586, %v4580
      %v6021 = vpack.c.b16 %v4587, %v4581
      %v6022 = vpack.c.b16 %v4588, %v4582
      %v6023 = vpack.c.b16 %v4589, %v4583
      %v6024 = vpack.c.b16 %v4596, %v4590
      %v6025 = vpack.c.b16 %v4597, %v4591
      %v6026 = vpack.c.b16 %v4598, %v4592
      %v6027 = vpack.c.b16 %v4599, %v4593
      %v6028 = vpack.c.b16 %v4600, %v4594
      %v6029 = vpack.c.b16 %v4601, %v4595
      %v6030 = vpack.c.b16 %v4608, %v4602
      %v6031 = vpack.c.b16 %v4609, %v4603
      %v6032 = vpack.c.b16 %v4610, %v4604
      %v6033 = vpack.c.b16 %v4611, %v4605
      %v6034 = vpack.c.b16 %v4612, %v4606
      %v6035 = vpack.c.b16 %v4613, %v4607
      %v6036 = vpack.c.b16 %v4620, %v4614
      %v6037 = vpack.c.b16 %v4621, %v4615
      %v6038 = vpack.c.b16 %v4622, %v4616
      %v6039 = vpack.c.b16 %v4623, %v4617
      %v6040 = vpack.c.b16 %v4624, %v4618
      %v6041 = vpack.c.b16 %v4625, %v4619
      %v6042 = vpack.c.b16 %v4632, %v4626
      %v6043 = vpack.c.b16 %v4633, %v4627
      %v6044 = vpack.c.b16 %v4634, %v4628
      %v6045 = vpack.c.b16 %v4635, %v4629
      %v6046 = vpack.c.b16 %v4636, %v4630
      %v6047 = vpack.c.b16 %v4637, %v4631
      %v6048 = vpack.c.b16 %v4644, %v4638
      %v6049 = vpack.c.b16 %v4645, %v4639
      %v6050 = vpack.c.b16 %v4646, %v4640
      %v6051 = vpack.c.b16 %v4647, %v4641
      %v6052 = vpack.c.b16 %v4648, %v4642
      %v6053 = vpack.c.b16 %v4649, %v4643
      %v6054 = vpack.c.b16 %v4656, %v4650
      %v6055 = vpack.c.b16 %v4657, %v4651
      %v6056 = vpack.c.b16 %v4658, %v4652
      %v6057 = vpack.c.b16 %v4659, %v4653
      %v6058 = vpack.c.b16 %v4660, %v4654
      %v6059 = vpack.c.b16 %v4661, %v4655
      %v6060 = vpack.c.b16 %v4668, %v4662
      %v6061 = vpack.c.b16 %v4669, %v4663
      %v6062 = vpack.c.b16 %v4670, %v4664
      %v6063 = vpack.c.b16 %v4671, %v4665
      %v6064 = vpack.c.b16 %v4672, %v4666
      %v6065 = vpack.c.b16 %v4673, %v4667
      %v6066 = vpack.c.b16 %v4680, %v4674
      %v6067 = vpack.c.b16 %v4681, %v4675
      %v6068 = vpack.c.b16 %v4682, %v4676
      %v6069 = vpack.c.b16 %v4683, %v4677
      %v6070 = vpack.c.b16 %v4684, %v4678
      %v6071 = vpack.c.b16 %v4685, %v4679
      %v6072 = vpack.c.b16 %v4692, %v4686
      %v6073 = vpack.c.b16 %v4693, %v4687
      %v6074 = vpack.c.b16 %v4694, %v4688
      %v6075 = vpack.c.b16 %v4695, %v4689
      %v6076 = vpack.c.b16 %v4696, %v4690
      %v6077 = vpack.c.b16 %v4697, %v4691
      %v6078 = vpack.c.b16 %v4704, %v4698
      %v6079 = vpack.c.b16 %v4705, %v4699
      %v6080 = vpack.c.b16 %v4706, %v4700
      %v6081 = vpack.c.b16 %v4707, %v4701
      %v6082 = vpack.c.b16 %v4708, %v4702
      %v6083 = vpack.c.b16 %v4709, %v4703
      %v6084 = vpack.c.b16 %v4716, %v4710
      %v6085 = vpack.c.b16 %v4717, %v4711
      %v6086 = vpack.c.b16 %v4718, %v4712
      %v6087 = vpack.c.b16 %v4719, %v4713
      %v6088 = vpack.c.b16 %v4720, %v4714
      %v6089 = vpack.c.b16 %v4721, %v4715
      %v6090 = vpack.c.b16 %v4728, %v4722
      %v6091 = vpack.c.b16 %v4729, %v4723
      %v6092 = vpack.c.b16 %v4730, %v4724
      %v6093 = vpack.c.b16 %v4731, %v4725
      %v6094 = vpack.c.b16 %v4732, %v4726
      %v6095 = vpack.c.b16 %v4733, %v4727
      %v6096 = vpack.c.b16 %v4740, %v4734
      %v6097 = vpack.c.b16 %v4741, %v4735
      %v6098 = vpack.c.b16 %v4742, %v4736
      %v6099 = vpack.c.b16 %v4743, %v4737
      %v6100 = vpack.c.b16 %v4744, %v4738
      %v6101 = vpack.c.b16 %v4745, %v4739
      %v6102 = vpack.c.b16 %v4752, %v4746
      %v6103 = vpack.c.b16 %v4753, %v4747
      %v6104 = vpack.c.b16 %v4754, %v4748
      %v6105 = vpack.c.b16 %v4755, %v4749
      %v6106 = vpack.c.b16 %v4756, %v4750
      %v6107 = vpack.c.b16 %v4757, %v4751
      %v6108 = vpack.c.b16 %v4764, %v4758
      %v6109 = vpack.c.b16 %v4765, %v4759
      %v6110 = vpack.c.b16 %v4766, %v4760
      %v6111 = vpack.c.b16 %v4767, %v4761
      %v6112 = vpack.c.b16 %v4768, %v4762
      %v6113 = vpack.c.b16 %v4769, %v4763
      %v6114 = vpack.c.b16 %v4776, %v4770
      %v6115 = vpack.c.b16 %v4777, %v4771
      %v6116 = vpack.c.b16 %v4778, %v4772
      %v6117 = vpack.c.b16 %v4779, %v4773
      %v6118 = vpack.c.b16 %v4780, %v4774
      %v6119 = vpack.c.b16 %v4781, %v4775
      %v6120 = vpack.c.b16 %v4788, %v4782
      %v6121 = vpack.c.b16 %v4789, %v4783
      %v6122 = vpack.c.b16 %v4790, %v4784
      %v6123 = vpack.c.b16 %v4791, %v4785
      %v6124 = vpack.c.b16 %v4792, %v4786
      %v6125 = vpack.c.b16 %v4793, %v4787
      %v6126 = vpack.c.b16 %v4800, %v4794
      %v6127 = vpack.c.b16 %v4801, %v4795
      %v6128 = vpack.c.b16 %v4802, %v4796
      %v6129 = vpack.c.b16 %v4803, %v4797
      %v6130 = vpack.c.b16 %v4804, %v4798
      %v6131 = vpack.c.b16 %v4805, %v4799
      %v6132 = vpack.c.b16 %v4812, %v4806
      %v6133 = vpack.c.b16 %v4813, %v4807
      %v6134 = vpack.c.b16 %v4814, %v4808
      %v6135 = vpack.c.b16 %v4815, %v4809
      %v6136 = vpack.c.b16 %v4816, %v4810
      %v6137 = vpack.c.b16 %v4817, %v4811
      %v6138 = vpack.c.b16 %v4824, %v4818
      %v6139 = vpack.c.b16 %v4825, %v4819
      %v6140 = vpack.c.b16 %v4826, %v4820
      %v6141 = vpack.c.b16 %v4827, %v4821
      %v6142 = vpack.c.b16 %v4828, %v4822
      %v6143 = vpack.c.b16 %v4829, %v4823
      %v6144 = vpack.c.b16 %v4836, %v4830
      %v6145 = vpack.c.b16 %v4837, %v4831
      %v6146 = vpack.c.b16 %v4838, %v4832
      %v6147 = vpack.c.b16 %v4839, %v4833
      %v6148 = vpack.c.b16 %v4840, %v4834
      %v6149 = vpack.c.b16 %v4841, %v4835
      %v6150 = vpack.c.b16 %v4848, %v4842
      %v6151 = vpack.c.b16 %v4849, %v4843
      %v6152 = vpack.c.b16 %v4850, %v4844
      %v6153 = vpack.c.b16 %v4851, %v4845
      %v6154 = vpack.c.b16 %v4852, %v4846
      %v6155 = vpack.c.b16 %v4853, %v4847
      %v6156 = vpack.c.b16 %v4860, %v4854
      %v6157 = vpack.c.b16 %v4861, %v4855
      %v6158 = vpack.c.b16 %v4862, %v4856
      %v6159 = vpack.c.b16 %v4863, %v4857
      %v6160 = vpack.c.b16 %v4864, %v4858
      %v6161 = vpack.c.b16 %v4865, %v4859
      %v6162 = vpack.c.b16 %v4872, %v4866
      %v6163 = vpack.c.b16 %v4873, %v4867
      %v6164 = vpack.c.b16 %v4874, %v4868
      %v6165 = vpack.c.b16 %v4875, %v4869
      %v6166 = vpack.c.b16 %v4876, %v4870
      %v6167 = vpack.c.b16 %v4877, %v4871
      %v6168 = vpack.c.b16 %v4884, %v4878
      %v6169 = vpack.c.b16 %v4885, %v4879
      %v6170 = vpack.c.b16 %v4886, %v4880
      %v6171 = vpack.c.b16 %v4887, %v4881
      %v6172 = vpack.c.b16 %v4888, %v4882
      %v6173 = vpack.c.b16 %v4889, %v4883
      %v6174 = vpack.c.b16 %v4896, %v4890
      %v6175 = vpack.c.b16 %v4897, %v4891
      %v6176 = vpack.c.b16 %v4898, %v4892
      %v6177 = vpack.c.b16 %v4899, %v4893
      %v6178 = vpack.c.b16 %v4900, %v4894
      %v6179 = vpack.c.b16 %v4901, %v4895
      %v6180 = vpack.c.b16 %v4908, %v4902
      %v6181 = vpack.c.b16 %v4909, %v4903
      %v6182 = vpack.c.b16 %v4910, %v4904
      %v6183 = vpack.c.b16 %v4911, %v4905
      %v6184 = vpack.c.b16 %v4912, %v4906
      %v6185 = vpack.c.b16 %v4913, %v4907
      %v6186 = vpack.c.b16 %v4920, %v4914
      %v6187 = vpack.c.b16 %v4921, %v4915
      %v6188 = vpack.c.b16 %v4922, %v4916
      %v6189 = vpack.c.b16 %v4923, %v4917
      %v6190 = vpack.c.b16 %v4924, %v4918
      %v6191 = vpack.c.b16 %v4925, %v4919
      %v6192 = vpack.c.b16 %v4932, %v4926
      %v6193 = vpack.c.b16 %v4933, %v4927
      %v6194 = vpack.c.b16 %v4934, %v4928
      %v6195 = vpack.c.b16 %v4935, %v4929
      %v6196 = vpack.c.b16 %v4936, %v4930
      %v6197 = vpack.c.b16 %v4937, %v4931
      %v6198 = vpack.c.b16 %v4944, %v4938
      %v6199 = vpack.c.b16 %v4945, %v4939
      %v6200 = vpack.c.b16 %v4946, %v4940
      %v6201 = vpack.c.b16 %v4947, %v4941
      %v6202 = vpack.c.b16 %v4948, %v4942
      %v6203 = vpack.c.b16 %v4949, %v4943
      %v6204 = vpack.c.b16 %v4956, %v4950
      %v6205 = vpack.c.b16 %v4957, %v4951
      %v6206 = vpack.c.b16 %v4958, %v4952
      %v6207 = vpack.c.b16 %v4959, %v4953
      %v6208 = vpack.c.b16 %v4960, %v4954
      %v6209 = vpack.c.b16 %v4961, %v4955
      %v6210 = vpack.c.b16 %v4968, %v4962
      %v6211 = vpack.c.b16 %v4969, %v4963
      %v6212 = vpack.c.b16 %v4970, %v4964
      %v6213 = vpack.c.b16 %v4971, %v4965
      %v6214 = vpack.c.b16 %v4972, %v4966
      %v6215 = vpack.c.b16 %v4973, %v4967
      %v6216 = vpack.c.b16 %v4980, %v4974
      %v6217 = vpack.c.b16 %v4981, %v4975
      %v6218 = vpack.c.b16 %v4982, %v4976
      %v6219 = vpack.c.b16 %v4983, %v4977
      %v6220 = vpack.c.b16 %v4984, %v4978
      %v6221 = vpack.c.b16 %v4985, %v4979
      %v6222 = vpack.c.b16 %v4992, %v4986
      %v6223 = vpack.c.b16 %v4993, %v4987
      %v6224 = vpack.c.b16 %v4994, %v4988
      %v6225 = vpack.c.b16 %v4995, %v4989
      %v6226 = vpack.c.b16 %v4996, %v4990
      %v6227 = vpack.c.b16 %v4997, %v4991
      %v6228 = vpack.c.b16 %v5004, %v4998
      %v6229 = vpack.c.b16 %v5005, %v4999
      %v6230 = vpack.c.b16 %v5006, %v5000
      %v6231 = vpack.c.b16 %v5007, %v5001
      %v6232 = vpack.c.b16 %v5008, %v5002
      %v6233 = vpack.c.b16 %v5009, %v5003
      %v6234 = vpack.c.b16 %v5016, %v5010
      %v6235 = vpack.c.b16 %v5017, %v5011
      %v6236 = vpack.c.b16 %v5018, %v5012
      %v6237 = vpack.c.b16 %v5019, %v5013
      %v6238 = vpack.c.b16 %v5020, %v5014
      %v6239 = vpack.c.b16 %v5021, %v5015
      %v6240 = vpack.c.b16 %v5028, %v5022
      %v6241 = vpack.c.b16 %v5029, %v5023
      %v6242 = vpack.c.b16 %v5030, %v5024
      %v6243 = vpack.c.b16 %v5031, %v5025
      %v6244 = vpack.c.b16 %v5032, %v5026
      %v6245 = vpack.c.b16 %v5033, %v5027
      %v6246 = vpack.c.b16 %v5040, %v5034
      %v6247 = vpack.c.b16 %v5041, %v5035
      %v6248 = vpack.c.b16 %v5042, %v5036
      %v6249 = vpack.c.b16 %v5043, %v5037
      %v6250 = vpack.c.b16 %v5044, %v5038
      %v6251 = vpack.c.b16 %v5045, %v5039
      %v6252 = vpack.c.b16 %v5052, %v5046
      %v6253 = vpack.c.b16 %v5053, %v5047
      %v6254 = vpack.c.b16 %v5054, %v5048
      %v6255 = vpack.c.b16 %v5055, %v5049
      %v6256 = vpack.c.b16 %v5056, %v5050
      %v6257 = vpack.c.b16 %v5057, %v5051
      %v6258 = vpack.c.b16 %v5064, %v5058
      %v6259 = vpack.c.b16 %v5065, %v5059
      %v6260 = vpack.c.b16 %v5066, %v5060
      %v6261 = vpack.c.b16 %v5067, %v5061
      %v6262 = vpack.c.b16 %v5068, %v5062
      %v6263 = vpack.c.b16 %v5069, %v5063
      %v6264 = vpack.c.b16 %v5076, %v5070
      %v6265 = vpack.c.b16 %v5077, %v5071
      %v6266 = vpack.c.b16 %v5078, %v5072
      %v6267 = vpack.c.b16 %v5079, %v5073
      %v6268 = vpack.c.b16 %v5080, %v5074
      %v6269 = vpack.c.b16 %v5081, %v5075
      %v6270 = vpack.c.b16 %v5088, %v5082
      %v6271 = vpack.c.b16 %v5089, %v5083
      %v6272 = vpack.c.b16 %v5090, %v5084
      %v6273 = vpack.c.b16 %v5091, %v5085
      %v6274 = vpack.c.b16 %v5092, %v5086
      %v6275 = vpack.c.b16 %v5093, %v5087
      %v6276 = vpack.c.b16 %v5100, %v5094
      %v6277 = vpack.c.b16 %v5101, %v5095
      %v6278 = vpack.c.b16 %v5102, %v5096
      %v6279 = vpack.c.b16 %v5103, %v5097
      %v6280 = vpack.c.b16 %v5104, %v5098
      %v6281 = vpack.c.b16 %v5105, %v5099
      %v6282 = vpack.c.b16 %v5112, %v5106
      %v6283 = vpack.c.b16 %v5113, %v5107
      %v6284 = vpack.c.b16 %v5114, %v5108
      %v6285 = vpack.c.b16 %v5115, %v5109
      %v6286 = vpack.c.b16 %v5116, %v5110
      %v6287 = vpack.c.b16 %v5117, %v5111
      %v6288 = vpack.c.b16 %v5124, %v5118
      %v6289 = vpack.c.b16 %v5125, %v5119
      %v6290 = vpack.c.b16 %v5126, %v5120
      %v6291 = vpack.c.b16 %v5127, %v5121
      %v6292 = vpack.c.b16 %v5128, %v5122
      %v6293 = vpack.c.b16 %v5129, %v5123
      %v6294 = vpack.c.b16 %v5136, %v5130
      %v6295 = vpack.c.b16 %v5137, %v5131
      %v6296 = vpack.c.b16 %v5138, %v5132
      %v6297 = vpack.c.b16 %v5139, %v5133
      %v6298 = vpack.c.b16 %v5140, %v5134
      %v6299 = vpack.c.b16 %v5141, %v5135
      %v6300 = vpack.c.b16 %v5148, %v5142
      %v6301 = vpack.c.b16 %v5149, %v5143
      %v6302 = vpack.c.b16 %v5150, %v5144
      %v6303 = vpack.c.b16 %v5151, %v5145
      %v6304 = vpack.c.b16 %v5152, %v5146
      %v6305 = vpack.c.b16 %v5153, %v5147
      %7458 = vmatprep.subr.bf16.mxu0 %v5155
      %7459 = vmatpush1.bf16.msra.mxu0 %v5154
      %7460 = vmatprep.subr.bf16.mxu0 %v5161
      %7461 = vmatpush1.bf16.msra.mxu0 %v5160
      %7462 = vmatprep.subr.bf16.mxu0 %v5167
      %7463 = vmatpush1.bf16.msra.mxu0 %v5166
      %7464 = vmatprep.subr.bf16.mxu0 %v5173
      %7465 = vmatpush1.bf16.msra.mxu0 %v5172
      %7466 = vmatprep.subr.bf16.mxu0 %v5179
      %7467 = vmatpush1.bf16.msra.mxu0 %v5178
      %7468 = vmatprep.subr.bf16.mxu0 %v5185
      %7469 = vmatpush1.bf16.msra.mxu0 %v5184
      %7470 = vmatprep.subr.bf16.mxu0 %v5191
      %7471 = vmatpush1.bf16.msra.mxu0 %v5190
      %7472 = vmatprep.subr.bf16.mxu0 %v5197
      %7473 = vmatpush1.bf16.msra.mxu0 %v5196
      %7474 = vmatprep.subr.bf16.mxu0 %v5203
      %7475 = vmatpush1.bf16.msra.mxu0 %v5202
      %7476 = vmatprep.subr.bf16.mxu0 %v5209
      %7477 = vmatpush1.bf16.msra.mxu0 %v5208
      %7478 = vmatprep.subr.bf16.mxu0 %v5215
      %7479 = vmatpush1.bf16.msra.mxu0 %v5214
      %7480 = vmatprep.subr.bf16.mxu0 %v5221
      %7481 = vmatpush1.bf16.msra.mxu0 %v5220
      %7482 = vmatprep.subr.bf16.mxu0 %v5227
      %7483 = vmatpush1.bf16.msra.mxu0 %v5226
      %7484 = vmatprep.subr.bf16.mxu0 %v5233
      %7485 = vmatpush1.bf16.msra.mxu0 %v5232
      %7486 = vmatprep.subr.bf16.mxu0 %v5239
      %7487 = vmatpush1.bf16.msra.mxu0 %v5238
      %7488 = vmatprep.subr.bf16.mxu0 %v5245
      %7489 = vmatpush1.bf16.msra.mxu0 %v5244
      %7490 = vmatprep.mubr.bf16.mxu0 %v1587
      %7491 = vmatmul.mubr.bf16.gmra.mrb[0].mxu0 %v1579
      %v7492 = vpop.f32.mrb[0].mxu0
      %v7493 = vadd.f32 %v1539, %v7492
      %v7494 = vpop.f32.mrb[0].mxu0
      %v7495 = vadd.f32 %v1543, %v7494
      %v7496 = vpop.f32.mrb[0].mxu0
      %v7497 = vpop.f32.mrb[0].mxu0
      %7498 = vdwg.mxu0
      %7499 = vmatprep.subr.bf16.mxu0 %v5251
      %7500 = vmatpush1.bf16.msra.mxu0 %v5250
      %7501 = vmatprep.subr.bf16.mxu0 %v5257
      %7502 = vmatpush1.bf16.msra.mxu0 %v5256
      %7503 = vmatprep.subr.bf16.mxu0 %v5263
      %7504 = vmatpush1.bf16.msra.mxu0 %v5262
      %7505 = vmatprep.subr.bf16.mxu0 %v5269
      %7506 = vmatpush1.bf16.msra.mxu0 %v5268
      %7507 = vmatprep.subr.bf16.mxu0 %v5275
      %7508 = vmatpush1.bf16.msra.mxu0 %v5274
      %7509 = vmatprep.subr.bf16.mxu0 %v5281
      %7510 = vmatpush1.bf16.msra.mxu0 %v5280
      %7511 = vmatprep.subr.bf16.mxu0 %v5287
      %7512 = vmatpush1.bf16.msra.mxu0 %v5286
      %7513 = vmatprep.subr.bf16.mxu0 %v5293
      %7514 = vmatpush1.bf16.msra.mxu0 %v5292
      %7515 = vmatprep.subr.bf16.mxu0 %v5299
      %7516 = vmatpush1.bf16.msra.mxu0 %v5298
      %7517 = vmatprep.subr.bf16.mxu0 %v5305
      %7518 = vmatpush1.bf16.msra.mxu0 %v5304
      %7519 = vmatprep.subr.bf16.mxu0 %v5311
      %7520 = vmatpush1.bf16.msra.mxu0 %v5310
      %7521 = vmatprep.subr.bf16.mxu0 %v5317
      %7522 = vmatpush1.bf16.msra.mxu0 %v5316
      %7523 = vmatprep.subr.bf16.mxu0 %v5323
      %7524 = vmatpush1.bf16.msra.mxu0 %v5322
      %7525 = vmatprep.subr.bf16.mxu0 %v5329
      %7526 = vmatpush1.bf16.msra.mxu0 %v5328
      %7527 = vmatprep.subr.bf16.mxu0 %v5335
      %7528 = vmatpush1.bf16.msra.mxu0 %v5334
      %7529 = vmatprep.subr.bf16.mxu0 %v5341
      %7530 = vmatpush1.bf16.msra.mxu0 %v5340
      %7531 = vmatprep.mubr.bf16.mxu0 %v1588
      %7532 = vmatmul.mubr.bf16.gmra.mrb[0].mxu0 %v1586
      %v7533 = vpop.f32.mrb[0].mxu0
      %v7534 = vadd.f32 %v7493, %v7533
      %v7535 = vpop.f32.mrb[0].mxu0
      %v7536 = vadd.f32 %v7495, %v7535
      %v7537 = vpop.f32.mrb[0].mxu0
      %v7538 = vpop.f32.mrb[0].mxu0
      %7539 = vdwg.mxu0
      %7540 = vmatprep.subr.bf16.mxu0 %v5347
      %7541 = vmatpush1.bf16.msra.mxu0 %v5346
      %7542 = vmatprep.subr.bf16.mxu0 %v5353
      %7543 = vmatpush1.bf16.msra.mxu0 %v5352
      %7544 = vmatprep.subr.bf16.mxu0 %v5359
      %7545 = vmatpush1.bf16.msra.mxu0 %v5358
      %7546 = vmatprep.subr.bf16.mxu0 %v5365
      %7547 = vmatpush1.bf16.msra.mxu0 %v5364
      %7548 = vmatprep.subr.bf16.mxu0 %v5371
      %7549 = vmatpush1.bf16.msra.mxu0 %v5370
      %7550 = vmatprep.subr.bf16.mxu0 %v5377
      %7551 = vmatpush1.bf16.msra.mxu0 %v5376
      %7552 = vmatprep.subr.bf16.mxu0 %v5383
      %7553 = vmatpush1.bf16.msra.mxu0 %v5382
      %7554 = vmatprep.subr.bf16.mxu0 %v5389
      %7555 = vmatpush1.bf16.msra.mxu0 %v5388
      %7556 = vmatprep.subr.bf16.mxu0 %v5395
      %7557 = vmatpush1.bf16.msra.mxu0 %v5394
      %7558 = vmatprep.subr.bf16.mxu0 %v5401
      %7559 = vmatpush1.bf16.msra.mxu0 %v5400
      %7560 = vmatprep.subr.bf16.mxu0 %v5407
      %7561 = vmatpush1.bf16.msra.mxu0 %v5406
      %7562 = vmatprep.subr.bf16.mxu0 %v5413
      %7563 = vmatpush1.bf16.msra.mxu0 %v5412
      %7564 = vmatprep.subr.bf16.mxu0 %v5419
      %7565 = vmatpush1.bf16.msra.mxu0 %v5418
      %7566 = vmatprep.subr.bf16.mxu0 %v5425
      %7567 = vmatpush1.bf16.msra.mxu0 %v5424
      %7568 = vmatprep.subr.bf16.mxu0 %v5431
      %7569 = vmatpush1.bf16.msra.mxu0 %v5430
      %7570 = vmatprep.subr.bf16.mxu0 %v5437
      %7571 = vmatpush1.bf16.msra.mxu0 %v5436
      %7572 = vmatprep.mubr.bf16.mxu0 %v1604
      %7573 = vmatmul.mubr.bf16.gmra.mrb[0].mxu0 %v1596
      %v7574 = vpop.f32.mrb[0].mxu0
      %v7575 = vadd.f32 %v7534, %v7574
      %v7576 = vpop.f32.mrb[0].mxu0
      %v7577 = vadd.f32 %v7536, %v7576
      %v7578 = vpop.f32.mrb[0].mxu0
      %v7579 = vpop.f32.mrb[0].mxu0
      %7580 = vdwg.mxu0
      %7581 = vmatprep.subr.bf16.mxu0 %v5443
      %7582 = vmatpush1.bf16.msra.mxu0 %v5442
      %7583 = vmatprep.subr.bf16.mxu0 %v5449
      %7584 = vmatpush1.bf16.msra.mxu0 %v5448
      %7585 = vmatprep.subr.bf16.mxu0 %v5455
      %7586 = vmatpush1.bf16.msra.mxu0 %v5454
      %7587 = vmatprep.subr.bf16.mxu0 %v5461
      %7588 = vmatpush1.bf16.msra.mxu0 %v5460
      %7589 = vmatprep.subr.bf16.mxu0 %v5467
      %7590 = vmatpush1.bf16.msra.mxu0 %v5466
      %7591 = vmatprep.subr.bf16.mxu0 %v5473
      %7592 = vmatpush1.bf16.msra.mxu0 %v5472
      %7593 = vmatprep.subr.bf16.mxu0 %v5479
      %7594 = vmatpush1.bf16.msra.mxu0 %v5478
      %7595 = vmatprep.subr.bf16.mxu0 %v5485
      %7596 = vmatpush1.bf16.msra.mxu0 %v5484
      %7597 = vmatprep.subr.bf16.mxu0 %v5491
      %7598 = vmatpush1.bf16.msra.mxu0 %v5490
      %7599 = vmatprep.subr.bf16.mxu0 %v5497
      %7600 = vmatpush1.bf16.msra.mxu0 %v5496
      %7601 = vmatprep.subr.bf16.mxu0 %v5503
      %7602 = vmatpush1.bf16.msra.mxu0 %v5502
      %7603 = vmatprep.subr.bf16.mxu0 %v5509
      %7604 = vmatpush1.bf16.msra.mxu0 %v5508
      %7605 = vmatprep.subr.bf16.mxu0 %v5515
      %7606 = vmatpush1.bf16.msra.mxu0 %v5514
      %7607 = vmatprep.subr.bf16.mxu0 %v5521
      %7608 = vmatpush1.bf16.msra.mxu0 %v5520
      %7609 = vmatprep.subr.bf16.mxu0 %v5527
      %7610 = vmatpush1.bf16.msra.mxu0 %v5526
      %7611 = vmatprep.subr.bf16.mxu0 %v5533
      %7612 = vmatpush1.bf16.msra.mxu0 %v5532
      %7613 = vmatprep.mubr.bf16.mxu0 %v1605
      %7614 = vmatmul.mubr.bf16.gmra.mrb[0].mxu0 %v1603
      %v7615 = vpop.f32.mrb[0].mxu0
      %v7616 = vadd.f32 %v7575, %v7615
      %v7617 = vpop.f32.mrb[0].mxu0
      %v7618 = vadd.f32 %v7577, %v7617
      %v7619 = vpop.f32.mrb[0].mxu0
      %v7620 = vpop.f32.mrb[0].mxu0
      %7621 = vdwg.mxu0
      %7622 = vmatprep.subr.bf16.mxu0 %v5539
      %7623 = vmatpush1.bf16.msra.mxu0 %v5538
      %7624 = vmatprep.subr.bf16.mxu0 %v5545
      %7625 = vmatpush1.bf16.msra.mxu0 %v5544
      %7626 = vmatprep.subr.bf16.mxu0 %v5551
      %7627 = vmatpush1.bf16.msra.mxu0 %v5550
      %7628 = vmatprep.subr.bf16.mxu0 %v5557
      %7629 = vmatpush1.bf16.msra.mxu0 %v5556
      %7630 = vmatprep.subr.bf16.mxu0 %v5563
      %7631 = vmatpush1.bf16.msra.mxu0 %v5562
      %7632 = vmatprep.subr.bf16.mxu0 %v5569
      %7633 = vmatpush1.bf16.msra.mxu0 %v5568
      %7634 = vmatprep.subr.bf16.mxu0 %v5575
      %7635 = vmatpush1.bf16.msra.mxu0 %v5574
      %7636 = vmatprep.subr.bf16.mxu0 %v5581
      %7637 = vmatpush1.bf16.msra.mxu0 %v5580
      %7638 = vmatprep.subr.bf16.mxu0 %v5587
      %7639 = vmatpush1.bf16.msra.mxu0 %v5586
      %7640 = vmatprep.subr.bf16.mxu0 %v5593
      %7641 = vmatpush1.bf16.msra.mxu0 %v5592
      %7642 = vmatprep.subr.bf16.mxu0 %v5599
      %7643 = vmatpush1.bf16.msra.mxu0 %v5598
      %7644 = vmatprep.subr.bf16.mxu0 %v5605
      %7645 = vmatpush1.bf16.msra.mxu0 %v5604
      %7646 = vmatprep.subr.bf16.mxu0 %v5611
      %7647 = vmatpush1.bf16.msra.mxu0 %v5610
      %7648 = vmatprep.subr.bf16.mxu0 %v5617
      %7649 = vmatpush1.bf16.msra.mxu0 %v5616
      %7650 = vmatprep.subr.bf16.mxu0 %v5623
      %7651 = vmatpush1.bf16.msra.mxu0 %v5622
      %7652 = vmatprep.subr.bf16.mxu0 %v5629
      %7653 = vmatpush1.bf16.msra.mxu0 %v5628
      %7654 = vmatprep.mubr.bf16.mxu0 %v1621
      %7655 = vmatmul.mubr.bf16.gmra.mrb[0].mxu0 %v1613
      %v7656 = vpop.f32.mrb[0].mxu0
      %v7657 = vadd.f32 %v7616, %v7656
      %v7658 = vpop.f32.mrb[0].mxu0
      %v7659 = vadd.f32 %v7618, %v7658
      %v7660 = vpop.f32.mrb[0].mxu0
      %v7661 = vpop.f32.mrb[0].mxu0
      %7662 = vdwg.mxu0
      %7663 = vmatprep.subr.bf16.mxu0 %v5635
      %7664 = vmatpush1.bf16.msra.mxu0 %v5634
      %7665 = vmatprep.subr.bf16.mxu0 %v5641
      %7666 = vmatpush1.bf16.msra.mxu0 %v5640
      %7667 = vmatprep.subr.bf16.mxu0 %v5647
      %7668 = vmatpush1.bf16.msra.mxu0 %v5646
      %7669 = vmatprep.subr.bf16.mxu0 %v5653
      %7670 = vmatpush1.bf16.msra.mxu0 %v5652
      %7671 = vmatprep.subr.bf16.mxu0 %v5659
      %7672 = vmatpush1.bf16.msra.mxu0 %v5658
      %7673 = vmatprep.subr.bf16.mxu0 %v5665
      %7674 = vmatpush1.bf16.msra.mxu0 %v5664
      %7675 = vmatprep.subr.bf16.mxu0 %v5671
      %7676 = vmatpush1.bf16.msra.mxu0 %v5670
      %7677 = vmatprep.subr.bf16.mxu0 %v5677
      %7678 = vmatpush1.bf16.msra.mxu0 %v5676
      %7679 = vmatprep.subr.bf16.mxu0 %v5683
      %7680 = vmatpush1.bf16.msra.mxu0 %v5682
      %7681 = vmatprep.subr.bf16.mxu0 %v5689
      %7682 = vmatpush1.bf16.msra.mxu0 %v5688
      %7683 = vmatprep.subr.bf16.mxu0 %v5695
      %7684 = vmatpush1.bf16.msra.mxu0 %v5694
      %7685 = vmatprep.subr.bf16.mxu0 %v5701
      %7686 = vmatpush1.bf16.msra.mxu0 %v5700
      %7687 = vmatprep.subr.bf16.mxu0 %v5707
      %7688 = vmatpush1.bf16.msra.mxu0 %v5706
      %7689 = vmatprep.subr.bf16.mxu0 %v5713
      %7690 = vmatpush1.bf16.msra.mxu0 %v5712
      %7691 = vmatprep.subr.bf16.mxu0 %v5719
      %7692 = vmatpush1.bf16.msra.mxu0 %v5718
      %7693 = vmatprep.subr.bf16.mxu0 %v5725
      %7694 = vmatpush1.bf16.msra.mxu0 %v5724
      %7695 = vmatprep.mubr.bf16.mxu0 %v1622
      %7696 = vmatmul.mubr.bf16.gmra.mrb[0].mxu0 %v1620
      %v7697 = vpop.f32.mrb[0].mxu0
      %v7698 = vadd.f32 %v7657, %v7697
      %v7699 = vpop.f32.mrb[0].mxu0
      %v7700 = vadd.f32 %v7659, %v7699
      %v7701 = vpop.f32.mrb[0].mxu0
      %v7702 = vpop.f32.mrb[0].mxu0
      %7703 = vdwg.mxu0
      %7704 = vmatprep.subr.bf16.mxu0 %v5731
      %7705 = vmatpush1.bf16.msra.mxu0 %v5730
      %7706 = vmatprep.subr.bf16.mxu0 %v5737
      %7707 = vmatpush1.bf16.msra.mxu0 %v5736
      %7708 = vmatprep.subr.bf16.mxu0 %v5743
      %7709 = vmatpush1.bf16.msra.mxu0 %v5742
      %7710 = vmatprep.subr.bf16.mxu0 %v5749
      %7711 = vmatpush1.bf16.msra.mxu0 %v5748
      %7712 = vmatprep.subr.bf16.mxu0 %v5755
      %7713 = vmatpush1.bf16.msra.mxu0 %v5754
      %7714 = vmatprep.subr.bf16.mxu0 %v5761
      %7715 = vmatpush1.bf16.msra.mxu0 %v5760
      %7716 = vmatprep.subr.bf16.mxu0 %v5767
      %7717 = vmatpush1.bf16.msra.mxu0 %v5766
      %7718 = vmatprep.subr.bf16.mxu0 %v5773
      %7719 = vmatpush1.bf16.msra.mxu0 %v5772
      %7720 = vmatprep.subr.bf16.mxu0 %v5779
      %7721 = vmatpush1.bf16.msra.mxu0 %v5778
      %7722 = vmatprep.subr.bf16.mxu0 %v5785
      %7723 = vmatpush1.bf16.msra.mxu0 %v5784
      %7724 = vmatprep.subr.bf16.mxu0 %v5791
      %7725 = vmatpush1.bf16.msra.mxu0 %v5790
      %7726 = vmatprep.subr.bf16.mxu0 %v5797
      %7727 = vmatpush1.bf16.msra.mxu0 %v5796
      %7728 = vmatprep.subr.bf16.mxu0 %v5803
      %7729 = vmatpush1.bf16.msra.mxu0 %v5802
      %7730 = vmatprep.subr.bf16.mxu0 %v5809
      %7731 = vmatpush1.bf16.msra.mxu0 %v5808
      %7732 = vmatprep.subr.bf16.mxu0 %v5815
      %7733 = vmatpush1.bf16.msra.mxu0 %v5814
      %7734 = vmatprep.subr.bf16.mxu0 %v5821
      %7735 = vmatpush1.bf16.msra.mxu0 %v5820
      %7736 = vmatprep.mubr.bf16.mxu0 %v1638
      %7737 = vmatmul.mubr.bf16.gmra.mrb[0].mxu0 %v1630
      %v7738 = vpop.f32.mrb[0].mxu0
      %v7739 = vadd.f32 %v7698, %v7738
      %v7740 = vpop.f32.mrb[0].mxu0
      %v7741 = vadd.f32 %v7700, %v7740
      %v7742 = vpop.f32.mrb[0].mxu0
      %v7743 = vpop.f32.mrb[0].mxu0
      %7744 = vdwg.mxu0
      %7745 = vmatprep.subr.bf16.mxu0 %v5827
      %7746 = vmatpush1.bf16.msra.mxu0 %v5826
      %7747 = vmatprep.subr.bf16.mxu0 %v5833
      %7748 = vmatpush1.bf16.msra.mxu0 %v5832
      %7749 = vmatprep.subr.bf16.mxu0 %v5839
      %7750 = vmatpush1.bf16.msra.mxu0 %v5838
      %7751 = vmatprep.subr.bf16.mxu0 %v5845
      %7752 = vmatpush1.bf16.msra.mxu0 %v5844
      %7753 = vmatprep.subr.bf16.mxu0 %v5851
      %7754 = vmatpush1.bf16.msra.mxu0 %v5850
      %7755 = vmatprep.subr.bf16.mxu0 %v5857
      %7756 = vmatpush1.bf16.msra.mxu0 %v5856
      %7757 = vmatprep.subr.bf16.mxu0 %v5863
      %7758 = vmatpush1.bf16.msra.mxu0 %v5862
      %7759 = vmatprep.subr.bf16.mxu0 %v5869
      %7760 = vmatpush1.bf16.msra.mxu0 %v5868
      %7761 = vmatprep.subr.bf16.mxu0 %v5875
      %7762 = vmatpush1.bf16.msra.mxu0 %v5874
      %7763 = vmatprep.subr.bf16.mxu0 %v5881
      %7764 = vmatpush1.bf16.msra.mxu0 %v5880
      %7765 = vmatprep.subr.bf16.mxu0 %v5887
      %7766 = vmatpush1.bf16.msra.mxu0 %v5886
      %7767 = vmatprep.subr.bf16.mxu0 %v5893
      %7768 = vmatpush1.bf16.msra.mxu0 %v5892
      %7769 = vmatprep.subr.bf16.mxu0 %v5899
      %7770 = vmatpush1.bf16.msra.mxu0 %v5898
      %7771 = vmatprep.subr.bf16.mxu0 %v5905
      %7772 = vmatpush1.bf16.msra.mxu0 %v5904
      %7773 = vmatprep.subr.bf16.mxu0 %v5911
      %7774 = vmatpush1.bf16.msra.mxu0 %v5910
      %7775 = vmatprep.subr.bf16.mxu0 %v5917
      %7776 = vmatpush1.bf16.msra.mxu0 %v5916
      %7777 = vmatprep.mubr.bf16.mxu0 %v1639
      %7778 = vmatmul.mubr.bf16.gmra.mrb[0].mxu0 %v1637
      %v7779 = vpop.f32.mrb[0].mxu0
      %v7780 = vadd.f32 %v7739, %v7779
      %v7781 = vpop.f32.mrb[0].mxu0
      %v7782 = vadd.f32 %v7741, %v7781
      %v7783 = vpop.f32.mrb[0].mxu0
      %v7784 = vpop.f32.mrb[0].mxu0
      %7785 = vdwg.mxu0
      %7786 = vmatprep.subr.bf16.mxu0 %v5923
      %7787 = vmatpush1.bf16.msra.mxu0 %v5922
      %7788 = vmatprep.subr.bf16.mxu0 %v5929
      %7789 = vmatpush1.bf16.msra.mxu0 %v5928
      %7790 = vmatprep.subr.bf16.mxu0 %v5935
      %7791 = vmatpush1.bf16.msra.mxu0 %v5934
      %7792 = vmatprep.subr.bf16.mxu0 %v5941
      %7793 = vmatpush1.bf16.msra.mxu0 %v5940
      %7794 = vmatprep.subr.bf16.mxu0 %v5947
      %7795 = vmatpush1.bf16.msra.mxu0 %v5946
      %7796 = vmatprep.subr.bf16.mxu0 %v5953
      %7797 = vmatpush1.bf16.msra.mxu0 %v5952
      %7798 = vmatprep.subr.bf16.mxu0 %v5959
      %7799 = vmatpush1.bf16.msra.mxu0 %v5958
      %7800 = vmatprep.subr.bf16.mxu0 %v5965
      %7801 = vmatpush1.bf16.msra.mxu0 %v5964
      %7802 = vmatprep.subr.bf16.mxu0 %v5971
      %7803 = vmatpush1.bf16.msra.mxu0 %v5970
      %7804 = vmatprep.subr.bf16.mxu0 %v5977
      %7805 = vmatpush1.bf16.msra.mxu0 %v5976
      %7806 = vmatprep.subr.bf16.mxu0 %v5983
      %7807 = vmatpush1.bf16.msra.mxu0 %v5982
      %7808 = vmatprep.subr.bf16.mxu0 %v5989
      %7809 = vmatpush1.bf16.msra.mxu0 %v5988
      %7810 = vmatprep.subr.bf16.mxu0 %v5995
      %7811 = vmatpush1.bf16.msra.mxu0 %v5994
      %7812 = vmatprep.subr.bf16.mxu0 %v6001
      %7813 = vmatpush1.bf16.msra.mxu0 %v6000
      %7814 = vmatprep.subr.bf16.mxu0 %v6007
      %7815 = vmatpush1.bf16.msra.mxu0 %v6006
      %7816 = vmatprep.subr.bf16.mxu0 %v6013
      %7817 = vmatpush1.bf16.msra.mxu0 %v6012
      %7818 = vmatprep.mubr.bf16.mxu0 %v1655
      %7819 = vmatmul.mubr.bf16.gmra.mrb[0].mxu0 %v1647
      %v7820 = vpop.f32.mrb[0].mxu0
      %v7821 = vadd.f32 %v7780, %v7820
      %v7822 = vpop.f32.mrb[0].mxu0
      %v7823 = vadd.f32 %v7782, %v7822
      %v7824 = vpop.f32.mrb[0].mxu0
      %v7825 = vpop.f32.mrb[0].mxu0
      %7826 = vdwg.mxu0
      %7827 = vmatprep.subr.bf16.mxu0 %v6019
      %7828 = vmatpush1.bf16.msra.mxu0 %v6018
      %7829 = vmatprep.subr.bf16.mxu0 %v6025
      %7830 = vmatpush1.bf16.msra.mxu0 %v6024
      %7831 = vmatprep.subr.bf16.mxu0 %v6031
      %7832 = vmatpush1.bf16.msra.mxu0 %v6030
      %7833 = vmatprep.subr.bf16.mxu0 %v6037
      %7834 = vmatpush1.bf16.msra.mxu0 %v6036
      %7835 = vmatprep.subr.bf16.mxu0 %v6043
      %7836 = vmatpush1.bf16.msra.mxu0 %v6042
      %7837 = vmatprep.subr.bf16.mxu0 %v6049
      %7838 = vmatpush1.bf16.msra.mxu0 %v6048
      %7839 = vmatprep.subr.bf16.mxu0 %v6055
      %7840 = vmatpush1.bf16.msra.mxu0 %v6054
      %7841 = vmatprep.subr.bf16.mxu0 %v6061
      %7842 = vmatpush1.bf16.msra.mxu0 %v6060
      %7843 = vmatprep.subr.bf16.mxu0 %v6067
      %7844 = vmatpush1.bf16.msra.mxu0 %v6066
      %7845 = vmatprep.subr.bf16.mxu0 %v6073
      %7846 = vmatpush1.bf16.msra.mxu0 %v6072
      %7847 = vmatprep.subr.bf16.mxu0 %v6079
      %7848 = vmatpush1.bf16.msra.mxu0 %v6078
      %7849 = vmatprep.subr.bf16.mxu0 %v6085
      %7850 = vmatpush1.bf16.msra.mxu0 %v6084
      %7851 = vmatprep.subr.bf16.mxu0 %v6091
      %7852 = vmatpush1.bf16.msra.mxu0 %v6090
      %7853 = vmatprep.subr.bf16.mxu0 %v6097
      %7854 = vmatpush1.bf16.msra.mxu0 %v6096
      %7855 = vmatprep.subr.bf16.mxu0 %v6103
      %7856 = vmatpush1.bf16.msra.mxu0 %v6102
      %7857 = vmatprep.subr.bf16.mxu0 %v6109
      %7858 = vmatpush1.bf16.msra.mxu0 %v6108
      %7859 = vmatprep.mubr.bf16.mxu0 %v1656
      %7860 = vmatmul.mubr.bf16.gmra.mrb[0].mxu0 %v1654
      %v7861 = vpop.f32.mrb[0].mxu0
      %v7862 = vadd.f32 %v7821, %v7861
      %v7863 = vpop.f32.mrb[0].mxu0
      %v7864 = vadd.f32 %v7823, %v7863
      %v7865 = vpop.f32.mrb[0].mxu0
      %v7866 = vpop.f32.mrb[0].mxu0
      %7867 = vdwg.mxu0
      %7868 = vmatprep.subr.bf16.mxu0 %v6115
      %7869 = vmatpush1.bf16.msra.mxu0 %v6114
      %7870 = vmatprep.subr.bf16.mxu0 %v6121
      %7871 = vmatpush1.bf16.msra.mxu0 %v6120
      %7872 = vmatprep.subr.bf16.mxu0 %v6127
      %7873 = vmatpush1.bf16.msra.mxu0 %v6126
      %7874 = vmatprep.subr.bf16.mxu0 %v6133
      %7875 = vmatpush1.bf16.msra.mxu0 %v6132
      %7876 = vmatprep.subr.bf16.mxu0 %v6139
      %7877 = vmatpush1.bf16.msra.mxu0 %v6138
      %7878 = vmatprep.subr.bf16.mxu0 %v6145
      %7879 = vmatpush1.bf16.msra.mxu0 %v6144
      %7880 = vmatprep.subr.bf16.mxu0 %v6151
      %7881 = vmatpush1.bf16.msra.mxu0 %v6150
      %7882 = vmatprep.subr.bf16.mxu0 %v6157
      %7883 = vmatpush1.bf16.msra.mxu0 %v6156
      %7884 = vmatprep.subr.bf16.mxu0 %v6163
      %7885 = vmatpush1.bf16.msra.mxu0 %v6162
      %7886 = vmatprep.subr.bf16.mxu0 %v6169
      %7887 = vmatpush1.bf16.msra.mxu0 %v6168
      %7888 = vmatprep.subr.bf16.mxu0 %v6175
      %7889 = vmatpush1.bf16.msra.mxu0 %v6174
      %7890 = vmatprep.subr.bf16.mxu0 %v6181
      %7891 = vmatpush1.bf16.msra.mxu0 %v6180
      %7892 = vmatprep.subr.bf16.mxu0 %v6187
      %7893 = vmatpush1.bf16.msra.mxu0 %v6186
      %7894 = vmatprep.subr.bf16.mxu0 %v6193
      %7895 = vmatpush1.bf16.msra.mxu0 %v6192
      %7896 = vmatprep.subr.bf16.mxu0 %v6199
      %7897 = vmatpush1.bf16.msra.mxu0 %v6198
      %7898 = vmatprep.subr.bf16.mxu0 %v6205
      %7899 = vmatpush1.bf16.msra.mxu0 %v6204
      %7900 = vmatprep.mubr.bf16.mxu0 %v1672
      %7901 = vmatmul.mubr.bf16.gmra.mrb[0].mxu0 %v1664
      %v7902 = vpop.f32.mrb[0].mxu0
      %v7903 = vadd.f32 %v7862, %v7902
      %v7904 = vpop.f32.mrb[0].mxu0
      %v7905 = vadd.f32 %v7864, %v7904
      %v7906 = vpop.f32.mrb[0].mxu0
      %v7907 = vpop.f32.mrb[0].mxu0
      %7908 = vdwg.mxu0
      %7909 = vmatprep.subr.bf16.mxu0 %v6211
      %7910 = vmatpush1.bf16.msra.mxu0 %v6210
      %7911 = vmatprep.subr.bf16.mxu0 %v6217
      %7912 = vmatpush1.bf16.msra.mxu0 %v6216
      %7913 = vmatprep.subr.bf16.mxu0 %v6223
      %7914 = vmatpush1.bf16.msra.mxu0 %v6222
      %7915 = vmatprep.subr.bf16.mxu0 %v6229
      %7916 = vmatpush1.bf16.msra.mxu0 %v6228
      %7917 = vmatprep.subr.bf16.mxu0 %v6235
      %7918 = vmatpush1.bf16.msra.mxu0 %v6234
      %7919 = vmatprep.subr.bf16.mxu0 %v6241
      %7920 = vmatpush1.bf16.msra.mxu0 %v6240
      %7921 = vmatprep.subr.bf16.mxu0 %v6247
      %7922 = vmatpush1.bf16.msra.mxu0 %v6246
      %7923 = vmatprep.subr.bf16.mxu0 %v6253
      %7924 = vmatpush1.bf16.msra.mxu0 %v6252
      %7925 = vmatprep.subr.bf16.mxu0 %v6259
      %7926 = vmatpush1.bf16.msra.mxu0 %v6258
      %7927 = vmatprep.subr.bf16.mxu0 %v6265
      %7928 = vmatpush1.bf16.msra.mxu0 %v6264
      %7929 = vmatprep.subr.bf16.mxu0 %v6271
      %7930 = vmatpush1.bf16.msra.mxu0 %v6270
      %7931 = vmatprep.subr.bf16.mxu0 %v6277
      %7932 = vmatpush1.bf16.msra.mxu0 %v6276
      %7933 = vmatprep.subr.bf16.mxu0 %v6283
      %7934 = vmatpush1.bf16.msra.mxu0 %v6282
      %7935 = vmatprep.subr.bf16.mxu0 %v6289
      %7936 = vmatpush1.bf16.msra.mxu0 %v6288
      %7937 = vmatprep.subr.bf16.mxu0 %v6295
      %7938 = vmatpush1.bf16.msra.mxu0 %v6294
      %7939 = vmatprep.subr.bf16.mxu0 %v6301
      %7940 = vmatpush1.bf16.msra.mxu0 %v6300
      %7941 = vmatprep.mubr.bf16.mxu0 %v1673
      %7942 = vmatmul.mubr.bf16.gmra.mrb[0].mxu0 %v1671
      %v7943 = vpop.f32.mrb[0].mxu0
      %v7944 = vadd.f32 %v7903, %v7943
      %v7945 = vpop.f32.mrb[0].mxu0
      %v7946 = vadd.f32 %v7905, %v7945
      %v7947 = vpop.f32.mrb[0].mxu0
      %v7948 = vpop.f32.mrb[0].mxu0
      %7949 = vdwg.mxu0
      %7950 = vmatprep.subr.bf16.mxu0 %v5157
      %7951 = vmatpush1.bf16.msra.mxu0 %v5156
      %7952 = vmatprep.subr.bf16.mxu0 %v5163
      %7953 = vmatpush1.bf16.msra.mxu0 %v5162
      %7954 = vmatprep.subr.bf16.mxu0 %v5169
      %7955 = vmatpush1.bf16.msra.mxu0 %v5168
      %7956 = vmatprep.subr.bf16.mxu0 %v5175
      %7957 = vmatpush1.bf16.msra.mxu0 %v5174
      %7958 = vmatprep.subr.bf16.mxu0 %v5181
      %7959 = vmatpush1.bf16.msra.mxu0 %v5180
      %7960 = vmatprep.subr.bf16.mxu0 %v5187
      %7961 = vmatpush1.bf16.msra.mxu0 %v5186
      %7962 = vmatprep.subr.bf16.mxu0 %v5193
      %7963 = vmatpush1.bf16.msra.mxu0 %v5192
      %7964 = vmatprep.subr.bf16.mxu0 %v5199
      %7965 = vmatpush1.bf16.msra.mxu0 %v5198
      %7966 = vmatprep.subr.bf16.mxu0 %v5205
      %7967 = vmatpush1.bf16.msra.mxu0 %v5204
      %7968 = vmatprep.subr.bf16.mxu0 %v5211
      %7969 = vmatpush1.bf16.msra.mxu0 %v5210
      %7970 = vmatprep.subr.bf16.mxu0 %v5217
      %7971 = vmatpush1.bf16.msra.mxu0 %v5216
      %7972 = vmatprep.subr.bf16.mxu0 %v5223
      %7973 = vmatpush1.bf16.msra.mxu0 %v5222
      %7974 = vmatprep.subr.bf16.mxu0 %v5229
      %7975 = vmatpush1.bf16.msra.mxu0 %v5228
      %7976 = vmatprep.subr.bf16.mxu0 %v5235
      %7977 = vmatpush1.bf16.msra.mxu0 %v5234
      %7978 = vmatprep.subr.bf16.mxu0 %v5241
      %7979 = vmatpush1.bf16.msra.mxu0 %v5240
      %7980 = vmatprep.subr.bf16.mxu0 %v5247
      %7981 = vmatpush1.bf16.msra.mxu0 %v5246
      %7982 = vmatprep.mubr.bf16.mxu0 %v1587
      %7983 = vmatmul.mubr.bf16.gmra.mrb[0].mxu0 %v1579
      %v7984 = vpop.f32.mrb[0].mxu0
      %v7985 = vadd.f32 %v1547, %v7984
      %v7986 = vpop.f32.mrb[0].mxu0
      %v7987 = vadd.f32 %v1551, %v7986
      %v7988 = vpop.f32.mrb[0].mxu0
      %v7989 = vpop.f32.mrb[0].mxu0
      %7990 = vdwg.mxu0
      %7991 = vmatprep.subr.bf16.mxu0 %v5253
      %7992 = vmatpush1.bf16.msra.mxu0 %v5252
      %7993 = vmatprep.subr.bf16.mxu0 %v5259
      %7994 = vmatpush1.bf16.msra.mxu0 %v5258
      %7995 = vmatprep.subr.bf16.mxu0 %v5265
      %7996 = vmatpush1.bf16.msra.mxu0 %v5264
      %7997 = vmatprep.subr.bf16.mxu0 %v5271
      %7998 = vmatpush1.bf16.msra.mxu0 %v5270
      %7999 = vmatprep.subr.bf16.mxu0 %v5277
      %8000 = vmatpush1.bf16.msra.mxu0 %v5276
      %8001 = vmatprep.subr.bf16.mxu0 %v5283
      %8002 = vmatpush1.bf16.msra.mxu0 %v5282
      %8003 = vmatprep.subr.bf16.mxu0 %v5289
      %8004 = vmatpush1.bf16.msra.mxu0 %v5288
      %8005 = vmatprep.subr.bf16.mxu0 %v5295
      %8006 = vmatpush1.bf16.msra.mxu0 %v5294
      %8007 = vmatprep.subr.bf16.mxu0 %v5301
      %8008 = vmatpush1.bf16.msra.mxu0 %v5300
      %8009 = vmatprep.subr.bf16.mxu0 %v5307
      %8010 = vmatpush1.bf16.msra.mxu0 %v5306
      %8011 = vmatprep.subr.bf16.mxu0 %v5313
      %8012 = vmatpush1.bf16.msra.mxu0 %v5312
      %8013 = vmatprep.subr.bf16.mxu0 %v5319
      %8014 = vmatpush1.bf16.msra.mxu0 %v5318
      %8015 = vmatprep.subr.bf16.mxu0 %v5325
      %8016 = vmatpush1.bf16.msra.mxu0 %v5324
      %8017 = vmatprep.subr.bf16.mxu0 %v5331
      %8018 = vmatpush1.bf16.msra.mxu0 %v5330
      %8019 = vmatprep.subr.bf16.mxu0 %v5337
      %8020 = vmatpush1.bf16.msra.mxu0 %v5336
      %8021 = vmatprep.subr.bf16.mxu0 %v5343
      %8022 = vmatpush1.bf16.msra.mxu0 %v5342
      %8023 = vmatprep.mubr.bf16.mxu0 %v1588
      %8024 = vmatmul.mubr.bf16.gmra.mrb[0].mxu0 %v1586
      %v8025 = vpop.f32.mrb[0].mxu0
      %v8026 = vadd.f32 %v7985, %v8025
      %v8027 = vpop.f32.mrb[0].mxu0
      %v8028 = vadd.f32 %v7987, %v8027
      %v8029 = vpop.f32.mrb[0].mxu0
      %v8030 = vpop.f32.mrb[0].mxu0
      %8031 = vdwg.mxu0
      %8032 = vmatprep.subr.bf16.mxu0 %v5349
      %8033 = vmatpush1.bf16.msra.mxu0 %v5348
      %8034 = vmatprep.subr.bf16.mxu0 %v5355
      %8035 = vmatpush1.bf16.msra.mxu0 %v5354
      %8036 = vmatprep.subr.bf16.mxu0 %v5361
      %8037 = vmatpush1.bf16.msra.mxu0 %v5360
      %8038 = vmatprep.subr.bf16.mxu0 %v5367
      %8039 = vmatpush1.bf16.msra.mxu0 %v5366
      %8040 = vmatprep.subr.bf16.mxu0 %v5373
      %8041 = vmatpush1.bf16.msra.mxu0 %v5372
      %8042 = vmatprep.subr.bf16.mxu0 %v5379
      %8043 = vmatpush1.bf16.msra.mxu0 %v5378
      %8044 = vmatprep.subr.bf16.mxu0 %v5385
      %8045 = vmatpush1.bf16.msra.mxu0 %v5384
      %8046 = vmatprep.subr.bf16.mxu0 %v5391
      %8047 = vmatpush1.bf16.msra.mxu0 %v5390
      %8048 = vmatprep.subr.bf16.mxu0 %v5397
      %8049 = vmatpush1.bf16.msra.mxu0 %v5396
      %8050 = vmatprep.subr.bf16.mxu0 %v5403
      %8051 = vmatpush1.bf16.msra.mxu0 %v5402
      %8052 = vmatprep.subr.bf16.mxu0 %v5409
      %8053 = vmatpush1.bf16.msra.mxu0 %v5408
      %8054 = vmatprep.subr.bf16.mxu0 %v5415
      %8055 = vmatpush1.bf16.msra.mxu0 %v5414
      %8056 = vmatprep.subr.bf16.mxu0 %v5421
      %8057 = vmatpush1.bf16.msra.mxu0 %v5420
      %8058 = vmatprep.subr.bf16.mxu0 %v5427
      %8059 = vmatpush1.bf16.msra.mxu0 %v5426
      %8060 = vmatprep.subr.bf16.mxu0 %v5433
      %8061 = vmatpush1.bf16.msra.mxu0 %v5432
      %8062 = vmatprep.subr.bf16.mxu0 %v5439
      %8063 = vmatpush1.bf16.msra.mxu0 %v5438
      %8064 = vmatprep.mubr.bf16.mxu0 %v1604
      %8065 = vmatmul.mubr.bf16.gmra.mrb[0].mxu0 %v1596
      %v8066 = vpop.f32.mrb[0].mxu0
      %v8067 = vadd.f32 %v8026, %v8066
      %v8068 = vpop.f32.mrb[0].mxu0
      %v8069 = vadd.f32 %v8028, %v8068
      %v8070 = vpop.f32.mrb[0].mxu0
      %v8071 = vpop.f32.mrb[0].mxu0
      %8072 = vdwg.mxu0
      %8073 = vmatprep.subr.bf16.mxu0 %v5445
      %8074 = vmatpush1.bf16.msra.mxu0 %v5444
      %8075 = vmatprep.subr.bf16.mxu0 %v5451
      %8076 = vmatpush1.bf16.msra.mxu0 %v5450
      %8077 = vmatprep.subr.bf16.mxu0 %v5457
      %8078 = vmatpush1.bf16.msra.mxu0 %v5456
      %8079 = vmatprep.subr.bf16.mxu0 %v5463
      %8080 = vmatpush1.bf16.msra.mxu0 %v5462
      %8081 = vmatprep.subr.bf16.mxu0 %v5469
      %8082 = vmatpush1.bf16.msra.mxu0 %v5468
      %8083 = vmatprep.subr.bf16.mxu0 %v5475
      %8084 = vmatpush1.bf16.msra.mxu0 %v5474
      %8085 = vmatprep.subr.bf16.mxu0 %v5481
      %8086 = vmatpush1.bf16.msra.mxu0 %v5480
      %8087 = vmatprep.subr.bf16.mxu0 %v5487
      %8088 = vmatpush1.bf16.msra.mxu0 %v5486
      %8089 = vmatprep.subr.bf16.mxu0 %v5493
      %8090 = vmatpush1.bf16.msra.mxu0 %v5492
      %8091 = vmatprep.subr.bf16.mxu0 %v5499
      %8092 = vmatpush1.bf16.msra.mxu0 %v5498
      %8093 = vmatprep.subr.bf16.mxu0 %v5505
      %8094 = vmatpush1.bf16.msra.mxu0 %v5504
      %8095 = vmatprep.subr.bf16.mxu0 %v5511
      %8096 = vmatpush1.bf16.msra.mxu0 %v5510
      %8097 = vmatprep.subr.bf16.mxu0 %v5517
      %8098 = vmatpush1.bf16.msra.mxu0 %v5516
      %8099 = vmatprep.subr.bf16.mxu0 %v5523
      %8100 = vmatpush1.bf16.msra.mxu0 %v5522
      %8101 = vmatprep.subr.bf16.mxu0 %v5529
      %8102 = vmatpush1.bf16.msra.mxu0 %v5528
      %8103 = vmatprep.subr.bf16.mxu0 %v5535
      %8104 = vmatpush1.bf16.msra.mxu0 %v5534
      %8105 = vmatprep.mubr.bf16.mxu0 %v1605
      %8106 = vmatmul.mubr.bf16.gmra.mrb[0].mxu0 %v1603
      %v8107 = vpop.f32.mrb[0].mxu0
      %v8108 = vadd.f32 %v8067, %v8107
      %v8109 = vpop.f32.mrb[0].mxu0
      %v8110 = vadd.f32 %v8069, %v8109
      %v8111 = vpop.f32.mrb[0].mxu0
      %v8112 = vpop.f32.mrb[0].mxu0
      %8113 = vdwg.mxu0
      %8114 = vmatprep.subr.bf16.mxu0 %v5541
      %8115 = vmatpush1.bf16.msra.mxu0 %v5540
      %8116 = vmatprep.subr.bf16.mxu0 %v5547
      %8117 = vmatpush1.bf16.msra.mxu0 %v5546
      %8118 = vmatprep.subr.bf16.mxu0 %v5553
      %8119 = vmatpush1.bf16.msra.mxu0 %v5552
      %8120 = vmatprep.subr.bf16.mxu0 %v5559
      %8121 = vmatpush1.bf16.msra.mxu0 %v5558
      %8122 = vmatprep.subr.bf16.mxu0 %v5565
      %8123 = vmatpush1.bf16.msra.mxu0 %v5564
      %8124 = vmatprep.subr.bf16.mxu0 %v5571
      %8125 = vmatpush1.bf16.msra.mxu0 %v5570
      %8126 = vmatprep.subr.bf16.mxu0 %v5577
      %8127 = vmatpush1.bf16.msra.mxu0 %v5576
      %8128 = vmatprep.subr.bf16.mxu0 %v5583
      %8129 = vmatpush1.bf16.msra.mxu0 %v5582
      %8130 = vmatprep.subr.bf16.mxu0 %v5589
      %8131 = vmatpush1.bf16.msra.mxu0 %v5588
      %8132 = vmatprep.subr.bf16.mxu0 %v5595
      %8133 = vmatpush1.bf16.msra.mxu0 %v5594
      %8134 = vmatprep.subr.bf16.mxu0 %v5601
      %8135 = vmatpush1.bf16.msra.mxu0 %v5600
      %8136 = vmatprep.subr.bf16.mxu0 %v5607
      %8137 = vmatpush1.bf16.msra.mxu0 %v5606
      %8138 = vmatprep.subr.bf16.mxu0 %v5613
      %8139 = vmatpush1.bf16.msra.mxu0 %v5612
      %8140 = vmatprep.subr.bf16.mxu0 %v5619
      %8141 = vmatpush1.bf16.msra.mxu0 %v5618
      %8142 = vmatprep.subr.bf16.mxu0 %v5625
      %8143 = vmatpush1.bf16.msra.mxu0 %v5624
      %8144 = vmatprep.subr.bf16.mxu0 %v5631
      %8145 = vmatpush1.bf16.msra.mxu0 %v5630
      %8146 = vmatprep.mubr.bf16.mxu0 %v1621
      %8147 = vmatmul.mubr.bf16.gmra.mrb[0].mxu0 %v1613
      %v8148 = vpop.f32.mrb[0].mxu0
      %v8149 = vadd.f32 %v8108, %v8148
      %v8150 = vpop.f32.mrb[0].mxu0
      %v8151 = vadd.f32 %v8110, %v8150
      %v8152 = vpop.f32.mrb[0].mxu0
      %v8153 = vpop.f32.mrb[0].mxu0
      %8154 = vdwg.mxu0
      %8155 = vmatprep.subr.bf16.mxu0 %v5637
      %8156 = vmatpush1.bf16.msra.mxu0 %v5636
      %8157 = vmatprep.subr.bf16.mxu0 %v5643
      %8158 = vmatpush1.bf16.msra.mxu0 %v5642
      %8159 = vmatprep.subr.bf16.mxu0 %v5649
      %8160 = vmatpush1.bf16.msra.mxu0 %v5648
      %8161 = vmatprep.subr.bf16.mxu0 %v5655
      %8162 = vmatpush1.bf16.msra.mxu0 %v5654
      %8163 = vmatprep.subr.bf16.mxu0 %v5661
      %8164 = vmatpush1.bf16.msra.mxu0 %v5660
      %8165 = vmatprep.subr.bf16.mxu0 %v5667
      %8166 = vmatpush1.bf16.msra.mxu0 %v5666
      %8167 = vmatprep.subr.bf16.mxu0 %v5673
      %8168 = vmatpush1.bf16.msra.mxu0 %v5672
      %8169 = vmatprep.subr.bf16.mxu0 %v5679
      %8170 = vmatpush1.bf16.msra.mxu0 %v5678
      %8171 = vmatprep.subr.bf16.mxu0 %v5685
      %8172 = vmatpush1.bf16.msra.mxu0 %v5684
      %8173 = vmatprep.subr.bf16.mxu0 %v5691
      %8174 = vmatpush1.bf16.msra.mxu0 %v5690
      %8175 = vmatprep.subr.bf16.mxu0 %v5697
      %8176 = vmatpush1.bf16.msra.mxu0 %v5696
      %8177 = vmatprep.subr.bf16.mxu0 %v5703
      %8178 = vmatpush1.bf16.msra.mxu0 %v5702
      %8179 = vmatprep.subr.bf16.mxu0 %v5709
      %8180 = vmatpush1.bf16.msra.mxu0 %v5708
      %8181 = vmatprep.subr.bf16.mxu0 %v5715
      %8182 = vmatpush1.bf16.msra.mxu0 %v5714
      %8183 = vmatprep.subr.bf16.mxu0 %v5721
      %8184 = vmatpush1.bf16.msra.mxu0 %v5720
      %8185 = vmatprep.subr.bf16.mxu0 %v5727
      %8186 = vmatpush1.bf16.msra.mxu0 %v5726
      %8187 = vmatprep.mubr.bf16.mxu0 %v1622
      %8188 = vmatmul.mubr.bf16.gmra.mrb[0].mxu0 %v1620
      %v8189 = vpop.f32.mrb[0].mxu0
      %v8190 = vadd.f32 %v8149, %v8189
      %v8191 = vpop.f32.mrb[0].mxu0
      %v8192 = vadd.f32 %v8151, %v8191
      %v8193 = vpop.f32.mrb[0].mxu0
      %v8194 = vpop.f32.mrb[0].mxu0
      %8195 = vdwg.mxu0
      %8196 = vmatprep.subr.bf16.mxu0 %v5733
      %8197 = vmatpush1.bf16.msra.mxu0 %v5732
      %8198 = vmatprep.subr.bf16.mxu0 %v5739
      %8199 = vmatpush1.bf16.msra.mxu0 %v5738
      %8200 = vmatprep.subr.bf16.mxu0 %v5745
      %8201 = vmatpush1.bf16.msra.mxu0 %v5744
      %8202 = vmatprep.subr.bf16.mxu0 %v5751
      %8203 = vmatpush1.bf16.msra.mxu0 %v5750
      %8204 = vmatprep.subr.bf16.mxu0 %v5757
      %8205 = vmatpush1.bf16.msra.mxu0 %v5756
      %8206 = vmatprep.subr.bf16.mxu0 %v5763
      %8207 = vmatpush1.bf16.msra.mxu0 %v5762
      %8208 = vmatprep.subr.bf16.mxu0 %v5769
      %8209 = vmatpush1.bf16.msra.mxu0 %v5768
      %8210 = vmatprep.subr.bf16.mxu0 %v5775
      %8211 = vmatpush1.bf16.msra.mxu0 %v5774
      %8212 = vmatprep.subr.bf16.mxu0 %v5781
      %8213 = vmatpush1.bf16.msra.mxu0 %v5780
      %8214 = vmatprep.subr.bf16.mxu0 %v5787
      %8215 = vmatpush1.bf16.msra.mxu0 %v5786
      %8216 = vmatprep.subr.bf16.mxu0 %v5793
      %8217 = vmatpush1.bf16.msra.mxu0 %v5792
      %8218 = vmatprep.subr.bf16.mxu0 %v5799
      %8219 = vmatpush1.bf16.msra.mxu0 %v5798
      %8220 = vmatprep.subr.bf16.mxu0 %v5805
      %8221 = vmatpush1.bf16.msra.mxu0 %v5804
      %8222 = vmatprep.subr.bf16.mxu0 %v5811
      %8223 = vmatpush1.bf16.msra.mxu0 %v5810
      %8224 = vmatprep.subr.bf16.mxu0 %v5817
      %8225 = vmatpush1.bf16.msra.mxu0 %v5816
      %8226 = vmatprep.subr.bf16.mxu0 %v5823
      %8227 = vmatpush1.bf16.msra.mxu0 %v5822
      %8228 = vmatprep.mubr.bf16.mxu0 %v1638
      %8229 = vmatmul.mubr.bf16.gmra.mrb[0].mxu0 %v1630
      %v8230 = vpop.f32.mrb[0].mxu0
      %v8231 = vadd.f32 %v8190, %v8230
      %v8232 = vpop.f32.mrb[0].mxu0
      %v8233 = vadd.f32 %v8192, %v8232
      %v8234 = vpop.f32.mrb[0].mxu0
      %v8235 = vpop.f32.mrb[0].mxu0
      %8236 = vdwg.mxu0
      %8237 = vmatprep.subr.bf16.mxu0 %v5829
      %8238 = vmatpush1.bf16.msra.mxu0 %v5828
      %8239 = vmatprep.subr.bf16.mxu0 %v5835
      %8240 = vmatpush1.bf16.msra.mxu0 %v5834
      %8241 = vmatprep.subr.bf16.mxu0 %v5841
      %8242 = vmatpush1.bf16.msra.mxu0 %v5840
      %8243 = vmatprep.subr.bf16.mxu0 %v5847
      %8244 = vmatpush1.bf16.msra.mxu0 %v5846
      %8245 = vmatprep.subr.bf16.mxu0 %v5853
      %8246 = vmatpush1.bf16.msra.mxu0 %v5852
      %8247 = vmatprep.subr.bf16.mxu0 %v5859
      %8248 = vmatpush1.bf16.msra.mxu0 %v5858
      %8249 = vmatprep.subr.bf16.mxu0 %v5865
      %8250 = vmatpush1.bf16.msra.mxu0 %v5864
      %8251 = vmatprep.subr.bf16.mxu0 %v5871
      %8252 = vmatpush1.bf16.msra.mxu0 %v5870
      %8253 = vmatprep.subr.bf16.mxu0 %v5877
      %8254 = vmatpush1.bf16.msra.mxu0 %v5876
      %8255 = vmatprep.subr.bf16.mxu0 %v5883
      %8256 = vmatpush1.bf16.msra.mxu0 %v5882
      %8257 = vmatprep.subr.bf16.mxu0 %v5889
      %8258 = vmatpush1.bf16.msra.mxu0 %v5888
      %8259 = vmatprep.subr.bf16.mxu0 %v5895
      %8260 = vmatpush1.bf16.msra.mxu0 %v5894
      %8261 = vmatprep.subr.bf16.mxu0 %v5901
      %8262 = vmatpush1.bf16.msra.mxu0 %v5900
      %8263 = vmatprep.subr.bf16.mxu0 %v5907
      %8264 = vmatpush1.bf16.msra.mxu0 %v5906
      %8265 = vmatprep.subr.bf16.mxu0 %v5913
      %8266 = vmatpush1.bf16.msra.mxu0 %v5912
      %8267 = vmatprep.subr.bf16.mxu0 %v5919
      %8268 = vmatpush1.bf16.msra.mxu0 %v5918
      %8269 = vmatprep.mubr.bf16.mxu0 %v1639
      %8270 = vmatmul.mubr.bf16.gmra.mrb[0].mxu0 %v1637
      %v8271 = vpop.f32.mrb[0].mxu0
      %v8272 = vadd.f32 %v8231, %v8271
      %v8273 = vpop.f32.mrb[0].mxu0
      %v8274 = vadd.f32 %v8233, %v8273
      %v8275 = vpop.f32.mrb[0].mxu0
      %v8276 = vpop.f32.mrb[0].mxu0
      %8277 = vdwg.mxu0
      %8278 = vmatprep.subr.bf16.mxu0 %v5925
      %8279 = vmatpush1.bf16.msra.mxu0 %v5924
      %8280 = vmatprep.subr.bf16.mxu0 %v5931
      %8281 = vmatpush1.bf16.msra.mxu0 %v5930
      %8282 = vmatprep.subr.bf16.mxu0 %v5937
      %8283 = vmatpush1.bf16.msra.mxu0 %v5936
      %8284 = vmatprep.subr.bf16.mxu0 %v5943
      %8285 = vmatpush1.bf16.msra.mxu0 %v5942
      %8286 = vmatprep.subr.bf16.mxu0 %v5949
      %8287 = vmatpush1.bf16.msra.mxu0 %v5948
      %8288 = vmatprep.subr.bf16.mxu0 %v5955
      %8289 = vmatpush1.bf16.msra.mxu0 %v5954
      %8290 = vmatprep.subr.bf16.mxu0 %v5961
      %8291 = vmatpush1.bf16.msra.mxu0 %v5960
      %8292 = vmatprep.subr.bf16.mxu0 %v5967
      %8293 = vmatpush1.bf16.msra.mxu0 %v5966
      %8294 = vmatprep.subr.bf16.mxu0 %v5973
      %8295 = vmatpush1.bf16.msra.mxu0 %v5972
      %8296 = vmatprep.subr.bf16.mxu0 %v5979
      %8297 = vmatpush1.bf16.msra.mxu0 %v5978
      %8298 = vmatprep.subr.bf16.mxu0 %v5985
      %8299 = vmatpush1.bf16.msra.mxu0 %v5984
      %8300 = vmatprep.subr.bf16.mxu0 %v5991
      %8301 = vmatpush1.bf16.msra.mxu0 %v5990
      %8302 = vmatprep.subr.bf16.mxu0 %v5997
      %8303 = vmatpush1.bf16.msra.mxu0 %v5996
      %8304 = vmatprep.subr.bf16.mxu0 %v6003
      %8305 = vmatpush1.bf16.msra.mxu0 %v6002
      %8306 = vmatprep.subr.bf16.mxu0 %v6009
      %8307 = vmatpush1.bf16.msra.mxu0 %v6008
      %8308 = vmatprep.subr.bf16.mxu0 %v6015
      %8309 = vmatpush1.bf16.msra.mxu0 %v6014
      %8310 = vmatprep.mubr.bf16.mxu0 %v1655
      %8311 = vmatmul.mubr.bf16.gmra.mrb[0].mxu0 %v1647
      %v8312 = vpop.f32.mrb[0].mxu0
      %v8313 = vadd.f32 %v8272, %v8312
      %v8314 = vpop.f32.mrb[0].mxu0
      %v8315 = vadd.f32 %v8274, %v8314
      %v8316 = vpop.f32.mrb[0].mxu0
      %v8317 = vpop.f32.mrb[0].mxu0
      %8318 = vdwg.mxu0
      %8319 = vmatprep.subr.bf16.mxu0 %v6021
      %8320 = vmatpush1.bf16.msra.mxu0 %v6020
      %8321 = vmatprep.subr.bf16.mxu0 %v6027
      %8322 = vmatpush1.bf16.msra.mxu0 %v6026
      %8323 = vmatprep.subr.bf16.mxu0 %v6033
      %8324 = vmatpush1.bf16.msra.mxu0 %v6032
      %8325 = vmatprep.subr.bf16.mxu0 %v6039
      %8326 = vmatpush1.bf16.msra.mxu0 %v6038
      %8327 = vmatprep.subr.bf16.mxu0 %v6045
      %8328 = vmatpush1.bf16.msra.mxu0 %v6044
      %8329 = vmatprep.subr.bf16.mxu0 %v6051
      %8330 = vmatpush1.bf16.msra.mxu0 %v6050
      %8331 = vmatprep.subr.bf16.mxu0 %v6057
      %8332 = vmatpush1.bf16.msra.mxu0 %v6056
      %8333 = vmatprep.subr.bf16.mxu0 %v6063
      %8334 = vmatpush1.bf16.msra.mxu0 %v6062
      %8335 = vmatprep.subr.bf16.mxu0 %v6069
      %8336 = vmatpush1.bf16.msra.mxu0 %v6068
      %8337 = vmatprep.subr.bf16.mxu0 %v6075
      %8338 = vmatpush1.bf16.msra.mxu0 %v6074
      %8339 = vmatprep.subr.bf16.mxu0 %v6081
      %8340 = vmatpush1.bf16.msra.mxu0 %v6080
      %8341 = vmatprep.subr.bf16.mxu0 %v6087
      %8342 = vmatpush1.bf16.msra.mxu0 %v6086
      %8343 = vmatprep.subr.bf16.mxu0 %v6093
      %8344 = vmatpush1.bf16.msra.mxu0 %v6092
      %8345 = vmatprep.subr.bf16.mxu0 %v6099
      %8346 = vmatpush1.bf16.msra.mxu0 %v6098
      %8347 = vmatprep.subr.bf16.mxu0 %v6105
      %8348 = vmatpush1.bf16.msra.mxu0 %v6104
      %8349 = vmatprep.subr.bf16.mxu0 %v6111
      %8350 = vmatpush1.bf16.msra.mxu0 %v6110
      %8351 = vmatprep.mubr.bf16.mxu0 %v1656
      %8352 = vmatmul.mubr.bf16.gmra.mrb[0].mxu0 %v1654
      %v8353 = vpop.f32.mrb[0].mxu0
      %v8354 = vadd.f32 %v8313, %v8353
      %v8355 = vpop.f32.mrb[0].mxu0
      %v8356 = vadd.f32 %v8315, %v8355
      %v8357 = vpop.f32.mrb[0].mxu0
      %v8358 = vpop.f32.mrb[0].mxu0
      %8359 = vdwg.mxu0
      %8360 = vmatprep.subr.bf16.mxu0 %v6117
      %8361 = vmatpush1.bf16.msra.mxu0 %v6116
      %8362 = vmatprep.subr.bf16.mxu0 %v6123
      %8363 = vmatpush1.bf16.msra.mxu0 %v6122
      %8364 = vmatprep.subr.bf16.mxu0 %v6129
      %8365 = vmatpush1.bf16.msra.mxu0 %v6128
      %8366 = vmatprep.subr.bf16.mxu0 %v6135
      %8367 = vmatpush1.bf16.msra.mxu0 %v6134
      %8368 = vmatprep.subr.bf16.mxu0 %v6141
      %8369 = vmatpush1.bf16.msra.mxu0 %v6140
      %8370 = vmatprep.subr.bf16.mxu0 %v6147
      %8371 = vmatpush1.bf16.msra.mxu0 %v6146
      %8372 = vmatprep.subr.bf16.mxu0 %v6153
      %8373 = vmatpush1.bf16.msra.mxu0 %v6152
      %8374 = vmatprep.subr.bf16.mxu0 %v6159
      %8375 = vmatpush1.bf16.msra.mxu0 %v6158
      %8376 = vmatprep.subr.bf16.mxu0 %v6165
      %8377 = vmatpush1.bf16.msra.mxu0 %v6164
      %8378 = vmatprep.subr.bf16.mxu0 %v6171
      %8379 = vmatpush1.bf16.msra.mxu0 %v6170
      %8380 = vmatprep.subr.bf16.mxu0 %v6177
      %8381 = vmatpush1.bf16.msra.mxu0 %v6176
      %8382 = vmatprep.subr.bf16.mxu0 %v6183
      %8383 = vmatpush1.bf16.msra.mxu0 %v6182
      %8384 = vmatprep.subr.bf16.mxu0 %v6189
      %8385 = vmatpush1.bf16.msra.mxu0 %v6188
      %8386 = vmatprep.subr.bf16.mxu0 %v6195
      %8387 = vmatpush1.bf16.msra.mxu0 %v6194
      %8388 = vmatprep.subr.bf16.mxu0 %v6201
      %8389 = vmatpush1.bf16.msra.mxu0 %v6200
      %8390 = vmatprep.subr.bf16.mxu0 %v6207
      %8391 = vmatpush1.bf16.msra.mxu0 %v6206
      %8392 = vmatprep.mubr.bf16.mxu0 %v1672
      %8393 = vmatmul.mubr.bf16.gmra.mrb[0].mxu0 %v1664
      %v8394 = vpop.f32.mrb[0].mxu0
      %v8395 = vadd.f32 %v8354, %v8394
      %v8396 = vpop.f32.mrb[0].mxu0
      %v8397 = vadd.f32 %v8356, %v8396
      %v8398 = vpop.f32.mrb[0].mxu0
      %v8399 = vpop.f32.mrb[0].mxu0
      %8400 = vdwg.mxu0
      %8401 = vmatprep.subr.bf16.mxu0 %v6213
      %8402 = vmatpush1.bf16.msra.mxu0 %v6212
      %8403 = vmatprep.subr.bf16.mxu0 %v6219
      %8404 = vmatpush1.bf16.msra.mxu0 %v6218
      %8405 = vmatprep.subr.bf16.mxu0 %v6225
      %8406 = vmatpush1.bf16.msra.mxu0 %v6224
      %8407 = vmatprep.subr.bf16.mxu0 %v6231
      %8408 = vmatpush1.bf16.msra.mxu0 %v6230
      %8409 = vmatprep.subr.bf16.mxu0 %v6237
      %8410 = vmatpush1.bf16.msra.mxu0 %v6236
      %8411 = vmatprep.subr.bf16.mxu0 %v6243
      %8412 = vmatpush1.bf16.msra.mxu0 %v6242
      %8413 = vmatprep.subr.bf16.mxu0 %v6249
      %8414 = vmatpush1.bf16.msra.mxu0 %v6248
      %8415 = vmatprep.subr.bf16.mxu0 %v6255
      %8416 = vmatpush1.bf16.msra.mxu0 %v6254
      %8417 = vmatprep.subr.bf16.mxu0 %v6261
      %8418 = vmatpush1.bf16.msra.mxu0 %v6260
      %8419 = vmatprep.subr.bf16.mxu0 %v6267
      %8420 = vmatpush1.bf16.msra.mxu0 %v6266
      %8421 = vmatprep.subr.bf16.mxu0 %v6273
      %8422 = vmatpush1.bf16.msra.mxu0 %v6272
      %8423 = vmatprep.subr.bf16.mxu0 %v6279
      %8424 = vmatpush1.bf16.msra.mxu0 %v6278
      %8425 = vmatprep.subr.bf16.mxu0 %v6285
      %8426 = vmatpush1.bf16.msra.mxu0 %v6284
      %8427 = vmatprep.subr.bf16.mxu0 %v6291
      %8428 = vmatpush1.bf16.msra.mxu0 %v6290
      %8429 = vmatprep.subr.bf16.mxu0 %v6297
      %8430 = vmatpush1.bf16.msra.mxu0 %v6296
      %8431 = vmatprep.subr.bf16.mxu0 %v6303
      %8432 = vmatpush1.bf16.msra.mxu0 %v6302
      %8433 = vmatprep.mubr.bf16.mxu0 %v1673
      %8434 = vmatmul.mubr.bf16.gmra.mrb[0].mxu0 %v1671
      %v8435 = vpop.f32.mrb[0].mxu0
      %v8436 = vadd.f32 %v8395, %v8435
      %v8437 = vpop.f32.mrb[0].mxu0
      %v8438 = vadd.f32 %v8397, %v8437
      %v8439 = vpop.f32.mrb[0].mxu0
      %v8440 = vpop.f32.mrb[0].mxu0
      %8441 = vdwg.mxu0
      %8442 = vmatprep.subr.bf16.mxu0 %v5159
      %8443 = vmatpush1.bf16.msra.mxu0 %v5158
      %8444 = vmatprep.subr.bf16.mxu0 %v5165
      %8445 = vmatpush1.bf16.msra.mxu0 %v5164
      %8446 = vmatprep.subr.bf16.mxu0 %v5171
      %8447 = vmatpush1.bf16.msra.mxu0 %v5170
      %8448 = vmatprep.subr.bf16.mxu0 %v5177
      %8449 = vmatpush1.bf16.msra.mxu0 %v5176
      %8450 = vmatprep.subr.bf16.mxu0 %v5183
      %8451 = vmatpush1.bf16.msra.mxu0 %v5182
      %8452 = vmatprep.subr.bf16.mxu0 %v5189
      %8453 = vmatpush1.bf16.msra.mxu0 %v5188
      %8454 = vmatprep.subr.bf16.mxu0 %v5195
      %8455 = vmatpush1.bf16.msra.mxu0 %v5194
      %8456 = vmatprep.subr.bf16.mxu0 %v5201
      %8457 = vmatpush1.bf16.msra.mxu0 %v5200
      %8458 = vmatprep.subr.bf16.mxu0 %v5207
      %8459 = vmatpush1.bf16.msra.mxu0 %v5206
      %8460 = vmatprep.subr.bf16.mxu0 %v5213
      %8461 = vmatpush1.bf16.msra.mxu0 %v5212
      %8462 = vmatprep.subr.bf16.mxu0 %v5219
      %8463 = vmatpush1.bf16.msra.mxu0 %v5218
      %8464 = vmatprep.subr.bf16.mxu0 %v5225
      %8465 = vmatpush1.bf16.msra.mxu0 %v5224
      %8466 = vmatprep.subr.bf16.mxu0 %v5231
      %8467 = vmatpush1.bf16.msra.mxu0 %v5230
      %8468 = vmatprep.subr.bf16.mxu0 %v5237
      %8469 = vmatpush1.bf16.msra.mxu0 %v5236
      %8470 = vmatprep.subr.bf16.mxu0 %v5243
      %8471 = vmatpush1.bf16.msra.mxu0 %v5242
      %8472 = vmatprep.subr.bf16.mxu0 %v5249
      %8473 = vmatpush1.bf16.msra.mxu0 %v5248
      %8474 = vmatprep.mubr.bf16.mxu0 %v1587
      %8475 = vmatmul.mubr.bf16.gmra.mrb[0].mxu0 %v1579
      %v8476 = vpop.f32.mrb[0].mxu0
      %v8477 = vadd.f32 %v1555, %v8476
      %v8478 = vpop.f32.mrb[0].mxu0
      %v8479 = vadd.f32 %v1559, %v8478
      %v8480 = vpop.f32.mrb[0].mxu0
      %v8481 = vpop.f32.mrb[0].mxu0
      %8482 = vdwg.mxu0
      %8483 = vmatprep.subr.bf16.mxu0 %v5255
      %8484 = vmatpush1.bf16.msra.mxu0 %v5254
      %8485 = vmatprep.subr.bf16.mxu0 %v5261
      %8486 = vmatpush1.bf16.msra.mxu0 %v5260
      %8487 = vmatprep.subr.bf16.mxu0 %v5267
      %8488 = vmatpush1.bf16.msra.mxu0 %v5266
      %8489 = vmatprep.subr.bf16.mxu0 %v5273
      %8490 = vmatpush1.bf16.msra.mxu0 %v5272
      %8491 = vmatprep.subr.bf16.mxu0 %v5279
      %8492 = vmatpush1.bf16.msra.mxu0 %v5278
      %8493 = vmatprep.subr.bf16.mxu0 %v5285
      %8494 = vmatpush1.bf16.msra.mxu0 %v5284
      %8495 = vmatprep.subr.bf16.mxu0 %v5291
      %8496 = vmatpush1.bf16.msra.mxu0 %v5290
      %8497 = vmatprep.subr.bf16.mxu0 %v5297
      %8498 = vmatpush1.bf16.msra.mxu0 %v5296
      %8499 = vmatprep.subr.bf16.mxu0 %v5303
      %8500 = vmatpush1.bf16.msra.mxu0 %v5302
      %8501 = vmatprep.subr.bf16.mxu0 %v5309
      %8502 = vmatpush1.bf16.msra.mxu0 %v5308
      %8503 = vmatprep.subr.bf16.mxu0 %v5315
      %8504 = vmatpush1.bf16.msra.mxu0 %v5314
      %8505 = vmatprep.subr.bf16.mxu0 %v5321
      %8506 = vmatpush1.bf16.msra.mxu0 %v5320
      %8507 = vmatprep.subr.bf16.mxu0 %v5327
      %8508 = vmatpush1.bf16.msra.mxu0 %v5326
      %8509 = vmatprep.subr.bf16.mxu0 %v5333
      %8510 = vmatpush1.bf16.msra.mxu0 %v5332
      %8511 = vmatprep.subr.bf16.mxu0 %v5339
      %8512 = vmatpush1.bf16.msra.mxu0 %v5338
      %8513 = vmatprep.subr.bf16.mxu0 %v5345
      %8514 = vmatpush1.bf16.msra.mxu0 %v5344
      %8515 = vmatprep.mubr.bf16.mxu0 %v1588
      %8516 = vmatmul.mubr.bf16.gmra.mrb[0].mxu0 %v1586
      %v8517 = vpop.f32.mrb[0].mxu0
      %v8518 = vadd.f32 %v8477, %v8517
      %v8519 = vpop.f32.mrb[0].mxu0
      %v8520 = vadd.f32 %v8479, %v8519
      %v8521 = vpop.f32.mrb[0].mxu0
      %v8522 = vpop.f32.mrb[0].mxu0
      %8523 = vdwg.mxu0
      %8524 = vmatprep.subr.bf16.mxu0 %v5351
      %8525 = vmatpush1.bf16.msra.mxu0 %v5350
      %8526 = vmatprep.subr.bf16.mxu0 %v5357
      %8527 = vmatpush1.bf16.msra.mxu0 %v5356
      %8528 = vmatprep.subr.bf16.mxu0 %v5363
      %8529 = vmatpush1.bf16.msra.mxu0 %v5362
      %8530 = vmatprep.subr.bf16.mxu0 %v5369
      %8531 = vmatpush1.bf16.msra.mxu0 %v5368
      %8532 = vmatprep.subr.bf16.mxu0 %v5375
      %8533 = vmatpush1.bf16.msra.mxu0 %v5374
      %8534 = vmatprep.subr.bf16.mxu0 %v5381
      %8535 = vmatpush1.bf16.msra.mxu0 %v5380
      %8536 = vmatprep.subr.bf16.mxu0 %v5387
      %8537 = vmatpush1.bf16.msra.mxu0 %v5386
      %8538 = vmatprep.subr.bf16.mxu0 %v5393
      %8539 = vmatpush1.bf16.msra.mxu0 %v5392
      %8540 = vmatprep.subr.bf16.mxu0 %v5399
      %8541 = vmatpush1.bf16.msra.mxu0 %v5398
      %8542 = vmatprep.subr.bf16.mxu0 %v5405
      %8543 = vmatpush1.bf16.msra.mxu0 %v5404
      %8544 = vmatprep.subr.bf16.mxu0 %v5411
      %8545 = vmatpush1.bf16.msra.mxu0 %v5410
      %8546 = vmatprep.subr.bf16.mxu0 %v5417
      %8547 = vmatpush1.bf16.msra.mxu0 %v5416
      %8548 = vmatprep.subr.bf16.mxu0 %v5423
      %8549 = vmatpush1.bf16.msra.mxu0 %v5422
      %8550 = vmatprep.subr.bf16.mxu0 %v5429
      %8551 = vmatpush1.bf16.msra.mxu0 %v5428
      %8552 = vmatprep.subr.bf16.mxu0 %v5435
      %8553 = vmatpush1.bf16.msra.mxu0 %v5434
      %8554 = vmatprep.subr.bf16.mxu0 %v5441
      %8555 = vmatpush1.bf16.msra.mxu0 %v5440
      %8556 = vmatprep.mubr.bf16.mxu0 %v1604
      %8557 = vmatmul.mubr.bf16.gmra.mrb[0].mxu0 %v1596
      %v8558 = vpop.f32.mrb[0].mxu0
      %v8559 = vadd.f32 %v8518, %v8558
      %v8560 = vpop.f32.mrb[0].mxu0
      %v8561 = vadd.f32 %v8520, %v8560
      %v8562 = vpop.f32.mrb[0].mxu0
      %v8563 = vpop.f32.mrb[0].mxu0
      %8564 = vdwg.mxu0
      %8565 = vmatprep.subr.bf16.mxu0 %v5447
      %8566 = vmatpush1.bf16.msra.mxu0 %v5446
      %8567 = vmatprep.subr.bf16.mxu0 %v5453
      %8568 = vmatpush1.bf16.msra.mxu0 %v5452
      %8569 = vmatprep.subr.bf16.mxu0 %v5459
      %8570 = vmatpush1.bf16.msra.mxu0 %v5458
      %8571 = vmatprep.subr.bf16.mxu0 %v5465
      %8572 = vmatpush1.bf16.msra.mxu0 %v5464
      %8573 = vmatprep.subr.bf16.mxu0 %v5471
      %8574 = vmatpush1.bf16.msra.mxu0 %v5470
      %8575 = vmatprep.subr.bf16.mxu0 %v5477
      %8576 = vmatpush1.bf16.msra.mxu0 %v5476
      %8577 = vmatprep.subr.bf16.mxu0 %v5483
      %8578 = vmatpush1.bf16.msra.mxu0 %v5482
      %8579 = vmatprep.subr.bf16.mxu0 %v5489
      %8580 = vmatpush1.bf16.msra.mxu0 %v5488
      %8581 = vmatprep.subr.bf16.mxu0 %v5495
      %8582 = vmatpush1.bf16.msra.mxu0 %v5494
      %8583 = vmatprep.subr.bf16.mxu0 %v5501
      %8584 = vmatpush1.bf16.msra.mxu0 %v5500
      %8585 = vmatprep.subr.bf16.mxu0 %v5507
      %8586 = vmatpush1.bf16.msra.mxu0 %v5506
      %8587 = vmatprep.subr.bf16.mxu0 %v5513
      %8588 = vmatpush1.bf16.msra.mxu0 %v5512
      %8589 = vmatprep.subr.bf16.mxu0 %v5519
      %8590 = vmatpush1.bf16.msra.mxu0 %v5518
      %8591 = vmatprep.subr.bf16.mxu0 %v5525
      %8592 = vmatpush1.bf16.msra.mxu0 %v5524
      %8593 = vmatprep.subr.bf16.mxu0 %v5531
      %8594 = vmatpush1.bf16.msra.mxu0 %v5530
      %8595 = vmatprep.subr.bf16.mxu0 %v5537
      %8596 = vmatpush1.bf16.msra.mxu0 %v5536
      %8597 = vmatprep.mubr.bf16.mxu0 %v1605
      %8598 = vmatmul.mubr.bf16.gmra.mrb[0].mxu0 %v1603
      %v8599 = vpop.f32.mrb[0].mxu0
      %v8600 = vadd.f32 %v8559, %v8599
      %v8601 = vpop.f32.mrb[0].mxu0
      %v8602 = vadd.f32 %v8561, %v8601
      %v8603 = vpop.f32.mrb[0].mxu0
      %v8604 = vpop.f32.mrb[0].mxu0
      %8605 = vdwg.mxu0
      %8606 = vmatprep.subr.bf16.mxu0 %v5543
      %8607 = vmatpush1.bf16.msra.mxu0 %v5542
      %8608 = vmatprep.subr.bf16.mxu0 %v5549
      %8609 = vmatpush1.bf16.msra.mxu0 %v5548
      %8610 = vmatprep.subr.bf16.mxu0 %v5555
      %8611 = vmatpush1.bf16.msra.mxu0 %v5554
      %8612 = vmatprep.subr.bf16.mxu0 %v5561
      %8613 = vmatpush1.bf16.msra.mxu0 %v5560
      %8614 = vmatprep.subr.bf16.mxu0 %v5567
      %8615 = vmatpush1.bf16.msra.mxu0 %v5566
      %8616 = vmatprep.subr.bf16.mxu0 %v5573
      %8617 = vmatpush1.bf16.msra.mxu0 %v5572
      %8618 = vmatprep.subr.bf16.mxu0 %v5579
      %8619 = vmatpush1.bf16.msra.mxu0 %v5578
      %8620 = vmatprep.subr.bf16.mxu0 %v5585
      %8621 = vmatpush1.bf16.msra.mxu0 %v5584
      %8622 = vmatprep.subr.bf16.mxu0 %v5591
      %8623 = vmatpush1.bf16.msra.mxu0 %v5590
      %8624 = vmatprep.subr.bf16.mxu0 %v5597
      %8625 = vmatpush1.bf16.msra.mxu0 %v5596
      %8626 = vmatprep.subr.bf16.mxu0 %v5603
      %8627 = vmatpush1.bf16.msra.mxu0 %v5602
      %8628 = vmatprep.subr.bf16.mxu0 %v5609
      %8629 = vmatpush1.bf16.msra.mxu0 %v5608
      %8630 = vmatprep.subr.bf16.mxu0 %v5615
      %8631 = vmatpush1.bf16.msra.mxu0 %v5614
      %8632 = vmatprep.subr.bf16.mxu0 %v5621
      %8633 = vmatpush1.bf16.msra.mxu0 %v5620
      %8634 = vmatprep.subr.bf16.mxu0 %v5627
      %8635 = vmatpush1.bf16.msra.mxu0 %v5626
      %8636 = vmatprep.subr.bf16.mxu0 %v5633
      %8637 = vmatpush1.bf16.msra.mxu0 %v5632
      %8638 = vmatprep.mubr.bf16.mxu0 %v1621
      %8639 = vmatmul.mubr.bf16.gmra.mrb[0].mxu0 %v1613
      %v8640 = vpop.f32.mrb[0].mxu0
      %v8641 = vadd.f32 %v8600, %v8640
      %v8642 = vpop.f32.mrb[0].mxu0
      %v8643 = vadd.f32 %v8602, %v8642
      %v8644 = vpop.f32.mrb[0].mxu0
      %v8645 = vpop.f32.mrb[0].mxu0
      %8646 = vdwg.mxu0
      %8647 = vmatprep.subr.bf16.mxu0 %v5639
      %8648 = vmatpush1.bf16.msra.mxu0 %v5638
      %8649 = vmatprep.subr.bf16.mxu0 %v5645
      %8650 = vmatpush1.bf16.msra.mxu0 %v5644
      %8651 = vmatprep.subr.bf16.mxu0 %v5651
      %8652 = vmatpush1.bf16.msra.mxu0 %v5650
      %8653 = vmatprep.subr.bf16.mxu0 %v5657
      %8654 = vmatpush1.bf16.msra.mxu0 %v5656
      %8655 = vmatprep.subr.bf16.mxu0 %v5663
      %8656 = vmatpush1.bf16.msra.mxu0 %v5662
      %8657 = vmatprep.subr.bf16.mxu0 %v5669
      %8658 = vmatpush1.bf16.msra.mxu0 %v5668
      %8659 = vmatprep.subr.bf16.mxu0 %v5675
      %8660 = vmatpush1.bf16.msra.mxu0 %v5674
      %8661 = vmatprep.subr.bf16.mxu0 %v5681
      %8662 = vmatpush1.bf16.msra.mxu0 %v5680
      %8663 = vmatprep.subr.bf16.mxu0 %v5687
      %8664 = vmatpush1.bf16.msra.mxu0 %v5686
      %8665 = vmatprep.subr.bf16.mxu0 %v5693
      %8666 = vmatpush1.bf16.msra.mxu0 %v5692
      %8667 = vmatprep.subr.bf16.mxu0 %v5699
      %8668 = vmatpush1.bf16.msra.mxu0 %v5698
      %8669 = vmatprep.subr.bf16.mxu0 %v5705
      %8670 = vmatpush1.bf16.msra.mxu0 %v5704
      %8671 = vmatprep.subr.bf16.mxu0 %v5711
      %8672 = vmatpush1.bf16.msra.mxu0 %v5710
      %8673 = vmatprep.subr.bf16.mxu0 %v5717
      %8674 = vmatpush1.bf16.msra.mxu0 %v5716
      %8675 = vmatprep.subr.bf16.mxu0 %v5723
      %8676 = vmatpush1.bf16.msra.mxu0 %v5722
      %8677 = vmatprep.subr.bf16.mxu0 %v5729
      %8678 = vmatpush1.bf16.msra.mxu0 %v5728
      %8679 = vmatprep.mubr.bf16.mxu0 %v1622
      %8680 = vmatmul.mubr.bf16.gmra.mrb[0].mxu0 %v1620
      %v8681 = vpop.f32.mrb[0].mxu0
      %v8682 = vadd.f32 %v8641, %v8681
      %v8683 = vpop.f32.mrb[0].mxu0
      %v8684 = vadd.f32 %v8643, %v8683
      %v8685 = vpop.f32.mrb[0].mxu0
      %v8686 = vpop.f32.mrb[0].mxu0
      %8687 = vdwg.mxu0
      %8688 = vmatprep.subr.bf16.mxu0 %v5735
      %8689 = vmatpush1.bf16.msra.mxu0 %v5734
      %8690 = vmatprep.subr.bf16.mxu0 %v5741
      %8691 = vmatpush1.bf16.msra.mxu0 %v5740
      %8692 = vmatprep.subr.bf16.mxu0 %v5747
      %8693 = vmatpush1.bf16.msra.mxu0 %v5746
      %8694 = vmatprep.subr.bf16.mxu0 %v5753
      %8695 = vmatpush1.bf16.msra.mxu0 %v5752
      %8696 = vmatprep.subr.bf16.mxu0 %v5759
      %8697 = vmatpush1.bf16.msra.mxu0 %v5758
      %8698 = vmatprep.subr.bf16.mxu0 %v5765
      %8699 = vmatpush1.bf16.msra.mxu0 %v5764
      %8700 = vmatprep.subr.bf16.mxu0 %v5771
      %8701 = vmatpush1.bf16.msra.mxu0 %v5770
      %8702 = vmatprep.subr.bf16.mxu0 %v5777
      %8703 = vmatpush1.bf16.msra.mxu0 %v5776
      %8704 = vmatprep.subr.bf16.mxu0 %v5783
      %8705 = vmatpush1.bf16.msra.mxu0 %v5782
      %8706 = vmatprep.subr.bf16.mxu0 %v5789
      %8707 = vmatpush1.bf16.msra.mxu0 %v5788
      %8708 = vmatprep.subr.bf16.mxu0 %v5795
      %8709 = vmatpush1.bf16.msra.mxu0 %v5794
      %8710 = vmatprep.subr.bf16.mxu0 %v5801
      %8711 = vmatpush1.bf16.msra.mxu0 %v5800
      %8712 = vmatprep.subr.bf16.mxu0 %v5807
      %8713 = vmatpush1.bf16.msra.mxu0 %v5806
      %8714 = vmatprep.subr.bf16.mxu0 %v5813
      %8715 = vmatpush1.bf16.msra.mxu0 %v5812
      %8716 = vmatprep.subr.bf16.mxu0 %v5819
      %8717 = vmatpush1.bf16.msra.mxu0 %v5818
      %8718 = vmatprep.subr.bf16.mxu0 %v5825
      %8719 = vmatpush1.bf16.msra.mxu0 %v5824
      %8720 = vmatprep.mubr.bf16.mxu0 %v1638
      %8721 = vmatmul.mubr.bf16.gmra.mrb[0].mxu0 %v1630
      %v8722 = vpop.f32.mrb[0].mxu0
      %v8723 = vadd.f32 %v8682, %v8722
      %v8724 = vpop.f32.mrb[0].mxu0
      %v8725 = vadd.f32 %v8684, %v8724
      %v8726 = vpop.f32.mrb[0].mxu0
      %v8727 = vpop.f32.mrb[0].mxu0
      %8728 = vdwg.mxu0
      %8729 = vmatprep.subr.bf16.mxu0 %v5831
      %8730 = vmatpush1.bf16.msra.mxu0 %v5830
      %8731 = vmatprep.subr.bf16.mxu0 %v5837
      %8732 = vmatpush1.bf16.msra.mxu0 %v5836
      %8733 = vmatprep.subr.bf16.mxu0 %v5843
      %8734 = vmatpush1.bf16.msra.mxu0 %v5842
      %8735 = vmatprep.subr.bf16.mxu0 %v5849
      %8736 = vmatpush1.bf16.msra.mxu0 %v5848
      %8737 = vmatprep.subr.bf16.mxu0 %v5855
      %8738 = vmatpush1.bf16.msra.mxu0 %v5854
      %8739 = vmatprep.subr.bf16.mxu0 %v5861
      %8740 = vmatpush1.bf16.msra.mxu0 %v5860
      %8741 = vmatprep.subr.bf16.mxu0 %v5867
      %8742 = vmatpush1.bf16.msra.mxu0 %v5866
      %8743 = vmatprep.subr.bf16.mxu0 %v5873
      %8744 = vmatpush1.bf16.msra.mxu0 %v5872
      %8745 = vmatprep.subr.bf16.mxu0 %v5879
      %8746 = vmatpush1.bf16.msra.mxu0 %v5878
      %8747 = vmatprep.subr.bf16.mxu0 %v5885
      %8748 = vmatpush1.bf16.msra.mxu0 %v5884
      %8749 = vmatprep.subr.bf16.mxu0 %v5891
      %8750 = vmatpush1.bf16.msra.mxu0 %v5890
      %8751 = vmatprep.subr.bf16.mxu0 %v5897
      %8752 = vmatpush1.bf16.msra.mxu0 %v5896
      %8753 = vmatprep.subr.bf16.mxu0 %v5903
      %8754 = vmatpush1.bf16.msra.mxu0 %v5902
      %8755 = vmatprep.subr.bf16.mxu0 %v5909
      %8756 = vmatpush1.bf16.msra.mxu0 %v5908
      %8757 = vmatprep.subr.bf16.mxu0 %v5915
      %8758 = vmatpush1.bf16.msra.mxu0 %v5914
      %8759 = vmatprep.subr.bf16.mxu0 %v5921
      %8760 = vmatpush1.bf16.msra.mxu0 %v5920
      %8761 = vmatprep.mubr.bf16.mxu0 %v1639
      %8762 = vmatmul.mubr.bf16.gmra.mrb[0].mxu0 %v1637
      %v8763 = vpop.f32.mrb[0].mxu0
      %v8764 = vadd.f32 %v8723, %v8763
      %v8765 = vpop.f32.mrb[0].mxu0
      %v8766 = vadd.f32 %v8725, %v8765
      %v8767 = vpop.f32.mrb[0].mxu0
      %v8768 = vpop.f32.mrb[0].mxu0
      %8769 = vdwg.mxu0
      %8770 = vmatprep.subr.bf16.mxu0 %v5927
      %8771 = vmatpush1.bf16.msra.mxu0 %v5926
      %8772 = vmatprep.subr.bf16.mxu0 %v5933
      %8773 = vmatpush1.bf16.msra.mxu0 %v5932
      %8774 = vmatprep.subr.bf16.mxu0 %v5939
      %8775 = vmatpush1.bf16.msra.mxu0 %v5938
      %8776 = vmatprep.subr.bf16.mxu0 %v5945
      %8777 = vmatpush1.bf16.msra.mxu0 %v5944
      %8778 = vmatprep.subr.bf16.mxu0 %v5951
      %8779 = vmatpush1.bf16.msra.mxu0 %v5950
      %8780 = vmatprep.subr.bf16.mxu0 %v5957
      %8781 = vmatpush1.bf16.msra.mxu0 %v5956
      %8782 = vmatprep.subr.bf16.mxu0 %v5963
      %8783 = vmatpush1.bf16.msra.mxu0 %v5962
      %8784 = vmatprep.subr.bf16.mxu0 %v5969
      %8785 = vmatpush1.bf16.msra.mxu0 %v5968
      %8786 = vmatprep.subr.bf16.mxu0 %v5975
      %8787 = vmatpush1.bf16.msra.mxu0 %v5974
      %8788 = vmatprep.subr.bf16.mxu0 %v5981
      %8789 = vmatpush1.bf16.msra.mxu0 %v5980
      %8790 = vmatprep.subr.bf16.mxu0 %v5987
      %8791 = vmatpush1.bf16.msra.mxu0 %v5986
      %8792 = vmatprep.subr.bf16.mxu0 %v5993
      %8793 = vmatpush1.bf16.msra.mxu0 %v5992
      %8794 = vmatprep.subr.bf16.mxu0 %v5999
      %8795 = vmatpush1.bf16.msra.mxu0 %v5998
      %8796 = vmatprep.subr.bf16.mxu0 %v6005
      %8797 = vmatpush1.bf16.msra.mxu0 %v6004
      %8798 = vmatprep.subr.bf16.mxu0 %v6011
      %8799 = vmatpush1.bf16.msra.mxu0 %v6010
      %8800 = vmatprep.subr.bf16.mxu0 %v6017
      %8801 = vmatpush1.bf16.msra.mxu0 %v6016
      %8802 = vmatprep.mubr.bf16.mxu0 %v1655
      %8803 = vmatmul.mubr.bf16.gmra.mrb[0].mxu0 %v1647
      %v8804 = vpop.f32.mrb[0].mxu0
      %v8805 = vadd.f32 %v8764, %v8804
      %v8806 = vpop.f32.mrb[0].mxu0
      %v8807 = vadd.f32 %v8766, %v8806
      %v8808 = vpop.f32.mrb[0].mxu0
      %v8809 = vpop.f32.mrb[0].mxu0
      %8810 = vdwg.mxu0
      %8811 = vmatprep.subr.bf16.mxu0 %v6023
      %8812 = vmatpush1.bf16.msra.mxu0 %v6022
      %8813 = vmatprep.subr.bf16.mxu0 %v6029
      %8814 = vmatpush1.bf16.msra.mxu0 %v6028
      %8815 = vmatprep.subr.bf16.mxu0 %v6035
      %8816 = vmatpush1.bf16.msra.mxu0 %v6034
      %8817 = vmatprep.subr.bf16.mxu0 %v6041
      %8818 = vmatpush1.bf16.msra.mxu0 %v6040
      %8819 = vmatprep.subr.bf16.mxu0 %v6047
      %8820 = vmatpush1.bf16.msra.mxu0 %v6046
      %8821 = vmatprep.subr.bf16.mxu0 %v6053
      %8822 = vmatpush1.bf16.msra.mxu0 %v6052
      %8823 = vmatprep.subr.bf16.mxu0 %v6059
      %8824 = vmatpush1.bf16.msra.mxu0 %v6058
      %8825 = vmatprep.subr.bf16.mxu0 %v6065
      %8826 = vmatpush1.bf16.msra.mxu0 %v6064
      %8827 = vmatprep.subr.bf16.mxu0 %v6071
      %8828 = vmatpush1.bf16.msra.mxu0 %v6070
      %8829 = vmatprep.subr.bf16.mxu0 %v6077
      %8830 = vmatpush1.bf16.msra.mxu0 %v6076
      %8831 = vmatprep.subr.bf16.mxu0 %v6083
      %8832 = vmatpush1.bf16.msra.mxu0 %v6082
      %8833 = vmatprep.subr.bf16.mxu0 %v6089
      %8834 = vmatpush1.bf16.msra.mxu0 %v6088
      %8835 = vmatprep.subr.bf16.mxu0 %v6095
      %8836 = vmatpush1.bf16.msra.mxu0 %v6094
      %8837 = vmatprep.subr.bf16.mxu0 %v6101
      %8838 = vmatpush1.bf16.msra.mxu0 %v6100
      %8839 = vmatprep.subr.bf16.mxu0 %v6107
      %8840 = vmatpush1.bf16.msra.mxu0 %v6106
      %8841 = vmatprep.subr.bf16.mxu0 %v6113
      %8842 = vmatpush1.bf16.msra.mxu0 %v6112
      %8843 = vmatprep.mubr.bf16.mxu0 %v1656
      %8844 = vmatmul.mubr.bf16.gmra.mrb[0].mxu0 %v1654
      %v8845 = vpop.f32.mrb[0].mxu0
      %v8846 = vadd.f32 %v8805, %v8845
      %v8847 = vpop.f32.mrb[0].mxu0
      %v8848 = vadd.f32 %v8807, %v8847
      %v8849 = vpop.f32.mrb[0].mxu0
      %v8850 = vpop.f32.mrb[0].mxu0
      %8851 = vdwg.mxu0
      %8852 = vmatprep.subr.bf16.mxu0 %v6119
      %8853 = vmatpush1.bf16.msra.mxu0 %v6118
      %8854 = vmatprep.subr.bf16.mxu0 %v6125
      %8855 = vmatpush1.bf16.msra.mxu0 %v6124
      %8856 = vmatprep.subr.bf16.mxu0 %v6131
      %8857 = vmatpush1.bf16.msra.mxu0 %v6130
      %8858 = vmatprep.subr.bf16.mxu0 %v6137
      %8859 = vmatpush1.bf16.msra.mxu0 %v6136
      %8860 = vmatprep.subr.bf16.mxu0 %v6143
      %8861 = vmatpush1.bf16.msra.mxu0 %v6142
      %8862 = vmatprep.subr.bf16.mxu0 %v6149
      %8863 = vmatpush1.bf16.msra.mxu0 %v6148
      %8864 = vmatprep.subr.bf16.mxu0 %v6155
      %8865 = vmatpush1.bf16.msra.mxu0 %v6154
      %8866 = vmatprep.subr.bf16.mxu0 %v6161
      %8867 = vmatpush1.bf16.msra.mxu0 %v6160
      %8868 = vmatprep.subr.bf16.mxu0 %v6167
      %8869 = vmatpush1.bf16.msra.mxu0 %v6166
      %8870 = vmatprep.subr.bf16.mxu0 %v6173
      %8871 = vmatpush1.bf16.msra.mxu0 %v6172
      %8872 = vmatprep.subr.bf16.mxu0 %v6179
      %8873 = vmatpush1.bf16.msra.mxu0 %v6178
      %8874 = vmatprep.subr.bf16.mxu0 %v6185
      %8875 = vmatpush1.bf16.msra.mxu0 %v6184
      %8876 = vmatprep.subr.bf16.mxu0 %v6191
      %8877 = vmatpush1.bf16.msra.mxu0 %v6190
      %8878 = vmatprep.subr.bf16.mxu0 %v6197
      %8879 = vmatpush1.bf16.msra.mxu0 %v6196
      %8880 = vmatprep.subr.bf16.mxu0 %v6203
      %8881 = vmatpush1.bf16.msra.mxu0 %v6202
      %8882 = vmatprep.subr.bf16.mxu0 %v6209
      %8883 = vmatpush1.bf16.msra.mxu0 %v6208
      %8884 = vmatprep.mubr.bf16.mxu0 %v1672
      %8885 = vmatmul.mubr.bf16.gmra.mrb[0].mxu0 %v1664
      %v8886 = vpop.f32.mrb[0].mxu0
      %v8887 = vadd.f32 %v8846, %v8886
      %v8888 = vpop.f32.mrb[0].mxu0
      %v8889 = vadd.f32 %v8848, %v8888
      %v8890 = vpop.f32.mrb[0].mxu0
      %v8891 = vpop.f32.mrb[0].mxu0
      %8892 = vdwg.mxu0
      %8893 = vmatprep.subr.bf16.mxu0 %v6215
      %8894 = vmatpush1.bf16.msra.mxu0 %v6214
      %8895 = vmatprep.subr.bf16.mxu0 %v6221
      %8896 = vmatpush1.bf16.msra.mxu0 %v6220
      %8897 = vmatprep.subr.bf16.mxu0 %v6227
      %8898 = vmatpush1.bf16.msra.mxu0 %v6226
      %8899 = vmatprep.subr.bf16.mxu0 %v6233
      %8900 = vmatpush1.bf16.msra.mxu0 %v6232
      %8901 = vmatprep.subr.bf16.mxu0 %v6239
      %8902 = vmatpush1.bf16.msra.mxu0 %v6238
      %8903 = vmatprep.subr.bf16.mxu0 %v6245
      %8904 = vmatpush1.bf16.msra.mxu0 %v6244
      %8905 = vmatprep.subr.bf16.mxu0 %v6251
      %8906 = vmatpush1.bf16.msra.mxu0 %v6250
      %8907 = vmatprep.subr.bf16.mxu0 %v6257
      %8908 = vmatpush1.bf16.msra.mxu0 %v6256
      %8909 = vmatprep.subr.bf16.mxu0 %v6263
      %8910 = vmatpush1.bf16.msra.mxu0 %v6262
      %8911 = vmatprep.subr.bf16.mxu0 %v6269
      %8912 = vmatpush1.bf16.msra.mxu0 %v6268
      %8913 = vmatprep.subr.bf16.mxu0 %v6275
      %8914 = vmatpush1.bf16.msra.mxu0 %v6274
      %8915 = vmatprep.subr.bf16.mxu0 %v6281
      %8916 = vmatpush1.bf16.msra.mxu0 %v6280
      %8917 = vmatprep.subr.bf16.mxu0 %v6287
      %8918 = vmatpush1.bf16.msra.mxu0 %v6286
      %8919 = vmatprep.subr.bf16.mxu0 %v6293
      %8920 = vmatpush1.bf16.msra.mxu0 %v6292
      %8921 = vmatprep.subr.bf16.mxu0 %v6299
      %8922 = vmatpush1.bf16.msra.mxu0 %v6298
      %8923 = vmatprep.subr.bf16.mxu0 %v6305
      %8924 = vmatpush1.bf16.msra.mxu0 %v6304
      %8925 = vmatprep.mubr.bf16.mxu0 %v1673
      %8926 = vmatmul.mubr.bf16.gmra.mrb[0].mxu0 %v1671
      %v8927 = vpop.f32.mrb[0].mxu0
      %v8928 = vadd.f32 %v8887, %v8927
      %v8929 = vpop.f32.mrb[0].mxu0
      %v8930 = vadd.f32 %v8889, %v8929
      %v8931 = vpop.f32.mrb[0].mxu0
      %v8932 = vpop.f32.mrb[0].mxu0
      %8933 = vdwg.mxu0
      %v8934 = vld [vmem:[%s3] sm:$0xff]
      %v8935 = vld [vmem:[%s3 + $0x8] sm:$0xff]
      %v8936 = vld [vmem:[%s3 + $0x10] sm:$0xff]
      %v8940 = vcombine.high %v8934, %v8934
      %v8941 = vcombine.high %v8935, %v8935
      %v8942 = vcombine.high %v8936, %v8936
      %v8946 = vadd.f32 %v7944, %v8934
      %v8947 = vadd.f32 %v7946, %v8940
      %v8948 = vadd.f32 %v8436, %v8935
      %v8949 = vadd.f32 %v8438, %v8941
      %v8950 = vadd.f32 %v8928, %v8936
      %v8951 = vadd.f32 %v8930, %v8942
      %v8952 = vld [vmem:[%s362] sm:$0x3f]
      %v8954 = vlaneseq
      %v8955 = vshrl.u32 %v8954, 7
      %v8956 = vsub.s32 0, %v8955
      %v8957 = vrot.slane %v8952, %v8956
      %v8958 = vlaneseq
      %v8959 = vshrl.u32 %v8958, 7
      %v8960 = vsub.s32 1, %v8959
      %v8961 = vrot.slane %v8952, %v8960
      %v8962 = vlaneseq
      %v8963 = vshrl.u32 %v8962, 7
      %v8964 = vsub.s32 2, %v8963
      %v8965 = vrot.slane %v8952, %v8964
      %v8966 = vlaneseq
      %v8967 = vshrl.u32 %v8966, 7
      %v8968 = vsub.s32 3, %v8967
      %v8969 = vrot.slane %v8952, %v8968
      %v8970 = vlaneseq
      %v8971 = vshrl.u32 %v8970, 7
      %v8972 = vsub.s32 4, %v8971
      %v8973 = vrot.slane %v8952, %v8972
      %v8974 = vlaneseq
      %v8975 = vshrl.u32 %v8974, 7
      %v8976 = vsub.s32 5, %v8975
      %v8977 = vrot.slane %v8952, %v8976
      %v8984 = vadd.f32 %v8946, %v8957
      %v8985 = vadd.f32 %v8947, %v8961
      %v8986 = vadd.f32 %v8948, %v8965
      %v8987 = vadd.f32 %v8949, %v8969
      %v8988 = vadd.f32 %v8950, %v8973
      %v8989 = vadd.f32 %v8951, %v8977
      %vm8990 = vcmask 1043456
      %v8991 = vsel %vm8990, %v8984, 0.0
      %v8992 = vsel %vm8990, %v8985, 0.0
      %v8993 = vadd.f32 %v8991, %v8992
      %v8994 = vsel %vm8990, %v8986, 0.0
      %v8995 = vadd.f32 %v8993, %v8994
      %v8996 = vsel %vm8990, %v8987, 0.0
      %v8997 = vadd.f32 %v8995, %v8996
      %v8998 = vsel %vm8990, %v8988, 0.0
      %v8999 = vadd.f32 %v8997, %v8998
      %v9000 = vsel %vm8990, %v8989, 0.0
      %v9001 = vadd.f32 %v8999, %v9000
      %9002 = vadd.xlane.f32.xlu0 %v9001
      %v9003 = vpop.xlane.xlu0 %9002
      %v9004 = vrcp.pop 768.0
      %v9005 = vmul.f32 %v9003, %v9004
      %v9006 = vsub.f32 %v8984, %v9005
      %v9007 = vsub.f32 %v8985, %v9005
      %v9008 = vsub.f32 %v8986, %v9005
      %v9009 = vsub.f32 %v8987, %v9005
      %v9010 = vsub.f32 %v8988, %v9005
      %v9011 = vsub.f32 %v8989, %v9005
      %v9012 = vmul.f32 %v9006, %v9006
      %v9013 = vmul.f32 %v9007, %v9007
      %v9014 = vmul.f32 %v9008, %v9008
      %v9015 = vmul.f32 %v9009, %v9009
      %v9016 = vmul.f32 %v9010, %v9010
      %v9017 = vmul.f32 %v9011, %v9011
      %v9018 = vsel %vm8990, %v9012, 0.0
      %v9019 = vsel %vm8990, %v9013, 0.0
      %v9020 = vadd.f32 %v9018, %v9019
      %v9021 = vsel %vm8990, %v9014, 0.0
      %v9022 = vadd.f32 %v9020, %v9021
      %v9023 = vsel %vm8990, %v9015, 0.0
      %v9024 = vadd.f32 %v9022, %v9023
      %v9025 = vsel %vm8990, %v9016, 0.0
      %v9026 = vadd.f32 %v9024, %v9025
      %v9027 = vsel %vm8990, %v9017, 0.0
      %v9028 = vadd.f32 %v9026, %v9027
      %9029 = vadd.xlane.f32.xlu0 %v9028
      %v9030 = vpop.xlane.xlu0 %9029
      %v9031 = vmul.f32 %v9030, %v9004
      %v9032 = vadd.f32 %v9031, 1e-05
      %v9033 = vrsqrt.pop %v9032
      %v9034 = vmul.f32 %v9006, %v9033
      %v9035 = vmul.f32 %v9007, %v9033
      %v9036 = vmul.f32 %v9008, %v9033
      %v9037 = vmul.f32 %v9009, %v9033
      %v9038 = vmul.f32 %v9010, %v9033
      %v9039 = vmul.f32 %v9011, %v9033
      %v9040 = vld [vmem:[%s6] sm:$0x3f]
      %v9042 = vlaneseq
      %v9043 = vshrl.u32 %v9042, 7
      %v9044 = vsub.s32 0, %v9043
      %v9045 = vrot.slane %v9040, %v9044
      %v9046 = vlaneseq
      %v9047 = vshrl.u32 %v9046, 7
      %v9048 = vsub.s32 1, %v9047
      %v9049 = vrot.slane %v9040, %v9048
      %v9050 = vlaneseq
      %v9051 = vshrl.u32 %v9050, 7
      %v9052 = vsub.s32 2, %v9051
      %v9053 = vrot.slane %v9040, %v9052
      %v9054 = vlaneseq
      %v9055 = vshrl.u32 %v9054, 7
      %v9056 = vsub.s32 3, %v9055
      %v9057 = vrot.slane %v9040, %v9056
      %v9058 = vlaneseq
      %v9059 = vshrl.u32 %v9058, 7
      %v9060 = vsub.s32 4, %v9059
      %v9061 = vrot.slane %v9040, %v9060
      %v9062 = vlaneseq
      %v9063 = vshrl.u32 %v9062, 7
      %v9064 = vsub.s32 5, %v9063
      %v9065 = vrot.slane %v9040, %v9064
      %v9072 = vmul.f32 %v9034, %v9045
      %v9073 = vmul.f32 %v9035, %v9049
      %v9074 = vmul.f32 %v9036, %v9053
      %v9075 = vmul.f32 %v9037, %v9057
      %v9076 = vmul.f32 %v9038, %v9061
      %v9077 = vmul.f32 %v9039, %v9065
      %v9078 = vld [vmem:[%s7] sm:$0x3f]
      %v9080 = vlaneseq
      %v9081 = vshrl.u32 %v9080, 7
      %v9082 = vsub.s32 0, %v9081
      %v9083 = vrot.slane %v9078, %v9082
      %v9084 = vlaneseq
      %v9085 = vshrl.u32 %v9084, 7
      %v9086 = vsub.s32 1, %v9085
      %v9087 = vrot.slane %v9078, %v9086
      %v9088 = vlaneseq
      %v9089 = vshrl.u32 %v9088, 7
      %v9090 = vsub.s32 2, %v9089
      %v9091 = vrot.slane %v9078, %v9090
      %v9092 = vlaneseq
      %v9093 = vshrl.u32 %v9092, 7
      %v9094 = vsub.s32 3, %v9093
      %v9095 = vrot.slane %v9078, %v9094
      %v9096 = vlaneseq
      %v9097 = vshrl.u32 %v9096, 7
      %v9098 = vsub.s32 4, %v9097
      %v9099 = vrot.slane %v9078, %v9098
      %v9100 = vlaneseq
      %v9101 = vshrl.u32 %v9100, 7
      %v9102 = vsub.s32 5, %v9101
      %v9103 = vrot.slane %v9078, %v9102
      %v9110 = vadd.f32 %v9072, %v9083
      %v9111 = vadd.f32 %v9073, %v9087
      %v9112 = vadd.f32 %v9074, %v9091
      %v9113 = vadd.f32 %v9075, %v9095
      %v9114 = vadd.f32 %v9076, %v9099
      %v9115 = vadd.f32 %v9077, %v9103
      %v9116 = vld [vmem:[%s366] sm:$0x3f]
      %v9117 = vlaneseq
      %vm9118 = vcmp.ge.s32.totalorder %v9117, 0
      %vm9119 = vcmp.lt.s32.totalorder %v9117, 768
      %vm9120 = vmand %vm9118, %vm9119
      %9121 = vst.msk [vmem:[%s373] ss:$8 sm:$0xf] %vm9120, %v9116
      %9122 = vst.msk [vmem:[%s373] ss:$8 sm:$0x30] %vm9120, %v9116
      %v9129 = vrot.slane %v9110, 7
      %v9130 = vrot.slane %v9111, 7
      %v9131 = vrot.slane %v9112, 7
      %v9132 = vrot.slane %v9113, 7
      %v9133 = vrot.slane %v9114, 7
      %v9134 = vrot.slane %v9115, 7
      %9141 = vst [vmem:[%s373] sm:$0x1e] %v9129
      %9142 = vst [vmem:[%s373 + $0x8] sm:$0x1e] %v9130
      %9143 = vst [vmem:[%s373 + $0x10] sm:$0x1e] %v9131
      %9144 = vst [vmem:[%s373 + $0x18] sm:$0x1e] %v9132
      %9145 = vst [vmem:[%s373 + $0x20] sm:$0x1e] %v9133
      %9146 = vst [vmem:[%s373 + $0x28] sm:$0x1e] %v9134
      %s9147 = smul.u32 %s23, 2
      %s9148 = sadd.s32 %s9147, %s24
      %p9149 = scmp.lt.s32.totalorder %s9148, 3
      %s9150 = scalar_select %p9149, %s9148, 3
      %s9151 = smul.addr %s9150, 6
      %s9152 = smul.addr %s9151, 8
      %s9153 = scalar_lea.vmem %s8, %s9152
      // Predicated region
      $region53: #{enc_img_forward.1} parent=51 // pred_check
        %p9154 = pneg %p240
      $region54: #{enc_img_forward.1} parent=51 // pred_check_branch
        %9156 = sbr.rel (%p9154) target = $region56
      $region55: #{enc_img_forward.1} parent=51 // pred_region
        %s9157 = smul.u32 %s23, 2
        %s9158 = sadd.s32 %s9157, %s24
      $region56: #{enc_img_forward.1} parent=51 // pred_fallthru
        _
    $region52: #{enc_img_forward.1} parent=5 // pred_fallthru
      _
    %p9159 = scmp.le.s32.totalorder 2, %s14
    // Predicated region
    $region57: #{enc_img_forward.1} parent=5 // pred_check
      %p9160 = pneg %p9159
    $region58: #{enc_img_forward.1} parent=5 // pred_check_branch
      %9162 = sbr.rel (%p9160) target = $region60
    $region59: #{enc_img_forward.1} parent=5 // pred_region
      %s9163 = ssub.s32 %s14, 2
      // Predicated region
      $region61: #{enc_img_forward.1} parent=59 // pred_check
        %p9164 = pneg %p246
      $region62: #{enc_img_forward.1} parent=59 // pred_check_branch
        %9166 = sbr.rel (%p9164) target = $region64
      $region63: #{enc_img_forward.1} parent=59 // pred_region
        %s9167 = smul.u32 %s25, 2
        %s9168 = sadd.s32 %s9167, %s26
        %p9169 = scmp.lt.s32.totalorder %s9168, 3
        %s9170 = scalar_select %p9169, %s9168, 3
        %s9171 = smul.addr %s9170, 6
        %s9172 = smul.addr %s9171, 8
        %s9173 = scalar_lea.vmem %s8, %s9172
      $region64: #{enc_img_forward.1} parent=59 // pred_fallthru
        _
    $region60: #{enc_img_forward.1} parent=5 // pred_fallthru
      _
  $region6: #{enc_img_forward.1} parent=0 // loop_footer
    %s18 = sadd.s32 1, %s14
  $region7: #{enc_img_forward.1} parent=0 // loop_footer_branch
    %13 = sbr.rel target = $region3
  $region8: #{enc_img_forward.1} parent=0 // loop_exit
    _

</llo_original>
